<compile_context>
chip_gen: v7x
topology: tpu7x:2x2x1
jax: 0.10.0
libtpu: 0.0.40
codegen_flags: <defaults>
</compile_context>

<pallas_src>
import functools
import math

import jax
import jax.numpy as jnp
from jax.experimental import pallas as pl
from jax.experimental.pallas import tpu as pltpu

EPS = 1e-5      # nn.BatchNorm2d default
LANE = 128


# ---------------------------------------------------------------------------
# small static helpers (trace-time only)
# ---------------------------------------------------------------------------
def _round_up(x, m):
    return (x + m - 1) // m * m


def _pick_rows(total, cap, multiple):
    """Largest divisor of `total` that is <= cap and a multiple of `multiple`;
    falls back to `total` (full-dim blocks are always legal)."""
    cap = max(1, min(cap, total))
    for d in range(cap, 0, -1):
        if total % d == 0 and d % multiple == 0:
            return d
    return total


def _pick_image_rows(nh, w):
    """Number of image rows per deconv grid step (block rows = tw * w)."""
    mult = 8 // math.gcd(max(w, 1), 8)
    tw = _pick_rows(nh, max(1, 256 // max(w, 1)), mult)
    if (tw * w) % 8 != 0 and tw != nh:
        tw = nh                      # full first-dim block is always legal
    return tw


# ---------------------------------------------------------------------------
# Pallas kernels
# ---------------------------------------------------------------------------
def _conv3x3_row_kernel(x0_ref, x1_ref, x2_ref, w_ref, o_ref, s_ref, q_ref,
                        *, width):
    """One output row of a 3x3 'same' conv; also emits BN partial statistics.

    x{0,1,2}_ref: (1, 1, W+2, Ci_p) bf16 -- the three kh-shifted padded rows.
    w_ref:        (3, 3, Ci_p, Co_p)  bf16
    o_ref:        (1, 1, W, Co_p)     bf16
    s_ref/q_ref:  (1, 1, 1, Co_p)     f32  (per-row sum / sum-of-squares)
    """
    rows = (x0_ref[0, 0], x1_ref[0, 0], x2_ref[0, 0])        # (W+2, Ci_p)
    acc = jnp.zeros((width, w_ref.shape[-1]), jnp.float32)
    for kh in range(3):
        row = rows[kh]
        for kw in range(3):
            acc += jnp.dot(row[kw:kw + width], w_ref[kh, kw],
                           preferred_element_type=jnp.float32)
    o_ref[0, 0] = acc.astype(o_ref.dtype)
    s_ref[0, 0] = jnp.sum(acc, axis=0, keepdims=True)
    q_ref[0, 0] = jnp.sum(acc * acc, axis=0, keepdims=True)


def _deconv_rows_kernel(x_ref, w_ref, o_ref, *, tw, width):
    """ConvTranspose2d(k=2, s=2, bias=False) on `tw` image rows.

    x_ref: (tw*W, Ci_p) bf16      w_ref: (2, Ci_p, 2*Co_p) bf16
    o_ref: (tw, 2, W, 2*Co_p) bf16  -- (row, kh, w, kw*Co_p + c)
    """
    xb = x_ref[...]
    for kh in range(2):
        y = jnp.dot(xb, w_ref[kh], preferred_element_type=jnp.float32)
        for t in range(tw):
            o_ref[t, kh] = y[t * width:(t + 1) * width].astype(o_ref.dtype)


def _bnrelu_deconv_rows_kernel(x_ref, sc_ref, sh_ref, w_ref,
                               o_ref, s_ref, q_ref, *, tw, width):
    """Fused BN1-affine + ReLU prologue, ConvTranspose2d(k=2, s=2), and
    BN2 partial-statistics epilogue."""
    x = x_ref[...].astype(jnp.float32)
    xb = jnp.maximum(x * sc_ref[...] + sh_ref[...], 0.0).astype(jnp.bfloat16)
    co2 = w_ref.shape[-1]
    s = jnp.zeros((1, co2), jnp.float32)
    q = jnp.zeros((1, co2), jnp.float32)
    for kh in range(2):
        y = jnp.dot(xb, w_ref[kh], preferred_element_type=jnp.float32)
        s += jnp.sum(y, axis=0, keepdims=True)
        q += jnp.sum(y * y, axis=0, keepdims=True)
        for t in range(tw):
            o_ref[t, kh] = y[t * width:(t + 1) * width].astype(o_ref.dtype)
    s_ref[0] = s
    q_ref[0] = q


def _bn_add_relu_kernel(x_ref, r_ref, sc_ref, sh_ref, o_ref):
    """relu(x * scale + shift + residual), per-channel affine broadcast."""
    x = x_ref[...].astype(jnp.float32)
    r = r_ref[...].astype(jnp.float32)
    o_ref[...] = jnp.maximum(x * sc_ref[...] + sh_ref[...] + r, 0.0)


# ---------------------------------------------------------------------------
# pallas_call wrappers
# ---------------------------------------------------------------------------
def conv3x3_bn_stats(xp, w, n, h, width, co_p):
    """xp: (N, H+2, W+2, Ci_p) bf16;  w: (3, 3, Ci_p, Co_p) bf16."""
    ci_p = xp.shape[-1]

    def row_spec(kh):
        return pl.BlockSpec((1, 1, width + 2, ci_p),
                            lambda ni, hi: (ni, hi + kh, 0, 0))

    flops = 2 * n * h * width * 9 * ci_p * co_p
    bytes_accessed = (3 * xp.size * 2 + w.size * 2
                      + n * h * width * co_p * 2 + 2 * n * h * co_p * 4)
    return pl.pallas_call(
        functools.partial(_conv3x3_row_kernel, width=width),
        grid=(n, h),
        in_specs=[row_spec(0), row_spec(1), row_spec(2),
                  pl.BlockSpec((3, 3, ci_p, co_p), lambda ni, hi: (0, 0, 0, 0))],
        out_specs=[pl.BlockSpec((1, 1, width, co_p), lambda ni, hi: (ni, hi, 0, 0)),
                   pl.BlockSpec((1, 1, 1, co_p), lambda ni, hi: (ni, hi, 0, 0)),
                   pl.BlockSpec((1, 1, 1, co_p), lambda ni, hi: (ni, hi, 0, 0))],
        out_shape=[jax.ShapeDtypeStruct((n, h, width, co_p), jnp.bfloat16),
                   jax.ShapeDtypeStruct((n, h, 1, co_p), jnp.float32),
                   jax.ShapeDtypeStruct((n, h, 1, co_p), jnp.float32)],
        compiler_params=pltpu.CompilerParams(
            dimension_semantics=("parallel", "parallel")),
        cost_estimate=pl.CostEstimate(flops=flops, transcendentals=0,
                                      bytes_accessed=bytes_accessed),
    )(xp, xp, xp, w)


def deconv2x2(x2d, w, nh, width, co2):
    """x2d: (NH*W, Ci_p) bf16;  w: (2, Ci_p, 2*Co_p) bf16 -> (NH, 2, W, 2*Co_p)."""
    ci_p = x2d.shape[-1]
    tw = _pick_image_rows(nh, width)
    flops = 2 * nh * width * ci_p * co2 * 2
    bytes_accessed = x2d.size * 2 + w.size * 2 + nh * 2 * width * co2 * 2
    return pl.pallas_call(
        functools.partial(_deconv_rows_kernel, tw=tw, width=width),
        grid=(nh // tw,),
        in_specs=[pl.BlockSpec((tw * width, ci_p), lambda i: (i, 0)),
                  pl.BlockSpec((2, ci_p, co2), lambda i: (0, 0, 0))],
        out_specs=pl.BlockSpec((tw, 2, width, co2), lambda i: (i, 0, 0, 0)),
        out_shape=jax.ShapeDtypeStruct((nh, 2, width, co2), jnp.bfloat16),
        compiler_params=pltpu.CompilerParams(dimension_semantics=("parallel",)),
        cost_estimate=pl.CostEstimate(flops=flops, transcendentals=0,
                                      bytes_accessed=bytes_accessed),
    )(x2d, w)


def bnrelu_deconv2x2(x2d, scale, shift, w, nh, width, co2):
    """relu(bn1-affine(x)) followed by ConvTranspose2d(k=2, s=2) + BN2 partials."""
    ci_p = x2d.shape[-1]
    tw = _pick_image_rows(nh, width)
    steps = nh // tw
    flops = 2 * nh * width * ci_p * co2 * 2
    bytes_accessed = x2d.size * 2 + w.size * 2 + nh * 2 * width * co2 * 2
    return pl.pallas_call(
        functools.partial(_bnrelu_deconv_rows_kernel, tw=tw, width=width),
        grid=(steps,),
        in_specs=[pl.BlockSpec((tw * width, ci_p), lambda i: (i, 0)),
                  pl.BlockSpec((1, ci_p), lambda i: (0, 0)),
                  pl.BlockSpec((1, ci_p), lambda i: (0, 0)),
                  pl.BlockSpec((2, ci_p, co2), lambda i: (0, 0, 0))],
        out_specs=[pl.BlockSpec((tw, 2, width, co2), lambda i: (i, 0, 0, 0)),
                   pl.BlockSpec((1, 1, co2), lambda i: (i, 0, 0)),
                   pl.BlockSpec((1, 1, co2), lambda i: (i, 0, 0))],
        out_shape=[jax.ShapeDtypeStruct((nh, 2, width, co2), jnp.bfloat16),
                   jax.ShapeDtypeStruct((steps, 1, co2), jnp.float32),
                   jax.ShapeDtypeStruct((steps, 1, co2), jnp.float32)],
        compiler_params=pltpu.CompilerParams(dimension_semantics=("parallel",)),
        cost_estimate=pl.CostEstimate(flops=flops, transcendentals=0,
                                      bytes_accessed=bytes_accessed),
    )(x2d, scale, shift, w)


def bn_add_relu(x, residual, scale, shift):
    m, c = x.shape
    tm = _pick_rows(m, 512, 8)
    return pl.pallas_call(
        _bn_add_relu_kernel,
        grid=(m // tm,),
        in_specs=[pl.BlockSpec((tm, c), lambda i: (i, 0)),
                  pl.BlockSpec((tm, c), lambda i: (i, 0)),
                  pl.BlockSpec((1, c), lambda i: (0, 0)),
                  pl.BlockSpec((1, c), lambda i: (0, 0))],
        out_specs=pl.BlockSpec((tm, c), lambda i: (i, 0)),
        out_shape=jax.ShapeDtypeStruct((m, c), jnp.float32),
        compiler_params=pltpu.CompilerParams(dimension_semantics=("parallel",)),
        cost_estimate=pl.CostEstimate(flops=5 * m * c, transcendentals=0,
                                      bytes_accessed=2 * m * c * 2 + m * c * 4),
    )(x, residual, scale, shift)


# ---------------------------------------------------------------------------
# BatchNorm affine finalization (tiny per-channel vectors; jnp glue)
# ---------------------------------------------------------------------------
def _bn_affine(sum_, sumsq, count, gamma, beta):
    mean = sum_ / count
    var = jnp.maximum(sumsq / count - mean * mean, 0.0)   # biased (train mode)
    scale = gamma * jax.lax.rsqrt(var + EPS)
    shift = beta - mean * scale
    return scale, shift


# ---------------------------------------------------------------------------
# Up_decoder forward
# ---------------------------------------------------------------------------
def up_decoder_forward(x_nchw, params):
    x = jnp.transpose(x_nchw, (0, 2, 3, 1)).astype(jnp.float32)  # NCHW -> NHWC
    n, h, w, cin = x.shape
    cout = params["w_conv1"].shape[0]
    ci_p = _round_up(cin, LANE)
    co_p = _round_up(cout, LANE)
    co2 = 2 * co_p
    nh = n * h

    # ---- prepared (channel-padded, bf16) operands -----------------------
    xc = jnp.pad(x, ((0, 0), (0, 0), (0, 0), (0, ci_p - cin))).astype(jnp.bfloat16)
    xp = jnp.pad(xc, ((0, 0), (1, 1), (1, 1), (0, 0)))           # spatial pad

    w1 = jnp.pad(jnp.transpose(params["w_conv1"], (2, 3, 1, 0)),
                 ((0, 0), (0, 0), (0, ci_p - cin), (0, co_p - cout))
                 ).astype(jnp.bfloat16)                          # (3,3,Ci_p,Co_p)

    def prep_deconv(wt, ci, cip):
        # torch ConvTranspose2d weight (Ci, Co, kh, kw) -> (kh, Ci_p, kw*Co_p+co)
        wt = jnp.transpose(wt, (2, 0, 3, 1))
        wt = jnp.pad(wt, ((0, 0), (0, cip - ci), (0, 0), (0, co_p - cout)))
        return wt.reshape(2, cip, co2).astype(jnp.bfloat16)

    w_up = prep_deconv(params["w_up"], cout, co_p)
    w_res = prep_deconv(params["w_res"], cin, ci_p)

    g1 = jnp.pad(params["g1"], (0, co_p - cout))
    b1 = jnp.pad(params["b1"], (0, co_p - cout))
    g2 = jnp.pad(params["g2"], (0, co_p - cout))
    b2 = jnp.pad(params["b2"], (0, co_p - cout))

    # ---- conv1 (+ fused BN1 partial statistics) --------------------------
    conv_out, s1, q1 = conv3x3_bn_stats(xp, w1, n, h, w, co_p)
    scale1, shift1 = _bn_affine(jnp.sum(s1, axis=(0, 1, 2)),
                                jnp.sum(q1, axis=(0, 1, 2)),
                                float(n * h * w), g1, b1)

    # ---- residual = ConvTranspose2d(x) ------------------------------------
    res = deconv2x2(xc.reshape(nh * w, ci_p), w_res, nh, w, co2)

    # ---- up = ConvTranspose2d(relu(bn1(conv1))) (+ fused BN2 partials) ----
    up, s2, q2 = bnrelu_deconv2x2(conv_out.reshape(nh * w, co_p),
                                  scale1.reshape(1, co_p),
                                  shift1.reshape(1, co_p),
                                  w_up, nh, w, co2)
    cs = jnp.sum(s2, axis=(0, 1))
    cq = jnp.sum(q2, axis=(0, 1))
    scale2, shift2 = _bn_affine(cs[:co_p] + cs[co_p:], cq[:co_p] + cq[co_p:],
                                float(n * h * w * 4), g2, b2)
    scale2 = jnp.concatenate([scale2, scale2]).reshape(1, co2)
    shift2 = jnp.concatenate([shift2, shift2]).reshape(1, co2)

    # TODO(synk): op=True replicate-pad branch (F.pad [0,0,1,0]) not implemented;
    #             this mirrors the default op=False construction.

    # ---- out = relu(bn2(up) + residual) -----------------------------------
    m2 = nh * 2 * w
    out = bn_add_relu(up.reshape(m2, co2), res.reshape(m2, co2), scale2, shift2)

    # metadata-only reshape back to NHWC, strip channel padding, NCHW out.
    out = out.reshape(n, 2 * h, 2 * w, co_p)[..., :cout]
    return jnp.transpose(out, (0, 3, 1, 2))


# ---------------------------------------------------------------------------
# Deterministic parameter init (mirrors the module's __init__)
# ---------------------------------------------------------------------------
def _xavier_uniform(key, shape, fan_in, fan_out):
    bound = (6.0 / (fan_in + fan_out)) ** 0.5
    return jax.random.uniform(key, shape, jnp.float32, -bound, bound)


def make_params(key, in_f, out_f):
    k1, k2, k3 = jax.random.split(key, 3)
    return {
        # nn.Conv2d(in_f, out_f, 3, 1, 1, bias=False): (out_f, in_f, 3, 3)
        "w_conv1": _xavier_uniform(k1, (out_f, in_f, 3, 3), in_f * 9, out_f * 9),
        # nn.ConvTranspose2d(out_f, out_f, 2, 2): (out_f, out_f, 2, 2)
        "w_up": _xavier_uniform(k2, (out_f, out_f, 2, 2), out_f * 4, out_f * 4),
        # nn.ConvTranspose2d(in_f, out_f, 2, 2): (in_f, out_f, 2, 2)
        "w_res": _xavier_uniform(k3, (in_f, out_f, 2, 2), out_f * 4, in_f * 4),
        # BatchNorm2d: weight=1, bias=0 (per __init__)
        "g1": jnp.ones((out_f,), jnp.float32),
        "b1": jnp.zeros((out_f,), jnp.float32),
        "g2": jnp.ones((out_f,), jnp.float32),
        "b2": jnp.zeros((out_f,), jnp.float32),
    }


if __name__ == "__main__":
    N, in_f, out_f, H, W = 2, 4, 8, 16, 16
    key = jax.random.PRNGKey(0)
    kp, kx = jax.random.split(key)
    params = make_params(kp, in_f, out_f)
    x = jax.random.normal(kx, (N, in_f, H, W), jnp.float32)

    fwd = jax.jit(functools.partial(up_decoder_forward, params=params))
    y = fwd(x)
    jax.block_until_ready(y)

    assert y.shape == (N, out_f, 2 * H, 2 * W), y.shape
    assert bool(jnp.all(jnp.isfinite(y))) and bool(jnp.all(y >= 0.0))
    print("KERNEL_OK")
</pallas_src>

<mosaic_0001>
module attributes {stable_mosaic.version = 11 : i64} {
  func.func @_deconv_rows_kernel(%arg0: i32, %arg1: memref<256x128xbf16, #tpu.memory_space<vmem>>, %arg2: memref<2x128x256xbf16, #tpu.memory_space<vmem>>, %arg3: memref<16x2x16x256xbf16, #tpu.memory_space<vmem>>) attributes {dimension_semantics = [#tpu.dimension_semantics<parallel>], iteration_bounds = array<i64: 2>, scalar_prefetch = 0 : i64, scratch_operands = 0 : i64, tpu.core_type = #tpu.core_type<tc>, window_params = [{transform_indices = @transform_0, window_bounds = array<i64: 256, 128>}, {pipeline_mode = #tpu.pipeline_mode<synchronous>, transform_indices = @transform_1, window_bounds = array<i64: 2, 128, 256>}, {transform_indices = @transform_2, window_bounds = array<i64: 16, 2, 16, 256>}]} {
    %c0 = arith.constant 0 : index
    %c0_0 = arith.constant 0 : index
    %0 = vector.load %arg1[%c0, %c0_0] : memref<256x128xbf16, #tpu.memory_space<vmem>>, vector<256x128xbf16>
    %c0_1 = arith.constant 0 : index
    %c0_2 = arith.constant 0 : index
    %c0_3 = arith.constant 0 : index
    %1 = vector.load %arg2[%c0_1, %c0_2, %c0_3] : memref<2x128x256xbf16, #tpu.memory_space<vmem>>, vector<1x128x256xbf16>
    %2 = vector.shape_cast %1 : vector<1x128x256xbf16> to vector<128x256xbf16>
    %cst = arith.constant dense<0.000000e+00> : vector<256x256xf32>
    %3 = tpu.matmul %0, %2, %cst {dimension_numbers = #tpu.dot_dimension_numbers<[1], [0], [0], [1], [0, 0, 1, 1], [], []>} : vector<256x128xbf16>, vector<128x256xbf16>, vector<256x256xf32> -> vector<256x256xf32>
    %4 = vector.extract_strided_slice %3 {offsets = [0, 0], sizes = [16, 256], strides = [1, 1]} : vector<256x256xf32> to vector<16x256xf32>
    %5 = arith.truncf %4 : vector<16x256xf32> to vector<16x256xbf16>
    %c0_4 = arith.constant 0 : index
    %c0_5 = arith.constant 0 : index
    %c0_6 = arith.constant 0 : index
    %c0_7 = arith.constant 0 : index
    %6 = vector.load %arg3[%c0_4, %c0_5, %c0_6, %c0_7] : memref<16x2x16x256xbf16, #tpu.memory_space<vmem>>, vector<1x1x16x256xbf16>
    %7 = vector.shape_cast %6 : vector<1x1x16x256xbf16> to vector<16x256xbf16>
    %8 = vector.shape_cast %5 : vector<16x256xbf16> to vector<1x1x16x256xbf16>
    tpu.vector_store %arg3[%c0_4, %c0_5, %c0_6, %c0_7], %8 {strides = array<i32>} : memref<16x2x16x256xbf16, #tpu.memory_space<vmem>>, vector<1x1x16x256xbf16>,
    %9 = vector.extract_strided_slice %3 {offsets = [16, 0], sizes = [16, 256], strides = [1, 1]} : vector<256x256xf32> to vector<16x256xf32>
    %10 = arith.truncf %9 : vector<16x256xf32> to vector<16x256xbf16>
    %c1 = arith.constant 1 : index
    %c0_8 = arith.constant 0 : index
    %c0_9 = arith.constant 0 : index
    %c0_10 = arith.constant 0 : index
    %11 = vector.load %arg3[%c1, %c0_8, %c0_9, %c0_10] : memref<16x2x16x256xbf16, #tpu.memory_space<vmem>>, vector<1x1x16x256xbf16>
    %12 = vector.shape_cast %11 : vector<1x1x16x256xbf16> to vector<16x256xbf16>
    %13 = vector.shape_cast %10 : vector<16x256xbf16> to vector<1x1x16x256xbf16>
    tpu.vector_store %arg3[%c1, %c0_8, %c0_9, %c0_10], %13 {strides = array<i32>} : memref<16x2x16x256xbf16, #tpu.memory_space<vmem>>, vector<1x1x16x256xbf16>,
    %14 = vector.extract_strided_slice %3 {offsets = [32, 0], sizes = [16, 256], strides = [1, 1]} : vector<256x256xf32> to vector<16x256xf32>
    %15 = arith.truncf %14 : vector<16x256xf32> to vector<16x256xbf16>
    %c2 = arith.constant 2 : index
    %c0_11 = arith.constant 0 : index
    %c0_12 = arith.constant 0 : index
    %c0_13 = arith.constant 0 : index
    %16 = vector.load %arg3[%c2, %c0_11, %c0_12, %c0_13] : memref<16x2x16x256xbf16, #tpu.memory_space<vmem>>, vector<1x1x16x256xbf16>
    %17 = vector.shape_cast %16 : vector<1x1x16x256xbf16> to vector<16x256xbf16>
    %18 = vector.shape_cast %15 : vector<16x256xbf16> to vector<1x1x16x256xbf16>
    tpu.vector_store %arg3[%c2, %c0_11, %c0_12, %c0_13], %18 {strides = array<i32>} : memref<16x2x16x256xbf16, #tpu.memory_space<vmem>>, vector<1x1x16x256xbf16>,
    %19 = vector.extract_strided_slice %3 {offsets = [48, 0], sizes = [16, 256], strides = [1, 1]} : vector<256x256xf32> to vector<16x256xf32>
    %20 = arith.truncf %19 : vector<16x256xf32> to vector<16x256xbf16>
    %c3 = arith.constant 3 : index
    %c0_14 = arith.constant 0 : index
    %c0_15 = arith.constant 0 : index
    %c0_16 = arith.constant 0 : index
    %21 = vector.load %arg3[%c3, %c0_14, %c0_15, %c0_16] : memref<16x2x16x256xbf16, #tpu.memory_space<vmem>>, vector<1x1x16x256xbf16>
    %22 = vector.shape_cast %21 : vector<1x1x16x256xbf16> to vector<16x256xbf16>
    %23 = vector.shape_cast %20 : vector<16x256xbf16> to vector<1x1x16x256xbf16>
    tpu.vector_store %arg3[%c3, %c0_14, %c0_15, %c0_16], %23 {strides = array<i32>} : memref<16x2x16x256xbf16, #tpu.memory_space<vmem>>, vector<1x1x16x256xbf16>,
    %24 = vector.extract_strided_slice %3 {offsets = [64, 0], sizes = [16, 256], strides = [1, 1]} : vector<256x256xf32> to vector<16x256xf32>
    %25 = arith.truncf %24 : vector<16x256xf32> to vector<16x256xbf16>
    %c4 = arith.constant 4 : index
    %c0_17 = arith.constant 0 : index
    %c0_18 = arith.constant 0 : index
    %c0_19 = arith.constant 0 : index
    %26 = vector.load %arg3[%c4, %c0_17, %c0_18, %c0_19] : memref<16x2x16x256xbf16, #tpu.memory_space<vmem>>, vector<1x1x16x256xbf16>
    %27 = vector.shape_cast %26 : vector<1x1x16x256xbf16> to vector<16x256xbf16>
    %28 = vector.shape_cast %25 : vector<16x256xbf16> to vector<1x1x16x256xbf16>
    tpu.vector_store %arg3[%c4, %c0_17, %c0_18, %c0_19], %28 {strides = array<i32>} : memref<16x2x16x256xbf16, #tpu.memory_space<vmem>>, vector<1x1x16x256xbf16>,
    %29 = vector.extract_strided_slice %3 {offsets = [80, 0], sizes = [16, 256], strides = [1, 1]} : vector<256x256xf32> to vector<16x256xf32>
    %30 = arith.truncf %29 : vector<16x256xf32> to vector<16x256xbf16>
    %c5 = arith.constant 5 : index
    %c0_20 = arith.constant 0 : index
    %c0_21 = arith.constant 0 : index
    %c0_22 = arith.constant 0 : index
    %31 = vector.load %arg3[%c5, %c0_20, %c0_21, %c0_22] : memref<16x2x16x256xbf16, #tpu.memory_space<vmem>>, vector<1x1x16x256xbf16>
    %32 = vector.shape_cast %31 : vector<1x1x16x256xbf16> to vector<16x256xbf16>
    %33 = vector.shape_cast %30 : vector<16x256xbf16> to vector<1x1x16x256xbf16>
    tpu.vector_store %arg3[%c5, %c0_20, %c0_21, %c0_22], %33 {strides = array<i32>} : memref<16x2x16x256xbf16, #tpu.memory_space<vmem>>, vector<1x1x16x256xbf16>,
    %34 = vector.extract_strided_slice %3 {offsets = [96, 0], sizes = [16, 256], strides = [1, 1]} : vector<256x256xf32> to vector<16x256xf32>
    %35 = arith.truncf %34 : vector<16x256xf32> to vector<16x256xbf16>
    %c6 = arith.constant 6 : index
    %c0_23 = arith.constant 0 : index
    %c0_24 = arith.constant 0 : index
    %c0_25 = arith.constant 0 : index
    %36 = vector.load %arg3[%c6, %c0_23, %c0_24, %c0_25] : memref<16x2x16x256xbf16, #tpu.memory_space<vmem>>, vector<1x1x16x256xbf16>
    %37 = vector.shape_cast %36 : vector<1x1x16x256xbf16> to vector<16x256xbf16>
    %38 = vector.shape_cast %35 : vector<16x256xbf16> to vector<1x1x16x256xbf16>
    tpu.vector_store %arg3[%c6, %c0_23, %c0_24, %c0_25], %38 {strides = array<i32>} : memref<16x2x16x256xbf16, #tpu.memory_space<vmem>>, vector<1x1x16x256xbf16>,
    %39 = vector.extract_strided_slice %3 {offsets = [112, 0], sizes = [16, 256], strides = [1, 1]} : vector<256x256xf32> to vector<16x256xf32>
    %40 = arith.truncf %39 : vector<16x256xf32> to vector<16x256xbf16>
    %c7 = arith.constant 7 : index
    %c0_26 = arith.constant 0 : index
    %c0_27 = arith.constant 0 : index
    %c0_28 = arith.constant 0 : index
    %41 = vector.load %arg3[%c7, %c0_26, %c0_27, %c0_28] : memref<16x2x16x256xbf16, #tpu.memory_space<vmem>>, vector<1x1x16x256xbf16>
    %42 = vector.shape_cast %41 : vector<1x1x16x256xbf16> to vector<16x256xbf16>
    %43 = vector.shape_cast %40 : vector<16x256xbf16> to vector<1x1x16x256xbf16>
    tpu.vector_store %arg3[%c7, %c0_26, %c0_27, %c0_28], %43 {strides = array<i32>} : memref<16x2x16x256xbf16, #tpu.memory_space<vmem>>, vector<1x1x16x256xbf16>,
    %44 = vector.extract_strided_slice %3 {offsets = [128, 0], sizes = [16, 256], strides = [1, 1]} : vector<256x256xf32> to vector<16x256xf32>
    %45 = arith.truncf %44 : vector<16x256xf32> to vector<16x256xbf16>
    %c8 = arith.constant 8 : index
    %c0_29 = arith.constant 0 : index
    %c0_30 = arith.constant 0 : index
    %c0_31 = arith.constant 0 : index
    %46 = vector.load %arg3[%c8, %c0_29, %c0_30, %c0_31] : memref<16x2x16x256xbf16, #tpu.memory_space<vmem>>, vector<1x1x16x256xbf16>
    %47 = vector.shape_cast %46 : vector<1x1x16x256xbf16> to vector<16x256xbf16>
    %48 = vector.shape_cast %45 : vector<16x256xbf16> to vector<1x1x16x256xbf16>
    tpu.vector_store %arg3[%c8, %c0_29, %c0_30, %c0_31], %48 {strides = array<i32>} : memref<16x2x16x256xbf16, #tpu.memory_space<vmem>>, vector<1x1x16x256xbf16>,
    %49 = vector.extract_strided_slice %3 {offsets = [144, 0], sizes = [16, 256], strides = [1, 1]} : vector<256x256xf32> to vector<16x256xf32>
    %50 = arith.truncf %49 : vector<16x256xf32> to vector<16x256xbf16>
    %c9 = arith.constant 9 : index
    %c0_32 = arith.constant 0 : index
    %c0_33 = arith.constant 0 : index
    %c0_34 = arith.constant 0 : index
    %51 = vector.load %arg3[%c9, %c0_32, %c0_33, %c0_34] : memref<16x2x16x256xbf16, #tpu.memory_space<vmem>>, vector<1x1x16x256xbf16>
    %52 = vector.shape_cast %51 : vector<1x1x16x256xbf16> to vector<16x256xbf16>
    %53 = vector.shape_cast %50 : vector<16x256xbf16> to vector<1x1x16x256xbf16>
    tpu.vector_store %arg3[%c9, %c0_32, %c0_33, %c0_34], %53 {strides = array<i32>} : memref<16x2x16x256xbf16, #tpu.memory_space<vmem>>, vector<1x1x16x256xbf16>,
    %54 = vector.extract_strided_slice %3 {offsets = [160, 0], sizes = [16, 256], strides = [1, 1]} : vector<256x256xf32> to vector<16x256xf32>
    %55 = arith.truncf %54 : vector<16x256xf32> to vector<16x256xbf16>
    %c10 = arith.constant 10 : index
    %c0_35 = arith.constant 0 : index
    %c0_36 = arith.constant 0 : index
    %c0_37 = arith.constant 0 : index
    %56 = vector.load %arg3[%c10, %c0_35, %c0_36, %c0_37] : memref<16x2x16x256xbf16, #tpu.memory_space<vmem>>, vector<1x1x16x256xbf16>
    %57 = vector.shape_cast %56 : vector<1x1x16x256xbf16> to vector<16x256xbf16>
    %58 = vector.shape_cast %55 : vector<16x256xbf16> to vector<1x1x16x256xbf16>
    tpu.vector_store %arg3[%c10, %c0_35, %c0_36, %c0_37], %58 {strides = array<i32>} : memref<16x2x16x256xbf16, #tpu.memory_space<vmem>>, vector<1x1x16x256xbf16>,
    %59 = vector.extract_strided_slice %3 {offsets = [176, 0], sizes = [16, 256], strides = [1, 1]} : vector<256x256xf32> to vector<16x256xf32>
    %60 = arith.truncf %59 : vector<16x256xf32> to vector<16x256xbf16>
    %c11 = arith.constant 11 : index
    %c0_38 = arith.constant 0 : index
    %c0_39 = arith.constant 0 : index
    %c0_40 = arith.constant 0 : index
    %61 = vector.load %arg3[%c11, %c0_38, %c0_39, %c0_40] : memref<16x2x16x256xbf16, #tpu.memory_space<vmem>>, vector<1x1x16x256xbf16>
    %62 = vector.shape_cast %61 : vector<1x1x16x256xbf16> to vector<16x256xbf16>
    %63 = vector.shape_cast %60 : vector<16x256xbf16> to vector<1x1x16x256xbf16>
    tpu.vector_store %arg3[%c11, %c0_38, %c0_39, %c0_40], %63 {strides = array<i32>} : memref<16x2x16x256xbf16, #tpu.memory_space<vmem>>, vector<1x1x16x256xbf16>,
    %64 = vector.extract_strided_slice %3 {offsets = [192, 0], sizes = [16, 256], strides = [1, 1]} : vector<256x256xf32> to vector<16x256xf32>
    %65 = arith.truncf %64 : vector<16x256xf32> to vector<16x256xbf16>
    %c12 = arith.constant 12 : index
    %c0_41 = arith.constant 0 : index
    %c0_42 = arith.constant 0 : index
    %c0_43 = arith.constant 0 : index
    %66 = vector.load %arg3[%c12, %c0_41, %c0_42, %c0_43] : memref<16x2x16x256xbf16, #tpu.memory_space<vmem>>, vector<1x1x16x256xbf16>
    %67 = vector.shape_cast %66 : vector<1x1x16x256xbf16> to vector<16x256xbf16>
    %68 = vector.shape_cast %65 : vector<16x256xbf16> to vector<1x1x16x256xbf16>
    tpu.vector_store %arg3[%c12, %c0_41, %c0_42, %c0_43], %68 {strides = array<i32>} : memref<16x2x16x256xbf16, #tpu.memory_space<vmem>>, vector<1x1x16x256xbf16>,
    %69 = vector.extract_strided_slice %3 {offsets = [208, 0], sizes = [16, 256], strides = [1, 1]} : vector<256x256xf32> to vector<16x256xf32>
    %70 = arith.truncf %69 : vector<16x256xf32> to vector<16x256xbf16>
    %c13 = arith.constant 13 : index
    %c0_44 = arith.constant 0 : index
    %c0_45 = arith.constant 0 : index
    %c0_46 = arith.constant 0 : index
    %71 = vector.load %arg3[%c13, %c0_44, %c0_45, %c0_46] : memref<16x2x16x256xbf16, #tpu.memory_space<vmem>>, vector<1x1x16x256xbf16>
    %72 = vector.shape_cast %71 : vector<1x1x16x256xbf16> to vector<16x256xbf16>
    %73 = vector.shape_cast %70 : vector<16x256xbf16> to vector<1x1x16x256xbf16>
    tpu.vector_store %arg3[%c13, %c0_44, %c0_45, %c0_46], %73 {strides = array<i32>} : memref<16x2x16x256xbf16, #tpu.memory_space<vmem>>, vector<1x1x16x256xbf16>,
    %74 = vector.extract_strided_slice %3 {offsets = [224, 0], sizes = [16, 256], strides = [1, 1]} : vector<256x256xf32> to vector<16x256xf32>
    %75 = arith.truncf %74 : vector<16x256xf32> to vector<16x256xbf16>
    %c14 = arith.constant 14 : index
    %c0_47 = arith.constant 0 : index
    %c0_48 = arith.constant 0 : index
    %c0_49 = arith.constant 0 : index
    %76 = vector.load %arg3[%c14, %c0_47, %c0_48, %c0_49] : memref<16x2x16x256xbf16, #tpu.memory_space<vmem>>, vector<1x1x16x256xbf16>
    %77 = vector.shape_cast %76 : vector<1x1x16x256xbf16> to vector<16x256xbf16>
    %78 = vector.shape_cast %75 : vector<16x256xbf16> to vector<1x1x16x256xbf16>
    tpu.vector_store %arg3[%c14, %c0_47, %c0_48, %c0_49], %78 {strides = array<i32>} : memref<16x2x16x256xbf16, #tpu.memory_space<vmem>>, vector<1x1x16x256xbf16>,
    %79 = vector.extract_strided_slice %3 {offsets = [240, 0], sizes = [16, 256], strides = [1, 1]} : vector<256x256xf32> to vector<16x256xf32>
    %80 = arith.truncf %79 : vector<16x256xf32> to vector<16x256xbf16>
    %c15 = arith.constant 15 : index
    %c0_50 = arith.constant 0 : index
    %c0_51 = arith.constant 0 : index
    %c0_52 = arith.constant 0 : index
    %81 = vector.load %arg3[%c15, %c0_50, %c0_51, %c0_52] : memref<16x2x16x256xbf16, #tpu.memory_space<vmem>>, vector<1x1x16x256xbf16>
    %82 = vector.shape_cast %81 : vector<1x1x16x256xbf16> to vector<16x256xbf16>
    %83 = vector.shape_cast %80 : vector<16x256xbf16> to vector<1x1x16x256xbf16>
    tpu.vector_store %arg3[%c15, %c0_50, %c0_51, %c0_52], %83 {strides = array<i32>} : memref<16x2x16x256xbf16, #tpu.memory_space<vmem>>, vector<1x1x16x256xbf16>,
    %c1_53 = arith.constant 1 : index
    %c0_54 = arith.constant 0 : index
    %c0_55 = arith.constant 0 : index
    %84 = vector.load %arg2[%c1_53, %c0_54, %c0_55] : memref<2x128x256xbf16, #tpu.memory_space<vmem>>, vector<1x128x256xbf16>
    %85 = vector.shape_cast %84 : vector<1x128x256xbf16> to vector<128x256xbf16>
    %cst_56 = arith.constant dense<0.000000e+00> : vector<256x256xf32>
    %86 = tpu.matmul %0, %85, %cst_56 {dimension_numbers = #tpu.dot_dimension_numbers<[1], [0], [0], [1], [0, 0, 1, 1], [], []>} : vector<256x128xbf16>, vector<128x256xbf16>, vector<256x256xf32> -> vector<256x256xf32>
    %87 = vector.extract_strided_slice %86 {offsets = [0, 0], sizes = [16, 256], strides = [1, 1]} : vector<256x256xf32> to vector<16x256xf32>
    %88 = arith.truncf %87 : vector<16x256xf32> to vector<16x256xbf16>
    %c0_57 = arith.constant 0 : index
    %c1_58 = arith.constant 1 : index
    %c0_59 = arith.constant 0 : index
    %c0_60 = arith.constant 0 : index
    %89 = vector.load %arg3[%c0_57, %c1_58, %c0_59, %c0_60] : memref<16x2x16x256xbf16, #tpu.memory_space<vmem>>, vector<1x1x16x256xbf16>
    %90 = vector.shape_cast %89 : vector<1x1x16x256xbf16> to vector<16x256xbf16>
    %91 = vector.shape_cast %88 : vector<16x256xbf16> to vector<1x1x16x256xbf16>
    tpu.vector_store %arg3[%c0_57, %c1_58, %c0_59, %c0_60], %91 {strides = array<i32>} : memref<16x2x16x256xbf16, #tpu.memory_space<vmem>>, vector<1x1x16x256xbf16>,
    %92 = vector.extract_strided_slice %86 {offsets = [16, 0], sizes = [16, 256], strides = [1, 1]} : vector<256x256xf32> to vector<16x256xf32>
    %93 = arith.truncf %92 : vector<16x256xf32> to vector<16x256xbf16>
    %c1_61 = arith.constant 1 : index
    %c1_62 = arith.constant 1 : index
    %c0_63 = arith.constant 0 : index
    %c0_64 = arith.constant 0 : index
    %94 = vector.load %arg3[%c1_61, %c1_62, %c0_63, %c0_64] : memref<16x2x16x256xbf16, #tpu.memory_space<vmem>>, vector<1x1x16x256xbf16>
    %95 = vector.shape_cast %94 : vector<1x1x16x256xbf16> to vector<16x256xbf16>
    %96 = vector.shape_cast %93 : vector<16x256xbf16> to vector<1x1x16x256xbf16>
    tpu.vector_store %arg3[%c1_61, %c1_62, %c0_63, %c0_64], %96 {strides = array<i32>} : memref<16x2x16x256xbf16, #tpu.memory_space<vmem>>, vector<1x1x16x256xbf16>,
    %97 = vector.extract_strided_slice %86 {offsets = [32, 0], sizes = [16, 256], strides = [1, 1]} : vector<256x256xf32> to vector<16x256xf32>
    %98 = arith.truncf %97 : vector<16x256xf32> to vector<16x256xbf16>
    %c2_65 = arith.constant 2 : index
    %c1_66 = arith.constant 1 : index
    %c0_67 = arith.constant 0 : index
    %c0_68 = arith.constant 0 : index
    %99 = vector.load %arg3[%c2_65, %c1_66, %c0_67, %c0_68] : memref<16x2x16x256xbf16, #tpu.memory_space<vmem>>, vector<1x1x16x256xbf16>
    %100 = vector.shape_cast %99 : vector<1x1x16x256xbf16> to vector<16x256xbf16>
    %101 = vector.shape_cast %98 : vector<16x256xbf16> to vector<1x1x16x256xbf16>
    tpu.vector_store %arg3[%c2_65, %c1_66, %c0_67, %c0_68], %101 {strides = array<i32>} : memref<16x2x16x256xbf16, #tpu.memory_space<vmem>>, vector<1x1x16x256xbf16>,
    %102 = vector.extract_strided_slice %86 {offsets = [48, 0], sizes = [16, 256], strides = [1, 1]} : vector<256x256xf32> to vector<16x256xf32>
    %103 = arith.truncf %102 : vector<16x256xf32> to vector<16x256xbf16>
    %c3_69 = arith.constant 3 : index
    %c1_70 = arith.constant 1 : index
    %c0_71 = arith.constant 0 : index
    %c0_72 = arith.constant 0 : index
    %104 = vector.load %arg3[%c3_69, %c1_70, %c0_71, %c0_72] : memref<16x2x16x256xbf16, #tpu.memory_space<vmem>>, vector<1x1x16x256xbf16>
    %105 = vector.shape_cast %104 : vector<1x1x16x256xbf16> to vector<16x256xbf16>
    %106 = vector.shape_cast %103 : vector<16x256xbf16> to vector<1x1x16x256xbf16>
    tpu.vector_store %arg3[%c3_69, %c1_70, %c0_71, %c0_72], %106 {strides = array<i32>} : memref<16x2x16x256xbf16, #tpu.memory_space<vmem>>, vector<1x1x16x256xbf16>,
    %107 = vector.extract_strided_slice %86 {offsets = [64, 0], sizes = [16, 256], strides = [1, 1]} : vector<256x256xf32> to vector<16x256xf32>
    %108 = arith.truncf %107 : vector<16x256xf32> to vector<16x256xbf16>
    %c4_73 = arith.constant 4 : index
    %c1_74 = arith.constant 1 : index
    %c0_75 = arith.constant 0 : index
    %c0_76 = arith.constant 0 : index
    %109 = vector.load %arg3[%c4_73, %c1_74, %c0_75, %c0_76] : memref<16x2x16x256xbf16, #tpu.memory_space<vmem>>, vector<1x1x16x256xbf16>
    %110 = vector.shape_cast %109 : vector<1x1x16x256xbf16> to vector<16x256xbf16>
    %111 = vector.shape_cast %108 : vector<16x256xbf16> to vector<1x1x16x256xbf16>
    tpu.vector_store %arg3[%c4_73, %c1_74, %c0_75, %c0_76], %111 {strides = array<i32>} : memref<16x2x16x256xbf16, #tpu.memory_space<vmem>>, vector<1x1x16x256xbf16>,
    %112 = vector.extract_strided_slice %86 {offsets = [80, 0], sizes = [16, 256], strides = [1, 1]} : vector<256x256xf32> to vector<16x256xf32>
    %113 = arith.truncf %112 : vector<16x256xf32> to vector<16x256xbf16>
    %c5_77 = arith.constant 5 : index
    %c1_78 = arith.constant 1 : index
    %c0_79 = arith.constant 0 : index
    %c0_80 = arith.constant 0 : index
    %114 = vector.load %arg3[%c5_77, %c1_78, %c0_79, %c0_80] : memref<16x2x16x256xbf16, #tpu.memory_space<vmem>>, vector<1x1x16x256xbf16>
    %115 = vector.shape_cast %114 : vector<1x1x16x256xbf16> to vector<16x256xbf16>
    %116 = vector.shape_cast %113 : vector<16x256xbf16> to vector<1x1x16x256xbf16>
    tpu.vector_store %arg3[%c5_77, %c1_78, %c0_79, %c0_80], %116 {strides = array<i32>} : memref<16x2x16x256xbf16, #tpu.memory_space<vmem>>, vector<1x1x16x256xbf16>,
    %117 = vector.extract_strided_slice %86 {offsets = [96, 0], sizes = [16, 256], strides = [1, 1]} : vector<256x256xf32> to vector<16x256xf32>
    %118 = arith.truncf %117 : vector<16x256xf32> to vector<16x256xbf16>
    %c6_81 = arith.constant 6 : index
    %c1_82 = arith.constant 1 : index
    %c0_83 = arith.constant 0 : index
    %c0_84 = arith.constant 0 : index
    %119 = vector.load %arg3[%c6_81, %c1_82, %c0_83, %c0_84] : memref<16x2x16x256xbf16, #tpu.memory_space<vmem>>, vector<1x1x16x256xbf16>
    %120 = vector.shape_cast %119 : vector<1x1x16x256xbf16> to vector<16x256xbf16>
    %121 = vector.shape_cast %118 : vector<16x256xbf16> to vector<1x1x16x256xbf16>
    tpu.vector_store %arg3[%c6_81, %c1_82, %c0_83, %c0_84], %121 {strides = array<i32>} : memref<16x2x16x256xbf16, #tpu.memory_space<vmem>>, vector<1x1x16x256xbf16>,
    %122 = vector.extract_strided_slice %86 {offsets = [112, 0], sizes = [16, 256], strides = [1, 1]} : vector<256x256xf32> to vector<16x256xf32>
    %123 = arith.truncf %122 : vector<16x256xf32> to vector<16x256xbf16>
    %c7_85 = arith.constant 7 : index
    %c1_86 = arith.constant 1 : index
    %c0_87 = arith.constant 0 : index
    %c0_88 = arith.constant 0 : index
    %124 = vector.load %arg3[%c7_85, %c1_86, %c0_87, %c0_88] : memref<16x2x16x256xbf16, #tpu.memory_space<vmem>>, vector<1x1x16x256xbf16>
    %125 = vector.shape_cast %124 : vector<1x1x16x256xbf16> to vector<16x256xbf16>
    %126 = vector.shape_cast %123 : vector<16x256xbf16> to vector<1x1x16x256xbf16>
    tpu.vector_store %arg3[%c7_85, %c1_86, %c0_87, %c0_88], %126 {strides = array<i32>} : memref<16x2x16x256xbf16, #tpu.memory_space<vmem>>, vector<1x1x16x256xbf16>,
    %127 = vector.extract_strided_slice %86 {offsets = [128, 0], sizes = [16, 256], strides = [1, 1]} : vector<256x256xf32> to vector<16x256xf32>
    %128 = arith.truncf %127 : vector<16x256xf32> to vector<16x256xbf16>
    %c8_89 = arith.constant 8 : index
    %c1_90 = arith.constant 1 : index
    %c0_91 = arith.constant 0 : index
    %c0_92 = arith.constant 0 : index
    %129 = vector.load %arg3[%c8_89, %c1_90, %c0_91, %c0_92] : memref<16x2x16x256xbf16, #tpu.memory_space<vmem>>, vector<1x1x16x256xbf16>
    %130 = vector.shape_cast %129 : vector<1x1x16x256xbf16> to vector<16x256xbf16>
    %131 = vector.shape_cast %128 : vector<16x256xbf16> to vector<1x1x16x256xbf16>
    tpu.vector_store %arg3[%c8_89, %c1_90, %c0_91, %c0_92], %131 {strides = array<i32>} : memref<16x2x16x256xbf16, #tpu.memory_space<vmem>>, vector<1x1x16x256xbf16>,
    %132 = vector.extract_strided_slice %86 {offsets = [144, 0], sizes = [16, 256], strides = [1, 1]} : vector<256x256xf32> to vector<16x256xf32>
    %133 = arith.truncf %132 : vector<16x256xf32> to vector<16x256xbf16>
    %c9_93 = arith.constant 9 : index
    %c1_94 = arith.constant 1 : index
    %c0_95 = arith.constant 0 : index
    %c0_96 = arith.constant 0 : index
    %134 = vector.load %arg3[%c9_93, %c1_94, %c0_95, %c0_96] : memref<16x2x16x256xbf16, #tpu.memory_space<vmem>>, vector<1x1x16x256xbf16>
    %135 = vector.shape_cast %134 : vector<1x1x16x256xbf16> to vector<16x256xbf16>
    %136 = vector.shape_cast %133 : vector<16x256xbf16> to vector<1x1x16x256xbf16>
    tpu.vector_store %arg3[%c9_93, %c1_94, %c0_95, %c0_96], %136 {strides = array<i32>} : memref<16x2x16x256xbf16, #tpu.memory_space<vmem>>, vector<1x1x16x256xbf16>,
    %137 = vector.extract_strided_slice %86 {offsets = [160, 0], sizes = [16, 256], strides = [1, 1]} : vector<256x256xf32> to vector<16x256xf32>
    %138 = arith.truncf %137 : vector<16x256xf32> to vector<16x256xbf16>
    %c10_97 = arith.constant 10 : index
    %c1_98 = arith.constant 1 : index
    %c0_99 = arith.constant 0 : index
    %c0_100 = arith.constant 0 : index
    %139 = vector.load %arg3[%c10_97, %c1_98, %c0_99, %c0_100] : memref<16x2x16x256xbf16, #tpu.memory_space<vmem>>, vector<1x1x16x256xbf16>
    %140 = vector.shape_cast %139 : vector<1x1x16x256xbf16> to vector<16x256xbf16>
    %141 = vector.shape_cast %138 : vector<16x256xbf16> to vector<1x1x16x256xbf16>
    tpu.vector_store %arg3[%c10_97, %c1_98, %c0_99, %c0_100], %141 {strides = array<i32>} : memref<16x2x16x256xbf16, #tpu.memory_space<vmem>>, vector<1x1x16x256xbf16>,
    %142 = vector.extract_strided_slice %86 {offsets = [176, 0], sizes = [16, 256], strides = [1, 1]} : vector<256x256xf32> to vector<16x256xf32>
    %143 = arith.truncf %142 : vector<16x256xf32> to vector<16x256xbf16>
    %c11_101 = arith.constant 11 : index
    %c1_102 = arith.constant 1 : index
    %c0_103 = arith.constant 0 : index
    %c0_104 = arith.constant 0 : index
    %144 = vector.load %arg3[%c11_101, %c1_102, %c0_103, %c0_104] : memref<16x2x16x256xbf16, #tpu.memory_space<vmem>>, vector<1x1x16x256xbf16>
    %145 = vector.shape_cast %144 : vector<1x1x16x256xbf16> to vector<16x256xbf16>
    %146 = vector.shape_cast %143 : vector<16x256xbf16> to vector<1x1x16x256xbf16>
    tpu.vector_store %arg3[%c11_101, %c1_102, %c0_103, %c0_104], %146 {strides = array<i32>} : memref<16x2x16x256xbf16, #tpu.memory_space<vmem>>, vector<1x1x16x256xbf16>,
    %147 = vector.extract_strided_slice %86 {offsets = [192, 0], sizes = [16, 256], strides = [1, 1]} : vector<256x256xf32> to vector<16x256xf32>
    %148 = arith.truncf %147 : vector<16x256xf32> to vector<16x256xbf16>
    %c12_105 = arith.constant 12 : index
    %c1_106 = arith.constant 1 : index
    %c0_107 = arith.constant 0 : index
    %c0_108 = arith.constant 0 : index
    %149 = vector.load %arg3[%c12_105, %c1_106, %c0_107, %c0_108] : memref<16x2x16x256xbf16, #tpu.memory_space<vmem>>, vector<1x1x16x256xbf16>
    %150 = vector.shape_cast %149 : vector<1x1x16x256xbf16> to vector<16x256xbf16>
    %151 = vector.shape_cast %148 : vector<16x256xbf16> to vector<1x1x16x256xbf16>
    tpu.vector_store %arg3[%c12_105, %c1_106, %c0_107, %c0_108], %151 {strides = array<i32>} : memref<16x2x16x256xbf16, #tpu.memory_space<vmem>>, vector<1x1x16x256xbf16>,
    %152 = vector.extract_strided_slice %86 {offsets = [208, 0], sizes = [16, 256], strides = [1, 1]} : vector<256x256xf32> to vector<16x256xf32>
    %153 = arith.truncf %152 : vector<16x256xf32> to vector<16x256xbf16>
    %c13_109 = arith.constant 13 : index
    %c1_110 = arith.constant 1 : index
    %c0_111 = arith.constant 0 : index
    %c0_112 = arith.constant 0 : index
    %154 = vector.load %arg3[%c13_109, %c1_110, %c0_111, %c0_112] : memref<16x2x16x256xbf16, #tpu.memory_space<vmem>>, vector<1x1x16x256xbf16>
    %155 = vector.shape_cast %154 : vector<1x1x16x256xbf16> to vector<16x256xbf16>
    %156 = vector.shape_cast %153 : vector<16x256xbf16> to vector<1x1x16x256xbf16>
    tpu.vector_store %arg3[%c13_109, %c1_110, %c0_111, %c0_112], %156 {strides = array<i32>} : memref<16x2x16x256xbf16, #tpu.memory_space<vmem>>, vector<1x1x16x256xbf16>,
    %157 = vector.extract_strided_slice %86 {offsets = [224, 0], sizes = [16, 256], strides = [1, 1]} : vector<256x256xf32> to vector<16x256xf32>
    %158 = arith.truncf %157 : vector<16x256xf32> to vector<16x256xbf16>
    %c14_113 = arith.constant 14 : index
    %c1_114 = arith.constant 1 : index
    %c0_115 = arith.constant 0 : index
    %c0_116 = arith.constant 0 : index
    %159 = vector.load %arg3[%c14_113, %c1_114, %c0_115, %c0_116] : memref<16x2x16x256xbf16, #tpu.memory_space<vmem>>, vector<1x1x16x256xbf16>
    %160 = vector.shape_cast %159 : vector<1x1x16x256xbf16> to vector<16x256xbf16>
    %161 = vector.shape_cast %158 : vector<16x256xbf16> to vector<1x1x16x256xbf16>
    tpu.vector_store %arg3[%c14_113, %c1_114, %c0_115, %c0_116], %161 {strides = array<i32>} : memref<16x2x16x256xbf16, #tpu.memory_space<vmem>>, vector<1x1x16x256xbf16>,
    %162 = vector.extract_strided_slice %86 {offsets = [240, 0], sizes = [16, 256], strides = [1, 1]} : vector<256x256xf32> to vector<16x256xf32>
    %163 = arith.truncf %162 : vector<16x256xf32> to vector<16x256xbf16>
    %c15_117 = arith.constant 15 : index
    %c1_118 = arith.constant 1 : index
    %c0_119 = arith.constant 0 : index
    %c0_120 = arith.constant 0 : index
    %164 = vector.load %arg3[%c15_117, %c1_118, %c0_119, %c0_120] : memref<16x2x16x256xbf16, #tpu.memory_space<vmem>>, vector<1x1x16x256xbf16>
    %165 = vector.shape_cast %164 : vector<1x1x16x256xbf16> to vector<16x256xbf16>
    %166 = vector.shape_cast %163 : vector<16x256xbf16> to vector<1x1x16x256xbf16>
    tpu.vector_store %arg3[%c15_117, %c1_118, %c0_119, %c0_120], %166 {strides = array<i32>} : memref<16x2x16x256xbf16, #tpu.memory_space<vmem>>, vector<1x1x16x256xbf16>,
    return
  }
  func.func @transform_0(%arg0: i32) -> (i32, i32) {
    %c0_i32 = arith.constant 0 : i32
    %c0_i32_0 = arith.constant 0 : i32
    return %arg0, %c0_i32 : i32, i32
  }
  func.func @transform_1(%arg0: i32) -> (i32, i32, i32) {
    %c0_i32 = arith.constant 0 : i32
    %c0_i32_0 = arith.constant 0 : i32
    %c0_i32_1 = arith.constant 0 : i32
    %c0_i32_2 = arith.constant 0 : i32
    return %c0_i32, %c0_i32_0, %c0_i32_1 : i32, i32, i32
  }
  func.func @transform_2(%arg0: i32) -> (i32, i32, i32, i32) {
    %c0_i32 = arith.constant 0 : i32
    %c0_i32_0 = arith.constant 0 : i32
    %c0_i32_1 = arith.constant 0 : i32
    %c0_i32_2 = arith.constant 0 : i32
    return %arg0, %c0_i32, %c0_i32_0, %c0_i32_1 : i32, i32, i32, i32
  }
}

module attributes {stable_mosaic.version = 11 : i64} {
  func.func @_conv3x3_row_kernel(%arg0: i32, %arg1: i32, %arg2: memref<1x1x18x128xbf16, #tpu.memory_space<vmem>>, %arg3: memref<1x1x18x128xbf16, #tpu.memory_space<vmem>>, %arg4: memref<1x1x18x128xbf16, #tpu.memory_space<vmem>>, %arg5: memref<3x3x128x128xbf16, #tpu.memory_space<vmem>>, %arg6: memref<1x1x16x128xbf16, #tpu.memory_space<vmem>>, %arg7: memref<1x1x1x128xf32, #tpu.memory_space<vmem>>, %arg8: memref<1x1x1x128xf32, #tpu.memory_space<vmem>>) attributes {dimension_semantics = [#tpu.dimension_semantics<parallel>, #tpu.dimension_semantics<parallel>], iteration_bounds = array<i64: 2, 16>, scalar_prefetch = 0 : i64, scratch_operands = 0 : i64, tpu.core_type = #tpu.core_type<tc>, window_params = [{transform_indices = @transform_0, window_bounds = array<i64: 1, 1, 18, 128>}, {transform_indices = @transform_1, window_bounds = array<i64: 1, 1, 18, 128>}, {transform_indices = @transform_2, window_bounds = array<i64: 1, 1, 18, 128>}, {pipeline_mode = #tpu.pipeline_mode<synchronous>, transform_indices = @transform_3, window_bounds = array<i64: 3, 3, 128, 128>}, {transform_indices = @transform_4, window_bounds = array<i64: 1, 1, 16, 128>}, {transform_indices = @transform_5, window_bounds = array<i64: 1, 1, 1, 128>}, {transform_indices = @transform_6, window_bounds = array<i64: 1, 1, 1, 128>}]} {
    %c0 = arith.constant 0 : index
    %c0_0 = arith.constant 0 : index
    %c0_1 = arith.constant 0 : index
    %c0_2 = arith.constant 0 : index
    %0 = vector.load %arg2[%c0, %c0_0, %c0_1, %c0_2] : memref<1x1x18x128xbf16, #tpu.memory_space<vmem>>, vector<1x1x18x128xbf16>
    %1 = vector.shape_cast %0 : vector<1x1x18x128xbf16> to vector<18x128xbf16>
    %c0_3 = arith.constant 0 : index
    %c0_4 = arith.constant 0 : index
    %c0_5 = arith.constant 0 : index
    %c0_6 = arith.constant 0 : index
    %2 = vector.load %arg3[%c0_3, %c0_4, %c0_5, %c0_6] : memref<1x1x18x128xbf16, #tpu.memory_space<vmem>>, vector<1x1x18x128xbf16>
    %3 = vector.shape_cast %2 : vector<1x1x18x128xbf16> to vector<18x128xbf16>
    %c0_7 = arith.constant 0 : index
    %c0_8 = arith.constant 0 : index
    %c0_9 = arith.constant 0 : index
    %c0_10 = arith.constant 0 : index
    %4 = vector.load %arg4[%c0_7, %c0_8, %c0_9, %c0_10] : memref<1x1x18x128xbf16, #tpu.memory_space<vmem>>, vector<1x1x18x128xbf16>
    %5 = vector.shape_cast %4 : vector<1x1x18x128xbf16> to vector<18x128xbf16>
    %cst = arith.constant 0.000000e+00 : f32
    %6 = vector.broadcast %cst : f32 to vector<16x128xf32>
    %7 = vector.extract_strided_slice %1 {offsets = [0, 0], sizes = [16, 128], strides = [1, 1]} : vector<18x128xbf16> to vector<16x128xbf16>
    %c0_11 = arith.constant 0 : index
    %c0_12 = arith.constant 0 : index
    %c0_13 = arith.constant 0 : index
    %c0_14 = arith.constant 0 : index
    %8 = vector.load %arg5[%c0_11, %c0_12, %c0_13, %c0_14] : memref<3x3x128x128xbf16, #tpu.memory_space<vmem>>, vector<1x1x128x128xbf16>
    %9 = vector.shape_cast %8 : vector<1x1x128x128xbf16> to vector<128x128xbf16>
    %cst_15 = arith.constant dense<0.000000e+00> : vector<16x128xf32>
    %10 = tpu.matmul %7, %9, %cst_15 {dimension_numbers = #tpu.dot_dimension_numbers<[1], [0], [0], [1], [0, 0, 1, 1], [], []>} : vector<16x128xbf16>, vector<128x128xbf16>, vector<16x128xf32> -> vector<16x128xf32>
    %11 = arith.addf %6, %10 : vector<16x128xf32>
    %12 = vector.extract_strided_slice %1 {offsets = [1, 0], sizes = [16, 128], strides = [1, 1]} : vector<18x128xbf16> to vector<16x128xbf16>
    %c0_16 = arith.constant 0 : index
    %c1 = arith.constant 1 : index
    %c0_17 = arith.constant 0 : index
    %c0_18 = arith.constant 0 : index
    %13 = vector.load %arg5[%c0_16, %c1, %c0_17, %c0_18] : memref<3x3x128x128xbf16, #tpu.memory_space<vmem>>, vector<1x1x128x128xbf16>
    %14 = vector.shape_cast %13 : vector<1x1x128x128xbf16> to vector<128x128xbf16>
    %cst_19 = arith.constant dense<0.000000e+00> : vector<16x128xf32>
    %15 = tpu.matmul %12, %14, %cst_19 {dimension_numbers = #tpu.dot_dimension_numbers<[1], [0], [0], [1], [0, 0, 1, 1], [], []>} : vector<16x128xbf16>, vector<128x128xbf16>, vector<16x128xf32> -> vector<16x128xf32>
    %16 = arith.addf %11, %15 : vector<16x128xf32>
    %17 = vector.extract_strided_slice %1 {offsets = [2, 0], sizes = [16, 128], strides = [1, 1]} : vector<18x128xbf16> to vector<16x128xbf16>
    %c0_20 = arith.constant 0 : index
    %c2 = arith.constant 2 : index
    %c0_21 = arith.constant 0 : index
    %c0_22 = arith.constant 0 : index
    %18 = vector.load %arg5[%c0_20, %c2, %c0_21, %c0_22] : memref<3x3x128x128xbf16, #tpu.memory_space<vmem>>, vector<1x1x128x128xbf16>
    %19 = vector.shape_cast %18 : vector<1x1x128x128xbf16> to vector<128x128xbf16>
    %cst_23 = arith.constant dense<0.000000e+00> : vector<16x128xf32>
    %20 = tpu.matmul %17, %19, %cst_23 {dimension_numbers = #tpu.dot_dimension_numbers<[1], [0], [0], [1], [0, 0, 1, 1], [], []>} : vector<16x128xbf16>, vector<128x128xbf16>, vector<16x128xf32> -> vector<16x128xf32>
    %21 = arith.addf %16, %20 : vector<16x128xf32>
    %22 = vector.extract_strided_slice %3 {offsets = [0, 0], sizes = [16, 128], strides = [1, 1]} : vector<18x128xbf16> to vector<16x128xbf16>
    %c1_24 = arith.constant 1 : index
    %c0_25 = arith.constant 0 : index
    %c0_26 = arith.constant 0 : index
    %c0_27 = arith.constant 0 : index
    %23 = vector.load %arg5[%c1_24, %c0_25, %c0_26, %c0_27] : memref<3x3x128x128xbf16, #tpu.memory_space<vmem>>, vector<1x1x128x128xbf16>
    %24 = vector.shape_cast %23 : vector<1x1x128x128xbf16> to vector<128x128xbf16>
    %cst_28 = arith.constant dense<0.000000e+00> : vector<16x128xf32>
    %25 = tpu.matmul %22, %24, %cst_28 {dimension_numbers = #tpu.dot_dimension_numbers<[1], [0], [0], [1], [0, 0, 1, 1], [], []>} : vector<16x128xbf16>, vector<128x128xbf16>, vector<16x128xf32> -> vector<16x128xf32>
    %26 = arith.addf %21, %25 : vector<16x128xf32>
    %27 = vector.extract_strided_slice %3 {offsets = [1, 0], sizes = [16, 128], strides = [1, 1]} : vector<18x128xbf16> to vector<16x128xbf16>
    %c1_29 = arith.constant 1 : index
    %c1_30 = arith.constant 1 : index
    %c0_31 = arith.constant 0 : index
    %c0_32 = arith.constant 0 : index
    %28 = vector.load %arg5[%c1_29, %c1_30, %c0_31, %c0_32] : memref<3x3x128x128xbf16, #tpu.memory_space<vmem>>, vector<1x1x128x128xbf16>
    %29 = vector.shape_cast %28 : vector<1x1x128x128xbf16> to vector<128x128xbf16>
    %cst_33 = arith.constant dense<0.000000e+00> : vector<16x128xf32>
    %30 = tpu.matmul %27, %29, %cst_33 {dimension_numbers = #tpu.dot_dimension_numbers<[1], [0], [0], [1], [0, 0, 1, 1], [], []>} : vector<16x128xbf16>, vector<128x128xbf16>, vector<16x128xf32> -> vector<16x128xf32>
    %31 = arith.addf %26, %30 : vector<16x128xf32>
    %32 = vector.extract_strided_slice %3 {offsets = [2, 0], sizes = [16, 128], strides = [1, 1]} : vector<18x128xbf16> to vector<16x128xbf16>
    %c1_34 = arith.constant 1 : index
    %c2_35 = arith.constant 2 : index
    %c0_36 = arith.constant 0 : index
    %c0_37 = arith.constant 0 : index
    %33 = vector.load %arg5[%c1_34, %c2_35, %c0_36, %c0_37] : memref<3x3x128x128xbf16, #tpu.memory_space<vmem>>, vector<1x1x128x128xbf16>
    %34 = vector.shape_cast %33 : vector<1x1x128x128xbf16> to vector<128x128xbf16>
    %cst_38 = arith.constant dense<0.000000e+00> : vector<16x128xf32>
    %35 = tpu.matmul %32, %34, %cst_38 {dimension_numbers = #tpu.dot_dimension_numbers<[1], [0], [0], [1], [0, 0, 1, 1], [], []>} : vector<16x128xbf16>, vector<128x128xbf16>, vector<16x128xf32> -> vector<16x128xf32>
    %36 = arith.addf %31, %35 : vector<16x128xf32>
    %37 = vector.extract_strided_slice %5 {offsets = [0, 0], sizes = [16, 128], strides = [1, 1]} : vector<18x128xbf16> to vector<16x128xbf16>
    %c2_39 = arith.constant 2 : index
    %c0_40 = arith.constant 0 : index
    %c0_41 = arith.constant 0 : index
    %c0_42 = arith.constant 0 : index
    %38 = vector.load %arg5[%c2_39, %c0_40, %c0_41, %c0_42] : memref<3x3x128x128xbf16, #tpu.memory_space<vmem>>, vector<1x1x128x128xbf16>
    %39 = vector.shape_cast %38 : vector<1x1x128x128xbf16> to vector<128x128xbf16>
    %cst_43 = arith.constant dense<0.000000e+00> : vector<16x128xf32>
    %40 = tpu.matmul %37, %39, %cst_43 {dimension_numbers = #tpu.dot_dimension_numbers<[1], [0], [0], [1], [0, 0, 1, 1], [], []>} : vector<16x128xbf16>, vector<128x128xbf16>, vector<16x128xf32> -> vector<16x128xf32>
    %41 = arith.addf %36, %40 : vector<16x128xf32>
    %42 = vector.extract_strided_slice %5 {offsets = [1, 0], sizes = [16, 128], strides = [1, 1]} : vector<18x128xbf16> to vector<16x128xbf16>
    %c2_44 = arith.constant 2 : index
    %c1_45 = arith.constant 1 : index
    %c0_46 = arith.constant 0 : index
    %c0_47 = arith.constant 0 : index
    %43 = vector.load %arg5[%c2_44, %c1_45, %c0_46, %c0_47] : memref<3x3x128x128xbf16, #tpu.memory_space<vmem>>, vector<1x1x128x128xbf16>
    %44 = vector.shape_cast %43 : vector<1x1x128x128xbf16> to vector<128x128xbf16>
    %cst_48 = arith.constant dense<0.000000e+00> : vector<16x128xf32>
    %45 = tpu.matmul %42, %44, %cst_48 {dimension_numbers = #tpu.dot_dimension_numbers<[1], [0], [0], [1], [0, 0, 1, 1], [], []>} : vector<16x128xbf16>, vector<128x128xbf16>, vector<16x128xf32> -> vector<16x128xf32>
    %46 = arith.addf %41, %45 : vector<16x128xf32>
    %47 = vector.extract_strided_slice %5 {offsets = [2, 0], sizes = [16, 128], strides = [1, 1]} : vector<18x128xbf16> to vector<16x128xbf16>
    %c2_49 = arith.constant 2 : index
    %c2_50 = arith.constant 2 : index
    %c0_51 = arith.constant 0 : index
    %c0_52 = arith.constant 0 : index
    %48 = vector.load %arg5[%c2_49, %c2_50, %c0_51, %c0_52] : memref<3x3x128x128xbf16, #tpu.memory_space<vmem>>, vector<1x1x128x128xbf16>
    %49 = vector.shape_cast %48 : vector<1x1x128x128xbf16> to vector<128x128xbf16>
    %cst_53 = arith.constant dense<0.000000e+00> : vector<16x128xf32>
    %50 = tpu.matmul %47, %49, %cst_53 {dimension_numbers = #tpu.dot_dimension_numbers<[1], [0], [0], [1], [0, 0, 1, 1], [], []>} : vector<16x128xbf16>, vector<128x128xbf16>, vector<16x128xf32> -> vector<16x128xf32>
    %51 = arith.addf %46, %50 : vector<16x128xf32>
    %52 = arith.truncf %51 : vector<16x128xf32> to vector<16x128xbf16>
    %c0_54 = arith.constant 0 : index
    %c0_55 = arith.constant 0 : index
    %c0_56 = arith.constant 0 : index
    %c0_57 = arith.constant 0 : index
    %53 = vector.load %arg6[%c0_54, %c0_55, %c0_56, %c0_57] : memref<1x1x16x128xbf16, #tpu.memory_space<vmem>>, vector<1x1x16x128xbf16>
    %54 = vector.shape_cast %53 : vector<1x1x16x128xbf16> to vector<16x128xbf16>
    %55 = vector.shape_cast %52 : vector<16x128xbf16> to vector<1x1x16x128xbf16>
    tpu.vector_store %arg6[%c0_54, %c0_55, %c0_56, %c0_57], %55 {strides = array<i32>} : memref<1x1x16x128xbf16, #tpu.memory_space<vmem>>, vector<1x1x16x128xbf16>,
    %cst_58 = arith.constant dense<0.000000e+00> : vector<128xf32>
    %56 = vector.multi_reduction <add>, %51, %cst_58 [0] : vector<16x128xf32> to vector<128xf32>
    %57 = vector.shape_cast %56 : vector<128xf32> to vector<1x128xf32>
    %c0_59 = arith.constant 0 : index
    %c0_60 = arith.constant 0 : index
    %c0_61 = arith.constant 0 : index
    %c0_62 = arith.constant 0 : index
    %58 = vector.load %arg7[%c0_59, %c0_60, %c0_61, %c0_62] : memref<1x1x1x128xf32, #tpu.memory_space<vmem>>, vector<1x1x1x128xf32>
    %59 = vector.shape_cast %58 : vector<1x1x1x128xf32> to vector<1x128xf32>
    %60 = vector.shape_cast %57 : vector<1x128xf32> to vector<1x1x1x128xf32>
    tpu.vector_store %arg7[%c0_59, %c0_60, %c0_61, %c0_62], %60 {strides = array<i32>} : memref<1x1x1x128xf32, #tpu.memory_space<vmem>>, vector<1x1x1x128xf32>,
    %61 = arith.mulf %51, %51 : vector<16x128xf32>
    %cst_63 = arith.constant dense<0.000000e+00> : vector<128xf32>
    %62 = vector.multi_reduction <add>, %61, %cst_63 [0] : vector<16x128xf32> to vector<128xf32>
    %63 = vector.shape_cast %62 : vector<128xf32> to vector<1x128xf32>
    %c0_64 = arith.constant 0 : index
    %c0_65 = arith.constant 0 : index
    %c0_66 = arith.constant 0 : index
    %c0_67 = arith.constant 0 : index
    %64 = vector.load %arg8[%c0_64, %c0_65, %c0_66, %c0_67] : memref<1x1x1x128xf32, #tpu.memory_space<vmem>>, vector<1x1x1x128xf32>
    %65 = vector.shape_cast %64 : vector<1x1x1x128xf32> to vector<1x128xf32>
    %66 = vector.shape_cast %63 : vector<1x128xf32> to vector<1x1x1x128xf32>
    tpu.vector_store %arg8[%c0_64, %c0_65, %c0_66, %c0_67], %66 {strides = array<i32>} : memref<1x1x1x128xf32, #tpu.memory_space<vmem>>, vector<1x1x1x128xf32>,
    return
  }
  func.func @transform_0(%arg0: i32, %arg1: i32) -> (i32, i32, i32, i32) {
    %c0_i32 = arith.constant 0 : i32
    %0 = arith.addi %arg1, %c0_i32 : i32
    %c0_i32_0 = arith.constant 0 : i32
    %c0_i32_1 = arith.constant 0 : i32
    %c0_i32_2 = arith.constant 0 : i32
    return %arg0, %0, %c0_i32_0, %c0_i32_1 : i32, i32, i32, i32
  }
  func.func @transform_1(%arg0: i32, %arg1: i32) -> (i32, i32, i32, i32) {
    %c1_i32 = arith.constant 1 : i32
    %0 = arith.addi %arg1, %c1_i32 : i32
    %c0_i32 = arith.constant 0 : i32
    %c0_i32_0 = arith.constant 0 : i32
    %c0_i32_1 = arith.constant 0 : i32
    return %arg0, %0, %c0_i32, %c0_i32_0 : i32, i32, i32, i32
  }
  func.func @transform_2(%arg0: i32, %arg1: i32) -> (i32, i32, i32, i32) {
    %c2_i32 = arith.constant 2 : i32
    %0 = arith.addi %arg1, %c2_i32 : i32
    %c0_i32 = arith.constant 0 : i32
    %c0_i32_0 = arith.constant 0 : i32
    %c0_i32_1 = arith.constant 0 : i32
    return %arg0, %0, %c0_i32, %c0_i32_0 : i32, i32, i32, i32
  }
  func.func @transform_3(%arg0: i32, %arg1: i32) -> (i32, i32, i32, i32) {
    %c0_i32 = arith.constant 0 : i32
    %c0_i32_0 = arith.constant 0 : i32
    %c0_i32_1 = arith.constant 0 : i32
    %c0_i32_2 = arith.constant 0 : i32
    %c0_i32_3 = arith.constant 0 : i32
    return %c0_i32, %c0_i32_0, %c0_i32_1, %c0_i32_2 : i32, i32, i32, i32
  }
  func.func @transform_4(%arg0: i32, %arg1: i32) -> (i32, i32, i32, i32) {
    %c0_i32 = arith.constant 0 : i32
    %c0_i32_0 = arith.constant 0 : i32
    %c0_i32_1 = arith.constant 0 : i32
    return %arg0, %arg1, %c0_i32, %c0_i32_0 : i32, i32, i32, i32
  }
  func.func @transform_5(%arg0: i32, %arg1: i32) -> (i32, i32, i32, i32) {
    %c0_i32 = arith.constant 0 : i32
    %c0_i32_0 = arith.constant 0 : i32
    %c0_i32_1 = arith.constant 0 : i32
    return %arg0, %arg1, %c0_i32, %c0_i32_0 : i32, i32, i32, i32
  }
  func.func @transform_6(%arg0: i32, %arg1: i32) -> (i32, i32, i32, i32) {
    %c0_i32 = arith.constant 0 : i32
    %c0_i32_0 = arith.constant 0 : i32
    %c0_i32_1 = arith.constant 0 : i32
    return %arg0, %arg1, %c0_i32, %c0_i32_0 : i32, i32, i32, i32
  }
}

module attributes {stable_mosaic.version = 11 : i64} {
  func.func @_bnrelu_deconv_rows_kernel(%arg0: i32, %arg1: memref<256x128xbf16, #tpu.memory_space<vmem>>, %arg2: memref<1x128xf32, #tpu.memory_space<vmem>>, %arg3: memref<1x128xf32, #tpu.memory_space<vmem>>, %arg4: memref<2x128x256xbf16, #tpu.memory_space<vmem>>, %arg5: memref<16x2x16x256xbf16, #tpu.memory_space<vmem>>, %arg6: memref<1x1x256xf32, #tpu.memory_space<vmem>>, %arg7: memref<1x1x256xf32, #tpu.memory_space<vmem>>) attributes {dimension_semantics = [#tpu.dimension_semantics<parallel>], iteration_bounds = array<i64: 2>, scalar_prefetch = 0 : i64, scratch_operands = 0 : i64, tpu.core_type = #tpu.core_type<tc>, window_params = [{transform_indices = @transform_0, window_bounds = array<i64: 256, 128>}, {pipeline_mode = #tpu.pipeline_mode<synchronous>, transform_indices = @transform_1, window_bounds = array<i64: 1, 128>}, {pipeline_mode = #tpu.pipeline_mode<synchronous>, transform_indices = @transform_2, window_bounds = array<i64: 1, 128>}, {pipeline_mode = #tpu.pipeline_mode<synchronous>, transform_indices = @transform_3, window_bounds = array<i64: 2, 128, 256>}, {transform_indices = @transform_4, window_bounds = array<i64: 16, 2, 16, 256>}, {transform_indices = @transform_5, window_bounds = array<i64: 1, 1, 256>}, {transform_indices = @transform_6, window_bounds = array<i64: 1, 1, 256>}]} {
    %c0 = arith.constant 0 : index
    %c0_0 = arith.constant 0 : index
    %0 = vector.load %arg1[%c0, %c0_0] : memref<256x128xbf16, #tpu.memory_space<vmem>>, vector<256x128xbf16>
    %1 = arith.extf %0 : vector<256x128xbf16> to vector<256x128xf32>
    %c0_1 = arith.constant 0 : index
    %c0_2 = arith.constant 0 : index
    %2 = vector.load %arg2[%c0_1, %c0_2] : memref<1x128xf32, #tpu.memory_space<vmem>>, vector<1x128xf32>
    %3 = vector.broadcast %2 : vector<1x128xf32> to vector<256x128xf32>
    %4 = arith.mulf %1, %3 : vector<256x128xf32>
    %c0_3 = arith.constant 0 : index
    %c0_4 = arith.constant 0 : index
    %5 = vector.load %arg3[%c0_3, %c0_4] : memref<1x128xf32, #tpu.memory_space<vmem>>, vector<1x128xf32>
    %6 = vector.broadcast %5 : vector<1x128xf32> to vector<256x128xf32>
    %7 = arith.addf %4, %6 : vector<256x128xf32>
    %cst = arith.constant 0.000000e+00 : f32
    %8 = vector.broadcast %cst : f32 to vector<256x128xf32>
    %9 = arith.maximumf %7, %8 : vector<256x128xf32>
    %10 = arith.truncf %9 : vector<256x128xf32> to vector<256x128xbf16>
    %cst_5 = arith.constant 0.000000e+00 : f32
    %11 = vector.broadcast %cst_5 : f32 to vector<1x256xf32>
    %cst_6 = arith.constant 0.000000e+00 : f32
    %12 = vector.broadcast %cst_6 : f32 to vector<1x256xf32>
    %c0_7 = arith.constant 0 : index
    %c0_8 = arith.constant 0 : index
    %c0_9 = arith.constant 0 : index
    %13 = vector.load %arg4[%c0_7, %c0_8, %c0_9] : memref<2x128x256xbf16, #tpu.memory_space<vmem>>, vector<1x128x256xbf16>
    %14 = vector.shape_cast %13 : vector<1x128x256xbf16> to vector<128x256xbf16>
    %cst_10 = arith.constant dense<0.000000e+00> : vector<256x256xf32>
    %15 = tpu.matmul %10, %14, %cst_10 {dimension_numbers = #tpu.dot_dimension_numbers<[1], [0], [0], [1], [0, 0, 1, 1], [], []>} : vector<256x128xbf16>, vector<128x256xbf16>, vector<256x256xf32> -> vector<256x256xf32>
    %cst_11 = arith.constant dense<0.000000e+00> : vector<256xf32>
    %16 = vector.multi_reduction <add>, %15, %cst_11 [0] : vector<256x256xf32> to vector<256xf32>
    %17 = vector.shape_cast %16 : vector<256xf32> to vector<1x256xf32>
    %18 = arith.addf %11, %17 : vector<1x256xf32>
    %19 = arith.mulf %15, %15 : vector<256x256xf32>
    %cst_12 = arith.constant dense<0.000000e+00> : vector<256xf32>
    %20 = vector.multi_reduction <add>, %19, %cst_12 [0] : vector<256x256xf32> to vector<256xf32>
    %21 = vector.shape_cast %20 : vector<256xf32> to vector<1x256xf32>
    %22 = arith.addf %12, %21 : vector<1x256xf32>
    %23 = vector.extract_strided_slice %15 {offsets = [0, 0], sizes = [16, 256], strides = [1, 1]} : vector<256x256xf32> to vector<16x256xf32>
    %24 = arith.truncf %23 : vector<16x256xf32> to vector<16x256xbf16>
    %c0_13 = arith.constant 0 : index
    %c0_14 = arith.constant 0 : index
    %c0_15 = arith.constant 0 : index
    %c0_16 = arith.constant 0 : index
    %25 = vector.load %arg5[%c0_13, %c0_14, %c0_15, %c0_16] : memref<16x2x16x256xbf16, #tpu.memory_space<vmem>>, vector<1x1x16x256xbf16>
    %26 = vector.shape_cast %25 : vector<1x1x16x256xbf16> to vector<16x256xbf16>
    %27 = vector.shape_cast %24 : vector<16x256xbf16> to vector<1x1x16x256xbf16>
    tpu.vector_store %arg5[%c0_13, %c0_14, %c0_15, %c0_16], %27 {strides = array<i32>} : memref<16x2x16x256xbf16, #tpu.memory_space<vmem>>, vector<1x1x16x256xbf16>,
    %28 = vector.extract_strided_slice %15 {offsets = [16, 0], sizes = [16, 256], strides = [1, 1]} : vector<256x256xf32> to vector<16x256xf32>
    %29 = arith.truncf %28 : vector<16x256xf32> to vector<16x256xbf16>
    %c1 = arith.constant 1 : index
    %c0_17 = arith.constant 0 : index
    %c0_18 = arith.constant 0 : index
    %c0_19 = arith.constant 0 : index
    %30 = vector.load %arg5[%c1, %c0_17, %c0_18, %c0_19] : memref<16x2x16x256xbf16, #tpu.memory_space<vmem>>, vector<1x1x16x256xbf16>
    %31 = vector.shape_cast %30 : vector<1x1x16x256xbf16> to vector<16x256xbf16>
    %32 = vector.shape_cast %29 : vector<16x256xbf16> to vector<1x1x16x256xbf16>
    tpu.vector_store %arg5[%c1, %c0_17, %c0_18, %c0_19], %32 {strides = array<i32>} : memref<16x2x16x256xbf16, #tpu.memory_space<vmem>>, vector<1x1x16x256xbf16>,
    %33 = vector.extract_strided_slice %15 {offsets = [32, 0], sizes = [16, 256], strides = [1, 1]} : vector<256x256xf32> to vector<16x256xf32>
    %34 = arith.truncf %33 : vector<16x256xf32> to vector<16x256xbf16>
    %c2 = arith.constant 2 : index
    %c0_20 = arith.constant 0 : index
    %c0_21 = arith.constant 0 : index
    %c0_22 = arith.constant 0 : index
    %35 = vector.load %arg5[%c2, %c0_20, %c0_21, %c0_22] : memref<16x2x16x256xbf16, #tpu.memory_space<vmem>>, vector<1x1x16x256xbf16>
    %36 = vector.shape_cast %35 : vector<1x1x16x256xbf16> to vector<16x256xbf16>
    %37 = vector.shape_cast %34 : vector<16x256xbf16> to vector<1x1x16x256xbf16>
    tpu.vector_store %arg5[%c2, %c0_20, %c0_21, %c0_22], %37 {strides = array<i32>} : memref<16x2x16x256xbf16, #tpu.memory_space<vmem>>, vector<1x1x16x256xbf16>,
    %38 = vector.extract_strided_slice %15 {offsets = [48, 0], sizes = [16, 256], strides = [1, 1]} : vector<256x256xf32> to vector<16x256xf32>
    %39 = arith.truncf %38 : vector<16x256xf32> to vector<16x256xbf16>
    %c3 = arith.constant 3 : index
    %c0_23 = arith.constant 0 : index
    %c0_24 = arith.constant 0 : index
    %c0_25 = arith.constant 0 : index
    %40 = vector.load %arg5[%c3, %c0_23, %c0_24, %c0_25] : memref<16x2x16x256xbf16, #tpu.memory_space<vmem>>, vector<1x1x16x256xbf16>
    %41 = vector.shape_cast %40 : vector<1x1x16x256xbf16> to vector<16x256xbf16>
    %42 = vector.shape_cast %39 : vector<16x256xbf16> to vector<1x1x16x256xbf16>
    tpu.vector_store %arg5[%c3, %c0_23, %c0_24, %c0_25], %42 {strides = array<i32>} : memref<16x2x16x256xbf16, #tpu.memory_space<vmem>>, vector<1x1x16x256xbf16>,
    %43 = vector.extract_strided_slice %15 {offsets = [64, 0], sizes = [16, 256], strides = [1, 1]} : vector<256x256xf32> to vector<16x256xf32>
    %44 = arith.truncf %43 : vector<16x256xf32> to vector<16x256xbf16>
    %c4 = arith.constant 4 : index
    %c0_26 = arith.constant 0 : index
    %c0_27 = arith.constant 0 : index
    %c0_28 = arith.constant 0 : index
    %45 = vector.load %arg5[%c4, %c0_26, %c0_27, %c0_28] : memref<16x2x16x256xbf16, #tpu.memory_space<vmem>>, vector<1x1x16x256xbf16>
    %46 = vector.shape_cast %45 : vector<1x1x16x256xbf16> to vector<16x256xbf16>
    %47 = vector.shape_cast %44 : vector<16x256xbf16> to vector<1x1x16x256xbf16>
    tpu.vector_store %arg5[%c4, %c0_26, %c0_27, %c0_28], %47 {strides = array<i32>} : memref<16x2x16x256xbf16, #tpu.memory_space<vmem>>, vector<1x1x16x256xbf16>,
    %48 = vector.extract_strided_slice %15 {offsets = [80, 0], sizes = [16, 256], strides = [1, 1]} : vector<256x256xf32> to vector<16x256xf32>
    %49 = arith.truncf %48 : vector<16x256xf32> to vector<16x256xbf16>
    %c5 = arith.constant 5 : index
    %c0_29 = arith.constant 0 : index
    %c0_30 = arith.constant 0 : index
    %c0_31 = arith.constant 0 : index
    %50 = vector.load %arg5[%c5, %c0_29, %c0_30, %c0_31] : memref<16x2x16x256xbf16, #tpu.memory_space<vmem>>, vector<1x1x16x256xbf16>
    %51 = vector.shape_cast %50 : vector<1x1x16x256xbf16> to vector<16x256xbf16>
    %52 = vector.shape_cast %49 : vector<16x256xbf16> to vector<1x1x16x256xbf16>
    tpu.vector_store %arg5[%c5, %c0_29, %c0_30, %c0_31], %52 {strides = array<i32>} : memref<16x2x16x256xbf16, #tpu.memory_space<vmem>>, vector<1x1x16x256xbf16>,
    %53 = vector.extract_strided_slice %15 {offsets = [96, 0], sizes = [16, 256], strides = [1, 1]} : vector<256x256xf32> to vector<16x256xf32>
    %54 = arith.truncf %53 : vector<16x256xf32> to vector<16x256xbf16>
    %c6 = arith.constant 6 : index
    %c0_32 = arith.constant 0 : index
    %c0_33 = arith.constant 0 : index
    %c0_34 = arith.constant 0 : index
    %55 = vector.load %arg5[%c6, %c0_32, %c0_33, %c0_34] : memref<16x2x16x256xbf16, #tpu.memory_space<vmem>>, vector<1x1x16x256xbf16>
    %56 = vector.shape_cast %55 : vector<1x1x16x256xbf16> to vector<16x256xbf16>
    %57 = vector.shape_cast %54 : vector<16x256xbf16> to vector<1x1x16x256xbf16>
    tpu.vector_store %arg5[%c6, %c0_32, %c0_33, %c0_34], %57 {strides = array<i32>} : memref<16x2x16x256xbf16, #tpu.memory_space<vmem>>, vector<1x1x16x256xbf16>,
    %58 = vector.extract_strided_slice %15 {offsets = [112, 0], sizes = [16, 256], strides = [1, 1]} : vector<256x256xf32> to vector<16x256xf32>
    %59 = arith.truncf %58 : vector<16x256xf32> to vector<16x256xbf16>
    %c7 = arith.constant 7 : index
    %c0_35 = arith.constant 0 : index
    %c0_36 = arith.constant 0 : index
    %c0_37 = arith.constant 0 : index
    %60 = vector.load %arg5[%c7, %c0_35, %c0_36, %c0_37] : memref<16x2x16x256xbf16, #tpu.memory_space<vmem>>, vector<1x1x16x256xbf16>
    %61 = vector.shape_cast %60 : vector<1x1x16x256xbf16> to vector<16x256xbf16>
    %62 = vector.shape_cast %59 : vector<16x256xbf16> to vector<1x1x16x256xbf16>
    tpu.vector_store %arg5[%c7, %c0_35, %c0_36, %c0_37], %62 {strides = array<i32>} : memref<16x2x16x256xbf16, #tpu.memory_space<vmem>>, vector<1x1x16x256xbf16>,
    %63 = vector.extract_strided_slice %15 {offsets = [128, 0], sizes = [16, 256], strides = [1, 1]} : vector<256x256xf32> to vector<16x256xf32>
    %64 = arith.truncf %63 : vector<16x256xf32> to vector<16x256xbf16>
    %c8 = arith.constant 8 : index
    %c0_38 = arith.constant 0 : index
    %c0_39 = arith.constant 0 : index
    %c0_40 = arith.constant 0 : index
    %65 = vector.load %arg5[%c8, %c0_38, %c0_39, %c0_40] : memref<16x2x16x256xbf16, #tpu.memory_space<vmem>>, vector<1x1x16x256xbf16>
    %66 = vector.shape_cast %65 : vector<1x1x16x256xbf16> to vector<16x256xbf16>
    %67 = vector.shape_cast %64 : vector<16x256xbf16> to vector<1x1x16x256xbf16>
    tpu.vector_store %arg5[%c8, %c0_38, %c0_39, %c0_40], %67 {strides = array<i32>} : memref<16x2x16x256xbf16, #tpu.memory_space<vmem>>, vector<1x1x16x256xbf16>,
    %68 = vector.extract_strided_slice %15 {offsets = [144, 0], sizes = [16, 256], strides = [1, 1]} : vector<256x256xf32> to vector<16x256xf32>
    %69 = arith.truncf %68 : vector<16x256xf32> to vector<16x256xbf16>
    %c9 = arith.constant 9 : index
    %c0_41 = arith.constant 0 : index
    %c0_42 = arith.constant 0 : index
    %c0_43 = arith.constant 0 : index
    %70 = vector.load %arg5[%c9, %c0_41, %c0_42, %c0_43] : memref<16x2x16x256xbf16, #tpu.memory_space<vmem>>, vector<1x1x16x256xbf16>
    %71 = vector.shape_cast %70 : vector<1x1x16x256xbf16> to vector<16x256xbf16>
    %72 = vector.shape_cast %69 : vector<16x256xbf16> to vector<1x1x16x256xbf16>
    tpu.vector_store %arg5[%c9, %c0_41, %c0_42, %c0_43], %72 {strides = array<i32>} : memref<16x2x16x256xbf16, #tpu.memory_space<vmem>>, vector<1x1x16x256xbf16>,
    %73 = vector.extract_strided_slice %15 {offsets = [160, 0], sizes = [16, 256], strides = [1, 1]} : vector<256x256xf32> to vector<16x256xf32>
    %74 = arith.truncf %73 : vector<16x256xf32> to vector<16x256xbf16>
    %c10 = arith.constant 10 : index
    %c0_44 = arith.constant 0 : index
    %c0_45 = arith.constant 0 : index
    %c0_46 = arith.constant 0 : index
    %75 = vector.load %arg5[%c10, %c0_44, %c0_45, %c0_46] : memref<16x2x16x256xbf16, #tpu.memory_space<vmem>>, vector<1x1x16x256xbf16>
    %76 = vector.shape_cast %75 : vector<1x1x16x256xbf16> to vector<16x256xbf16>
    %77 = vector.shape_cast %74 : vector<16x256xbf16> to vector<1x1x16x256xbf16>
    tpu.vector_store %arg5[%c10, %c0_44, %c0_45, %c0_46], %77 {strides = array<i32>} : memref<16x2x16x256xbf16, #tpu.memory_space<vmem>>, vector<1x1x16x256xbf16>,
    %78 = vector.extract_strided_slice %15 {offsets = [176, 0], sizes = [16, 256], strides = [1, 1]} : vector<256x256xf32> to vector<16x256xf32>
    %79 = arith.truncf %78 : vector<16x256xf32> to vector<16x256xbf16>
    %c11 = arith.constant 11 : index
    %c0_47 = arith.constant 0 : index
    %c0_48 = arith.constant 0 : index
    %c0_49 = arith.constant 0 : index
    %80 = vector.load %arg5[%c11, %c0_47, %c0_48, %c0_49] : memref<16x2x16x256xbf16, #tpu.memory_space<vmem>>, vector<1x1x16x256xbf16>
    %81 = vector.shape_cast %80 : vector<1x1x16x256xbf16> to vector<16x256xbf16>
    %82 = vector.shape_cast %79 : vector<16x256xbf16> to vector<1x1x16x256xbf16>
    tpu.vector_store %arg5[%c11, %c0_47, %c0_48, %c0_49], %82 {strides = array<i32>} : memref<16x2x16x256xbf16, #tpu.memory_space<vmem>>, vector<1x1x16x256xbf16>,
    %83 = vector.extract_strided_slice %15 {offsets = [192, 0], sizes = [16, 256], strides = [1, 1]} : vector<256x256xf32> to vector<16x256xf32>
    %84 = arith.truncf %83 : vector<16x256xf32> to vector<16x256xbf16>
    %c12 = arith.constant 12 : index
    %c0_50 = arith.constant 0 : index
    %c0_51 = arith.constant 0 : index
    %c0_52 = arith.constant 0 : index
    %85 = vector.load %arg5[%c12, %c0_50, %c0_51, %c0_52] : memref<16x2x16x256xbf16, #tpu.memory_space<vmem>>, vector<1x1x16x256xbf16>
    %86 = vector.shape_cast %85 : vector<1x1x16x256xbf16> to vector<16x256xbf16>
    %87 = vector.shape_cast %84 : vector<16x256xbf16> to vector<1x1x16x256xbf16>
    tpu.vector_store %arg5[%c12, %c0_50, %c0_51, %c0_52], %87 {strides = array<i32>} : memref<16x2x16x256xbf16, #tpu.memory_space<vmem>>, vector<1x1x16x256xbf16>,
    %88 = vector.extract_strided_slice %15 {offsets = [208, 0], sizes = [16, 256], strides = [1, 1]} : vector<256x256xf32> to vector<16x256xf32>
    %89 = arith.truncf %88 : vector<16x256xf32> to vector<16x256xbf16>
    %c13 = arith.constant 13 : index
    %c0_53 = arith.constant 0 : index
    %c0_54 = arith.constant 0 : index
    %c0_55 = arith.constant 0 : index
    %90 = vector.load %arg5[%c13, %c0_53, %c0_54, %c0_55] : memref<16x2x16x256xbf16, #tpu.memory_space<vmem>>, vector<1x1x16x256xbf16>
    %91 = vector.shape_cast %90 : vector<1x1x16x256xbf16> to vector<16x256xbf16>
    %92 = vector.shape_cast %89 : vector<16x256xbf16> to vector<1x1x16x256xbf16>
    tpu.vector_store %arg5[%c13, %c0_53, %c0_54, %c0_55], %92 {strides = array<i32>} : memref<16x2x16x256xbf16, #tpu.memory_space<vmem>>, vector<1x1x16x256xbf16>,
    %93 = vector.extract_strided_slice %15 {offsets = [224, 0], sizes = [16, 256], strides = [1, 1]} : vector<256x256xf32> to vector<16x256xf32>
    %94 = arith.truncf %93 : vector<16x256xf32> to vector<16x256xbf16>
    %c14 = arith.constant 14 : index
    %c0_56 = arith.constant 0 : index
    %c0_57 = arith.constant 0 : index
    %c0_58 = arith.constant 0 : index
    %95 = vector.load %arg5[%c14, %c0_56, %c0_57, %c0_58] : memref<16x2x16x256xbf16, #tpu.memory_space<vmem>>, vector<1x1x16x256xbf16>
    %96 = vector.shape_cast %95 : vector<1x1x16x256xbf16> to vector<16x256xbf16>
    %97 = vector.shape_cast %94 : vector<16x256xbf16> to vector<1x1x16x256xbf16>
    tpu.vector_store %arg5[%c14, %c0_56, %c0_57, %c0_58], %97 {strides = array<i32>} : memref<16x2x16x256xbf16, #tpu.memory_space<vmem>>, vector<1x1x16x256xbf16>,
    %98 = vector.extract_strided_slice %15 {offsets = [240, 0], sizes = [16, 256], strides = [1, 1]} : vector<256x256xf32> to vector<16x256xf32>
    %99 = arith.truncf %98 : vector<16x256xf32> to vector<16x256xbf16>
    %c15 = arith.constant 15 : index
    %c0_59 = arith.constant 0 : index
    %c0_60 = arith.constant 0 : index
    %c0_61 = arith.constant 0 : index
    %100 = vector.load %arg5[%c15, %c0_59, %c0_60, %c0_61] : memref<16x2x16x256xbf16, #tpu.memory_space<vmem>>, vector<1x1x16x256xbf16>
    %101 = vector.shape_cast %100 : vector<1x1x16x256xbf16> to vector<16x256xbf16>
    %102 = vector.shape_cast %99 : vector<16x256xbf16> to vector<1x1x16x256xbf16>
    tpu.vector_store %arg5[%c15, %c0_59, %c0_60, %c0_61], %102 {strides = array<i32>} : memref<16x2x16x256xbf16, #tpu.memory_space<vmem>>, vector<1x1x16x256xbf16>,
    %c1_62 = arith.constant 1 : index
    %c0_63 = arith.constant 0 : index
    %c0_64 = arith.constant 0 : index
    %103 = vector.load %arg4[%c1_62, %c0_63, %c0_64] : memref<2x128x256xbf16, #tpu.memory_space<vmem>>, vector<1x128x256xbf16>
    %104 = vector.shape_cast %103 : vector<1x128x256xbf16> to vector<128x256xbf16>
    %cst_65 = arith.constant dense<0.000000e+00> : vector<256x256xf32>
    %105 = tpu.matmul %10, %104, %cst_65 {dimension_numbers = #tpu.dot_dimension_numbers<[1], [0], [0], [1], [0, 0, 1, 1], [], []>} : vector<256x128xbf16>, vector<128x256xbf16>, vector<256x256xf32> -> vector<256x256xf32>
    %cst_66 = arith.constant dense<0.000000e+00> : vector<256xf32>
    %106 = vector.multi_reduction <add>, %105, %cst_66 [0] : vector<256x256xf32> to vector<256xf32>
    %107 = vector.shape_cast %106 : vector<256xf32> to vector<1x256xf32>
    %108 = arith.addf %18, %107 : vector<1x256xf32>
    %109 = arith.mulf %105, %105 : vector<256x256xf32>
    %cst_67 = arith.constant dense<0.000000e+00> : vector<256xf32>
    %110 = vector.multi_reduction <add>, %109, %cst_67 [0] : vector<256x256xf32> to vector<256xf32>
    %111 = vector.shape_cast %110 : vector<256xf32> to vector<1x256xf32>
    %112 = arith.addf %22, %111 : vector<1x256xf32>
    %113 = vector.extract_strided_slice %105 {offsets = [0, 0], sizes = [16, 256], strides = [1, 1]} : vector<256x256xf32> to vector<16x256xf32>
    %114 = arith.truncf %113 : vector<16x256xf32> to vector<16x256xbf16>
    %c0_68 = arith.constant 0 : index
    %c1_69 = arith.constant 1 : index
    %c0_70 = arith.constant 0 : index
    %c0_71 = arith.constant 0 : index
    %115 = vector.load %arg5[%c0_68, %c1_69, %c0_70, %c0_71] : memref<16x2x16x256xbf16, #tpu.memory_space<vmem>>, vector<1x1x16x256xbf16>
    %116 = vector.shape_cast %115 : vector<1x1x16x256xbf16> to vector<16x256xbf16>
    %117 = vector.shape_cast %114 : vector<16x256xbf16> to vector<1x1x16x256xbf16>
    tpu.vector_store %arg5[%c0_68, %c1_69, %c0_70, %c0_71], %117 {strides = array<i32>} : memref<16x2x16x256xbf16, #tpu.memory_space<vmem>>, vector<1x1x16x256xbf16>,
    %118 = vector.extract_strided_slice %105 {offsets = [16, 0], sizes = [16, 256], strides = [1, 1]} : vector<256x256xf32> to vector<16x256xf32>
    %119 = arith.truncf %118 : vector<16x256xf32> to vector<16x256xbf16>
    %c1_72 = arith.constant 1 : index
    %c1_73 = arith.constant 1 : index
    %c0_74 = arith.constant 0 : index
    %c0_75 = arith.constant 0 : index
    %120 = vector.load %arg5[%c1_72, %c1_73, %c0_74, %c0_75] : memref<16x2x16x256xbf16, #tpu.memory_space<vmem>>, vector<1x1x16x256xbf16>
    %121 = vector.shape_cast %120 : vector<1x1x16x256xbf16> to vector<16x256xbf16>
    %122 = vector.shape_cast %119 : vector<16x256xbf16> to vector<1x1x16x256xbf16>
    tpu.vector_store %arg5[%c1_72, %c1_73, %c0_74, %c0_75], %122 {strides = array<i32>} : memref<16x2x16x256xbf16, #tpu.memory_space<vmem>>, vector<1x1x16x256xbf16>,
    %123 = vector.extract_strided_slice %105 {offsets = [32, 0], sizes = [16, 256], strides = [1, 1]} : vector<256x256xf32> to vector<16x256xf32>
    %124 = arith.truncf %123 : vector<16x256xf32> to vector<16x256xbf16>
    %c2_76 = arith.constant 2 : index
    %c1_77 = arith.constant 1 : index
    %c0_78 = arith.constant 0 : index
    %c0_79 = arith.constant 0 : index
    %125 = vector.load %arg5[%c2_76, %c1_77, %c0_78, %c0_79] : memref<16x2x16x256xbf16, #tpu.memory_space<vmem>>, vector<1x1x16x256xbf16>
    %126 = vector.shape_cast %125 : vector<1x1x16x256xbf16> to vector<16x256xbf16>
    %127 = vector.shape_cast %124 : vector<16x256xbf16> to vector<1x1x16x256xbf16>
    tpu.vector_store %arg5[%c2_76, %c1_77, %c0_78, %c0_79], %127 {strides = array<i32>} : memref<16x2x16x256xbf16, #tpu.memory_space<vmem>>, vector<1x1x16x256xbf16>,
    %128 = vector.extract_strided_slice %105 {offsets = [48, 0], sizes = [16, 256], strides = [1, 1]} : vector<256x256xf32> to vector<16x256xf32>
    %129 = arith.truncf %128 : vector<16x256xf32> to vector<16x256xbf16>
    %c3_80 = arith.constant 3 : index
    %c1_81 = arith.constant 1 : index
    %c0_82 = arith.constant 0 : index
    %c0_83 = arith.constant 0 : index
    %130 = vector.load %arg5[%c3_80, %c1_81, %c0_82, %c0_83] : memref<16x2x16x256xbf16, #tpu.memory_space<vmem>>, vector<1x1x16x256xbf16>
    %131 = vector.shape_cast %130 : vector<1x1x16x256xbf16> to vector<16x256xbf16>
    %132 = vector.shape_cast %129 : vector<16x256xbf16> to vector<1x1x16x256xbf16>
    tpu.vector_store %arg5[%c3_80, %c1_81, %c0_82, %c0_83], %132 {strides = array<i32>} : memref<16x2x16x256xbf16, #tpu.memory_space<vmem>>, vector<1x1x16x256xbf16>,
    %133 = vector.extract_strided_slice %105 {offsets = [64, 0], sizes = [16, 256], strides = [1, 1]} : vector<256x256xf32> to vector<16x256xf32>
    %134 = arith.truncf %133 : vector<16x256xf32> to vector<16x256xbf16>
    %c4_84 = arith.constant 4 : index
    %c1_85 = arith.constant 1 : index
    %c0_86 = arith.constant 0 : index
    %c0_87 = arith.constant 0 : index
    %135 = vector.load %arg5[%c4_84, %c1_85, %c0_86, %c0_87] : memref<16x2x16x256xbf16, #tpu.memory_space<vmem>>, vector<1x1x16x256xbf16>
    %136 = vector.shape_cast %135 : vector<1x1x16x256xbf16> to vector<16x256xbf16>
    %137 = vector.shape_cast %134 : vector<16x256xbf16> to vector<1x1x16x256xbf16>
    tpu.vector_store %arg5[%c4_84, %c1_85, %c0_86, %c0_87], %137 {strides = array<i32>} : memref<16x2x16x256xbf16, #tpu.memory_space<vmem>>, vector<1x1x16x256xbf16>,
    %138 = vector.extract_strided_slice %105 {offsets = [80, 0], sizes = [16, 256], strides = [1, 1]} : vector<256x256xf32> to vector<16x256xf32>
    %139 = arith.truncf %138 : vector<16x256xf32> to vector<16x256xbf16>
    %c5_88 = arith.constant 5 : index
    %c1_89 = arith.constant 1 : index
    %c0_90 = arith.constant 0 : index
    %c0_91 = arith.constant 0 : index
    %140 = vector.load %arg5[%c5_88, %c1_89, %c0_90, %c0_91] : memref<16x2x16x256xbf16, #tpu.memory_space<vmem>>, vector<1x1x16x256xbf16>
    %141 = vector.shape_cast %140 : vector<1x1x16x256xbf16> to vector<16x256xbf16>
    %142 = vector.shape_cast %139 : vector<16x256xbf16> to vector<1x1x16x256xbf16>
    tpu.vector_store %arg5[%c5_88, %c1_89, %c0_90, %c0_91], %142 {strides = array<i32>} : memref<16x2x16x256xbf16, #tpu.memory_space<vmem>>, vector<1x1x16x256xbf16>,
    %143 = vector.extract_strided_slice %105 {offsets = [96, 0], sizes = [16, 256], strides = [1, 1]} : vector<256x256xf32> to vector<16x256xf32>
    %144 = arith.truncf %143 : vector<16x256xf32> to vector<16x256xbf16>
    %c6_92 = arith.constant 6 : index
    %c1_93 = arith.constant 1 : index
    %c0_94 = arith.constant 0 : index
    %c0_95 = arith.constant 0 : index
    %145 = vector.load %arg5[%c6_92, %c1_93, %c0_94, %c0_95] : memref<16x2x16x256xbf16, #tpu.memory_space<vmem>>, vector<1x1x16x256xbf16>
    %146 = vector.shape_cast %145 : vector<1x1x16x256xbf16> to vector<16x256xbf16>
    %147 = vector.shape_cast %144 : vector<16x256xbf16> to vector<1x1x16x256xbf16>
    tpu.vector_store %arg5[%c6_92, %c1_93, %c0_94, %c0_95], %147 {strides = array<i32>} : memref<16x2x16x256xbf16, #tpu.memory_space<vmem>>, vector<1x1x16x256xbf16>,
    %148 = vector.extract_strided_slice %105 {offsets = [112, 0], sizes = [16, 256], strides = [1, 1]} : vector<256x256xf32> to vector<16x256xf32>
    %149 = arith.truncf %148 : vector<16x256xf32> to vector<16x256xbf16>
    %c7_96 = arith.constant 7 : index
    %c1_97 = arith.constant 1 : index
    %c0_98 = arith.constant 0 : index
    %c0_99 = arith.constant 0 : index
    %150 = vector.load %arg5[%c7_96, %c1_97, %c0_98, %c0_99] : memref<16x2x16x256xbf16, #tpu.memory_space<vmem>>, vector<1x1x16x256xbf16>
    %151 = vector.shape_cast %150 : vector<1x1x16x256xbf16> to vector<16x256xbf16>
    %152 = vector.shape_cast %149 : vector<16x256xbf16> to vector<1x1x16x256xbf16>
    tpu.vector_store %arg5[%c7_96, %c1_97, %c0_98, %c0_99], %152 {strides = array<i32>} : memref<16x2x16x256xbf16, #tpu.memory_space<vmem>>, vector<1x1x16x256xbf16>,
    %153 = vector.extract_strided_slice %105 {offsets = [128, 0], sizes = [16, 256], strides = [1, 1]} : vector<256x256xf32> to vector<16x256xf32>
    %154 = arith.truncf %153 : vector<16x256xf32> to vector<16x256xbf16>
    %c8_100 = arith.constant 8 : index
    %c1_101 = arith.constant 1 : index
    %c0_102 = arith.constant 0 : index
    %c0_103 = arith.constant 0 : index
    %155 = vector.load %arg5[%c8_100, %c1_101, %c0_102, %c0_103] : memref<16x2x16x256xbf16, #tpu.memory_space<vmem>>, vector<1x1x16x256xbf16>
    %156 = vector.shape_cast %155 : vector<1x1x16x256xbf16> to vector<16x256xbf16>
    %157 = vector.shape_cast %154 : vector<16x256xbf16> to vector<1x1x16x256xbf16>
    tpu.vector_store %arg5[%c8_100, %c1_101, %c0_102, %c0_103], %157 {strides = array<i32>} : memref<16x2x16x256xbf16, #tpu.memory_space<vmem>>, vector<1x1x16x256xbf16>,
    %158 = vector.extract_strided_slice %105 {offsets = [144, 0], sizes = [16, 256], strides = [1, 1]} : vector<256x256xf32> to vector<16x256xf32>
    %159 = arith.truncf %158 : vector<16x256xf32> to vector<16x256xbf16>
    %c9_104 = arith.constant 9 : index
    %c1_105 = arith.constant 1 : index
    %c0_106 = arith.constant 0 : index
    %c0_107 = arith.constant 0 : index
    %160 = vector.load %arg5[%c9_104, %c1_105, %c0_106, %c0_107] : memref<16x2x16x256xbf16, #tpu.memory_space<vmem>>, vector<1x1x16x256xbf16>
    %161 = vector.shape_cast %160 : vector<1x1x16x256xbf16> to vector<16x256xbf16>
    %162 = vector.shape_cast %159 : vector<16x256xbf16> to vector<1x1x16x256xbf16>
    tpu.vector_store %arg5[%c9_104, %c1_105, %c0_106, %c0_107], %162 {strides = array<i32>} : memref<16x2x16x256xbf16, #tpu.memory_space<vmem>>, vector<1x1x16x256xbf16>,
    %163 = vector.extract_strided_slice %105 {offsets = [160, 0], sizes = [16, 256], strides = [1, 1]} : vector<256x256xf32> to vector<16x256xf32>
    %164 = arith.truncf %163 : vector<16x256xf32> to vector<16x256xbf16>
    %c10_108 = arith.constant 10 : index
    %c1_109 = arith.constant 1 : index
    %c0_110 = arith.constant 0 : index
    %c0_111 = arith.constant 0 : index
    %165 = vector.load %arg5[%c10_108, %c1_109, %c0_110, %c0_111] : memref<16x2x16x256xbf16, #tpu.memory_space<vmem>>, vector<1x1x16x256xbf16>
    %166 = vector.shape_cast %165 : vector<1x1x16x256xbf16> to vector<16x256xbf16>
    %167 = vector.shape_cast %164 : vector<16x256xbf16> to vector<1x1x16x256xbf16>
    tpu.vector_store %arg5[%c10_108, %c1_109, %c0_110, %c0_111], %167 {strides = array<i32>} : memref<16x2x16x256xbf16, #tpu.memory_space<vmem>>, vector<1x1x16x256xbf16>,
    %168 = vector.extract_strided_slice %105 {offsets = [176, 0], sizes = [16, 256], strides = [1, 1]} : vector<256x256xf32> to vector<16x256xf32>
    %169 = arith.truncf %168 : vector<16x256xf32> to vector<16x256xbf16>
    %c11_112 = arith.constant 11 : index
    %c1_113 = arith.constant 1 : index
    %c0_114 = arith.constant 0 : index
    %c0_115 = arith.constant 0 : index
    %170 = vector.load %arg5[%c11_112, %c1_113, %c0_114, %c0_115] : memref<16x2x16x256xbf16, #tpu.memory_space<vmem>>, vector<1x1x16x256xbf16>
    %171 = vector.shape_cast %170 : vector<1x1x16x256xbf16> to vector<16x256xbf16>
    %172 = vector.shape_cast %169 : vector<16x256xbf16> to vector<1x1x16x256xbf16>
    tpu.vector_store %arg5[%c11_112, %c1_113, %c0_114, %c0_115], %172 {strides = array<i32>} : memref<16x2x16x256xbf16, #tpu.memory_space<vmem>>, vector<1x1x16x256xbf16>,
    %173 = vector.extract_strided_slice %105 {offsets = [192, 0], sizes = [16, 256], strides = [1, 1]} : vector<256x256xf32> to vector<16x256xf32>
    %174 = arith.truncf %173 : vector<16x256xf32> to vector<16x256xbf16>
    %c12_116 = arith.constant 12 : index
    %c1_117 = arith.constant 1 : index
    %c0_118 = arith.constant 0 : index
    %c0_119 = arith.constant 0 : index
    %175 = vector.load %arg5[%c12_116, %c1_117, %c0_118, %c0_119] : memref<16x2x16x256xbf16, #tpu.memory_space<vmem>>, vector<1x1x16x256xbf16>
    %176 = vector.shape_cast %175 : vector<1x1x16x256xbf16> to vector<16x256xbf16>
    %177 = vector.shape_cast %174 : vector<16x256xbf16> to vector<1x1x16x256xbf16>
    tpu.vector_store %arg5[%c12_116, %c1_117, %c0_118, %c0_119], %177 {strides = array<i32>} : memref<16x2x16x256xbf16, #tpu.memory_space<vmem>>, vector<1x1x16x256xbf16>,
    %178 = vector.extract_strided_slice %105 {offsets = [208, 0], sizes = [16, 256], strides = [1, 1]} : vector<256x256xf32> to vector<16x256xf32>
    %179 = arith.truncf %178 : vector<16x256xf32> to vector<16x256xbf16>
    %c13_120 = arith.constant 13 : index
    %c1_121 = arith.constant 1 : index
    %c0_122 = arith.constant 0 : index
    %c0_123 = arith.constant 0 : index
    %180 = vector.load %arg5[%c13_120, %c1_121, %c0_122, %c0_123] : memref<16x2x16x256xbf16, #tpu.memory_space<vmem>>, vector<1x1x16x256xbf16>
    %181 = vector.shape_cast %180 : vector<1x1x16x256xbf16> to vector<16x256xbf16>
    %182 = vector.shape_cast %179 : vector<16x256xbf16> to vector<1x1x16x256xbf16>
    tpu.vector_store %arg5[%c13_120, %c1_121, %c0_122, %c0_123], %182 {strides = array<i32>} : memref<16x2x16x256xbf16, #tpu.memory_space<vmem>>, vector<1x1x16x256xbf16>,
    %183 = vector.extract_strided_slice %105 {offsets = [224, 0], sizes = [16, 256], strides = [1, 1]} : vector<256x256xf32> to vector<16x256xf32>
    %184 = arith.truncf %183 : vector<16x256xf32> to vector<16x256xbf16>
    %c14_124 = arith.constant 14 : index
    %c1_125 = arith.constant 1 : index
    %c0_126 = arith.constant 0 : index
    %c0_127 = arith.constant 0 : index
    %185 = vector.load %arg5[%c14_124, %c1_125, %c0_126, %c0_127] : memref<16x2x16x256xbf16, #tpu.memory_space<vmem>>, vector<1x1x16x256xbf16>
    %186 = vector.shape_cast %185 : vector<1x1x16x256xbf16> to vector<16x256xbf16>
    %187 = vector.shape_cast %184 : vector<16x256xbf16> to vector<1x1x16x256xbf16>
    tpu.vector_store %arg5[%c14_124, %c1_125, %c0_126, %c0_127], %187 {strides = array<i32>} : memref<16x2x16x256xbf16, #tpu.memory_space<vmem>>, vector<1x1x16x256xbf16>,
    %188 = vector.extract_strided_slice %105 {offsets = [240, 0], sizes = [16, 256], strides = [1, 1]} : vector<256x256xf32> to vector<16x256xf32>
    %189 = arith.truncf %188 : vector<16x256xf32> to vector<16x256xbf16>
    %c15_128 = arith.constant 15 : index
    %c1_129 = arith.constant 1 : index
    %c0_130 = arith.constant 0 : index
    %c0_131 = arith.constant 0 : index
    %190 = vector.load %arg5[%c15_128, %c1_129, %c0_130, %c0_131] : memref<16x2x16x256xbf16, #tpu.memory_space<vmem>>, vector<1x1x16x256xbf16>
    %191 = vector.shape_cast %190 : vector<1x1x16x256xbf16> to vector<16x256xbf16>
    %192 = vector.shape_cast %189 : vector<16x256xbf16> to vector<1x1x16x256xbf16>
    tpu.vector_store %arg5[%c15_128, %c1_129, %c0_130, %c0_131], %192 {strides = array<i32>} : memref<16x2x16x256xbf16, #tpu.memory_space<vmem>>, vector<1x1x16x256xbf16>,
    %c0_132 = arith.constant 0 : index
    %c0_133 = arith.constant 0 : index
    %c0_134 = arith.constant 0 : index
    %193 = vector.load %arg6[%c0_132, %c0_133, %c0_134] : memref<1x1x256xf32, #tpu.memory_space<vmem>>, vector<1x1x256xf32>
    %194 = vector.shape_cast %193 : vector<1x1x256xf32> to vector<1x256xf32>
    %195 = vector.shape_cast %108 : vector<1x256xf32> to vector<1x1x256xf32>
    tpu.vector_store %arg6[%c0_132, %c0_133, %c0_134], %195 {strides = array<i32>} : memref<1x1x256xf32, #tpu.memory_space<vmem>>, vector<1x1x256xf32>,
    %c0_135 = arith.constant 0 : index
    %c0_136 = arith.constant 0 : index
    %c0_137 = arith.constant 0 : index
    %196 = vector.load %arg7[%c0_135, %c0_136, %c0_137] : memref<1x1x256xf32, #tpu.memory_space<vmem>>, vector<1x1x256xf32>
    %197 = vector.shape_cast %196 : vector<1x1x256xf32> to vector<1x256xf32>
    %198 = vector.shape_cast %112 : vector<1x256xf32> to vector<1x1x256xf32>
    tpu.vector_store %arg7[%c0_135, %c0_136, %c0_137], %198 {strides = array<i32>} : memref<1x1x256xf32, #tpu.memory_space<vmem>>, vector<1x1x256xf32>,
    return
  }
  func.func @transform_0(%arg0: i32) -> (i32, i32) {
    %c0_i32 = arith.constant 0 : i32
    %c0_i32_0 = arith.constant 0 : i32
    return %arg0, %c0_i32 : i32, i32
  }
  func.func @transform_1(%arg0: i32) -> (i32, i32) {
    %c0_i32 = arith.constant 0 : i32
    %c0_i32_0 = arith.constant 0 : i32
    %c0_i32_1 = arith.constant 0 : i32
    return %c0_i32, %c0_i32_0 : i32, i32
  }
  func.func @transform_2(%arg0: i32) -> (i32, i32) {
    %c0_i32 = arith.constant 0 : i32
    %c0_i32_0 = arith.constant 0 : i32
    %c0_i32_1 = arith.constant 0 : i32
    return %c0_i32, %c0_i32_0 : i32, i32
  }
  func.func @transform_3(%arg0: i32) -> (i32, i32, i32) {
    %c0_i32 = arith.constant 0 : i32
    %c0_i32_0 = arith.constant 0 : i32
    %c0_i32_1 = arith.constant 0 : i32
    %c0_i32_2 = arith.constant 0 : i32
    return %c0_i32, %c0_i32_0, %c0_i32_1 : i32, i32, i32
  }
  func.func @transform_4(%arg0: i32) -> (i32, i32, i32, i32) {
    %c0_i32 = arith.constant 0 : i32
    %c0_i32_0 = arith.constant 0 : i32
    %c0_i32_1 = arith.constant 0 : i32
    %c0_i32_2 = arith.constant 0 : i32
    return %arg0, %c0_i32, %c0_i32_0, %c0_i32_1 : i32, i32, i32, i32
  }
  func.func @transform_5(%arg0: i32) -> (i32, i32, i32) {
    %c0_i32 = arith.constant 0 : i32
    %c0_i32_0 = arith.constant 0 : i32
    %c0_i32_1 = arith.constant 0 : i32
    return %arg0, %c0_i32, %c0_i32_0 : i32, i32, i32
  }
  func.func @transform_6(%arg0: i32) -> (i32, i32, i32) {
    %c0_i32 = arith.constant 0 : i32
    %c0_i32_0 = arith.constant 0 : i32
    %c0_i32_1 = arith.constant 0 : i32
    return %arg0, %c0_i32, %c0_i32_0 : i32, i32, i32
  }
}

module attributes {stable_mosaic.version = 11 : i64} {
  func.func @_bn_add_relu_kernel(%arg0: i32, %arg1: memref<512x256xbf16, #tpu.memory_space<vmem>>, %arg2: memref<512x256xbf16, #tpu.memory_space<vmem>>, %arg3: memref<1x256xf32, #tpu.memory_space<vmem>>, %arg4: memref<1x256xf32, #tpu.memory_space<vmem>>, %arg5: memref<512x256xf32, #tpu.memory_space<vmem>>) attributes {dimension_semantics = [#tpu.dimension_semantics<parallel>], iteration_bounds = array<i64: 2>, scalar_prefetch = 0 : i64, scratch_operands = 0 : i64, tpu.core_type = #tpu.core_type<tc>, window_params = [{transform_indices = @transform_0, window_bounds = array<i64: 512, 256>}, {transform_indices = @transform_1, window_bounds = array<i64: 512, 256>}, {pipeline_mode = #tpu.pipeline_mode<synchronous>, transform_indices = @transform_2, window_bounds = array<i64: 1, 256>}, {pipeline_mode = #tpu.pipeline_mode<synchronous>, transform_indices = @transform_3, window_bounds = array<i64: 1, 256>}, {transform_indices = @transform_4, window_bounds = array<i64: 512, 256>}]} {
    %c0 = arith.constant 0 : index
    %c0_0 = arith.constant 0 : index
    %0 = vector.load %arg1[%c0, %c0_0] : memref<512x256xbf16, #tpu.memory_space<vmem>>, vector<512x256xbf16>
    %1 = arith.extf %0 : vector<512x256xbf16> to vector<512x256xf32>
    %c0_1 = arith.constant 0 : index
    %c0_2 = arith.constant 0 : index
    %2 = vector.load %arg2[%c0_1, %c0_2] : memref<512x256xbf16, #tpu.memory_space<vmem>>, vector<512x256xbf16>
    %3 = arith.extf %2 : vector<512x256xbf16> to vector<512x256xf32>
    %c0_3 = arith.constant 0 : index
    %c0_4 = arith.constant 0 : index
    %4 = vector.load %arg3[%c0_3, %c0_4] : memref<1x256xf32, #tpu.memory_space<vmem>>, vector<1x256xf32>
    %5 = vector.broadcast %4 : vector<1x256xf32> to vector<512x256xf32>
    %6 = arith.mulf %1, %5 : vector<512x256xf32>
    %c0_5 = arith.constant 0 : index
    %c0_6 = arith.constant 0 : index
    %7 = vector.load %arg4[%c0_5, %c0_6] : memref<1x256xf32, #tpu.memory_space<vmem>>, vector<1x256xf32>
    %8 = vector.broadcast %7 : vector<1x256xf32> to vector<512x256xf32>
    %9 = arith.addf %6, %8 : vector<512x256xf32>
    %10 = arith.addf %9, %3 : vector<512x256xf32>
    %cst = arith.constant 0.000000e+00 : f32
    %11 = vector.broadcast %cst : f32 to vector<512x256xf32>
    %12 = arith.maximumf %10, %11 : vector<512x256xf32>
    %c0_7 = arith.constant 0 : index
    %c0_8 = arith.constant 0 : index
    %13 = vector.load %arg5[%c0_7, %c0_8] : memref<512x256xf32, #tpu.memory_space<vmem>>, vector<512x256xf32>
    tpu.vector_store %arg5[%c0_7, %c0_8], %12 {strides = array<i32>} : memref<512x256xf32, #tpu.memory_space<vmem>>, vector<512x256xf32>,
    return
  }
  func.func @transform_0(%arg0: i32) -> (i32, i32) {
    %c0_i32 = arith.constant 0 : i32
    %c0_i32_0 = arith.constant 0 : i32
    return %arg0, %c0_i32 : i32, i32
  }
  func.func @transform_1(%arg0: i32) -> (i32, i32) {
    %c0_i32 = arith.constant 0 : i32
    %c0_i32_0 = arith.constant 0 : i32
    return %arg0, %c0_i32 : i32, i32
  }
  func.func @transform_2(%arg0: i32) -> (i32, i32) {
    %c0_i32 = arith.constant 0 : i32
    %c0_i32_0 = arith.constant 0 : i32
    %c0_i32_1 = arith.constant 0 : i32
    return %c0_i32, %c0_i32_0 : i32, i32
  }
  func.func @transform_3(%arg0: i32) -> (i32, i32) {
    %c0_i32 = arith.constant 0 : i32
    %c0_i32_0 = arith.constant 0 : i32
    %c0_i32_1 = arith.constant 0 : i32
    return %c0_i32, %c0_i32_0 : i32, i32
  }
  func.func @transform_4(%arg0: i32) -> (i32, i32) {
    %c0_i32 = arith.constant 0 : i32
    %c0_i32_0 = arith.constant 0 : i32
    return %arg0, %c0_i32 : i32, i32
  }
}

</mosaic_0001>

<llo_original>
// kernel: up_decoder_forward.4
$region0: #{up_decoder_forward.4}
  #allocation0 [shape = 'u32[]', space=smem, size = 0x4, offset = 0x4, fixed_abs, tag = 'smem constant byte address 0x4 - core index']
  #allocation1 [shape = 'u32[144,128]{1,0:T(1,128)}', space=vmem, size = 0x12000, scoped, tag = 'internal scratch']
  %s0 = inlined_call_operand.vmem [shape: bf16[2,18,18,128], index: 0, kind: input, shape index: {}, may-alias: {0,1,2}]
  %s1 = inlined_call_operand.vmem [shape: bf16[2,18,18,128], index: 1, kind: input, shape index: {}, may-alias: {0,1,2}]
  %s2 = inlined_call_operand.vmem [shape: bf16[2,18,18,128], index: 2, kind: input, shape index: {}, may-alias: {0,1,2}]
  %s3 = inlined_call_operand.vmem [shape: bf16[3,3,128,128], index: 3, kind: input, shape index: {}]
  %s4 = inlined_call_operand.vmem [shape: bf16[2,16,16,128], index: 4, kind: output, shape index: {0}]
  %s5 = inlined_call_operand.vmem [shape: f32[2,16,1,128], index: 5, kind: output, shape index: {1}]
  %s6 = inlined_call_operand.vmem [shape: f32[2,16,1,128], index: 6, kind: output, shape index: {2}]
  %7 = xla_tuple %s4, %s5, %s6
  %s8 = sld [smem:[#allocation0]]
  $region65: #{up_decoder_forward.4} parent=0
    _
  %s10 = ssub.s32 1, %s8
  %s11 = scalar_select 0, %s10, %s8
  loop: start=0, step=1, limit=34
  $region2: #{up_decoder_forward.4} parent=0 // loop_pre_header
    _
  $region3: #{up_decoder_forward.4} parent=0 // loop_header
    %s13 = sphi 0, %s17
    %p14 = scmp.ge.s32.totalorder %s13, 34
    %s20 = sphi 0, %s32
    %s21 = sphi 0, %s28
    %s22 = sphi 0, %s20
    %s23 = sphi 0, %s21
    %s24 = sphi 0, %s22
    %s25 = sphi 0, %s23
    %s37 = sphi 0, %s39
    %s40 = sphi 0, %s37
    %s41 = sphi 0, %s40
    %s57 = sphi 0, %s41
    %s67 = sphi 0, %s69
    %s70 = sphi 0, %s67
    %s71 = sphi 0, %s70
    %s87 = sphi 0, %s71
    %s97 = sphi 0, %s99
    %s100 = sphi 0, %s97
    %s101 = sphi 0, %s100
    %s117 = sphi 0, %s101
    %s121 = sphi 0, %s121
    %s123 = sphi 0, %s121
    %s124 = sphi 0, %s123
    %s138 = sphi 0, %s124
    %s146 = sphi 0, %s148
    %s149 = sphi 0, %s146
    %s150 = sphi 0, %s149
    %s166 = sphi 0, %s150
    %s174 = sphi 0, %s176
    %s177 = sphi 0, %s174
    %s178 = sphi 0, %s177
    %s194 = sphi 0, %s178
    %s202 = sphi 0, %s204
    %s205 = sphi 0, %s202
    %s206 = sphi 0, %s205
    %s222 = sphi 0, %s206
  $region4: #{up_decoder_forward.4} parent=0 // loop_header_branch
    %16 = sbr.rel (%p14) target = $region8
  $region5: #{up_decoder_forward.4} parent=0 // loop_body
    %s18 = ssub.s32 %s13, 1
    %s19 = ssub.s32 %s13, 2
    %s26 = sadd.s32 1, %s21
    %p27 = scmp.ge.s32.totalorder %s26, 16
    %s28 = scalar_select %p27, 0, %s26
    %s29 = sadd.s32 1, %s20
    %s30 = scalar_select %p27, %s29, %s20
    %p31 = scmp.ge.s32.totalorder %s30, 2
    %s32 = scalar_select %p31, 0, %s30
    %s33 = ssub.s32 %s20, %s32
    %s34 = ssub.s32 %s21, %s28
    %s35 = sor.u32 %s33, %s34
    %p36 = scmp.eq.s32.totalorder %s35, 0
    %s38 = sadd.s32 %s37, 1
    %s39 = scalar_select %p36, %s37, %s38
    %p42 = pneg %p36
    %p43 = scmp.eq.s32.totalorder %s13, 31
    %p44 = por %p42, %p43
    %p45 = scmp.ne.s32.totalorder %s37, %s40
    %p46 = scmp.eq.s32.totalorder %s13, 0
    %p47 = por %p45, %p46
    %p48 = scmp.ne.s32.totalorder %s37, %s40
    %p49 = scmp.eq.s32.totalorder %s18, 31
    %p50 = por %p48, %p49
    %p51 = scmp.ne.s32.totalorder %s40, %s41
    %p52 = scmp.eq.s32.totalorder %s18, 0
    %p53 = por %p51, %p52
    %p54 = scmp.ne.s32.totalorder %s40, %s41
    %p55 = scmp.eq.s32.totalorder %s19, 31
    %p56 = por %p54, %p55
    %p58 = scmp.ne.s32.totalorder %s41, %s57
    %p59 = scmp.eq.s32.totalorder %s19, 0
    %p60 = por %p58, %p59
    %s61 = sadd.s32 %s21, 1
    %s62 = sadd.s32 %s28, 1
    %s63 = ssub.s32 %s20, %s32
    %s64 = ssub.s32 %s61, %s62
    %s65 = sor.u32 %s63, %s64
    %p66 = scmp.eq.s32.totalorder %s65, 0
    %s68 = sadd.s32 %s67, 1
    %s69 = scalar_select %p66, %s67, %s68
    %p72 = pneg %p66
    %p73 = scmp.eq.s32.totalorder %s13, 31
    %p74 = por %p72, %p73
    %p75 = scmp.ne.s32.totalorder %s67, %s70
    %p76 = scmp.eq.s32.totalorder %s13, 0
    %p77 = por %p75, %p76
    %p78 = scmp.ne.s32.totalorder %s67, %s70
    %p79 = scmp.eq.s32.totalorder %s18, 31
    %p80 = por %p78, %p79
    %p81 = scmp.ne.s32.totalorder %s70, %s71
    %p82 = scmp.eq.s32.totalorder %s18, 0
    %p83 = por %p81, %p82
    %p84 = scmp.ne.s32.totalorder %s70, %s71
    %p85 = scmp.eq.s32.totalorder %s19, 31
    %p86 = por %p84, %p85
    %p88 = scmp.ne.s32.totalorder %s71, %s87
    %p89 = scmp.eq.s32.totalorder %s19, 0
    %p90 = por %p88, %p89
    %s91 = sadd.s32 %s21, 2
    %s92 = sadd.s32 %s28, 2
    %s93 = ssub.s32 %s20, %s32
    %s94 = ssub.s32 %s91, %s92
    %s95 = sor.u32 %s93, %s94
    %p96 = scmp.eq.s32.totalorder %s95, 0
    %s98 = sadd.s32 %s97, 1
    %s99 = scalar_select %p96, %s97, %s98
    %p102 = pneg %p96
    %p103 = scmp.eq.s32.totalorder %s13, 31
    %p104 = por %p102, %p103
    %p105 = scmp.ne.s32.totalorder %s97, %s100
    %p106 = scmp.eq.s32.totalorder %s13, 0
    %p107 = por %p105, %p106
    %p108 = scmp.ne.s32.totalorder %s97, %s100
    %p109 = scmp.eq.s32.totalorder %s18, 31
    %p110 = por %p108, %p109
    %p111 = scmp.ne.s32.totalorder %s100, %s101
    %p112 = scmp.eq.s32.totalorder %s18, 0
    %p113 = por %p111, %p112
    %p114 = scmp.ne.s32.totalorder %s100, %s101
    %p115 = scmp.eq.s32.totalorder %s19, 31
    %p116 = por %p114, %p115
    %p118 = scmp.ne.s32.totalorder %s101, %s117
    %p119 = scmp.eq.s32.totalorder %s19, 0
    %p120 = por %p118, %p119
    %s122 = sadd.s32 %s121, 1
    %p125 = scmp.eq.s32.totalorder %s13, 31
    %p126 = scmp.ne.s32.totalorder %s121, %s123
    %p127 = scmp.eq.s32.totalorder %s13, 0
    %p128 = por %p126, %p127
    %p129 = scmp.ne.s32.totalorder %s121, %s123
    %p130 = scmp.eq.s32.totalorder %s18, 31
    %p131 = por %p129, %p130
    %p132 = scmp.ne.s32.totalorder %s123, %s124
    %p133 = scmp.eq.s32.totalorder %s18, 0
    %p134 = por %p132, %p133
    %p135 = scmp.ne.s32.totalorder %s123, %s124
    %p136 = scmp.eq.s32.totalorder %s19, 31
    %p137 = por %p135, %p136
    %p139 = scmp.ne.s32.totalorder %s124, %s138
    %p140 = scmp.eq.s32.totalorder %s19, 0
    %p141 = por %p139, %p140
    %s142 = ssub.s32 %s20, %s32
    %s143 = ssub.s32 %s21, %s28
    %s144 = sor.u32 %s142, %s143
    %p145 = scmp.eq.s32.totalorder %s144, 0
    %s147 = sadd.s32 %s146, 1
    %s148 = scalar_select %p145, %s146, %s147
    %p151 = pneg %p145
    %p152 = scmp.eq.s32.totalorder %s13, 31
    %p153 = por %p151, %p152
    %p154 = scmp.ne.s32.totalorder %s146, %s149
    %p155 = scmp.eq.s32.totalorder %s13, 0
    %p156 = por %p154, %p155
    %p157 = scmp.ne.s32.totalorder %s146, %s149
    %p158 = scmp.eq.s32.totalorder %s18, 31
    %p159 = por %p157, %p158
    %p160 = scmp.ne.s32.totalorder %s149, %s150
    %p161 = scmp.eq.s32.totalorder %s18, 0
    %p162 = por %p160, %p161
    %p163 = scmp.ne.s32.totalorder %s149, %s150
    %p164 = scmp.eq.s32.totalorder %s19, 31
    %p165 = por %p163, %p164
    %p167 = scmp.ne.s32.totalorder %s150, %s166
    %p168 = scmp.eq.s32.totalorder %s19, 0
    %p169 = por %p167, %p168
    %s170 = ssub.s32 %s20, %s32
    %s171 = ssub.s32 %s21, %s28
    %s172 = sor.u32 %s170, %s171
    %p173 = scmp.eq.s32.totalorder %s172, 0
    %s175 = sadd.s32 %s174, 1
    %s176 = scalar_select %p173, %s174, %s175
    %p179 = pneg %p173
    %p180 = scmp.eq.s32.totalorder %s13, 31
    %p181 = por %p179, %p180
    %p182 = scmp.ne.s32.totalorder %s174, %s177
    %p183 = scmp.eq.s32.totalorder %s13, 0
    %p184 = por %p182, %p183
    %p185 = scmp.ne.s32.totalorder %s174, %s177
    %p186 = scmp.eq.s32.totalorder %s18, 31
    %p187 = por %p185, %p186
    %p188 = scmp.ne.s32.totalorder %s177, %s178
    %p189 = scmp.eq.s32.totalorder %s18, 0
    %p190 = por %p188, %p189
    %p191 = scmp.ne.s32.totalorder %s177, %s178
    %p192 = scmp.eq.s32.totalorder %s19, 31
    %p193 = por %p191, %p192
    %p195 = scmp.ne.s32.totalorder %s178, %s194
    %p196 = scmp.eq.s32.totalorder %s19, 0
    %p197 = por %p195, %p196
    %s198 = ssub.s32 %s20, %s32
    %s199 = ssub.s32 %s21, %s28
    %s200 = sor.u32 %s198, %s199
    %p201 = scmp.eq.s32.totalorder %s200, 0
    %s203 = sadd.s32 %s202, 1
    %s204 = scalar_select %p201, %s202, %s203
    %p207 = pneg %p201
    %p208 = scmp.eq.s32.totalorder %s13, 31
    %p209 = por %p207, %p208
    %p210 = scmp.ne.s32.totalorder %s202, %s205
    %p211 = scmp.eq.s32.totalorder %s13, 0
    %p212 = por %p210, %p211
    %p213 = scmp.ne.s32.totalorder %s202, %s205
    %p214 = scmp.eq.s32.totalorder %s18, 31
    %p215 = por %p213, %p214
    %p216 = scmp.ne.s32.totalorder %s205, %s206
    %p217 = scmp.eq.s32.totalorder %s18, 0
    %p218 = por %p216, %p217
    %p219 = scmp.ne.s32.totalorder %s205, %s206
    %p220 = scmp.eq.s32.totalorder %s19, 31
    %p221 = por %p219, %p220
    %p223 = scmp.ne.s32.totalorder %s206, %s222
    %p224 = scmp.eq.s32.totalorder %s19, 0
    %p225 = por %p223, %p224
    %p226 = scmp.le.s32.totalorder 1, %s13
    %p227 = scmp.lt.s32.totalorder %s13, 33
    %p228 = pnand %p226, %p227
    %p229 = pneg %p228
    // Predicated region
    $region9: #{up_decoder_forward.4} parent=5 // pred_check
      _
    $region10: #{up_decoder_forward.4} parent=5 // pred_check_branch
      %231 = sbr.rel (%p228) target = $region12
    $region11: #{up_decoder_forward.4} parent=5 // pred_region
      %s232 = ssub.s32 %s13, 1
      // Predicated region
      $region13: #{up_decoder_forward.4} parent=11 // pred_check
        %p233 = pneg %p134
      $region14: #{up_decoder_forward.4} parent=11 // pred_check_branch
        %235 = sbr.rel (%p233) target = $region16
      $region15: #{up_decoder_forward.4} parent=11 // pred_region
        _
      $region16: #{up_decoder_forward.4} parent=11 // pred_fallthru
        _
    $region12: #{up_decoder_forward.4} parent=5 // pred_fallthru
      _
    %p236 = scmp.lt.s32.totalorder %s13, 32
    // Predicated region
    $region17: #{up_decoder_forward.4} parent=5 // pred_check
      %p237 = pneg %p236
    $region18: #{up_decoder_forward.4} parent=5 // pred_check_branch
      %239 = sbr.rel (%p237) target = $region20
    $region19: #{up_decoder_forward.4} parent=5 // pred_region
      // Predicated region
      $region21: #{up_decoder_forward.4} parent=19 // pred_check
        %p240 = pneg %p47
      $region22: #{up_decoder_forward.4} parent=19 // pred_check_branch
        %242 = sbr.rel (%p240) target = $region24
      $region23: #{up_decoder_forward.4} parent=19 // pred_region
        %p243 = scmp.lt.s32.totalorder %s20, 1
        %s244 = scalar_select %p243, %s20, 1
        %p245 = scmp.lt.s32.totalorder %s21, 17
        %s246 = scalar_select %p245, %s21, 17
        %s247 = smul.addr %s246, 3
        %s248 = smul.addr %s244, 54
        %s249 = sadd.s32 %s247, %s248
        %s250 = smul.addr %s249, 4
        %s251 = scalar_lea.vmem %s0, %s250
      $region24: #{up_decoder_forward.4} parent=19 // pred_fallthru
        _
      // Predicated region
      $region25: #{up_decoder_forward.4} parent=19 // pred_check
        %p252 = pneg %p77
      $region26: #{up_decoder_forward.4} parent=19 // pred_check_branch
        %254 = sbr.rel (%p252) target = $region28
      $region27: #{up_decoder_forward.4} parent=19 // pred_region
        %s255 = sadd.s32 %s21, 1
        %p256 = scmp.lt.s32.totalorder %s20, 1
        %s257 = scalar_select %p256, %s20, 1
        %p258 = scmp.lt.s32.totalorder %s255, 17
        %s259 = scalar_select %p258, %s255, 17
        %s260 = smul.addr %s259, 3
        %s261 = smul.addr %s257, 54
        %s262 = sadd.s32 %s260, %s261
        %s263 = smul.addr %s262, 4
        %s264 = scalar_lea.vmem %s1, %s263
        %s265 = sadd.s32 %s21, 1
      $region28: #{up_decoder_forward.4} parent=19 // pred_fallthru
        _
      // Predicated region
      $region29: #{up_decoder_forward.4} parent=19 // pred_check
        %p266 = pneg %p107
      $region30: #{up_decoder_forward.4} parent=19 // pred_check_branch
        %268 = sbr.rel (%p266) target = $region32
      $region31: #{up_decoder_forward.4} parent=19 // pred_region
        %s269 = sadd.s32 %s21, 2
        %p270 = scmp.lt.s32.totalorder %s20, 1
        %s271 = scalar_select %p270, %s20, 1
        %p272 = scmp.lt.s32.totalorder %s269, 17
        %s273 = scalar_select %p272, %s269, 17
        %s274 = smul.addr %s273, 3
        %s275 = smul.addr %s271, 54
        %s276 = sadd.s32 %s274, %s275
        %s277 = smul.addr %s276, 4
        %s278 = scalar_lea.vmem %s2, %s277
        %s279 = sadd.s32 %s21, 2
      $region32: #{up_decoder_forward.4} parent=19 // pred_fallthru
        _
    $region20: #{up_decoder_forward.4} parent=5 // pred_fallthru
      _
    %p280 = scmp.le.s32.totalorder 1, %s13
    %p281 = scmp.lt.s32.totalorder %s13, 33
    %p282 = pnand %p280, %p281
    %p283 = pneg %p282
    // Predicated region
    $region33: #{up_decoder_forward.4} parent=5 // pred_check
      _
    $region34: #{up_decoder_forward.4} parent=5 // pred_check_branch
      %285 = sbr.rel (%p282) target = $region36
    $region35: #{up_decoder_forward.4} parent=5 // pred_region
      %s286 = ssub.s32 %s13, 1
      %p287 = scmp.lt.s32.totalorder %s22, 1
      %s288 = scalar_select %p287, %s22, 1
      %p289 = scmp.lt.s32.totalorder %s23, 17
      %s290 = scalar_select %p289, %s23, 17
      %s291 = smul.addr %s290, 3
      %s292 = smul.addr %s288, 54
      %s293 = sadd.s32 %s291, %s292
      %s294 = smul.addr %s293, 4
      %s295 = scalar_lea.vmem %s0, %s294
      %p296 = pneg %p53
      %p297 = pneg %p50
      %s298 = sadd.s32 %s23, 1
      %p299 = scmp.lt.s32.totalorder %s22, 1
      %s300 = scalar_select %p299, %s22, 1
      %p301 = scmp.lt.s32.totalorder %s298, 17
      %s302 = scalar_select %p301, %s298, 17
      %s303 = smul.addr %s302, 3
      %s304 = smul.addr %s300, 54
      %s305 = sadd.s32 %s303, %s304
      %s306 = smul.addr %s305, 4
      %s307 = scalar_lea.vmem %s1, %s306
      %p308 = pneg %p83
      %p309 = pneg %p80
      %s310 = sadd.s32 %s23, 2
      %p311 = scmp.lt.s32.totalorder %s22, 1
      %s312 = scalar_select %p311, %s22, 1
      %p313 = scmp.lt.s32.totalorder %s310, 17
      %s314 = scalar_select %p313, %s310, 17
      %s315 = smul.addr %s314, 3
      %s316 = smul.addr %s312, 54
      %s317 = sadd.s32 %s315, %s316
      %s318 = smul.addr %s317, 4
      %s319 = scalar_lea.vmem %s2, %s318
      %p320 = pneg %p113
      %p321 = pneg %p110
      %p322 = pneg %p134
      %p323 = pneg %p131
      %p324 = pneg %p162
      %p325 = pneg %p159
      %p326 = scmp.lt.s32.totalorder %s22, 1
      %s327 = scalar_select %p326, %s22, 1
      %p328 = scmp.lt.s32.totalorder %s23, 15
      %s329 = scalar_select %p328, %s23, 15
      %s330 = smul.addr %s329, 2
      %s331 = smul.addr %s327, 32
      %s332 = sadd.s32 %s330, %s331
      %s333 = smul.addr %s332, 4
      %s334 = scalar_lea.vmem %s4, %s333
      %p335 = pneg %p190
      %p336 = pneg %p187
      %p337 = scmp.lt.s32.totalorder %s22, 1
      %s338 = scalar_select %p337, %s22, 1
      %p339 = scmp.lt.s32.totalorder %s23, 15
      %s340 = scalar_select %p339, %s23, 15
      %s341 = smul.addr %s338, 16
      %s342 = sadd.s32 %s340, %s341
      %s343 = scalar_lea.vmem %s5, %s342
      %p344 = pneg %p218
      %p345 = pneg %p215
      %p346 = scmp.lt.s32.totalorder %s22, 1
      %s347 = scalar_select %p346, %s22, 1
      %p348 = scmp.lt.s32.totalorder %s23, 15
      %s349 = scalar_select %p348, %s23, 15
      %s350 = smul.addr %s347, 16
      %s351 = sadd.s32 %s349, %s350
      %s352 = scalar_lea.vmem %s6, %s351
      %p353 = scmp.lt.s32.totalorder %s22, 1
      %s354 = scalar_select %p353, %s22, 1
      %p355 = scmp.lt.s32.totalorder %s23, 17
      %s356 = scalar_select %p355, %s23, 17
      %s357 = smul.addr %s356, 3
      %s358 = smul.addr %s354, 54
      %s359 = sadd.s32 %s357, %s358
      %s360 = smul.addr %s359, 4
      %s361 = scalar_lea.vmem %s0, %s360
      %s362 = sadd.s32 %s23, 1
      %p363 = scmp.lt.s32.totalorder %s22, 1
      %s364 = scalar_select %p363, %s22, 1
      %p365 = scmp.lt.s32.totalorder %s362, 17
      %s366 = scalar_select %p365, %s362, 17
      %s367 = smul.addr %s366, 3
      %s368 = smul.addr %s364, 54
      %s369 = sadd.s32 %s367, %s368
      %s370 = smul.addr %s369, 4
      %s371 = scalar_lea.vmem %s1, %s370
      %s372 = sadd.s32 %s23, 1
      %s373 = sadd.s32 %s23, 2
      %p374 = scmp.lt.s32.totalorder %s22, 1
      %s375 = scalar_select %p374, %s22, 1
      %p376 = scmp.lt.s32.totalorder %s373, 17
      %s377 = scalar_select %p376, %s373, 17
      %s378 = smul.addr %s377, 3
      %s379 = smul.addr %s375, 54
      %s380 = sadd.s32 %s378, %s379
      %s381 = smul.addr %s380, 4
      %s382 = scalar_lea.vmem %s2, %s381
      %s383 = sadd.s32 %s23, 2
      %p384 = scmp.lt.s32.totalorder %s22, 1
      %s385 = scalar_select %p384, %s22, 1
      %p386 = scmp.lt.s32.totalorder %s23, 15
      %s387 = scalar_select %p386, %s23, 15
      %s388 = smul.addr %s387, 2
      %s389 = smul.addr %s385, 32
      %s390 = sadd.s32 %s388, %s389
      %s391 = smul.addr %s390, 4
      %s392 = scalar_lea.vmem %s4, %s391
      %p393 = scmp.lt.s32.totalorder %s22, 1
      %s394 = scalar_select %p393, %s22, 1
      %p395 = scmp.lt.s32.totalorder %s23, 15
      %s396 = scalar_select %p395, %s23, 15
      %s397 = smul.addr %s394, 16
      %s398 = sadd.s32 %s396, %s397
      %s399 = scalar_lea.vmem %s5, %s398
      %p400 = scmp.lt.s32.totalorder %s22, 1
      %s401 = scalar_select %p400, %s22, 1
      %p402 = scmp.lt.s32.totalorder %s23, 15
      %s403 = scalar_select %p402, %s23, 15
      %s404 = smul.addr %s401, 16
      %s405 = sadd.s32 %s403, %s404
      %s406 = scalar_lea.vmem %s6, %s405
      %v408 = vld [vmem:[%s361] sm:$0xf]
      %v409 = vld [vmem:[%s361 + $0x4] sm:$0xf]
      %v410 = vld [vmem:[%s361 + $0x8] sm:$0x1]
      %v411 = vld [vmem:[%s371] sm:$0xf]
      %v412 = vld [vmem:[%s371 + $0x4] sm:$0xf]
      %v413 = vld [vmem:[%s371 + $0x8] sm:$0x1]
      %v414 = vld [vmem:[%s382] sm:$0xf]
      %v415 = vld [vmem:[%s382 + $0x4] sm:$0xf]
      %v416 = vld [vmem:[%s382 + $0x8] sm:$0x1]
      %v417 = vld [vmem:[%s3] sm:$0xf]
      %v418 = vld [vmem:[%s3 + $0x4] sm:$0xf]
      %v419 = vld [vmem:[%s3 + $0x8] sm:$0xf]
      %v420 = vld [vmem:[%s3 + $0xc] sm:$0xf]
      %v421 = vld [vmem:[%s3 + $0x10] sm:$0xf]
      %v422 = vld [vmem:[%s3 + $0x14] sm:$0xf]
      %v423 = vld [vmem:[%s3 + $0x18] sm:$0xf]
      %v424 = vld [vmem:[%s3 + $0x1c] sm:$0xf]
      %v425 = vld [vmem:[%s3 + $0x20] sm:$0xf]
      %v426 = vld [vmem:[%s3 + $0x24] sm:$0xf]
      %v427 = vld [vmem:[%s3 + $0x28] sm:$0xf]
      %v428 = vld [vmem:[%s3 + $0x2c] sm:$0xf]
      %v429 = vld [vmem:[%s3 + $0x30] sm:$0xf]
      %v430 = vld [vmem:[%s3 + $0x34] sm:$0xf]
      %v431 = vld [vmem:[%s3 + $0x38] sm:$0xf]
      %v432 = vld [vmem:[%s3 + $0x3c] sm:$0xf]
      %s433 = scalar_lea.vmem %s3, 64
      %v434 = vld [vmem:[%s433] sm:$0xf]
      %v435 = vld [vmem:[%s433 + $0x4] sm:$0xf]
      %v436 = vld [vmem:[%s433 + $0x8] sm:$0xf]
      %v437 = vld [vmem:[%s433 + $0xc] sm:$0xf]
      %v438 = vld [vmem:[%s433 + $0x10] sm:$0xf]
      %v439 = vld [vmem:[%s433 + $0x14] sm:$0xf]
      %v440 = vld [vmem:[%s433 + $0x18] sm:$0xf]
      %v441 = vld [vmem:[%s433 + $0x1c] sm:$0xf]
      %v442 = vld [vmem:[%s433 + $0x20] sm:$0xf]
      %v443 = vld [vmem:[%s433 + $0x24] sm:$0xf]
      %v444 = vld [vmem:[%s433 + $0x28] sm:$0xf]
      %v445 = vld [vmem:[%s433 + $0x2c] sm:$0xf]
      %v446 = vld [vmem:[%s433 + $0x30] sm:$0xf]
      %v447 = vld [vmem:[%s433 + $0x34] sm:$0xf]
      %v448 = vld [vmem:[%s433 + $0x38] sm:$0xf]
      %v449 = vld [vmem:[%s433 + $0x3c] sm:$0xf]
      %v453 = vunpack.c.l.b16 %v408
      %v454 = vunpack.c.l.b16 %v409
      %v455 = vunpack.c.l.b16 %v410
      %v456 = vpack.c.b16 %v454, %v453
      %v457 = vpack.c.b16 %v455, %v455
      %vm458 = vsmask.f32 7424
      %v460 = vshrl.u32 %v456, 16
      %v462 = vshll.u32 %v456, 16
      %v464 = vrot.slane %v462, 1
      %v465 = vor.u32 %v460, %v464
      %v467 = vshll.u32 %v457, 16
      %v469 = vrot.slane %v467, 1
      %v470 = vsel %vm458, %v465, %v469
      %v488 = vunpack.c.l.b16 %v434
      %v489 = vunpack.c.l.b16 %v435
      %v490 = vunpack.c.l.b16 %v436
      %v491 = vunpack.c.l.b16 %v437
      %v492 = vunpack.c.l.b16 %v438
      %v493 = vunpack.c.l.b16 %v439
      %v494 = vunpack.c.l.b16 %v440
      %v495 = vunpack.c.l.b16 %v441
      %v496 = vunpack.c.l.b16 %v442
      %v497 = vunpack.c.l.b16 %v443
      %v498 = vunpack.c.l.b16 %v444
      %v499 = vunpack.c.l.b16 %v445
      %v500 = vunpack.c.l.b16 %v446
      %v501 = vunpack.c.l.b16 %v447
      %v502 = vunpack.c.l.b16 %v448
      %v503 = vunpack.c.l.b16 %v449
      %v504 = vpack.c.b16 %v489, %v488
      %v505 = vpack.c.b16 %v491, %v490
      %v506 = vpack.c.b16 %v493, %v492
      %v507 = vpack.c.b16 %v495, %v494
      %v508 = vpack.c.b16 %v497, %v496
      %v509 = vpack.c.b16 %v499, %v498
      %v510 = vpack.c.b16 %v501, %v500
      %v511 = vpack.c.b16 %v503, %v502
      %520 = vmatprep.subr.bf16.mxu0 0
      %521 = vmatpush1.bf16.msra.mxu0 %v504
      %522 = vmatprep.subr.bf16.mxu0 0
      %523 = vmatpush1.bf16.msra.mxu0 %v505
      %524 = vmatprep.subr.bf16.mxu0 0
      %525 = vmatpush1.bf16.msra.mxu0 %v506
      %526 = vmatprep.subr.bf16.mxu0 0
      %527 = vmatpush1.bf16.msra.mxu0 %v507
      %528 = vmatprep.subr.bf16.mxu0 0
      %529 = vmatpush1.bf16.msra.mxu0 %v508
      %530 = vmatprep.subr.bf16.mxu0 0
      %531 = vmatpush1.bf16.msra.mxu0 %v509
      %532 = vmatprep.subr.bf16.mxu0 0
      %533 = vmatpush1.bf16.msra.mxu0 %v510
      %534 = vmatprep.subr.bf16.mxu0 0
      %535 = vmatpush1.bf16.msra.mxu0 %v511
      %536 = vmatprep.subr.bf16.mxu0 0
      %537 = vmatpush1.bf16.msra.mxu0 0
      %538 = vmatprep.subr.bf16.mxu0 0
      %539 = vmatpush1.bf16.msra.mxu0 0
      %540 = vmatprep.subr.bf16.mxu0 0
      %541 = vmatpush1.bf16.msra.mxu0 0
      %542 = vmatprep.subr.bf16.mxu0 0
      %543 = vmatpush1.bf16.msra.mxu0 0
      %544 = vmatprep.subr.bf16.mxu0 0
      %545 = vmatpush1.bf16.msra.mxu0 0
      %546 = vmatprep.subr.bf16.mxu0 0
      %547 = vmatpush1.bf16.msra.mxu0 0
      %548 = vmatprep.subr.bf16.mxu0 0
      %549 = vmatpush1.bf16.msra.mxu0 0
      %550 = vmatprep.subr.bf16.mxu0 0
      %551 = vmatpush1.bf16.msra.mxu0 0
      %552 = vmatprep.mubr.bf16.mxu0 0
      %553 = vmatmul.mubr.bf16.gmra.mrb[0].mxu0 %v470
      %v554 = vpop.f32.mrb[0].mxu0
      %v555 = vadd.f32 0.0, %v554
      %v556 = vpop.f32.mrb[0].mxu0
      %v557 = vpop.f32.mrb[0].mxu0
      %v558 = vadd.f32 0.0, %v557
      %v559 = vpop.f32.mrb[0].mxu0
      %560 = vdwg.mxu0
      %v578 = vunpack.c.l.b16 %v417
      %v579 = vunpack.c.l.b16 %v418
      %v580 = vunpack.c.l.b16 %v419
      %v581 = vunpack.c.l.b16 %v420
      %v582 = vunpack.c.l.b16 %v421
      %v583 = vunpack.c.l.b16 %v422
      %v584 = vunpack.c.l.b16 %v423
      %v585 = vunpack.c.l.b16 %v424
      %v586 = vunpack.c.l.b16 %v425
      %v587 = vunpack.c.l.b16 %v426
      %v588 = vunpack.c.l.b16 %v427
      %v589 = vunpack.c.l.b16 %v428
      %v590 = vunpack.c.l.b16 %v429
      %v591 = vunpack.c.l.b16 %v430
      %v592 = vunpack.c.l.b16 %v431
      %v593 = vunpack.c.l.b16 %v432
      %v594 = vpack.c.b16 %v579, %v578
      %v595 = vpack.c.b16 %v581, %v580
      %v596 = vpack.c.b16 %v583, %v582
      %v597 = vpack.c.b16 %v585, %v584
      %v598 = vpack.c.b16 %v587, %v586
      %v599 = vpack.c.b16 %v589, %v588
      %v600 = vpack.c.b16 %v591, %v590
      %v601 = vpack.c.b16 %v593, %v592
      %610 = vmatprep.subr.bf16.mxu0 0
      %611 = vmatpush1.bf16.msra.mxu0 %v594
      %612 = vmatprep.subr.bf16.mxu0 0
      %613 = vmatpush1.bf16.msra.mxu0 %v595
      %614 = vmatprep.subr.bf16.mxu0 0
      %615 = vmatpush1.bf16.msra.mxu0 %v596
      %616 = vmatprep.subr.bf16.mxu0 0
      %617 = vmatpush1.bf16.msra.mxu0 %v597
      %618 = vmatprep.subr.bf16.mxu0 0
      %619 = vmatpush1.bf16.msra.mxu0 %v598
      %620 = vmatprep.subr.bf16.mxu0 0
      %621 = vmatpush1.bf16.msra.mxu0 %v599
      %622 = vmatprep.subr.bf16.mxu0 0
      %623 = vmatpush1.bf16.msra.mxu0 %v600
      %624 = vmatprep.subr.bf16.mxu0 0
      %625 = vmatpush1.bf16.msra.mxu0 %v601
      %626 = vmatprep.subr.bf16.mxu0 0
      %627 = vmatpush1.bf16.msra.mxu0 0
      %628 = vmatprep.subr.bf16.mxu0 0
      %629 = vmatpush1.bf16.msra.mxu0 0
      %630 = vmatprep.subr.bf16.mxu0 0
      %631 = vmatpush1.bf16.msra.mxu0 0
      %632 = vmatprep.subr.bf16.mxu0 0
      %633 = vmatpush1.bf16.msra.mxu0 0
      %634 = vmatprep.subr.bf16.mxu0 0
      %635 = vmatpush1.bf16.msra.mxu0 0
      %636 = vmatprep.subr.bf16.mxu0 0
      %637 = vmatpush1.bf16.msra.mxu0 0
      %638 = vmatprep.subr.bf16.mxu0 0
      %639 = vmatpush1.bf16.msra.mxu0 0
      %640 = vmatprep.subr.bf16.mxu0 0
      %641 = vmatpush1.bf16.msra.mxu0 0
      %642 = vmatprep.mubr.bf16.mxu0 0
      %643 = vmatmul.mubr.bf16.gmra.mrb[0].mxu0 %v456
      %v644 = vpop.f32.mrb[0].mxu0
      %v645 = vadd.f32 %v555, %v644
      %v646 = vpop.f32.mrb[0].mxu0
      %v647 = vpop.f32.mrb[0].mxu0
      %v648 = vadd.f32 %v558, %v647
      %v649 = vpop.f32.mrb[0].mxu0
      %650 = vdwg.mxu0
      %s651 = scalar_lea.vmem %s3, 128
      %v652 = vld [vmem:[%s651] sm:$0xf]
      %v653 = vld [vmem:[%s651 + $0x4] sm:$0xf]
      %v654 = vld [vmem:[%s651 + $0x8] sm:$0xf]
      %v655 = vld [vmem:[%s651 + $0xc] sm:$0xf]
      %v656 = vld [vmem:[%s651 + $0x10] sm:$0xf]
      %v657 = vld [vmem:[%s651 + $0x14] sm:$0xf]
      %v658 = vld [vmem:[%s651 + $0x18] sm:$0xf]
      %v659 = vld [vmem:[%s651 + $0x1c] sm:$0xf]
      %v660 = vld [vmem:[%s651 + $0x20] sm:$0xf]
      %v661 = vld [vmem:[%s651 + $0x24] sm:$0xf]
      %v662 = vld [vmem:[%s651 + $0x28] sm:$0xf]
      %v663 = vld [vmem:[%s651 + $0x2c] sm:$0xf]
      %v664 = vld [vmem:[%s651 + $0x30] sm:$0xf]
      %v665 = vld [vmem:[%s651 + $0x34] sm:$0xf]
      %v666 = vld [vmem:[%s651 + $0x38] sm:$0xf]
      %v667 = vld [vmem:[%s651 + $0x3c] sm:$0xf]
      %vm668 = vcmask 1046528
      %v669 = vrot.slane %v456, 1
      %v670 = vrot.slane %v457, 1
      %v671 = vsel %vm668, %v669, %v670
      %v689 = vunpack.c.l.b16 %v652
      %v690 = vunpack.c.l.b16 %v653
      %v691 = vunpack.c.l.b16 %v654
      %v692 = vunpack.c.l.b16 %v655
      %v693 = vunpack.c.l.b16 %v656
      %v694 = vunpack.c.l.b16 %v657
      %v695 = vunpack.c.l.b16 %v658
      %v696 = vunpack.c.l.b16 %v659
      %v697 = vunpack.c.l.b16 %v660
      %v698 = vunpack.c.l.b16 %v661
      %v699 = vunpack.c.l.b16 %v662
      %v700 = vunpack.c.l.b16 %v663
      %v701 = vunpack.c.l.b16 %v664
      %v702 = vunpack.c.l.b16 %v665
      %v703 = vunpack.c.l.b16 %v666
      %v704 = vunpack.c.l.b16 %v667
      %v705 = vpack.c.b16 %v690, %v689
      %v706 = vpack.c.b16 %v692, %v691
      %v707 = vpack.c.b16 %v694, %v693
      %v708 = vpack.c.b16 %v696, %v695
      %v709 = vpack.c.b16 %v698, %v697
      %v710 = vpack.c.b16 %v700, %v699
      %v711 = vpack.c.b16 %v702, %v701
      %v712 = vpack.c.b16 %v704, %v703
      %721 = vmatprep.subr.bf16.mxu0 0
      %722 = vmatpush1.bf16.msra.mxu0 %v705
      %723 = vmatprep.subr.bf16.mxu0 0
      %724 = vmatpush1.bf16.msra.mxu0 %v706
      %725 = vmatprep.subr.bf16.mxu0 0
      %726 = vmatpush1.bf16.msra.mxu0 %v707
      %727 = vmatprep.subr.bf16.mxu0 0
      %728 = vmatpush1.bf16.msra.mxu0 %v708
      %729 = vmatprep.subr.bf16.mxu0 0
      %730 = vmatpush1.bf16.msra.mxu0 %v709
      %731 = vmatprep.subr.bf16.mxu0 0
      %732 = vmatpush1.bf16.msra.mxu0 %v710
      %733 = vmatprep.subr.bf16.mxu0 0
      %734 = vmatpush1.bf16.msra.mxu0 %v711
      %735 = vmatprep.subr.bf16.mxu0 0
      %736 = vmatpush1.bf16.msra.mxu0 %v712
      %737 = vmatprep.subr.bf16.mxu0 0
      %738 = vmatpush1.bf16.msra.mxu0 0
      %739 = vmatprep.subr.bf16.mxu0 0
      %740 = vmatpush1.bf16.msra.mxu0 0
      %741 = vmatprep.subr.bf16.mxu0 0
      %742 = vmatpush1.bf16.msra.mxu0 0
      %743 = vmatprep.subr.bf16.mxu0 0
      %744 = vmatpush1.bf16.msra.mxu0 0
      %745 = vmatprep.subr.bf16.mxu0 0
      %746 = vmatpush1.bf16.msra.mxu0 0
      %747 = vmatprep.subr.bf16.mxu0 0
      %748 = vmatpush1.bf16.msra.mxu0 0
      %749 = vmatprep.subr.bf16.mxu0 0
      %750 = vmatpush1.bf16.msra.mxu0 0
      %751 = vmatprep.subr.bf16.mxu0 0
      %752 = vmatpush1.bf16.msra.mxu0 0
      %753 = vmatprep.mubr.bf16.mxu0 0
      %754 = vmatmul.mubr.bf16.gmra.mrb[0].mxu0 %v671
      %v755 = vpop.f32.mrb[0].mxu0
      %v756 = vadd.f32 0.0, %v755
      %v757 = vpop.f32.mrb[0].mxu0
      %v758 = vpop.f32.mrb[0].mxu0
      %v759 = vadd.f32 0.0, %v758
      %v760 = vpop.f32.mrb[0].mxu0
      %761 = vdwg.mxu0
      %v762 = vadd.f32 %v645, %v756
      %v763 = vadd.f32 %v648, %v759
      %s764 = scalar_lea.vmem %s3, 192
      %v765 = vld [vmem:[%s764] sm:$0xf]
      %v766 = vld [vmem:[%s764 + $0x4] sm:$0xf]
      %v767 = vld [vmem:[%s764 + $0x8] sm:$0xf]
      %v768 = vld [vmem:[%s764 + $0xc] sm:$0xf]
      %v769 = vld [vmem:[%s764 + $0x10] sm:$0xf]
      %v770 = vld [vmem:[%s764 + $0x14] sm:$0xf]
      %v771 = vld [vmem:[%s764 + $0x18] sm:$0xf]
      %v772 = vld [vmem:[%s764 + $0x1c] sm:$0xf]
      %v773 = vld [vmem:[%s764 + $0x20] sm:$0xf]
      %v774 = vld [vmem:[%s764 + $0x24] sm:$0xf]
      %v775 = vld [vmem:[%s764 + $0x28] sm:$0xf]
      %v776 = vld [vmem:[%s764 + $0x2c] sm:$0xf]
      %v777 = vld [vmem:[%s764 + $0x30] sm:$0xf]
      %v778 = vld [vmem:[%s764 + $0x34] sm:$0xf]
      %v779 = vld [vmem:[%s764 + $0x38] sm:$0xf]
      %v780 = vld [vmem:[%s764 + $0x3c] sm:$0xf]
      %v783 = vunpack.c.l.b16 %v411
      %v784 = vunpack.c.l.b16 %v412
      %v785 = vpack.c.b16 %v784, %v783
      %v803 = vunpack.c.l.b16 %v765
      %v804 = vunpack.c.l.b16 %v766
      %v805 = vunpack.c.l.b16 %v767
      %v806 = vunpack.c.l.b16 %v768
      %v807 = vunpack.c.l.b16 %v769
      %v808 = vunpack.c.l.b16 %v770
      %v809 = vunpack.c.l.b16 %v771
      %v810 = vunpack.c.l.b16 %v772
      %v811 = vunpack.c.l.b16 %v773
      %v812 = vunpack.c.l.b16 %v774
      %v813 = vunpack.c.l.b16 %v775
      %v814 = vunpack.c.l.b16 %v776
      %v815 = vunpack.c.l.b16 %v777
      %v816 = vunpack.c.l.b16 %v778
      %v817 = vunpack.c.l.b16 %v779
      %v818 = vunpack.c.l.b16 %v780
      %v819 = vpack.c.b16 %v804, %v803
      %v820 = vpack.c.b16 %v806, %v805
      %v821 = vpack.c.b16 %v808, %v807
      %v822 = vpack.c.b16 %v810, %v809
      %v823 = vpack.c.b16 %v812, %v811
      %v824 = vpack.c.b16 %v814, %v813
      %v825 = vpack.c.b16 %v816, %v815
      %v826 = vpack.c.b16 %v818, %v817
      %835 = vmatprep.subr.bf16.mxu0 0
      %836 = vmatpush1.bf16.msra.mxu0 %v819
      %837 = vmatprep.subr.bf16.mxu0 0
      %838 = vmatpush1.bf16.msra.mxu0 %v820
      %839 = vmatprep.subr.bf16.mxu0 0
      %840 = vmatpush1.bf16.msra.mxu0 %v821
      %841 = vmatprep.subr.bf16.mxu0 0
      %842 = vmatpush1.bf16.msra.mxu0 %v822
      %843 = vmatprep.subr.bf16.mxu0 0
      %844 = vmatpush1.bf16.msra.mxu0 %v823
      %845 = vmatprep.subr.bf16.mxu0 0
      %846 = vmatpush1.bf16.msra.mxu0 %v824
      %847 = vmatprep.subr.bf16.mxu0 0
      %848 = vmatpush1.bf16.msra.mxu0 %v825
      %849 = vmatprep.subr.bf16.mxu0 0
      %850 = vmatpush1.bf16.msra.mxu0 %v826
      %851 = vmatprep.subr.bf16.mxu0 0
      %852 = vmatpush1.bf16.msra.mxu0 0
      %853 = vmatprep.subr.bf16.mxu0 0
      %854 = vmatpush1.bf16.msra.mxu0 0
      %855 = vmatprep.subr.bf16.mxu0 0
      %856 = vmatpush1.bf16.msra.mxu0 0
      %857 = vmatprep.subr.bf16.mxu0 0
      %858 = vmatpush1.bf16.msra.mxu0 0
      %859 = vmatprep.subr.bf16.mxu0 0
      %860 = vmatpush1.bf16.msra.mxu0 0
      %861 = vmatprep.subr.bf16.mxu0 0
      %862 = vmatpush1.bf16.msra.mxu0 0
      %863 = vmatprep.subr.bf16.mxu0 0
      %864 = vmatpush1.bf16.msra.mxu0 0
      %865 = vmatprep.subr.bf16.mxu0 0
      %866 = vmatpush1.bf16.msra.mxu0 0
      %867 = vmatprep.mubr.bf16.mxu0 0
      %868 = vmatmul.mubr.bf16.gmra.mrb[0].mxu0 %v785
      %v869 = vpop.f32.mrb[0].mxu0
      %v870 = vadd.f32 0.0, %v869
      %v871 = vpop.f32.mrb[0].mxu0
      %v872 = vpop.f32.mrb[0].mxu0
      %v873 = vadd.f32 0.0, %v872
      %v874 = vpop.f32.mrb[0].mxu0
      %875 = vdwg.mxu0
      %v876 = vadd.f32 %v762, %v870
      %v877 = vadd.f32 %v763, %v873
      %s878 = scalar_lea.vmem %s3, 256
      %v879 = vld [vmem:[%s878] sm:$0xf]
      %v880 = vld [vmem:[%s878 + $0x4] sm:$0xf]
      %v881 = vld [vmem:[%s878 + $0x8] sm:$0xf]
      %v882 = vld [vmem:[%s878 + $0xc] sm:$0xf]
      %v883 = vld [vmem:[%s878 + $0x10] sm:$0xf]
      %v884 = vld [vmem:[%s878 + $0x14] sm:$0xf]
      %v885 = vld [vmem:[%s878 + $0x18] sm:$0xf]
      %v886 = vld [vmem:[%s878 + $0x1c] sm:$0xf]
      %v887 = vld [vmem:[%s878 + $0x20] sm:$0xf]
      %v888 = vld [vmem:[%s878 + $0x24] sm:$0xf]
      %v889 = vld [vmem:[%s878 + $0x28] sm:$0xf]
      %v890 = vld [vmem:[%s878 + $0x2c] sm:$0xf]
      %v891 = vld [vmem:[%s878 + $0x30] sm:$0xf]
      %v892 = vld [vmem:[%s878 + $0x34] sm:$0xf]
      %v893 = vld [vmem:[%s878 + $0x38] sm:$0xf]
      %v894 = vld [vmem:[%s878 + $0x3c] sm:$0xf]
      %v896 = vunpack.c.l.b16 %v413
      %v897 = vpack.c.b16 %v896, %v896
      %v899 = vshrl.u32 %v785, 16
      %v901 = vshll.u32 %v785, 16
      %v903 = vrot.slane %v901, 1
      %v904 = vor.u32 %v899, %v903
      %v906 = vshll.u32 %v897, 16
      %v908 = vrot.slane %v906, 1
      %v909 = vsel %vm458, %v904, %v908
      %v927 = vunpack.c.l.b16 %v879
      %v928 = vunpack.c.l.b16 %v880
      %v929 = vunpack.c.l.b16 %v881
      %v930 = vunpack.c.l.b16 %v882
      %v931 = vunpack.c.l.b16 %v883
      %v932 = vunpack.c.l.b16 %v884
      %v933 = vunpack.c.l.b16 %v885
      %v934 = vunpack.c.l.b16 %v886
      %v935 = vunpack.c.l.b16 %v887
      %v936 = vunpack.c.l.b16 %v888
      %v937 = vunpack.c.l.b16 %v889
      %v938 = vunpack.c.l.b16 %v890
      %v939 = vunpack.c.l.b16 %v891
      %v940 = vunpack.c.l.b16 %v892
      %v941 = vunpack.c.l.b16 %v893
      %v942 = vunpack.c.l.b16 %v894
      %v943 = vpack.c.b16 %v928, %v927
      %v944 = vpack.c.b16 %v930, %v929
      %v945 = vpack.c.b16 %v932, %v931
      %v946 = vpack.c.b16 %v934, %v933
      %v947 = vpack.c.b16 %v936, %v935
      %v948 = vpack.c.b16 %v938, %v937
      %v949 = vpack.c.b16 %v940, %v939
      %v950 = vpack.c.b16 %v942, %v941
      %959 = vmatprep.subr.bf16.mxu0 0
      %960 = vmatpush1.bf16.msra.mxu0 %v943
      %961 = vmatprep.subr.bf16.mxu0 0
      %962 = vmatpush1.bf16.msra.mxu0 %v944
      %963 = vmatprep.subr.bf16.mxu0 0
      %964 = vmatpush1.bf16.msra.mxu0 %v945
      %965 = vmatprep.subr.bf16.mxu0 0
      %966 = vmatpush1.bf16.msra.mxu0 %v946
      %967 = vmatprep.subr.bf16.mxu0 0
      %968 = vmatpush1.bf16.msra.mxu0 %v947
      %969 = vmatprep.subr.bf16.mxu0 0
      %970 = vmatpush1.bf16.msra.mxu0 %v948
      %971 = vmatprep.subr.bf16.mxu0 0
      %972 = vmatpush1.bf16.msra.mxu0 %v949
      %973 = vmatprep.subr.bf16.mxu0 0
      %974 = vmatpush1.bf16.msra.mxu0 %v950
      %975 = vmatprep.subr.bf16.mxu0 0
      %976 = vmatpush1.bf16.msra.mxu0 0
      %977 = vmatprep.subr.bf16.mxu0 0
      %978 = vmatpush1.bf16.msra.mxu0 0
      %979 = vmatprep.subr.bf16.mxu0 0
      %980 = vmatpush1.bf16.msra.mxu0 0
      %981 = vmatprep.subr.bf16.mxu0 0
      %982 = vmatpush1.bf16.msra.mxu0 0
      %983 = vmatprep.subr.bf16.mxu0 0
      %984 = vmatpush1.bf16.msra.mxu0 0
      %985 = vmatprep.subr.bf16.mxu0 0
      %986 = vmatpush1.bf16.msra.mxu0 0
      %987 = vmatprep.subr.bf16.mxu0 0
      %988 = vmatpush1.bf16.msra.mxu0 0
      %989 = vmatprep.subr.bf16.mxu0 0
      %990 = vmatpush1.bf16.msra.mxu0 0
      %991 = vmatprep.mubr.bf16.mxu0 0
      %992 = vmatmul.mubr.bf16.gmra.mrb[0].mxu0 %v909
      %v993 = vpop.f32.mrb[0].mxu0
      %v994 = vadd.f32 0.0, %v993
      %v995 = vpop.f32.mrb[0].mxu0
      %v996 = vpop.f32.mrb[0].mxu0
      %v997 = vadd.f32 0.0, %v996
      %v998 = vpop.f32.mrb[0].mxu0
      %999 = vdwg.mxu0
      %v1000 = vadd.f32 %v876, %v994
      %v1001 = vadd.f32 %v877, %v997
      %s1002 = scalar_lea.vmem %s3, 320
      %v1003 = vld [vmem:[%s1002] sm:$0xf]
      %v1004 = vld [vmem:[%s1002 + $0x4] sm:$0xf]
      %v1005 = vld [vmem:[%s1002 + $0x8] sm:$0xf]
      %v1006 = vld [vmem:[%s1002 + $0xc] sm:$0xf]
      %v1007 = vld [vmem:[%s1002 + $0x10] sm:$0xf]
      %v1008 = vld [vmem:[%s1002 + $0x14] sm:$0xf]
      %v1009 = vld [vmem:[%s1002 + $0x18] sm:$0xf]
      %v1010 = vld [vmem:[%s1002 + $0x1c] sm:$0xf]
      %v1011 = vld [vmem:[%s1002 + $0x20] sm:$0xf]
      %v1012 = vld [vmem:[%s1002 + $0x24] sm:$0xf]
      %v1013 = vld [vmem:[%s1002 + $0x28] sm:$0xf]
      %v1014 = vld [vmem:[%s1002 + $0x2c] sm:$0xf]
      %v1015 = vld [vmem:[%s1002 + $0x30] sm:$0xf]
      %v1016 = vld [vmem:[%s1002 + $0x34] sm:$0xf]
      %v1017 = vld [vmem:[%s1002 + $0x38] sm:$0xf]
      %v1018 = vld [vmem:[%s1002 + $0x3c] sm:$0xf]
      %v1019 = vrot.slane %v785, 1
      %v1020 = vrot.slane %v897, 1
      %v1021 = vsel %vm668, %v1019, %v1020
      %v1039 = vunpack.c.l.b16 %v1003
      %v1040 = vunpack.c.l.b16 %v1004
      %v1041 = vunpack.c.l.b16 %v1005
      %v1042 = vunpack.c.l.b16 %v1006
      %v1043 = vunpack.c.l.b16 %v1007
      %v1044 = vunpack.c.l.b16 %v1008
      %v1045 = vunpack.c.l.b16 %v1009
      %v1046 = vunpack.c.l.b16 %v1010
      %v1047 = vunpack.c.l.b16 %v1011
      %v1048 = vunpack.c.l.b16 %v1012
      %v1049 = vunpack.c.l.b16 %v1013
      %v1050 = vunpack.c.l.b16 %v1014
      %v1051 = vunpack.c.l.b16 %v1015
      %v1052 = vunpack.c.l.b16 %v1016
      %v1053 = vunpack.c.l.b16 %v1017
      %v1054 = vunpack.c.l.b16 %v1018
      %v1055 = vpack.c.b16 %v1040, %v1039
      %v1056 = vpack.c.b16 %v1042, %v1041
      %v1057 = vpack.c.b16 %v1044, %v1043
      %v1058 = vpack.c.b16 %v1046, %v1045
      %v1059 = vpack.c.b16 %v1048, %v1047
      %v1060 = vpack.c.b16 %v1050, %v1049
      %v1061 = vpack.c.b16 %v1052, %v1051
      %v1062 = vpack.c.b16 %v1054, %v1053
      %1071 = vmatprep.subr.bf16.mxu0 0
      %1072 = vmatpush1.bf16.msra.mxu0 %v1055
      %1073 = vmatprep.subr.bf16.mxu0 0
      %1074 = vmatpush1.bf16.msra.mxu0 %v1056
      %1075 = vmatprep.subr.bf16.mxu0 0
      %1076 = vmatpush1.bf16.msra.mxu0 %v1057
      %1077 = vmatprep.subr.bf16.mxu0 0
      %1078 = vmatpush1.bf16.msra.mxu0 %v1058
      %1079 = vmatprep.subr.bf16.mxu0 0
      %1080 = vmatpush1.bf16.msra.mxu0 %v1059
      %1081 = vmatprep.subr.bf16.mxu0 0
      %1082 = vmatpush1.bf16.msra.mxu0 %v1060
      %1083 = vmatprep.subr.bf16.mxu0 0
      %1084 = vmatpush1.bf16.msra.mxu0 %v1061
      %1085 = vmatprep.subr.bf16.mxu0 0
      %1086 = vmatpush1.bf16.msra.mxu0 %v1062
      %1087 = vmatprep.subr.bf16.mxu0 0
      %1088 = vmatpush1.bf16.msra.mxu0 0
      %1089 = vmatprep.subr.bf16.mxu0 0
      %1090 = vmatpush1.bf16.msra.mxu0 0
      %1091 = vmatprep.subr.bf16.mxu0 0
      %1092 = vmatpush1.bf16.msra.mxu0 0
      %1093 = vmatprep.subr.bf16.mxu0 0
      %1094 = vmatpush1.bf16.msra.mxu0 0
      %1095 = vmatprep.subr.bf16.mxu0 0
      %1096 = vmatpush1.bf16.msra.mxu0 0
      %1097 = vmatprep.subr.bf16.mxu0 0
      %1098 = vmatpush1.bf16.msra.mxu0 0
      %1099 = vmatprep.subr.bf16.mxu0 0
      %1100 = vmatpush1.bf16.msra.mxu0 0
      %1101 = vmatprep.subr.bf16.mxu0 0
      %1102 = vmatpush1.bf16.msra.mxu0 0
      %1103 = vmatprep.mubr.bf16.mxu0 0
      %1104 = vmatmul.mubr.bf16.gmra.mrb[0].mxu0 %v1021
      %v1105 = vpop.f32.mrb[0].mxu0
      %v1106 = vadd.f32 0.0, %v1105
      %v1107 = vpop.f32.mrb[0].mxu0
      %v1108 = vpop.f32.mrb[0].mxu0
      %v1109 = vadd.f32 0.0, %v1108
      %v1110 = vpop.f32.mrb[0].mxu0
      %1111 = vdwg.mxu0
      %v1112 = vadd.f32 %v1000, %v1106
      %v1113 = vadd.f32 %v1001, %v1109
      %s1114 = scalar_lea.vmem %s3, 384
      %v1115 = vld [vmem:[%s1114] sm:$0xf]
      %v1116 = vld [vmem:[%s1114 + $0x4] sm:$0xf]
      %v1117 = vld [vmem:[%s1114 + $0x8] sm:$0xf]
      %v1118 = vld [vmem:[%s1114 + $0xc] sm:$0xf]
      %v1119 = vld [vmem:[%s1114 + $0x10] sm:$0xf]
      %v1120 = vld [vmem:[%s1114 + $0x14] sm:$0xf]
      %v1121 = vld [vmem:[%s1114 + $0x18] sm:$0xf]
      %v1122 = vld [vmem:[%s1114 + $0x1c] sm:$0xf]
      %v1123 = vld [vmem:[%s1114 + $0x20] sm:$0xf]
      %v1124 = vld [vmem:[%s1114 + $0x24] sm:$0xf]
      %v1125 = vld [vmem:[%s1114 + $0x28] sm:$0xf]
      %v1126 = vld [vmem:[%s1114 + $0x2c] sm:$0xf]
      %v1127 = vld [vmem:[%s1114 + $0x30] sm:$0xf]
      %v1128 = vld [vmem:[%s1114 + $0x34] sm:$0xf]
      %v1129 = vld [vmem:[%s1114 + $0x38] sm:$0xf]
      %v1130 = vld [vmem:[%s1114 + $0x3c] sm:$0xf]
      %v1133 = vunpack.c.l.b16 %v414
      %v1134 = vunpack.c.l.b16 %v415
      %v1135 = vpack.c.b16 %v1134, %v1133
      %v1153 = vunpack.c.l.b16 %v1115
      %v1154 = vunpack.c.l.b16 %v1116
      %v1155 = vunpack.c.l.b16 %v1117
      %v1156 = vunpack.c.l.b16 %v1118
      %v1157 = vunpack.c.l.b16 %v1119
      %v1158 = vunpack.c.l.b16 %v1120
      %v1159 = vunpack.c.l.b16 %v1121
      %v1160 = vunpack.c.l.b16 %v1122
      %v1161 = vunpack.c.l.b16 %v1123
      %v1162 = vunpack.c.l.b16 %v1124
      %v1163 = vunpack.c.l.b16 %v1125
      %v1164 = vunpack.c.l.b16 %v1126
      %v1165 = vunpack.c.l.b16 %v1127
      %v1166 = vunpack.c.l.b16 %v1128
      %v1167 = vunpack.c.l.b16 %v1129
      %v1168 = vunpack.c.l.b16 %v1130
      %v1169 = vpack.c.b16 %v1154, %v1153
      %v1170 = vpack.c.b16 %v1156, %v1155
      %v1171 = vpack.c.b16 %v1158, %v1157
      %v1172 = vpack.c.b16 %v1160, %v1159
      %v1173 = vpack.c.b16 %v1162, %v1161
      %v1174 = vpack.c.b16 %v1164, %v1163
      %v1175 = vpack.c.b16 %v1166, %v1165
      %v1176 = vpack.c.b16 %v1168, %v1167
      %1185 = vmatprep.subr.bf16.mxu0 0
      %1186 = vmatpush1.bf16.msra.mxu0 %v1169
      %1187 = vmatprep.subr.bf16.mxu0 0
      %1188 = vmatpush1.bf16.msra.mxu0 %v1170
      %1189 = vmatprep.subr.bf16.mxu0 0
      %1190 = vmatpush1.bf16.msra.mxu0 %v1171
      %1191 = vmatprep.subr.bf16.mxu0 0
      %1192 = vmatpush1.bf16.msra.mxu0 %v1172
      %1193 = vmatprep.subr.bf16.mxu0 0
      %1194 = vmatpush1.bf16.msra.mxu0 %v1173
      %1195 = vmatprep.subr.bf16.mxu0 0
      %1196 = vmatpush1.bf16.msra.mxu0 %v1174
      %1197 = vmatprep.subr.bf16.mxu0 0
      %1198 = vmatpush1.bf16.msra.mxu0 %v1175
      %1199 = vmatprep.subr.bf16.mxu0 0
      %1200 = vmatpush1.bf16.msra.mxu0 %v1176
      %1201 = vmatprep.subr.bf16.mxu0 0
      %1202 = vmatpush1.bf16.msra.mxu0 0
      %1203 = vmatprep.subr.bf16.mxu0 0
      %1204 = vmatpush1.bf16.msra.mxu0 0
      %1205 = vmatprep.subr.bf16.mxu0 0
      %1206 = vmatpush1.bf16.msra.mxu0 0
      %1207 = vmatprep.subr.bf16.mxu0 0
      %1208 = vmatpush1.bf16.msra.mxu0 0
      %1209 = vmatprep.subr.bf16.mxu0 0
      %1210 = vmatpush1.bf16.msra.mxu0 0
      %1211 = vmatprep.subr.bf16.mxu0 0
      %1212 = vmatpush1.bf16.msra.mxu0 0
      %1213 = vmatprep.subr.bf16.mxu0 0
      %1214 = vmatpush1.bf16.msra.mxu0 0
      %1215 = vmatprep.subr.bf16.mxu0 0
      %1216 = vmatpush1.bf16.msra.mxu0 0
      %1217 = vmatprep.mubr.bf16.mxu0 0
      %1218 = vmatmul.mubr.bf16.gmra.mrb[0].mxu0 %v1135
      %v1219 = vpop.f32.mrb[0].mxu0
      %v1220 = vadd.f32 0.0, %v1219
      %v1221 = vpop.f32.mrb[0].mxu0
      %v1222 = vpop.f32.mrb[0].mxu0
      %v1223 = vadd.f32 0.0, %v1222
      %v1224 = vpop.f32.mrb[0].mxu0
      %1225 = vdwg.mxu0
      %v1226 = vadd.f32 %v1112, %v1220
      %v1227 = vadd.f32 %v1113, %v1223
      %s1228 = scalar_lea.vmem %s3, 448
      %v1229 = vld [vmem:[%s1228] sm:$0xf]
      %v1230 = vld [vmem:[%s1228 + $0x4] sm:$0xf]
      %v1231 = vld [vmem:[%s1228 + $0x8] sm:$0xf]
      %v1232 = vld [vmem:[%s1228 + $0xc] sm:$0xf]
      %v1233 = vld [vmem:[%s1228 + $0x10] sm:$0xf]
      %v1234 = vld [vmem:[%s1228 + $0x14] sm:$0xf]
      %v1235 = vld [vmem:[%s1228 + $0x18] sm:$0xf]
      %v1236 = vld [vmem:[%s1228 + $0x1c] sm:$0xf]
      %v1237 = vld [vmem:[%s1228 + $0x20] sm:$0xf]
      %v1238 = vld [vmem:[%s1228 + $0x24] sm:$0xf]
      %v1239 = vld [vmem:[%s1228 + $0x28] sm:$0xf]
      %v1240 = vld [vmem:[%s1228 + $0x2c] sm:$0xf]
      %v1241 = vld [vmem:[%s1228 + $0x30] sm:$0xf]
      %v1242 = vld [vmem:[%s1228 + $0x34] sm:$0xf]
      %v1243 = vld [vmem:[%s1228 + $0x38] sm:$0xf]
      %v1244 = vld [vmem:[%s1228 + $0x3c] sm:$0xf]
      %v1246 = vunpack.c.l.b16 %v416
      %v1247 = vpack.c.b16 %v1246, %v1246
      %v1249 = vshrl.u32 %v1135, 16
      %v1251 = vshll.u32 %v1135, 16
      %v1253 = vrot.slane %v1251, 1
      %v1254 = vor.u32 %v1249, %v1253
      %v1256 = vshll.u32 %v1247, 16
      %v1258 = vrot.slane %v1256, 1
      %v1259 = vsel %vm458, %v1254, %v1258
      %v1277 = vunpack.c.l.b16 %v1229
      %v1278 = vunpack.c.l.b16 %v1230
      %v1279 = vunpack.c.l.b16 %v1231
      %v1280 = vunpack.c.l.b16 %v1232
      %v1281 = vunpack.c.l.b16 %v1233
      %v1282 = vunpack.c.l.b16 %v1234
      %v1283 = vunpack.c.l.b16 %v1235
      %v1284 = vunpack.c.l.b16 %v1236
      %v1285 = vunpack.c.l.b16 %v1237
      %v1286 = vunpack.c.l.b16 %v1238
      %v1287 = vunpack.c.l.b16 %v1239
      %v1288 = vunpack.c.l.b16 %v1240
      %v1289 = vunpack.c.l.b16 %v1241
      %v1290 = vunpack.c.l.b16 %v1242
      %v1291 = vunpack.c.l.b16 %v1243
      %v1292 = vunpack.c.l.b16 %v1244
      %v1293 = vpack.c.b16 %v1278, %v1277
      %v1294 = vpack.c.b16 %v1280, %v1279
      %v1295 = vpack.c.b16 %v1282, %v1281
      %v1296 = vpack.c.b16 %v1284, %v1283
      %v1297 = vpack.c.b16 %v1286, %v1285
      %v1298 = vpack.c.b16 %v1288, %v1287
      %v1299 = vpack.c.b16 %v1290, %v1289
      %v1300 = vpack.c.b16 %v1292, %v1291
      %1309 = vmatprep.subr.bf16.mxu0 0
      %1310 = vmatpush1.bf16.msra.mxu0 %v1293
      %1311 = vmatprep.subr.bf16.mxu0 0
      %1312 = vmatpush1.bf16.msra.mxu0 %v1294
      %1313 = vmatprep.subr.bf16.mxu0 0
      %1314 = vmatpush1.bf16.msra.mxu0 %v1295
      %1315 = vmatprep.subr.bf16.mxu0 0
      %1316 = vmatpush1.bf16.msra.mxu0 %v1296
      %1317 = vmatprep.subr.bf16.mxu0 0
      %1318 = vmatpush1.bf16.msra.mxu0 %v1297
      %1319 = vmatprep.subr.bf16.mxu0 0
      %1320 = vmatpush1.bf16.msra.mxu0 %v1298
      %1321 = vmatprep.subr.bf16.mxu0 0
      %1322 = vmatpush1.bf16.msra.mxu0 %v1299
      %1323 = vmatprep.subr.bf16.mxu0 0
      %1324 = vmatpush1.bf16.msra.mxu0 %v1300
      %1325 = vmatprep.subr.bf16.mxu0 0
      %1326 = vmatpush1.bf16.msra.mxu0 0
      %1327 = vmatprep.subr.bf16.mxu0 0
      %1328 = vmatpush1.bf16.msra.mxu0 0
      %1329 = vmatprep.subr.bf16.mxu0 0
      %1330 = vmatpush1.bf16.msra.mxu0 0
      %1331 = vmatprep.subr.bf16.mxu0 0
      %1332 = vmatpush1.bf16.msra.mxu0 0
      %1333 = vmatprep.subr.bf16.mxu0 0
      %1334 = vmatpush1.bf16.msra.mxu0 0
      %1335 = vmatprep.subr.bf16.mxu0 0
      %1336 = vmatpush1.bf16.msra.mxu0 0
      %1337 = vmatprep.subr.bf16.mxu0 0
      %1338 = vmatpush1.bf16.msra.mxu0 0
      %1339 = vmatprep.subr.bf16.mxu0 0
      %1340 = vmatpush1.bf16.msra.mxu0 0
      %1341 = vmatprep.mubr.bf16.mxu0 0
      %1342 = vmatmul.mubr.bf16.gmra.mrb[0].mxu0 %v1259
      %v1343 = vpop.f32.mrb[0].mxu0
      %v1344 = vadd.f32 0.0, %v1343
      %v1345 = vpop.f32.mrb[0].mxu0
      %v1346 = vpop.f32.mrb[0].mxu0
      %v1347 = vadd.f32 0.0, %v1346
      %v1348 = vpop.f32.mrb[0].mxu0
      %1349 = vdwg.mxu0
      %v1350 = vadd.f32 %v1226, %v1344
      %v1351 = vadd.f32 %v1227, %v1347
      %s1352 = scalar_lea.vmem %s3, 512
      %v1353 = vld [vmem:[%s1352] sm:$0xf]
      %v1354 = vld [vmem:[%s1352 + $0x4] sm:$0xf]
      %v1355 = vld [vmem:[%s1352 + $0x8] sm:$0xf]
      %v1356 = vld [vmem:[%s1352 + $0xc] sm:$0xf]
      %v1357 = vld [vmem:[%s1352 + $0x10] sm:$0xf]
      %v1358 = vld [vmem:[%s1352 + $0x14] sm:$0xf]
      %v1359 = vld [vmem:[%s1352 + $0x18] sm:$0xf]
      %v1360 = vld [vmem:[%s1352 + $0x1c] sm:$0xf]
      %v1361 = vld [vmem:[%s1352 + $0x20] sm:$0xf]
      %v1362 = vld [vmem:[%s1352 + $0x24] sm:$0xf]
      %v1363 = vld [vmem:[%s1352 + $0x28] sm:$0xf]
      %v1364 = vld [vmem:[%s1352 + $0x2c] sm:$0xf]
      %v1365 = vld [vmem:[%s1352 + $0x30] sm:$0xf]
      %v1366 = vld [vmem:[%s1352 + $0x34] sm:$0xf]
      %v1367 = vld [vmem:[%s1352 + $0x38] sm:$0xf]
      %v1368 = vld [vmem:[%s1352 + $0x3c] sm:$0xf]
      %v1369 = vrot.slane %v1135, 1
      %v1370 = vrot.slane %v1247, 1
      %v1371 = vsel %vm668, %v1369, %v1370
      %v1389 = vunpack.c.l.b16 %v1353
      %v1390 = vunpack.c.l.b16 %v1354
      %v1391 = vunpack.c.l.b16 %v1355
      %v1392 = vunpack.c.l.b16 %v1356
      %v1393 = vunpack.c.l.b16 %v1357
      %v1394 = vunpack.c.l.b16 %v1358
      %v1395 = vunpack.c.l.b16 %v1359
      %v1396 = vunpack.c.l.b16 %v1360
      %v1397 = vunpack.c.l.b16 %v1361
      %v1398 = vunpack.c.l.b16 %v1362
      %v1399 = vunpack.c.l.b16 %v1363
      %v1400 = vunpack.c.l.b16 %v1364
      %v1401 = vunpack.c.l.b16 %v1365
      %v1402 = vunpack.c.l.b16 %v1366
      %v1403 = vunpack.c.l.b16 %v1367
      %v1404 = vunpack.c.l.b16 %v1368
      %v1405 = vpack.c.b16 %v1390, %v1389
      %v1406 = vpack.c.b16 %v1392, %v1391
      %v1407 = vpack.c.b16 %v1394, %v1393
      %v1408 = vpack.c.b16 %v1396, %v1395
      %v1409 = vpack.c.b16 %v1398, %v1397
      %v1410 = vpack.c.b16 %v1400, %v1399
      %v1411 = vpack.c.b16 %v1402, %v1401
      %v1412 = vpack.c.b16 %v1404, %v1403
      %1421 = vmatprep.subr.bf16.mxu0 0
      %1422 = vmatpush1.bf16.msra.mxu0 %v1405
      %1423 = vmatprep.subr.bf16.mxu0 0
      %1424 = vmatpush1.bf16.msra.mxu0 %v1406
      %1425 = vmatprep.subr.bf16.mxu0 0
      %1426 = vmatpush1.bf16.msra.mxu0 %v1407
      %1427 = vmatprep.subr.bf16.mxu0 0
      %1428 = vmatpush1.bf16.msra.mxu0 %v1408
      %1429 = vmatprep.subr.bf16.mxu0 0
      %1430 = vmatpush1.bf16.msra.mxu0 %v1409
      %1431 = vmatprep.subr.bf16.mxu0 0
      %1432 = vmatpush1.bf16.msra.mxu0 %v1410
      %1433 = vmatprep.subr.bf16.mxu0 0
      %1434 = vmatpush1.bf16.msra.mxu0 %v1411
      %1435 = vmatprep.subr.bf16.mxu0 0
      %1436 = vmatpush1.bf16.msra.mxu0 %v1412
      %1437 = vmatprep.subr.bf16.mxu0 0
      %1438 = vmatpush1.bf16.msra.mxu0 0
      %1439 = vmatprep.subr.bf16.mxu0 0
      %1440 = vmatpush1.bf16.msra.mxu0 0
      %1441 = vmatprep.subr.bf16.mxu0 0
      %1442 = vmatpush1.bf16.msra.mxu0 0
      %1443 = vmatprep.subr.bf16.mxu0 0
      %1444 = vmatpush1.bf16.msra.mxu0 0
      %1445 = vmatprep.subr.bf16.mxu0 0
      %1446 = vmatpush1.bf16.msra.mxu0 0
      %1447 = vmatprep.subr.bf16.mxu0 0
      %1448 = vmatpush1.bf16.msra.mxu0 0
      %1449 = vmatprep.subr.bf16.mxu0 0
      %1450 = vmatpush1.bf16.msra.mxu0 0
      %1451 = vmatprep.subr.bf16.mxu0 0
      %1452 = vmatpush1.bf16.msra.mxu0 0
      %1453 = vmatprep.mubr.bf16.mxu0 0
      %1454 = vmatmul.mubr.bf16.gmra.mrb[0].mxu0 %v1371
      %v1455 = vpop.f32.mrb[0].mxu0
      %v1456 = vadd.f32 0.0, %v1455
      %v1457 = vpop.f32.mrb[0].mxu0
      %v1458 = vpop.f32.mrb[0].mxu0
      %v1459 = vadd.f32 0.0, %v1458
      %v1460 = vpop.f32.mrb[0].mxu0
      %1461 = vdwg.mxu0
      %v1462 = vadd.f32 %v1350, %v1456
      %v1463 = vadd.f32 %v1351, %v1459
      %v1464 = vpack.c.bf16 %v1463, %v1462
      %v1466 = vunpack.c.l.b16 %v1464
      %v1467 = vunpack.c.h.b16 %v1464
      %v1468 = vpack.c.b16 %v1466, %v1466
      %v1469 = vpack.c.b16 %v1467, %v1467
      %1472 = vst [vmem:[%s392] sm:$0xf] %v1468
      %1473 = vst [vmem:[%s392 + $0x4] sm:$0xf] %v1469
      %v1474 = vadd.f32 %v1462, %v1463
      %v1475 = vrot.slane %v1474, 4
      %v1476 = vadd.f32 %v1474, %v1475
      %v1477 = vrot.slane %v1476, 2
      %v1478 = vadd.f32 %v1476, %v1477
      %v1479 = vrot.slane %v1478, 1
      %v1480 = vadd.f32 %v1478, %v1479
      %1481 = vst [vmem:[%s399] sm:$0x1] %v1480
      %v1482 = vmul.f32 %v1462, %v1462
      %v1483 = vmul.f32 %v1463, %v1463
      %v1484 = vadd.f32 %v1482, %v1483
      %v1485 = vrot.slane %v1484, 4
      %v1486 = vadd.f32 %v1484, %v1485
      %v1487 = vrot.slane %v1486, 2
      %v1488 = vadd.f32 %v1486, %v1487
      %v1489 = vrot.slane %v1488, 1
      %v1490 = vadd.f32 %v1488, %v1489
      %1491 = vst [vmem:[%s406] sm:$0x1] %v1490
      %p1492 = scmp.lt.s32.totalorder %s22, 1
      %s1493 = scalar_select %p1492, %s22, 1
      %p1494 = scmp.lt.s32.totalorder %s23, 15
      %s1495 = scalar_select %p1494, %s23, 15
      %s1496 = smul.addr %s1495, 2
      %s1497 = smul.addr %s1493, 32
      %s1498 = sadd.s32 %s1496, %s1497
      %s1499 = smul.addr %s1498, 4
      %s1500 = scalar_lea.vmem %s4, %s1499
      %p1501 = scmp.lt.s32.totalorder %s22, 1
      %s1502 = scalar_select %p1501, %s22, 1
      %p1503 = scmp.lt.s32.totalorder %s23, 15
      %s1504 = scalar_select %p1503, %s23, 15
      %s1505 = smul.addr %s1502, 16
      %s1506 = sadd.s32 %s1504, %s1505
      %s1507 = scalar_lea.vmem %s5, %s1506
      %p1508 = scmp.lt.s32.totalorder %s22, 1
      %s1509 = scalar_select %p1508, %s22, 1
      %p1510 = scmp.lt.s32.totalorder %s23, 15
      %s1511 = scalar_select %p1510, %s23, 15
      %s1512 = smul.addr %s1509, 16
      %s1513 = sadd.s32 %s1511, %s1512
      %s1514 = scalar_lea.vmem %s6, %s1513
      // Predicated region
      $region37: #{up_decoder_forward.4} parent=35 // pred_check
        %p1515 = pneg %p159
      $region38: #{up_decoder_forward.4} parent=35 // pred_check_branch
        %1517 = sbr.rel (%p1515) target = $region40
      $region39: #{up_decoder_forward.4} parent=35 // pred_region
        _
      $region40: #{up_decoder_forward.4} parent=35 // pred_fallthru
        _
      // Predicated region
      $region41: #{up_decoder_forward.4} parent=35 // pred_check
        %p1518 = pneg %p187
      $region42: #{up_decoder_forward.4} parent=35 // pred_check_branch
        %1520 = sbr.rel (%p1518) target = $region44
      $region43: #{up_decoder_forward.4} parent=35 // pred_region
        _
      $region44: #{up_decoder_forward.4} parent=35 // pred_fallthru
        _
      // Predicated region
      $region45: #{up_decoder_forward.4} parent=35 // pred_check
        %p1521 = pneg %p215
      $region46: #{up_decoder_forward.4} parent=35 // pred_check_branch
        %1523 = sbr.rel (%p1521) target = $region48
      $region47: #{up_decoder_forward.4} parent=35 // pred_region
        _
      $region48: #{up_decoder_forward.4} parent=35 // pred_fallthru
        _
    $region36: #{up_decoder_forward.4} parent=5 // pred_fallthru
      _
    %p1524 = scmp.le.s32.totalorder 2, %s13
    // Predicated region
    $region49: #{up_decoder_forward.4} parent=5 // pred_check
      %p1525 = pneg %p1524
    $region50: #{up_decoder_forward.4} parent=5 // pred_check_branch
      %1527 = sbr.rel (%p1525) target = $region52
    $region51: #{up_decoder_forward.4} parent=5 // pred_region
      %s1528 = ssub.s32 %s13, 2
      // Predicated region
      $region53: #{up_decoder_forward.4} parent=51 // pred_check
        %p1529 = pneg %p165
      $region54: #{up_decoder_forward.4} parent=51 // pred_check_branch
        %1531 = sbr.rel (%p1529) target = $region56
      $region55: #{up_decoder_forward.4} parent=51 // pred_region
        %p1532 = scmp.lt.s32.totalorder %s24, 1
        %s1533 = scalar_select %p1532, %s24, 1
        %p1534 = scmp.lt.s32.totalorder %s25, 15
        %s1535 = scalar_select %p1534, %s25, 15
        %s1536 = smul.addr %s1535, 2
        %s1537 = smul.addr %s1533, 32
        %s1538 = sadd.s32 %s1536, %s1537
        %s1539 = smul.addr %s1538, 4
        %s1540 = scalar_lea.vmem %s4, %s1539
      $region56: #{up_decoder_forward.4} parent=51 // pred_fallthru
        _
      // Predicated region
      $region57: #{up_decoder_forward.4} parent=51 // pred_check
        %p1541 = pneg %p193
      $region58: #{up_decoder_forward.4} parent=51 // pred_check_branch
        %1543 = sbr.rel (%p1541) target = $region60
      $region59: #{up_decoder_forward.4} parent=51 // pred_region
        %p1544 = scmp.lt.s32.totalorder %s24, 1
        %s1545 = scalar_select %p1544, %s24, 1
        %p1546 = scmp.lt.s32.totalorder %s25, 15
        %s1547 = scalar_select %p1546, %s25, 15
        %s1548 = smul.addr %s1545, 16
        %s1549 = sadd.s32 %s1547, %s1548
        %s1550 = scalar_lea.vmem %s5, %s1549
      $region60: #{up_decoder_forward.4} parent=51 // pred_fallthru
        _
      // Predicated region
      $region61: #{up_decoder_forward.4} parent=51 // pred_check
        %p1551 = pneg %p221
      $region62: #{up_decoder_forward.4} parent=51 // pred_check_branch
        %1553 = sbr.rel (%p1551) target = $region64
      $region63: #{up_decoder_forward.4} parent=51 // pred_region
        %p1554 = scmp.lt.s32.totalorder %s24, 1
        %s1555 = scalar_select %p1554, %s24, 1
        %p1556 = scmp.lt.s32.totalorder %s25, 15
        %s1557 = scalar_select %p1556, %s25, 15
        %s1558 = smul.addr %s1555, 16
        %s1559 = sadd.s32 %s1557, %s1558
        %s1560 = scalar_lea.vmem %s6, %s1559
      $region64: #{up_decoder_forward.4} parent=51 // pred_fallthru
        _
    $region52: #{up_decoder_forward.4} parent=5 // pred_fallthru
      _
  $region6: #{up_decoder_forward.4} parent=0 // loop_footer
    %s17 = sadd.s32 1, %s13
  $region7: #{up_decoder_forward.4} parent=0 // loop_footer_branch
    %12 = sbr.rel target = $region3
  $region8: #{up_decoder_forward.4} parent=0 // loop_exit
    _

// kernel: up_decoder_forward.5
$region0: #{up_decoder_forward.5}
  #allocation0 [shape = 'u32[]', space=smem, size = 0x4, offset = 0x4, fixed_abs, tag = 'smem constant byte address 0x4 - core index']
  #allocation1 [shape = 'u32[144,128]{1,0:T(1,128)}', space=vmem, size = 0x12000, scoped, tag = 'internal scratch']
  %s0 = inlined_call_operand.vmem [shape: bf16[512,128], index: 0, kind: input, shape index: {}]
  %s1 = inlined_call_operand.vmem [shape: bf16[2,128,256], index: 1, kind: input, shape index: {}]
  %s2 = inlined_call_operand.vmem [shape: bf16[32,2,16,256], index: 2, kind: output, shape index: {}]
  %s3 = sld [smem:[#allocation0]]
  $region41: #{up_decoder_forward.5} parent=0
    _
  %s5 = ssub.s32 1, %s3
  %s6 = scalar_select 0, %s5, %s3
  loop: start=0, step=1, limit=4
  $region2: #{up_decoder_forward.5} parent=0 // loop_pre_header
    _
  $region3: #{up_decoder_forward.5} parent=0 // loop_header
    %s8 = sphi 0, %s12
    %p9 = scmp.ge.s32.totalorder %s8, 4
    %s18 = sphi 0, %s20
    %s21 = sphi 0, %s18
    %s22 = sphi 0, %s21
    %s38 = sphi 0, %s22
    %s42 = sphi 0, %s42
    %s44 = sphi 0, %s42
    %s45 = sphi 0, %s44
    %s59 = sphi 0, %s45
    %s65 = sphi 0, %s67
    %s68 = sphi 0, %s65
    %s69 = sphi 0, %s68
    %s85 = sphi 0, %s69
  $region4: #{up_decoder_forward.5} parent=0 // loop_header_branch
    %11 = sbr.rel (%p9) target = $region8
  $region5: #{up_decoder_forward.5} parent=0 // loop_body
    %s13 = ssub.s32 %s8, 1
    %s14 = ssub.s32 %s8, 2
    %s15 = sadd.s32 %s8, 1
    %s16 = ssub.s32 %s8, %s15
    %p17 = scmp.eq.s32.totalorder %s16, 0
    %s19 = sadd.s32 %s18, 1
    %s20 = scalar_select %p17, %s18, %s19
    %p23 = pneg %p17
    %p24 = scmp.eq.s32.totalorder %s8, 1
    %p25 = por %p23, %p24
    %p26 = scmp.ne.s32.totalorder %s18, %s21
    %p27 = scmp.eq.s32.totalorder %s8, 0
    %p28 = por %p26, %p27
    %p29 = scmp.ne.s32.totalorder %s18, %s21
    %p30 = scmp.eq.s32.totalorder %s13, 1
    %p31 = por %p29, %p30
    %p32 = scmp.ne.s32.totalorder %s21, %s22
    %p33 = scmp.eq.s32.totalorder %s13, 0
    %p34 = por %p32, %p33
    %p35 = scmp.ne.s32.totalorder %s21, %s22
    %p36 = scmp.eq.s32.totalorder %s14, 1
    %p37 = por %p35, %p36
    %p39 = scmp.ne.s32.totalorder %s22, %s38
    %p40 = scmp.eq.s32.totalorder %s14, 0
    %p41 = por %p39, %p40
    %s43 = sadd.s32 %s42, 1
    %p46 = scmp.eq.s32.totalorder %s8, 1
    %p47 = scmp.ne.s32.totalorder %s42, %s44
    %p48 = scmp.eq.s32.totalorder %s8, 0
    %p49 = por %p47, %p48
    %p50 = scmp.ne.s32.totalorder %s42, %s44
    %p51 = scmp.eq.s32.totalorder %s13, 1
    %p52 = por %p50, %p51
    %p53 = scmp.ne.s32.totalorder %s44, %s45
    %p54 = scmp.eq.s32.totalorder %s13, 0
    %p55 = por %p53, %p54
    %p56 = scmp.ne.s32.totalorder %s44, %s45
    %p57 = scmp.eq.s32.totalorder %s14, 1
    %p58 = por %p56, %p57
    %p60 = scmp.ne.s32.totalorder %s45, %s59
    %p61 = scmp.eq.s32.totalorder %s14, 0
    %p62 = por %p60, %p61
    %s63 = ssub.s32 %s8, %s15
    %p64 = scmp.eq.s32.totalorder %s63, 0
    %s66 = sadd.s32 %s65, 1
    %s67 = scalar_select %p64, %s65, %s66
    %p70 = pneg %p64
    %p71 = scmp.eq.s32.totalorder %s8, 1
    %p72 = por %p70, %p71
    %p73 = scmp.ne.s32.totalorder %s65, %s68
    %p74 = scmp.eq.s32.totalorder %s8, 0
    %p75 = por %p73, %p74
    %p76 = scmp.ne.s32.totalorder %s65, %s68
    %p77 = scmp.eq.s32.totalorder %s13, 1
    %p78 = por %p76, %p77
    %p79 = scmp.ne.s32.totalorder %s68, %s69
    %p80 = scmp.eq.s32.totalorder %s13, 0
    %p81 = por %p79, %p80
    %p82 = scmp.ne.s32.totalorder %s68, %s69
    %p83 = scmp.eq.s32.totalorder %s14, 1
    %p84 = por %p82, %p83
    %p86 = scmp.ne.s32.totalorder %s69, %s85
    %p87 = scmp.eq.s32.totalorder %s14, 0
    %p88 = por %p86, %p87
    %p89 = scmp.le.s32.totalorder 1, %s8
    %p90 = scmp.lt.s32.totalorder %s8, 3
    %p91 = pnand %p89, %p90
    %p92 = pneg %p91
    // Predicated region
    $region9: #{up_decoder_forward.5} parent=5 // pred_check
      _
    $region10: #{up_decoder_forward.5} parent=5 // pred_check_branch
      %94 = sbr.rel (%p91) target = $region12
    $region11: #{up_decoder_forward.5} parent=5 // pred_region
      %s95 = ssub.s32 %s8, 1
      // Predicated region
      $region13: #{up_decoder_forward.5} parent=11 // pred_check
        %p96 = pneg %p55
      $region14: #{up_decoder_forward.5} parent=11 // pred_check_branch
        %98 = sbr.rel (%p96) target = $region16
      $region15: #{up_decoder_forward.5} parent=11 // pred_region
        _
      $region16: #{up_decoder_forward.5} parent=11 // pred_fallthru
        _
    $region12: #{up_decoder_forward.5} parent=5 // pred_fallthru
      _
    %p99 = scmp.lt.s32.totalorder %s8, 2
    // Predicated region
    $region17: #{up_decoder_forward.5} parent=5 // pred_check
      %p100 = pneg %p99
    $region18: #{up_decoder_forward.5} parent=5 // pred_check_branch
      %102 = sbr.rel (%p100) target = $region20
    $region19: #{up_decoder_forward.5} parent=5 // pred_region
      // Predicated region
      $region21: #{up_decoder_forward.5} parent=19 // pred_check
        %p103 = pneg %p28
      $region22: #{up_decoder_forward.5} parent=19 // pred_check_branch
        %105 = sbr.rel (%p103) target = $region24
      $region23: #{up_decoder_forward.5} parent=19 // pred_region
        %s106 = smul.u32 32, %s8
        %p107 = scmp.lt.s32.totalorder %s106, 63
        %s108 = scalar_select %p107, %s106, 63
        %s109 = smul.addr %s108, 4
        %s110 = scalar_lea.vmem %s0, %s109
        %s111 = smul.u32 32, %s8
      $region24: #{up_decoder_forward.5} parent=19 // pred_fallthru
        _
    $region20: #{up_decoder_forward.5} parent=5 // pred_fallthru
      _
    %p112 = scmp.le.s32.totalorder 1, %s8
    %p113 = scmp.lt.s32.totalorder %s8, 3
    %p114 = pnand %p112, %p113
    %p115 = pneg %p114
    // Predicated region
    $region25: #{up_decoder_forward.5} parent=5 // pred_check
      _
    $region26: #{up_decoder_forward.5} parent=5 // pred_check_branch
      %117 = sbr.rel (%p114) target = $region28
    $region27: #{up_decoder_forward.5} parent=5 // pred_region
      %s118 = ssub.s32 %s8, 1
      %s119 = smul.u32 32, %s13
      %p120 = scmp.lt.s32.totalorder %s119, 63
      %s121 = scalar_select %p120, %s119, 63
      %s122 = smul.addr %s121, 4
      %s123 = scalar_lea.vmem %s0, %s122
      %p124 = pneg %p34
      %p125 = pneg %p31
      %p126 = pneg %p55
      %p127 = pneg %p52
      %p128 = pneg %p81
      %p129 = pneg %p78
      %s130 = smul.u32 16, %s13
      %p131 = scmp.lt.s32.totalorder %s130, 31
      %s132 = scalar_select %p131, %s130, 31
      %s133 = smul.addr %s132, 8
      %s134 = smul.addr %s133, 4
      %s135 = scalar_lea.vmem %s2, %s134
      %s136 = smul.u32 32, %s13
      %p137 = scmp.lt.s32.totalorder %s136, 63
      %s138 = scalar_select %p137, %s136, 63
      %s139 = smul.addr %s138, 4
      %s140 = scalar_lea.vmem %s0, %s139
      %s141 = smul.u32 32, %s13
      %s142 = smul.u32 16, %s13
      %p143 = scmp.lt.s32.totalorder %s142, 31
      %s144 = scalar_select %p143, %s142, 31
      %s145 = smul.addr %s144, 8
      %s146 = smul.addr %s145, 4
      %s147 = scalar_lea.vmem %s2, %s146
      %s148 = smul.u32 16, %s13
      %v150 = vld [vmem:[%s140] sm:$0xf]
      %v151 = vld [vmem:[%s140 + $0x4] sm:$0xf]
      %v152 = vld [vmem:[%s140 + $0x8] sm:$0xf]
      %v153 = vld [vmem:[%s140 + $0xc] sm:$0xf]
      %v154 = vld [vmem:[%s140 + $0x10] sm:$0xf]
      %v155 = vld [vmem:[%s140 + $0x14] sm:$0xf]
      %v156 = vld [vmem:[%s140 + $0x18] sm:$0xf]
      %v157 = vld [vmem:[%s140 + $0x1c] sm:$0xf]
      %v158 = vld [vmem:[%s140 + $0x20] sm:$0xf]
      %v159 = vld [vmem:[%s140 + $0x24] sm:$0xf]
      %v160 = vld [vmem:[%s140 + $0x28] sm:$0xf]
      %v161 = vld [vmem:[%s140 + $0x2c] sm:$0xf]
      %v162 = vld [vmem:[%s140 + $0x30] sm:$0xf]
      %v163 = vld [vmem:[%s140 + $0x34] sm:$0xf]
      %v164 = vld [vmem:[%s140 + $0x38] sm:$0xf]
      %v165 = vld [vmem:[%s140 + $0x3c] sm:$0xf]
      %v166 = vld [vmem:[%s140 + $0x40] sm:$0xf]
      %v167 = vld [vmem:[%s140 + $0x44] sm:$0xf]
      %v168 = vld [vmem:[%s140 + $0x48] sm:$0xf]
      %v169 = vld [vmem:[%s140 + $0x4c] sm:$0xf]
      %v170 = vld [vmem:[%s140 + $0x50] sm:$0xf]
      %v171 = vld [vmem:[%s140 + $0x54] sm:$0xf]
      %v172 = vld [vmem:[%s140 + $0x58] sm:$0xf]
      %v173 = vld [vmem:[%s140 + $0x5c] sm:$0xf]
      %v174 = vld [vmem:[%s140 + $0x60] sm:$0xf]
      %v175 = vld [vmem:[%s140 + $0x64] sm:$0xf]
      %v176 = vld [vmem:[%s140 + $0x68] sm:$0xf]
      %v177 = vld [vmem:[%s140 + $0x6c] sm:$0xf]
      %v178 = vld [vmem:[%s140 + $0x70] sm:$0xf]
      %v179 = vld [vmem:[%s140 + $0x74] sm:$0xf]
      %v180 = vld [vmem:[%s140 + $0x78] sm:$0xf]
      %v181 = vld [vmem:[%s140 + $0x7c] sm:$0xf]
      %v182 = vld [vmem:[%s1] sm:$0xff]
      %v183 = vld [vmem:[%s1 + $0x8] sm:$0xff]
      %v184 = vld [vmem:[%s1 + $0x10] sm:$0xff]
      %v185 = vld [vmem:[%s1 + $0x18] sm:$0xff]
      %v186 = vld [vmem:[%s1 + $0x20] sm:$0xff]
      %v187 = vld [vmem:[%s1 + $0x28] sm:$0xff]
      %v188 = vld [vmem:[%s1 + $0x30] sm:$0xff]
      %v189 = vld [vmem:[%s1 + $0x38] sm:$0xff]
      %v190 = vld [vmem:[%s1 + $0x40] sm:$0xff]
      %v191 = vld [vmem:[%s1 + $0x48] sm:$0xff]
      %v192 = vld [vmem:[%s1 + $0x50] sm:$0xff]
      %v193 = vld [vmem:[%s1 + $0x58] sm:$0xff]
      %v194 = vld [vmem:[%s1 + $0x60] sm:$0xff]
      %v195 = vld [vmem:[%s1 + $0x68] sm:$0xff]
      %v196 = vld [vmem:[%s1 + $0x70] sm:$0xff]
      %v197 = vld [vmem:[%s1 + $0x78] sm:$0xff]
      %v230 = vunpack.c.l.b16 %v150
      %v231 = vunpack.c.l.b16 %v151
      %v232 = vunpack.c.l.b16 %v152
      %v233 = vunpack.c.l.b16 %v153
      %v234 = vunpack.c.l.b16 %v154
      %v235 = vunpack.c.l.b16 %v155
      %v236 = vunpack.c.l.b16 %v156
      %v237 = vunpack.c.l.b16 %v157
      %v238 = vunpack.c.l.b16 %v158
      %v239 = vunpack.c.l.b16 %v159
      %v240 = vunpack.c.l.b16 %v160
      %v241 = vunpack.c.l.b16 %v161
      %v242 = vunpack.c.l.b16 %v162
      %v243 = vunpack.c.l.b16 %v163
      %v244 = vunpack.c.l.b16 %v164
      %v245 = vunpack.c.l.b16 %v165
      %v246 = vunpack.c.l.b16 %v166
      %v247 = vunpack.c.l.b16 %v167
      %v248 = vunpack.c.l.b16 %v168
      %v249 = vunpack.c.l.b16 %v169
      %v250 = vunpack.c.l.b16 %v170
      %v251 = vunpack.c.l.b16 %v171
      %v252 = vunpack.c.l.b16 %v172
      %v253 = vunpack.c.l.b16 %v173
      %v254 = vunpack.c.l.b16 %v174
      %v255 = vunpack.c.l.b16 %v175
      %v256 = vunpack.c.l.b16 %v176
      %v257 = vunpack.c.l.b16 %v177
      %v258 = vunpack.c.l.b16 %v178
      %v259 = vunpack.c.l.b16 %v179
      %v260 = vunpack.c.l.b16 %v180
      %v261 = vunpack.c.l.b16 %v181
      %v262 = vpack.c.b16 %v231, %v230
      %v263 = vpack.c.b16 %v233, %v232
      %v264 = vpack.c.b16 %v235, %v234
      %v265 = vpack.c.b16 %v237, %v236
      %v266 = vpack.c.b16 %v239, %v238
      %v267 = vpack.c.b16 %v241, %v240
      %v268 = vpack.c.b16 %v243, %v242
      %v269 = vpack.c.b16 %v245, %v244
      %v270 = vpack.c.b16 %v247, %v246
      %v271 = vpack.c.b16 %v249, %v248
      %v272 = vpack.c.b16 %v251, %v250
      %v273 = vpack.c.b16 %v253, %v252
      %v274 = vpack.c.b16 %v255, %v254
      %v275 = vpack.c.b16 %v257, %v256
      %v276 = vpack.c.b16 %v259, %v258
      %v277 = vpack.c.b16 %v261, %v260
      %v310 = vunpack.c.l.b16 %v182
      %v311 = vunpack.c.h.b16 %v182
      %v312 = vunpack.c.l.b16 %v183
      %v313 = vunpack.c.h.b16 %v183
      %v314 = vunpack.c.l.b16 %v184
      %v315 = vunpack.c.h.b16 %v184
      %v316 = vunpack.c.l.b16 %v185
      %v317 = vunpack.c.h.b16 %v185
      %v318 = vunpack.c.l.b16 %v186
      %v319 = vunpack.c.h.b16 %v186
      %v320 = vunpack.c.l.b16 %v187
      %v321 = vunpack.c.h.b16 %v187
      %v322 = vunpack.c.l.b16 %v188
      %v323 = vunpack.c.h.b16 %v188
      %v324 = vunpack.c.l.b16 %v189
      %v325 = vunpack.c.h.b16 %v189
      %v326 = vunpack.c.l.b16 %v190
      %v327 = vunpack.c.h.b16 %v190
      %v328 = vunpack.c.l.b16 %v191
      %v329 = vunpack.c.h.b16 %v191
      %v330 = vunpack.c.l.b16 %v192
      %v331 = vunpack.c.h.b16 %v192
      %v332 = vunpack.c.l.b16 %v193
      %v333 = vunpack.c.h.b16 %v193
      %v334 = vunpack.c.l.b16 %v194
      %v335 = vunpack.c.h.b16 %v194
      %v336 = vunpack.c.l.b16 %v195
      %v337 = vunpack.c.h.b16 %v195
      %v338 = vunpack.c.l.b16 %v196
      %v339 = vunpack.c.h.b16 %v196
      %v340 = vunpack.c.l.b16 %v197
      %v341 = vunpack.c.h.b16 %v197
      %v342 = vpack.c.b16 %v312, %v310
      %v343 = vpack.c.b16 %v313, %v311
      %v344 = vpack.c.b16 %v316, %v314
      %v345 = vpack.c.b16 %v317, %v315
      %v346 = vpack.c.b16 %v320, %v318
      %v347 = vpack.c.b16 %v321, %v319
      %v348 = vpack.c.b16 %v324, %v322
      %v349 = vpack.c.b16 %v325, %v323
      %v350 = vpack.c.b16 %v328, %v326
      %v351 = vpack.c.b16 %v329, %v327
      %v352 = vpack.c.b16 %v332, %v330
      %v353 = vpack.c.b16 %v333, %v331
      %v354 = vpack.c.b16 %v336, %v334
      %v355 = vpack.c.b16 %v337, %v335
      %v356 = vpack.c.b16 %v340, %v338
      %v357 = vpack.c.b16 %v341, %v339
      %374 = vmatprep.subr.bf16.mxu0 %v343
      %375 = vmatpush1.bf16.msra.mxu0 %v342
      %376 = vmatprep.subr.bf16.mxu0 %v345
      %377 = vmatpush1.bf16.msra.mxu0 %v344
      %378 = vmatprep.subr.bf16.mxu0 %v347
      %379 = vmatpush1.bf16.msra.mxu0 %v346
      %380 = vmatprep.subr.bf16.mxu0 %v349
      %381 = vmatpush1.bf16.msra.mxu0 %v348
      %382 = vmatprep.subr.bf16.mxu0 %v351
      %383 = vmatpush1.bf16.msra.mxu0 %v350
      %384 = vmatprep.subr.bf16.mxu0 %v353
      %385 = vmatpush1.bf16.msra.mxu0 %v352
      %386 = vmatprep.subr.bf16.mxu0 %v355
      %387 = vmatpush1.bf16.msra.mxu0 %v354
      %388 = vmatprep.subr.bf16.mxu0 %v357
      %389 = vmatpush1.bf16.msra.mxu0 %v356
      %390 = vmatprep.subr.bf16.mxu0 0
      %391 = vmatpush1.bf16.msra.mxu0 0
      %392 = vmatprep.subr.bf16.mxu0 0
      %393 = vmatpush1.bf16.msra.mxu0 0
      %394 = vmatprep.subr.bf16.mxu0 0
      %395 = vmatpush1.bf16.msra.mxu0 0
      %396 = vmatprep.subr.bf16.mxu0 0
      %397 = vmatpush1.bf16.msra.mxu0 0
      %398 = vmatprep.subr.bf16.mxu0 0
      %399 = vmatpush1.bf16.msra.mxu0 0
      %400 = vmatprep.subr.bf16.mxu0 0
      %401 = vmatpush1.bf16.msra.mxu0 0
      %402 = vmatprep.subr.bf16.mxu0 0
      %403 = vmatpush1.bf16.msra.mxu0 0
      %404 = vmatprep.subr.bf16.mxu0 0
      %405 = vmatpush1.bf16.msra.mxu0 0
      %406 = vmatprep.mubr.bf16.mxu0 0
      %407 = vmatmul.mubr.bf16.gmra.mrb[0].mxu0 %v262
      %v408 = vpop.f32.mrb[0].mxu0
      %v409 = vadd.f32 0.0, %v408
      %v410 = vpop.f32.mrb[0].mxu0
      %v411 = vadd.f32 0.0, %v410
      %v412 = vpop.f32.mrb[0].mxu0
      %v413 = vadd.f32 0.0, %v412
      %v414 = vpop.f32.mrb[0].mxu0
      %v415 = vadd.f32 0.0, %v414
      %416 = vmatprep.mubr.bf16.mxu0 0
      %417 = vmatmul.mubr.bf16.gmra.mrb[0].mxu0 %v263
      %v418 = vpop.f32.mrb[0].mxu0
      %v419 = vadd.f32 0.0, %v418
      %v420 = vpop.f32.mrb[0].mxu0
      %v421 = vadd.f32 0.0, %v420
      %v422 = vpop.f32.mrb[0].mxu0
      %v423 = vadd.f32 0.0, %v422
      %v424 = vpop.f32.mrb[0].mxu0
      %v425 = vadd.f32 0.0, %v424
      %426 = vmatprep.mubr.bf16.mxu0 0
      %427 = vmatmul.mubr.bf16.gmra.mrb[0].mxu0 %v264
      %v428 = vpop.f32.mrb[0].mxu0
      %v429 = vadd.f32 0.0, %v428
      %v430 = vpop.f32.mrb[0].mxu0
      %v431 = vadd.f32 0.0, %v430
      %v432 = vpop.f32.mrb[0].mxu0
      %v433 = vadd.f32 0.0, %v432
      %v434 = vpop.f32.mrb[0].mxu0
      %v435 = vadd.f32 0.0, %v434
      %436 = vmatprep.mubr.bf16.mxu0 0
      %437 = vmatmul.mubr.bf16.gmra.mrb[0].mxu0 %v265
      %v438 = vpop.f32.mrb[0].mxu0
      %v439 = vadd.f32 0.0, %v438
      %v440 = vpop.f32.mrb[0].mxu0
      %v441 = vadd.f32 0.0, %v440
      %v442 = vpop.f32.mrb[0].mxu0
      %v443 = vadd.f32 0.0, %v442
      %v444 = vpop.f32.mrb[0].mxu0
      %v445 = vadd.f32 0.0, %v444
      %446 = vmatprep.mubr.bf16.mxu0 0
      %447 = vmatmul.mubr.bf16.gmra.mrb[0].mxu0 %v266
      %v448 = vpop.f32.mrb[0].mxu0
      %v449 = vadd.f32 0.0, %v448
      %v450 = vpop.f32.mrb[0].mxu0
      %v451 = vadd.f32 0.0, %v450
      %v452 = vpop.f32.mrb[0].mxu0
      %v453 = vadd.f32 0.0, %v452
      %v454 = vpop.f32.mrb[0].mxu0
      %v455 = vadd.f32 0.0, %v454
      %456 = vmatprep.mubr.bf16.mxu0 0
      %457 = vmatmul.mubr.bf16.gmra.mrb[0].mxu0 %v267
      %v458 = vpop.f32.mrb[0].mxu0
      %v459 = vadd.f32 0.0, %v458
      %v460 = vpop.f32.mrb[0].mxu0
      %v461 = vadd.f32 0.0, %v460
      %v462 = vpop.f32.mrb[0].mxu0
      %v463 = vadd.f32 0.0, %v462
      %v464 = vpop.f32.mrb[0].mxu0
      %v465 = vadd.f32 0.0, %v464
      %466 = vmatprep.mubr.bf16.mxu0 0
      %467 = vmatmul.mubr.bf16.gmra.mrb[0].mxu0 %v268
      %v468 = vpop.f32.mrb[0].mxu0
      %v469 = vadd.f32 0.0, %v468
      %v470 = vpop.f32.mrb[0].mxu0
      %v471 = vadd.f32 0.0, %v470
      %v472 = vpop.f32.mrb[0].mxu0
      %v473 = vadd.f32 0.0, %v472
      %v474 = vpop.f32.mrb[0].mxu0
      %v475 = vadd.f32 0.0, %v474
      %476 = vmatprep.mubr.bf16.mxu0 0
      %477 = vmatmul.mubr.bf16.gmra.mrb[0].mxu0 %v269
      %v478 = vpop.f32.mrb[0].mxu0
      %v479 = vadd.f32 0.0, %v478
      %v480 = vpop.f32.mrb[0].mxu0
      %v481 = vadd.f32 0.0, %v480
      %v482 = vpop.f32.mrb[0].mxu0
      %v483 = vadd.f32 0.0, %v482
      %v484 = vpop.f32.mrb[0].mxu0
      %v485 = vadd.f32 0.0, %v484
      %486 = vmatprep.mubr.bf16.mxu0 0
      %487 = vmatmul.mubr.bf16.gmra.mrb[0].mxu0 %v270
      %v488 = vpop.f32.mrb[0].mxu0
      %v489 = vadd.f32 0.0, %v488
      %v490 = vpop.f32.mrb[0].mxu0
      %v491 = vadd.f32 0.0, %v490
      %v492 = vpop.f32.mrb[0].mxu0
      %v493 = vadd.f32 0.0, %v492
      %v494 = vpop.f32.mrb[0].mxu0
      %v495 = vadd.f32 0.0, %v494
      %496 = vmatprep.mubr.bf16.mxu0 0
      %497 = vmatmul.mubr.bf16.gmra.mrb[0].mxu0 %v271
      %v498 = vpop.f32.mrb[0].mxu0
      %v499 = vadd.f32 0.0, %v498
      %v500 = vpop.f32.mrb[0].mxu0
      %v501 = vadd.f32 0.0, %v500
      %v502 = vpop.f32.mrb[0].mxu0
      %v503 = vadd.f32 0.0, %v502
      %v504 = vpop.f32.mrb[0].mxu0
      %v505 = vadd.f32 0.0, %v504
      %506 = vmatprep.mubr.bf16.mxu0 0
      %507 = vmatmul.mubr.bf16.gmra.mrb[0].mxu0 %v272
      %v508 = vpop.f32.mrb[0].mxu0
      %v509 = vadd.f32 0.0, %v508
      %v510 = vpop.f32.mrb[0].mxu0
      %v511 = vadd.f32 0.0, %v510
      %v512 = vpop.f32.mrb[0].mxu0
      %v513 = vadd.f32 0.0, %v512
      %v514 = vpop.f32.mrb[0].mxu0
      %v515 = vadd.f32 0.0, %v514
      %516 = vmatprep.mubr.bf16.mxu0 0
      %517 = vmatmul.mubr.bf16.gmra.mrb[0].mxu0 %v273
      %v518 = vpop.f32.mrb[0].mxu0
      %v519 = vadd.f32 0.0, %v518
      %v520 = vpop.f32.mrb[0].mxu0
      %v521 = vadd.f32 0.0, %v520
      %v522 = vpop.f32.mrb[0].mxu0
      %v523 = vadd.f32 0.0, %v522
      %v524 = vpop.f32.mrb[0].mxu0
      %v525 = vadd.f32 0.0, %v524
      %526 = vmatprep.mubr.bf16.mxu0 0
      %527 = vmatmul.mubr.bf16.gmra.mrb[0].mxu0 %v274
      %v528 = vpop.f32.mrb[0].mxu0
      %v529 = vadd.f32 0.0, %v528
      %v530 = vpop.f32.mrb[0].mxu0
      %v531 = vadd.f32 0.0, %v530
      %v532 = vpop.f32.mrb[0].mxu0
      %v533 = vadd.f32 0.0, %v532
      %v534 = vpop.f32.mrb[0].mxu0
      %v535 = vadd.f32 0.0, %v534
      %536 = vmatprep.mubr.bf16.mxu0 0
      %537 = vmatmul.mubr.bf16.gmra.mrb[0].mxu0 %v275
      %v538 = vpop.f32.mrb[0].mxu0
      %v539 = vadd.f32 0.0, %v538
      %v540 = vpop.f32.mrb[0].mxu0
      %v541 = vadd.f32 0.0, %v540
      %v542 = vpop.f32.mrb[0].mxu0
      %v543 = vadd.f32 0.0, %v542
      %v544 = vpop.f32.mrb[0].mxu0
      %v545 = vadd.f32 0.0, %v544
      %546 = vmatprep.mubr.bf16.mxu0 0
      %547 = vmatmul.mubr.bf16.gmra.mrb[0].mxu0 %v276
      %v548 = vpop.f32.mrb[0].mxu0
      %v549 = vadd.f32 0.0, %v548
      %v550 = vpop.f32.mrb[0].mxu0
      %v551 = vadd.f32 0.0, %v550
      %v552 = vpop.f32.mrb[0].mxu0
      %v553 = vadd.f32 0.0, %v552
      %v554 = vpop.f32.mrb[0].mxu0
      %v555 = vadd.f32 0.0, %v554
      %556 = vmatprep.mubr.bf16.mxu0 0
      %557 = vmatmul.mubr.bf16.gmra.mrb[0].mxu0 %v277
      %v558 = vpop.f32.mrb[0].mxu0
      %v559 = vadd.f32 0.0, %v558
      %v560 = vpop.f32.mrb[0].mxu0
      %v561 = vadd.f32 0.0, %v560
      %v562 = vpop.f32.mrb[0].mxu0
      %v563 = vadd.f32 0.0, %v562
      %v564 = vpop.f32.mrb[0].mxu0
      %v565 = vadd.f32 0.0, %v564
      %566 = vdwg.mxu0
      %v567 = vpack.c.bf16 %v413, %v409
      %v568 = vpack.c.bf16 %v415, %v411
      %v571 = vunpack.c.l.b16 %v567
      %v572 = vunpack.c.l.b16 %v568
      %v573 = vunpack.c.h.b16 %v567
      %v574 = vunpack.c.h.b16 %v568
      %v575 = vpack.c.b16 %v572, %v571
      %v576 = vpack.c.b16 %v574, %v573
      %579 = vst [vmem:[%s147] sm:$0xff] %v575
      %580 = vst [vmem:[%s147 + $0x8] sm:$0xff] %v576
      %v581 = vpack.c.bf16 %v423, %v419
      %v582 = vpack.c.bf16 %v425, %v421
      %v585 = vunpack.c.l.b16 %v581
      %v586 = vunpack.c.l.b16 %v582
      %v587 = vunpack.c.h.b16 %v581
      %v588 = vunpack.c.h.b16 %v582
      %v589 = vpack.c.b16 %v586, %v585
      %v590 = vpack.c.b16 %v588, %v587
      %s593 = scalar_lea.vmem %s147, 32
      %594 = vst [vmem:[%s593] sm:$0xff] %v589
      %595 = vst [vmem:[%s593 + $0x8] sm:$0xff] %v590
      %v596 = vpack.c.bf16 %v433, %v429
      %v597 = vpack.c.bf16 %v435, %v431
      %v600 = vunpack.c.l.b16 %v596
      %v601 = vunpack.c.l.b16 %v597
      %v602 = vunpack.c.h.b16 %v596
      %v603 = vunpack.c.h.b16 %v597
      %v604 = vpack.c.b16 %v601, %v600
      %v605 = vpack.c.b16 %v603, %v602
      %s608 = scalar_lea.vmem %s147, 64
      %609 = vst [vmem:[%s608] sm:$0xff] %v604
      %610 = vst [vmem:[%s608 + $0x8] sm:$0xff] %v605
      %v611 = vpack.c.bf16 %v443, %v439
      %v612 = vpack.c.bf16 %v445, %v441
      %v615 = vunpack.c.l.b16 %v611
      %v616 = vunpack.c.l.b16 %v612
      %v617 = vunpack.c.h.b16 %v611
      %v618 = vunpack.c.h.b16 %v612
      %v619 = vpack.c.b16 %v616, %v615
      %v620 = vpack.c.b16 %v618, %v617
      %s623 = scalar_lea.vmem %s147, 96
      %624 = vst [vmem:[%s623] sm:$0xff] %v619
      %625 = vst [vmem:[%s623 + $0x8] sm:$0xff] %v620
      %v626 = vpack.c.bf16 %v453, %v449
      %v627 = vpack.c.bf16 %v455, %v451
      %v630 = vunpack.c.l.b16 %v626
      %v631 = vunpack.c.l.b16 %v627
      %v632 = vunpack.c.h.b16 %v626
      %v633 = vunpack.c.h.b16 %v627
      %v634 = vpack.c.b16 %v631, %v630
      %v635 = vpack.c.b16 %v633, %v632
      %s638 = scalar_lea.vmem %s147, 128
      %639 = vst [vmem:[%s638] sm:$0xff] %v634
      %640 = vst [vmem:[%s638 + $0x8] sm:$0xff] %v635
      %v641 = vpack.c.bf16 %v463, %v459
      %v642 = vpack.c.bf16 %v465, %v461
      %v645 = vunpack.c.l.b16 %v641
      %v646 = vunpack.c.l.b16 %v642
      %v647 = vunpack.c.h.b16 %v641
      %v648 = vunpack.c.h.b16 %v642
      %v649 = vpack.c.b16 %v646, %v645
      %v650 = vpack.c.b16 %v648, %v647
      %s653 = scalar_lea.vmem %s147, 160
      %654 = vst [vmem:[%s653] sm:$0xff] %v649
      %655 = vst [vmem:[%s653 + $0x8] sm:$0xff] %v650
      %v656 = vpack.c.bf16 %v473, %v469
      %v657 = vpack.c.bf16 %v475, %v471
      %v660 = vunpack.c.l.b16 %v656
      %v661 = vunpack.c.l.b16 %v657
      %v662 = vunpack.c.h.b16 %v656
      %v663 = vunpack.c.h.b16 %v657
      %v664 = vpack.c.b16 %v661, %v660
      %v665 = vpack.c.b16 %v663, %v662
      %s668 = scalar_lea.vmem %s147, 192
      %669 = vst [vmem:[%s668] sm:$0xff] %v664
      %670 = vst [vmem:[%s668 + $0x8] sm:$0xff] %v665
      %v671 = vpack.c.bf16 %v483, %v479
      %v672 = vpack.c.bf16 %v485, %v481
      %v675 = vunpack.c.l.b16 %v671
      %v676 = vunpack.c.l.b16 %v672
      %v677 = vunpack.c.h.b16 %v671
      %v678 = vunpack.c.h.b16 %v672
      %v679 = vpack.c.b16 %v676, %v675
      %v680 = vpack.c.b16 %v678, %v677
      %s683 = scalar_lea.vmem %s147, 224
      %684 = vst [vmem:[%s683] sm:$0xff] %v679
      %685 = vst [vmem:[%s683 + $0x8] sm:$0xff] %v680
      %v686 = vpack.c.bf16 %v493, %v489
      %v687 = vpack.c.bf16 %v495, %v491
      %v690 = vunpack.c.l.b16 %v686
      %v691 = vunpack.c.l.b16 %v687
      %v692 = vunpack.c.h.b16 %v686
      %v693 = vunpack.c.h.b16 %v687
      %v694 = vpack.c.b16 %v691, %v690
      %v695 = vpack.c.b16 %v693, %v692
      %s698 = scalar_lea.vmem %s147, 256
      %699 = vst [vmem:[%s698] sm:$0xff] %v694
      %700 = vst [vmem:[%s698 + $0x8] sm:$0xff] %v695
      %v701 = vpack.c.bf16 %v503, %v499
      %v702 = vpack.c.bf16 %v505, %v501
      %v705 = vunpack.c.l.b16 %v701
      %v706 = vunpack.c.l.b16 %v702
      %v707 = vunpack.c.h.b16 %v701
      %v708 = vunpack.c.h.b16 %v702
      %v709 = vpack.c.b16 %v706, %v705
      %v710 = vpack.c.b16 %v708, %v707
      %s713 = scalar_lea.vmem %s147, 288
      %714 = vst [vmem:[%s713] sm:$0xff] %v709
      %715 = vst [vmem:[%s713 + $0x8] sm:$0xff] %v710
      %v716 = vpack.c.bf16 %v513, %v509
      %v717 = vpack.c.bf16 %v515, %v511
      %v720 = vunpack.c.l.b16 %v716
      %v721 = vunpack.c.l.b16 %v717
      %v722 = vunpack.c.h.b16 %v716
      %v723 = vunpack.c.h.b16 %v717
      %v724 = vpack.c.b16 %v721, %v720
      %v725 = vpack.c.b16 %v723, %v722
      %s728 = scalar_lea.vmem %s147, 320
      %729 = vst [vmem:[%s728] sm:$0xff] %v724
      %730 = vst [vmem:[%s728 + $0x8] sm:$0xff] %v725
      %v731 = vpack.c.bf16 %v523, %v519
      %v732 = vpack.c.bf16 %v525, %v521
      %v735 = vunpack.c.l.b16 %v731
      %v736 = vunpack.c.l.b16 %v732
      %v737 = vunpack.c.h.b16 %v731
      %v738 = vunpack.c.h.b16 %v732
      %v739 = vpack.c.b16 %v736, %v735
      %v740 = vpack.c.b16 %v738, %v737
      %s743 = scalar_lea.vmem %s147, 352
      %744 = vst [vmem:[%s743] sm:$0xff] %v739
      %745 = vst [vmem:[%s743 + $0x8] sm:$0xff] %v740
      %v746 = vpack.c.bf16 %v533, %v529
      %v747 = vpack.c.bf16 %v535, %v531
      %v750 = vunpack.c.l.b16 %v746
      %v751 = vunpack.c.l.b16 %v747
      %v752 = vunpack.c.h.b16 %v746
      %v753 = vunpack.c.h.b16 %v747
      %v754 = vpack.c.b16 %v751, %v750
      %v755 = vpack.c.b16 %v753, %v752
      %s758 = scalar_lea.vmem %s147, 384
      %759 = vst [vmem:[%s758] sm:$0xff] %v754
      %760 = vst [vmem:[%s758 + $0x8] sm:$0xff] %v755
      %v761 = vpack.c.bf16 %v543, %v539
      %v762 = vpack.c.bf16 %v545, %v541
      %v765 = vunpack.c.l.b16 %v761
      %v766 = vunpack.c.l.b16 %v762
      %v767 = vunpack.c.h.b16 %v761
      %v768 = vunpack.c.h.b16 %v762
      %v769 = vpack.c.b16 %v766, %v765
      %v770 = vpack.c.b16 %v768, %v767
      %s773 = scalar_lea.vmem %s147, 416
      %774 = vst [vmem:[%s773] sm:$0xff] %v769
      %775 = vst [vmem:[%s773 + $0x8] sm:$0xff] %v770
      %v776 = vpack.c.bf16 %v553, %v549
      %v777 = vpack.c.bf16 %v555, %v551
      %v780 = vunpack.c.l.b16 %v776
      %v781 = vunpack.c.l.b16 %v777
      %v782 = vunpack.c.h.b16 %v776
      %v783 = vunpack.c.h.b16 %v777
      %v784 = vpack.c.b16 %v781, %v780
      %v785 = vpack.c.b16 %v783, %v782
      %s788 = scalar_lea.vmem %s147, 448
      %789 = vst [vmem:[%s788] sm:$0xff] %v784
      %790 = vst [vmem:[%s788 + $0x8] sm:$0xff] %v785
      %v791 = vpack.c.bf16 %v563, %v559
      %v792 = vpack.c.bf16 %v565, %v561
      %v795 = vunpack.c.l.b16 %v791
      %v796 = vunpack.c.l.b16 %v792
      %v797 = vunpack.c.h.b16 %v791
      %v798 = vunpack.c.h.b16 %v792
      %v799 = vpack.c.b16 %v796, %v795
      %v800 = vpack.c.b16 %v798, %v797
      %s803 = scalar_lea.vmem %s147, 480
      %804 = vst [vmem:[%s803] sm:$0xff] %v799
      %805 = vst [vmem:[%s803 + $0x8] sm:$0xff] %v800
      %s806 = scalar_lea.vmem %s1, 128
      %v807 = vld [vmem:[%s806] sm:$0xff]
      %v808 = vld [vmem:[%s806 + $0x8] sm:$0xff]
      %v809 = vld [vmem:[%s806 + $0x10] sm:$0xff]
      %v810 = vld [vmem:[%s806 + $0x18] sm:$0xff]
      %v811 = vld [vmem:[%s806 + $0x20] sm:$0xff]
      %v812 = vld [vmem:[%s806 + $0x28] sm:$0xff]
      %v813 = vld [vmem:[%s806 + $0x30] sm:$0xff]
      %v814 = vld [vmem:[%s806 + $0x38] sm:$0xff]
      %v815 = vld [vmem:[%s806 + $0x40] sm:$0xff]
      %v816 = vld [vmem:[%s806 + $0x48] sm:$0xff]
      %v817 = vld [vmem:[%s806 + $0x50] sm:$0xff]
      %v818 = vld [vmem:[%s806 + $0x58] sm:$0xff]
      %v819 = vld [vmem:[%s806 + $0x60] sm:$0xff]
      %v820 = vld [vmem:[%s806 + $0x68] sm:$0xff]
      %v821 = vld [vmem:[%s806 + $0x70] sm:$0xff]
      %v822 = vld [vmem:[%s806 + $0x78] sm:$0xff]
      %v839 = vunpack.c.l.b16 %v807
      %v840 = vunpack.c.h.b16 %v807
      %v841 = vunpack.c.l.b16 %v808
      %v842 = vunpack.c.h.b16 %v808
      %v843 = vunpack.c.l.b16 %v809
      %v844 = vunpack.c.h.b16 %v809
      %v845 = vunpack.c.l.b16 %v810
      %v846 = vunpack.c.h.b16 %v810
      %v847 = vunpack.c.l.b16 %v811
      %v848 = vunpack.c.h.b16 %v811
      %v849 = vunpack.c.l.b16 %v812
      %v850 = vunpack.c.h.b16 %v812
      %v851 = vunpack.c.l.b16 %v813
      %v852 = vunpack.c.h.b16 %v813
      %v853 = vunpack.c.l.b16 %v814
      %v854 = vunpack.c.h.b16 %v814
      %v855 = vunpack.c.l.b16 %v815
      %v856 = vunpack.c.h.b16 %v815
      %v857 = vunpack.c.l.b16 %v816
      %v858 = vunpack.c.h.b16 %v816
      %v859 = vunpack.c.l.b16 %v817
      %v860 = vunpack.c.h.b16 %v817
      %v861 = vunpack.c.l.b16 %v818
      %v862 = vunpack.c.h.b16 %v818
      %v863 = vunpack.c.l.b16 %v819
      %v864 = vunpack.c.h.b16 %v819
      %v865 = vunpack.c.l.b16 %v820
      %v866 = vunpack.c.h.b16 %v820
      %v867 = vunpack.c.l.b16 %v821
      %v868 = vunpack.c.h.b16 %v821
      %v869 = vunpack.c.l.b16 %v822
      %v870 = vunpack.c.h.b16 %v822
      %v871 = vpack.c.b16 %v841, %v839
      %v872 = vpack.c.b16 %v842, %v840
      %v873 = vpack.c.b16 %v845, %v843
      %v874 = vpack.c.b16 %v846, %v844
      %v875 = vpack.c.b16 %v849, %v847
      %v876 = vpack.c.b16 %v850, %v848
      %v877 = vpack.c.b16 %v853, %v851
      %v878 = vpack.c.b16 %v854, %v852
      %v879 = vpack.c.b16 %v857, %v855
      %v880 = vpack.c.b16 %v858, %v856
      %v881 = vpack.c.b16 %v861, %v859
      %v882 = vpack.c.b16 %v862, %v860
      %v883 = vpack.c.b16 %v865, %v863
      %v884 = vpack.c.b16 %v866, %v864
      %v885 = vpack.c.b16 %v869, %v867
      %v886 = vpack.c.b16 %v870, %v868
      %903 = vmatprep.subr.bf16.mxu0 %v872
      %904 = vmatpush1.bf16.msra.mxu0 %v871
      %905 = vmatprep.subr.bf16.mxu0 %v874
      %906 = vmatpush1.bf16.msra.mxu0 %v873
      %907 = vmatprep.subr.bf16.mxu0 %v876
      %908 = vmatpush1.bf16.msra.mxu0 %v875
      %909 = vmatprep.subr.bf16.mxu0 %v878
      %910 = vmatpush1.bf16.msra.mxu0 %v877
      %911 = vmatprep.subr.bf16.mxu0 %v880
      %912 = vmatpush1.bf16.msra.mxu0 %v879
      %913 = vmatprep.subr.bf16.mxu0 %v882
      %914 = vmatpush1.bf16.msra.mxu0 %v881
      %915 = vmatprep.subr.bf16.mxu0 %v884
      %916 = vmatpush1.bf16.msra.mxu0 %v883
      %917 = vmatprep.subr.bf16.mxu0 %v886
      %918 = vmatpush1.bf16.msra.mxu0 %v885
      %919 = vmatprep.subr.bf16.mxu0 0
      %920 = vmatpush1.bf16.msra.mxu0 0
      %921 = vmatprep.subr.bf16.mxu0 0
      %922 = vmatpush1.bf16.msra.mxu0 0
      %923 = vmatprep.subr.bf16.mxu0 0
      %924 = vmatpush1.bf16.msra.mxu0 0
      %925 = vmatprep.subr.bf16.mxu0 0
      %926 = vmatpush1.bf16.msra.mxu0 0
      %927 = vmatprep.subr.bf16.mxu0 0
      %928 = vmatpush1.bf16.msra.mxu0 0
      %929 = vmatprep.subr.bf16.mxu0 0
      %930 = vmatpush1.bf16.msra.mxu0 0
      %931 = vmatprep.subr.bf16.mxu0 0
      %932 = vmatpush1.bf16.msra.mxu0 0
      %933 = vmatprep.subr.bf16.mxu0 0
      %934 = vmatpush1.bf16.msra.mxu0 0
      %935 = vmatprep.mubr.bf16.mxu0 0
      %936 = vmatmul.mubr.bf16.gmra.mrb[0].mxu0 %v262
      %v937 = vpop.f32.mrb[0].mxu0
      %v938 = vadd.f32 0.0, %v937
      %v939 = vpop.f32.mrb[0].mxu0
      %v940 = vadd.f32 0.0, %v939
      %v941 = vpop.f32.mrb[0].mxu0
      %v942 = vadd.f32 0.0, %v941
      %v943 = vpop.f32.mrb[0].mxu0
      %v944 = vadd.f32 0.0, %v943
      %945 = vmatprep.mubr.bf16.mxu0 0
      %946 = vmatmul.mubr.bf16.gmra.mrb[0].mxu0 %v263
      %v947 = vpop.f32.mrb[0].mxu0
      %v948 = vadd.f32 0.0, %v947
      %v949 = vpop.f32.mrb[0].mxu0
      %v950 = vadd.f32 0.0, %v949
      %v951 = vpop.f32.mrb[0].mxu0
      %v952 = vadd.f32 0.0, %v951
      %v953 = vpop.f32.mrb[0].mxu0
      %v954 = vadd.f32 0.0, %v953
      %955 = vmatprep.mubr.bf16.mxu0 0
      %956 = vmatmul.mubr.bf16.gmra.mrb[0].mxu0 %v264
      %v957 = vpop.f32.mrb[0].mxu0
      %v958 = vadd.f32 0.0, %v957
      %v959 = vpop.f32.mrb[0].mxu0
      %v960 = vadd.f32 0.0, %v959
      %v961 = vpop.f32.mrb[0].mxu0
      %v962 = vadd.f32 0.0, %v961
      %v963 = vpop.f32.mrb[0].mxu0
      %v964 = vadd.f32 0.0, %v963
      %965 = vmatprep.mubr.bf16.mxu0 0
      %966 = vmatmul.mubr.bf16.gmra.mrb[0].mxu0 %v265
      %v967 = vpop.f32.mrb[0].mxu0
      %v968 = vadd.f32 0.0, %v967
      %v969 = vpop.f32.mrb[0].mxu0
      %v970 = vadd.f32 0.0, %v969
      %v971 = vpop.f32.mrb[0].mxu0
      %v972 = vadd.f32 0.0, %v971
      %v973 = vpop.f32.mrb[0].mxu0
      %v974 = vadd.f32 0.0, %v973
      %975 = vmatprep.mubr.bf16.mxu0 0
      %976 = vmatmul.mubr.bf16.gmra.mrb[0].mxu0 %v266
      %v977 = vpop.f32.mrb[0].mxu0
      %v978 = vadd.f32 0.0, %v977
      %v979 = vpop.f32.mrb[0].mxu0
      %v980 = vadd.f32 0.0, %v979
      %v981 = vpop.f32.mrb[0].mxu0
      %v982 = vadd.f32 0.0, %v981
      %v983 = vpop.f32.mrb[0].mxu0
      %v984 = vadd.f32 0.0, %v983
      %985 = vmatprep.mubr.bf16.mxu0 0
      %986 = vmatmul.mubr.bf16.gmra.mrb[0].mxu0 %v267
      %v987 = vpop.f32.mrb[0].mxu0
      %v988 = vadd.f32 0.0, %v987
      %v989 = vpop.f32.mrb[0].mxu0
      %v990 = vadd.f32 0.0, %v989
      %v991 = vpop.f32.mrb[0].mxu0
      %v992 = vadd.f32 0.0, %v991
      %v993 = vpop.f32.mrb[0].mxu0
      %v994 = vadd.f32 0.0, %v993
      %995 = vmatprep.mubr.bf16.mxu0 0
      %996 = vmatmul.mubr.bf16.gmra.mrb[0].mxu0 %v268
      %v997 = vpop.f32.mrb[0].mxu0
      %v998 = vadd.f32 0.0, %v997
      %v999 = vpop.f32.mrb[0].mxu0
      %v1000 = vadd.f32 0.0, %v999
      %v1001 = vpop.f32.mrb[0].mxu0
      %v1002 = vadd.f32 0.0, %v1001
      %v1003 = vpop.f32.mrb[0].mxu0
      %v1004 = vadd.f32 0.0, %v1003
      %1005 = vmatprep.mubr.bf16.mxu0 0
      %1006 = vmatmul.mubr.bf16.gmra.mrb[0].mxu0 %v269
      %v1007 = vpop.f32.mrb[0].mxu0
      %v1008 = vadd.f32 0.0, %v1007
      %v1009 = vpop.f32.mrb[0].mxu0
      %v1010 = vadd.f32 0.0, %v1009
      %v1011 = vpop.f32.mrb[0].mxu0
      %v1012 = vadd.f32 0.0, %v1011
      %v1013 = vpop.f32.mrb[0].mxu0
      %v1014 = vadd.f32 0.0, %v1013
      %1015 = vmatprep.mubr.bf16.mxu0 0
      %1016 = vmatmul.mubr.bf16.gmra.mrb[0].mxu0 %v270
      %v1017 = vpop.f32.mrb[0].mxu0
      %v1018 = vadd.f32 0.0, %v1017
      %v1019 = vpop.f32.mrb[0].mxu0
      %v1020 = vadd.f32 0.0, %v1019
      %v1021 = vpop.f32.mrb[0].mxu0
      %v1022 = vadd.f32 0.0, %v1021
      %v1023 = vpop.f32.mrb[0].mxu0
      %v1024 = vadd.f32 0.0, %v1023
      %1025 = vmatprep.mubr.bf16.mxu0 0
      %1026 = vmatmul.mubr.bf16.gmra.mrb[0].mxu0 %v271
      %v1027 = vpop.f32.mrb[0].mxu0
      %v1028 = vadd.f32 0.0, %v1027
      %v1029 = vpop.f32.mrb[0].mxu0
      %v1030 = vadd.f32 0.0, %v1029
      %v1031 = vpop.f32.mrb[0].mxu0
      %v1032 = vadd.f32 0.0, %v1031
      %v1033 = vpop.f32.mrb[0].mxu0
      %v1034 = vadd.f32 0.0, %v1033
      %1035 = vmatprep.mubr.bf16.mxu0 0
      %1036 = vmatmul.mubr.bf16.gmra.mrb[0].mxu0 %v272
      %v1037 = vpop.f32.mrb[0].mxu0
      %v1038 = vadd.f32 0.0, %v1037
      %v1039 = vpop.f32.mrb[0].mxu0
      %v1040 = vadd.f32 0.0, %v1039
      %v1041 = vpop.f32.mrb[0].mxu0
      %v1042 = vadd.f32 0.0, %v1041
      %v1043 = vpop.f32.mrb[0].mxu0
      %v1044 = vadd.f32 0.0, %v1043
      %1045 = vmatprep.mubr.bf16.mxu0 0
      %1046 = vmatmul.mubr.bf16.gmra.mrb[0].mxu0 %v273
      %v1047 = vpop.f32.mrb[0].mxu0
      %v1048 = vadd.f32 0.0, %v1047
      %v1049 = vpop.f32.mrb[0].mxu0
      %v1050 = vadd.f32 0.0, %v1049
      %v1051 = vpop.f32.mrb[0].mxu0
      %v1052 = vadd.f32 0.0, %v1051
      %v1053 = vpop.f32.mrb[0].mxu0
      %v1054 = vadd.f32 0.0, %v1053
      %1055 = vmatprep.mubr.bf16.mxu0 0
      %1056 = vmatmul.mubr.bf16.gmra.mrb[0].mxu0 %v274
      %v1057 = vpop.f32.mrb[0].mxu0
      %v1058 = vadd.f32 0.0, %v1057
      %v1059 = vpop.f32.mrb[0].mxu0
      %v1060 = vadd.f32 0.0, %v1059
      %v1061 = vpop.f32.mrb[0].mxu0
      %v1062 = vadd.f32 0.0, %v1061
      %v1063 = vpop.f32.mrb[0].mxu0
      %v1064 = vadd.f32 0.0, %v1063
      %1065 = vmatprep.mubr.bf16.mxu0 0
      %1066 = vmatmul.mubr.bf16.gmra.mrb[0].mxu0 %v275
      %v1067 = vpop.f32.mrb[0].mxu0
      %v1068 = vadd.f32 0.0, %v1067
      %v1069 = vpop.f32.mrb[0].mxu0
      %v1070 = vadd.f32 0.0, %v1069
      %v1071 = vpop.f32.mrb[0].mxu0
      %v1072 = vadd.f32 0.0, %v1071
      %v1073 = vpop.f32.mrb[0].mxu0
      %v1074 = vadd.f32 0.0, %v1073
      %1075 = vmatprep.mubr.bf16.mxu0 0
      %1076 = vmatmul.mubr.bf16.gmra.mrb[0].mxu0 %v276
      %v1077 = vpop.f32.mrb[0].mxu0
      %v1078 = vadd.f32 0.0, %v1077
      %v1079 = vpop.f32.mrb[0].mxu0
      %v1080 = vadd.f32 0.0, %v1079
      %v1081 = vpop.f32.mrb[0].mxu0
      %v1082 = vadd.f32 0.0, %v1081
      %v1083 = vpop.f32.mrb[0].mxu0
      %v1084 = vadd.f32 0.0, %v1083
      %1085 = vmatprep.mubr.bf16.mxu0 0
      %1086 = vmatmul.mubr.bf16.gmra.mrb[0].mxu0 %v277
      %v1087 = vpop.f32.mrb[0].mxu0
      %v1088 = vadd.f32 0.0, %v1087
      %v1089 = vpop.f32.mrb[0].mxu0
      %v1090 = vadd.f32 0.0, %v1089
      %v1091 = vpop.f32.mrb[0].mxu0
      %v1092 = vadd.f32 0.0, %v1091
      %v1093 = vpop.f32.mrb[0].mxu0
      %v1094 = vadd.f32 0.0, %v1093
      %1095 = vdwg.mxu0
      %v1096 = vpack.c.bf16 %v942, %v938
      %v1097 = vpack.c.bf16 %v944, %v940
      %v1100 = vunpack.c.l.b16 %v1096
      %v1101 = vunpack.c.l.b16 %v1097
      %v1102 = vunpack.c.h.b16 %v1096
      %v1103 = vunpack.c.h.b16 %v1097
      %v1104 = vpack.c.b16 %v1101, %v1100
      %v1105 = vpack.c.b16 %v1103, %v1102
      %s1108 = scalar_lea.vmem %s147, 16
      %1109 = vst [vmem:[%s1108] sm:$0xff] %v1104
      %1110 = vst [vmem:[%s1108 + $0x8] sm:$0xff] %v1105
      %v1111 = vpack.c.bf16 %v952, %v948
      %v1112 = vpack.c.bf16 %v954, %v950
      %v1115 = vunpack.c.l.b16 %v1111
      %v1116 = vunpack.c.l.b16 %v1112
      %v1117 = vunpack.c.h.b16 %v1111
      %v1118 = vunpack.c.h.b16 %v1112
      %v1119 = vpack.c.b16 %v1116, %v1115
      %v1120 = vpack.c.b16 %v1118, %v1117
      %s1123 = scalar_lea.vmem %s147, 48
      %1124 = vst [vmem:[%s1123] sm:$0xff] %v1119
      %1125 = vst [vmem:[%s1123 + $0x8] sm:$0xff] %v1120
      %v1126 = vpack.c.bf16 %v962, %v958
      %v1127 = vpack.c.bf16 %v964, %v960
      %v1130 = vunpack.c.l.b16 %v1126
      %v1131 = vunpack.c.l.b16 %v1127
      %v1132 = vunpack.c.h.b16 %v1126
      %v1133 = vunpack.c.h.b16 %v1127
      %v1134 = vpack.c.b16 %v1131, %v1130
      %v1135 = vpack.c.b16 %v1133, %v1132
      %s1138 = scalar_lea.vmem %s147, 80
      %1139 = vst [vmem:[%s1138] sm:$0xff] %v1134
      %1140 = vst [vmem:[%s1138 + $0x8] sm:$0xff] %v1135
      %v1141 = vpack.c.bf16 %v972, %v968
      %v1142 = vpack.c.bf16 %v974, %v970
      %v1145 = vunpack.c.l.b16 %v1141
      %v1146 = vunpack.c.l.b16 %v1142
      %v1147 = vunpack.c.h.b16 %v1141
      %v1148 = vunpack.c.h.b16 %v1142
      %v1149 = vpack.c.b16 %v1146, %v1145
      %v1150 = vpack.c.b16 %v1148, %v1147
      %s1153 = scalar_lea.vmem %s147, 112
      %1154 = vst [vmem:[%s1153] sm:$0xff] %v1149
      %1155 = vst [vmem:[%s1153 + $0x8] sm:$0xff] %v1150
      %v1156 = vpack.c.bf16 %v982, %v978
      %v1157 = vpack.c.bf16 %v984, %v980
      %v1160 = vunpack.c.l.b16 %v1156
      %v1161 = vunpack.c.l.b16 %v1157
      %v1162 = vunpack.c.h.b16 %v1156
      %v1163 = vunpack.c.h.b16 %v1157
      %v1164 = vpack.c.b16 %v1161, %v1160
      %v1165 = vpack.c.b16 %v1163, %v1162
      %s1168 = scalar_lea.vmem %s147, 144
      %1169 = vst [vmem:[%s1168] sm:$0xff] %v1164
      %1170 = vst [vmem:[%s1168 + $0x8] sm:$0xff] %v1165
      %v1171 = vpack.c.bf16 %v992, %v988
      %v1172 = vpack.c.bf16 %v994, %v990
      %v1175 = vunpack.c.l.b16 %v1171
      %v1176 = vunpack.c.l.b16 %v1172
      %v1177 = vunpack.c.h.b16 %v1171
      %v1178 = vunpack.c.h.b16 %v1172
      %v1179 = vpack.c.b16 %v1176, %v1175
      %v1180 = vpack.c.b16 %v1178, %v1177
      %s1183 = scalar_lea.vmem %s147, 176
      %1184 = vst [vmem:[%s1183] sm:$0xff] %v1179
      %1185 = vst [vmem:[%s1183 + $0x8] sm:$0xff] %v1180
      %v1186 = vpack.c.bf16 %v1002, %v998
      %v1187 = vpack.c.bf16 %v1004, %v1000
      %v1190 = vunpack.c.l.b16 %v1186
      %v1191 = vunpack.c.l.b16 %v1187
      %v1192 = vunpack.c.h.b16 %v1186
      %v1193 = vunpack.c.h.b16 %v1187
      %v1194 = vpack.c.b16 %v1191, %v1190
      %v1195 = vpack.c.b16 %v1193, %v1192
      %s1198 = scalar_lea.vmem %s147, 208
      %1199 = vst [vmem:[%s1198] sm:$0xff] %v1194
      %1200 = vst [vmem:[%s1198 + $0x8] sm:$0xff] %v1195
      %v1201 = vpack.c.bf16 %v1012, %v1008
      %v1202 = vpack.c.bf16 %v1014, %v1010
      %v1205 = vunpack.c.l.b16 %v1201
      %v1206 = vunpack.c.l.b16 %v1202
      %v1207 = vunpack.c.h.b16 %v1201
      %v1208 = vunpack.c.h.b16 %v1202
      %v1209 = vpack.c.b16 %v1206, %v1205
      %v1210 = vpack.c.b16 %v1208, %v1207
      %s1213 = scalar_lea.vmem %s147, 240
      %1214 = vst [vmem:[%s1213] sm:$0xff] %v1209
      %1215 = vst [vmem:[%s1213 + $0x8] sm:$0xff] %v1210
      %v1216 = vpack.c.bf16 %v1022, %v1018
      %v1217 = vpack.c.bf16 %v1024, %v1020
      %v1220 = vunpack.c.l.b16 %v1216
      %v1221 = vunpack.c.l.b16 %v1217
      %v1222 = vunpack.c.h.b16 %v1216
      %v1223 = vunpack.c.h.b16 %v1217
      %v1224 = vpack.c.b16 %v1221, %v1220
      %v1225 = vpack.c.b16 %v1223, %v1222
      %s1228 = scalar_lea.vmem %s147, 272
      %1229 = vst [vmem:[%s1228] sm:$0xff] %v1224
      %1230 = vst [vmem:[%s1228 + $0x8] sm:$0xff] %v1225
      %v1231 = vpack.c.bf16 %v1032, %v1028
      %v1232 = vpack.c.bf16 %v1034, %v1030
      %v1235 = vunpack.c.l.b16 %v1231
      %v1236 = vunpack.c.l.b16 %v1232
      %v1237 = vunpack.c.h.b16 %v1231
      %v1238 = vunpack.c.h.b16 %v1232
      %v1239 = vpack.c.b16 %v1236, %v1235
      %v1240 = vpack.c.b16 %v1238, %v1237
      %s1243 = scalar_lea.vmem %s147, 304
      %1244 = vst [vmem:[%s1243] sm:$0xff] %v1239
      %1245 = vst [vmem:[%s1243 + $0x8] sm:$0xff] %v1240
      %v1246 = vpack.c.bf16 %v1042, %v1038
      %v1247 = vpack.c.bf16 %v1044, %v1040
      %v1250 = vunpack.c.l.b16 %v1246
      %v1251 = vunpack.c.l.b16 %v1247
      %v1252 = vunpack.c.h.b16 %v1246
      %v1253 = vunpack.c.h.b16 %v1247
      %v1254 = vpack.c.b16 %v1251, %v1250
      %v1255 = vpack.c.b16 %v1253, %v1252
      %s1258 = scalar_lea.vmem %s147, 336
      %1259 = vst [vmem:[%s1258] sm:$0xff] %v1254
      %1260 = vst [vmem:[%s1258 + $0x8] sm:$0xff] %v1255
      %v1261 = vpack.c.bf16 %v1052, %v1048
      %v1262 = vpack.c.bf16 %v1054, %v1050
      %v1265 = vunpack.c.l.b16 %v1261
      %v1266 = vunpack.c.l.b16 %v1262
      %v1267 = vunpack.c.h.b16 %v1261
      %v1268 = vunpack.c.h.b16 %v1262
      %v1269 = vpack.c.b16 %v1266, %v1265
      %v1270 = vpack.c.b16 %v1268, %v1267
      %s1273 = scalar_lea.vmem %s147, 368
      %1274 = vst [vmem:[%s1273] sm:$0xff] %v1269
      %1275 = vst [vmem:[%s1273 + $0x8] sm:$0xff] %v1270
      %v1276 = vpack.c.bf16 %v1062, %v1058
      %v1277 = vpack.c.bf16 %v1064, %v1060
      %v1280 = vunpack.c.l.b16 %v1276
      %v1281 = vunpack.c.l.b16 %v1277
      %v1282 = vunpack.c.h.b16 %v1276
      %v1283 = vunpack.c.h.b16 %v1277
      %v1284 = vpack.c.b16 %v1281, %v1280
      %v1285 = vpack.c.b16 %v1283, %v1282
      %s1288 = scalar_lea.vmem %s147, 400
      %1289 = vst [vmem:[%s1288] sm:$0xff] %v1284
      %1290 = vst [vmem:[%s1288 + $0x8] sm:$0xff] %v1285
      %v1291 = vpack.c.bf16 %v1072, %v1068
      %v1292 = vpack.c.bf16 %v1074, %v1070
      %v1295 = vunpack.c.l.b16 %v1291
      %v1296 = vunpack.c.l.b16 %v1292
      %v1297 = vunpack.c.h.b16 %v1291
      %v1298 = vunpack.c.h.b16 %v1292
      %v1299 = vpack.c.b16 %v1296, %v1295
      %v1300 = vpack.c.b16 %v1298, %v1297
      %s1303 = scalar_lea.vmem %s147, 432
      %1304 = vst [vmem:[%s1303] sm:$0xff] %v1299
      %1305 = vst [vmem:[%s1303 + $0x8] sm:$0xff] %v1300
      %v1306 = vpack.c.bf16 %v1082, %v1078
      %v1307 = vpack.c.bf16 %v1084, %v1080
      %v1310 = vunpack.c.l.b16 %v1306
      %v1311 = vunpack.c.l.b16 %v1307
      %v1312 = vunpack.c.h.b16 %v1306
      %v1313 = vunpack.c.h.b16 %v1307
      %v1314 = vpack.c.b16 %v1311, %v1310
      %v1315 = vpack.c.b16 %v1313, %v1312
      %s1318 = scalar_lea.vmem %s147, 464
      %1319 = vst [vmem:[%s1318] sm:$0xff] %v1314
      %1320 = vst [vmem:[%s1318 + $0x8] sm:$0xff] %v1315
      %v1321 = vpack.c.bf16 %v1092, %v1088
      %v1322 = vpack.c.bf16 %v1094, %v1090
      %v1325 = vunpack.c.l.b16 %v1321
      %v1326 = vunpack.c.l.b16 %v1322
      %v1327 = vunpack.c.h.b16 %v1321
      %v1328 = vunpack.c.h.b16 %v1322
      %v1329 = vpack.c.b16 %v1326, %v1325
      %v1330 = vpack.c.b16 %v1328, %v1327
      %s1333 = scalar_lea.vmem %s147, 496
      %1334 = vst [vmem:[%s1333] sm:$0xff] %v1329
      %1335 = vst [vmem:[%s1333 + $0x8] sm:$0xff] %v1330
      %s1336 = smul.u32 16, %s13
      %p1337 = scmp.lt.s32.totalorder %s1336, 31
      %s1338 = scalar_select %p1337, %s1336, 31
      %s1339 = smul.addr %s1338, 8
      %s1340 = smul.addr %s1339, 4
      %s1341 = scalar_lea.vmem %s2, %s1340
      // Predicated region
      $region29: #{up_decoder_forward.5} parent=27 // pred_check
        %p1342 = pneg %p78
      $region30: #{up_decoder_forward.5} parent=27 // pred_check_branch
        %1344 = sbr.rel (%p1342) target = $region32
      $region31: #{up_decoder_forward.5} parent=27 // pred_region
        %s1345 = smul.u32 16, %s13
      $region32: #{up_decoder_forward.5} parent=27 // pred_fallthru
        _
    $region28: #{up_decoder_forward.5} parent=5 // pred_fallthru
      _
    %p1346 = scmp.le.s32.totalorder 2, %s8
    // Predicated region
    $region33: #{up_decoder_forward.5} parent=5 // pred_check
      %p1347 = pneg %p1346
    $region34: #{up_decoder_forward.5} parent=5 // pred_check_branch
      %1349 = sbr.rel (%p1347) target = $region36
    $region35: #{up_decoder_forward.5} parent=5 // pred_region
      %s1350 = ssub.s32 %s8, 2
      // Predicated region
      $region37: #{up_decoder_forward.5} parent=35 // pred_check
        %p1351 = pneg %p84
      $region38: #{up_decoder_forward.5} parent=35 // pred_check_branch
        %1353 = sbr.rel (%p1351) target = $region40
      $region39: #{up_decoder_forward.5} parent=35 // pred_region
        %s1354 = smul.u32 16, %s14
        %p1355 = scmp.lt.s32.totalorder %s1354, 31
        %s1356 = scalar_select %p1355, %s1354, 31
        %s1357 = smul.addr %s1356, 8
        %s1358 = smul.addr %s1357, 4
        %s1359 = scalar_lea.vmem %s2, %s1358
      $region40: #{up_decoder_forward.5} parent=35 // pred_fallthru
        _
    $region36: #{up_decoder_forward.5} parent=5 // pred_fallthru
      _
  $region6: #{up_decoder_forward.5} parent=0 // loop_footer
    %s12 = sadd.s32 1, %s8
  $region7: #{up_decoder_forward.5} parent=0 // loop_footer_branch
    %7 = sbr.rel target = $region3
  $region8: #{up_decoder_forward.5} parent=0 // loop_exit
    _

// kernel: up_decoder_forward.7
$region0: #{up_decoder_forward.7}
  #allocation0 [shape = 'u32[]', space=smem, size = 0x4, offset = 0x4, fixed_abs, tag = 'smem constant byte address 0x4 - core index']
  #allocation1 [shape = 'u32[144,128]{1,0:T(1,128)}', space=vmem, size = 0x12000, scoped, tag = 'internal scratch']
  %s0 = inlined_call_operand.vmem [shape: bf16[1024,256], index: 0, kind: input, shape index: {}]
  %s1 = inlined_call_operand.vmem [shape: bf16[1024,256], index: 1, kind: input, shape index: {}]
  %s2 = inlined_call_operand.vmem [shape: f32[1,256], index: 2, kind: input, shape index: {}]
  %s3 = inlined_call_operand.vmem [shape: f32[1,256], index: 3, kind: input, shape index: {}]
  %s4 = inlined_call_operand.vmem [shape: f32[1024,256], index: 4, kind: output, shape index: {}]
  %s5 = sld [smem:[#allocation0]]
  $region49: #{up_decoder_forward.7} parent=0
    _
  %s7 = ssub.s32 1, %s5
  %s8 = scalar_select 0, %s7, %s5
  loop: start=0, step=1, limit=4
  $region2: #{up_decoder_forward.7} parent=0 // loop_pre_header
    _
  $region3: #{up_decoder_forward.7} parent=0 // loop_header
    %s10 = sphi 0, %s14
    %p11 = scmp.ge.s32.totalorder %s10, 4
    %s20 = sphi 0, %s22
    %s23 = sphi 0, %s20
    %s24 = sphi 0, %s23
    %s40 = sphi 0, %s24
    %s46 = sphi 0, %s48
    %s49 = sphi 0, %s46
    %s50 = sphi 0, %s49
    %s66 = sphi 0, %s50
    %s70 = sphi 0, %s70
    %s72 = sphi 0, %s70
    %s73 = sphi 0, %s72
    %s87 = sphi 0, %s73
    %s91 = sphi 0, %s91
    %s93 = sphi 0, %s91
    %s94 = sphi 0, %s93
    %s108 = sphi 0, %s94
    %s114 = sphi 0, %s116
    %s117 = sphi 0, %s114
    %s118 = sphi 0, %s117
    %s134 = sphi 0, %s118
  $region4: #{up_decoder_forward.7} parent=0 // loop_header_branch
    %13 = sbr.rel (%p11) target = $region8
  $region5: #{up_decoder_forward.7} parent=0 // loop_body
    %s15 = ssub.s32 %s10, 1
    %s16 = ssub.s32 %s10, 2
    %s17 = sadd.s32 %s10, 1
    %s18 = ssub.s32 %s10, %s17
    %p19 = scmp.eq.s32.totalorder %s18, 0
    %s21 = sadd.s32 %s20, 1
    %s22 = scalar_select %p19, %s20, %s21
    %p25 = pneg %p19
    %p26 = scmp.eq.s32.totalorder %s10, 1
    %p27 = por %p25, %p26
    %p28 = scmp.ne.s32.totalorder %s20, %s23
    %p29 = scmp.eq.s32.totalorder %s10, 0
    %p30 = por %p28, %p29
    %p31 = scmp.ne.s32.totalorder %s20, %s23
    %p32 = scmp.eq.s32.totalorder %s15, 1
    %p33 = por %p31, %p32
    %p34 = scmp.ne.s32.totalorder %s23, %s24
    %p35 = scmp.eq.s32.totalorder %s15, 0
    %p36 = por %p34, %p35
    %p37 = scmp.ne.s32.totalorder %s23, %s24
    %p38 = scmp.eq.s32.totalorder %s16, 1
    %p39 = por %p37, %p38
    %p41 = scmp.ne.s32.totalorder %s24, %s40
    %p42 = scmp.eq.s32.totalorder %s16, 0
    %p43 = por %p41, %p42
    %s44 = ssub.s32 %s10, %s17
    %p45 = scmp.eq.s32.totalorder %s44, 0
    %s47 = sadd.s32 %s46, 1
    %s48 = scalar_select %p45, %s46, %s47
    %p51 = pneg %p45
    %p52 = scmp.eq.s32.totalorder %s10, 1
    %p53 = por %p51, %p52
    %p54 = scmp.ne.s32.totalorder %s46, %s49
    %p55 = scmp.eq.s32.totalorder %s10, 0
    %p56 = por %p54, %p55
    %p57 = scmp.ne.s32.totalorder %s46, %s49
    %p58 = scmp.eq.s32.totalorder %s15, 1
    %p59 = por %p57, %p58
    %p60 = scmp.ne.s32.totalorder %s49, %s50
    %p61 = scmp.eq.s32.totalorder %s15, 0
    %p62 = por %p60, %p61
    %p63 = scmp.ne.s32.totalorder %s49, %s50
    %p64 = scmp.eq.s32.totalorder %s16, 1
    %p65 = por %p63, %p64
    %p67 = scmp.ne.s32.totalorder %s50, %s66
    %p68 = scmp.eq.s32.totalorder %s16, 0
    %p69 = por %p67, %p68
    %s71 = sadd.s32 %s70, 1
    %p74 = scmp.eq.s32.totalorder %s10, 1
    %p75 = scmp.ne.s32.totalorder %s70, %s72
    %p76 = scmp.eq.s32.totalorder %s10, 0
    %p77 = por %p75, %p76
    %p78 = scmp.ne.s32.totalorder %s70, %s72
    %p79 = scmp.eq.s32.totalorder %s15, 1
    %p80 = por %p78, %p79
    %p81 = scmp.ne.s32.totalorder %s72, %s73
    %p82 = scmp.eq.s32.totalorder %s15, 0
    %p83 = por %p81, %p82
    %p84 = scmp.ne.s32.totalorder %s72, %s73
    %p85 = scmp.eq.s32.totalorder %s16, 1
    %p86 = por %p84, %p85
    %p88 = scmp.ne.s32.totalorder %s73, %s87
    %p89 = scmp.eq.s32.totalorder %s16, 0
    %p90 = por %p88, %p89
    %s92 = sadd.s32 %s91, 1
    %p95 = scmp.eq.s32.totalorder %s10, 1
    %p96 = scmp.ne.s32.totalorder %s91, %s93
    %p97 = scmp.eq.s32.totalorder %s10, 0
    %p98 = por %p96, %p97
    %p99 = scmp.ne.s32.totalorder %s91, %s93
    %p100 = scmp.eq.s32.totalorder %s15, 1
    %p101 = por %p99, %p100
    %p102 = scmp.ne.s32.totalorder %s93, %s94
    %p103 = scmp.eq.s32.totalorder %s15, 0
    %p104 = por %p102, %p103
    %p105 = scmp.ne.s32.totalorder %s93, %s94
    %p106 = scmp.eq.s32.totalorder %s16, 1
    %p107 = por %p105, %p106
    %p109 = scmp.ne.s32.totalorder %s94, %s108
    %p110 = scmp.eq.s32.totalorder %s16, 0
    %p111 = por %p109, %p110
    %s112 = ssub.s32 %s10, %s17
    %p113 = scmp.eq.s32.totalorder %s112, 0
    %s115 = sadd.s32 %s114, 1
    %s116 = scalar_select %p113, %s114, %s115
    %p119 = pneg %p113
    %p120 = scmp.eq.s32.totalorder %s10, 1
    %p121 = por %p119, %p120
    %p122 = scmp.ne.s32.totalorder %s114, %s117
    %p123 = scmp.eq.s32.totalorder %s10, 0
    %p124 = por %p122, %p123
    %p125 = scmp.ne.s32.totalorder %s114, %s117
    %p126 = scmp.eq.s32.totalorder %s15, 1
    %p127 = por %p125, %p126
    %p128 = scmp.ne.s32.totalorder %s117, %s118
    %p129 = scmp.eq.s32.totalorder %s15, 0
    %p130 = por %p128, %p129
    %p131 = scmp.ne.s32.totalorder %s117, %s118
    %p132 = scmp.eq.s32.totalorder %s16, 1
    %p133 = por %p131, %p132
    %p135 = scmp.ne.s32.totalorder %s118, %s134
    %p136 = scmp.eq.s32.totalorder %s16, 0
    %p137 = por %p135, %p136
    %p138 = scmp.le.s32.totalorder 1, %s10
    %p139 = scmp.lt.s32.totalorder %s10, 3
    %p140 = pnand %p138, %p139
    %p141 = pneg %p140
    // Predicated region
    $region9: #{up_decoder_forward.7} parent=5 // pred_check
      _
    $region10: #{up_decoder_forward.7} parent=5 // pred_check_branch
      %143 = sbr.rel (%p140) target = $region12
    $region11: #{up_decoder_forward.7} parent=5 // pred_region
      %s144 = ssub.s32 %s10, 1
      // Predicated region
      $region13: #{up_decoder_forward.7} parent=11 // pred_check
        %p145 = pneg %p83
      $region14: #{up_decoder_forward.7} parent=11 // pred_check_branch
        %147 = sbr.rel (%p145) target = $region16
      $region15: #{up_decoder_forward.7} parent=11 // pred_region
        _
      $region16: #{up_decoder_forward.7} parent=11 // pred_fallthru
        _
      // Predicated region
      $region17: #{up_decoder_forward.7} parent=11 // pred_check
        %p148 = pneg %p104
      $region18: #{up_decoder_forward.7} parent=11 // pred_check_branch
        %150 = sbr.rel (%p148) target = $region20
      $region19: #{up_decoder_forward.7} parent=11 // pred_region
        _
      $region20: #{up_decoder_forward.7} parent=11 // pred_fallthru
        _
    $region12: #{up_decoder_forward.7} parent=5 // pred_fallthru
      _
    %p151 = scmp.lt.s32.totalorder %s10, 2
    // Predicated region
    $region21: #{up_decoder_forward.7} parent=5 // pred_check
      %p152 = pneg %p151
    $region22: #{up_decoder_forward.7} parent=5 // pred_check_branch
      %154 = sbr.rel (%p152) target = $region24
    $region23: #{up_decoder_forward.7} parent=5 // pred_region
      // Predicated region
      $region25: #{up_decoder_forward.7} parent=23 // pred_check
        %p155 = pneg %p30
      $region26: #{up_decoder_forward.7} parent=23 // pred_check_branch
        %157 = sbr.rel (%p155) target = $region28
      $region27: #{up_decoder_forward.7} parent=23 // pred_region
        %s158 = smul.u32 64, %s10
        %p159 = scmp.lt.s32.totalorder %s158, 127
        %s160 = scalar_select %p159, %s158, 127
        %s161 = smul.addr %s160, 2
        %s162 = smul.addr %s161, 4
        %s163 = scalar_lea.vmem %s0, %s162
        %s164 = smul.u32 64, %s10
      $region28: #{up_decoder_forward.7} parent=23 // pred_fallthru
        _
      // Predicated region
      $region29: #{up_decoder_forward.7} parent=23 // pred_check
        %p165 = pneg %p56
      $region30: #{up_decoder_forward.7} parent=23 // pred_check_branch
        %167 = sbr.rel (%p165) target = $region32
      $region31: #{up_decoder_forward.7} parent=23 // pred_region
        %s168 = smul.u32 64, %s10
        %p169 = scmp.lt.s32.totalorder %s168, 127
        %s170 = scalar_select %p169, %s168, 127
        %s171 = smul.addr %s170, 2
        %s172 = smul.addr %s171, 4
        %s173 = scalar_lea.vmem %s1, %s172
        %s174 = smul.u32 64, %s10
      $region32: #{up_decoder_forward.7} parent=23 // pred_fallthru
        _
    $region24: #{up_decoder_forward.7} parent=5 // pred_fallthru
      _
    %p175 = scmp.le.s32.totalorder 1, %s10
    %p176 = scmp.lt.s32.totalorder %s10, 3
    %p177 = pnand %p175, %p176
    %p178 = pneg %p177
    // Predicated region
    $region33: #{up_decoder_forward.7} parent=5 // pred_check
      _
    $region34: #{up_decoder_forward.7} parent=5 // pred_check_branch
      %180 = sbr.rel (%p177) target = $region36
    $region35: #{up_decoder_forward.7} parent=5 // pred_region
      %s181 = ssub.s32 %s10, 1
      %s182 = smul.u32 64, %s15
      %p183 = scmp.lt.s32.totalorder %s182, 127
      %s184 = scalar_select %p183, %s182, 127
      %s185 = smul.addr %s184, 2
      %s186 = smul.addr %s185, 4
      %s187 = scalar_lea.vmem %s0, %s186
      %p188 = pneg %p36
      %p189 = pneg %p33
      %s190 = smul.u32 64, %s15
      %p191 = scmp.lt.s32.totalorder %s190, 127
      %s192 = scalar_select %p191, %s190, 127
      %s193 = smul.addr %s192, 2
      %s194 = smul.addr %s193, 4
      %s195 = scalar_lea.vmem %s1, %s194
      %p196 = pneg %p62
      %p197 = pneg %p59
      %p198 = pneg %p83
      %p199 = pneg %p80
      %p200 = pneg %p104
      %p201 = pneg %p101
      %p202 = pneg %p130
      %p203 = pneg %p127
      %s204 = smul.u32 64, %s15
      %p205 = scmp.lt.s32.totalorder %s204, 127
      %s206 = scalar_select %p205, %s204, 127
      %s207 = smul.addr %s206, 2
      %s208 = smul.addr %s207, 8
      %s209 = scalar_lea.vmem %s4, %s208
      %s210 = smul.u32 64, %s15
      %p211 = scmp.lt.s32.totalorder %s210, 127
      %s212 = scalar_select %p211, %s210, 127
      %s213 = smul.addr %s212, 2
      %s214 = smul.addr %s213, 4
      %s215 = scalar_lea.vmem %s0, %s214
      %s216 = smul.u32 64, %s15
      %s217 = smul.u32 64, %s15
      %p218 = scmp.lt.s32.totalorder %s217, 127
      %s219 = scalar_select %p218, %s217, 127
      %s220 = smul.addr %s219, 2
      %s221 = smul.addr %s220, 4
      %s222 = scalar_lea.vmem %s1, %s221
      %s223 = smul.u32 64, %s15
      %s224 = smul.u32 64, %s15
      %p225 = scmp.lt.s32.totalorder %s224, 127
      %s226 = scalar_select %p225, %s224, 127
      %s227 = smul.addr %s226, 2
      %s228 = smul.addr %s227, 8
      %s229 = scalar_lea.vmem %s4, %s228
      %s230 = smul.u32 64, %s15
      %v231 = vld [vmem:[%s215] sm:$0xff]
      %v232 = vld [vmem:[%s215 + $0x8] sm:$0xff]
      %v233 = vld [vmem:[%s215 + $0x10] sm:$0xff]
      %v234 = vld [vmem:[%s215 + $0x18] sm:$0xff]
      %v235 = vld [vmem:[%s215 + $0x20] sm:$0xff]
      %v236 = vld [vmem:[%s215 + $0x28] sm:$0xff]
      %v237 = vld [vmem:[%s215 + $0x30] sm:$0xff]
      %v238 = vld [vmem:[%s215 + $0x38] sm:$0xff]
      %v239 = vld [vmem:[%s215 + $0x40] sm:$0xff]
      %v240 = vld [vmem:[%s215 + $0x48] sm:$0xff]
      %v241 = vld [vmem:[%s215 + $0x50] sm:$0xff]
      %v242 = vld [vmem:[%s215 + $0x58] sm:$0xff]
      %v243 = vld [vmem:[%s215 + $0x60] sm:$0xff]
      %v244 = vld [vmem:[%s215 + $0x68] sm:$0xff]
      %v245 = vld [vmem:[%s215 + $0x70] sm:$0xff]
      %v246 = vld [vmem:[%s215 + $0x78] sm:$0xff]
      %v247 = vld [vmem:[%s215 + $0x80] sm:$0xff]
      %v248 = vld [vmem:[%s215 + $0x88] sm:$0xff]
      %v249 = vld [vmem:[%s215 + $0x90] sm:$0xff]
      %v250 = vld [vmem:[%s215 + $0x98] sm:$0xff]
      %v251 = vld [vmem:[%s215 + $0xa0] sm:$0xff]
      %v252 = vld [vmem:[%s215 + $0xa8] sm:$0xff]
      %v253 = vld [vmem:[%s215 + $0xb0] sm:$0xff]
      %v254 = vld [vmem:[%s215 + $0xb8] sm:$0xff]
      %v255 = vld [vmem:[%s215 + $0xc0] sm:$0xff]
      %v256 = vld [vmem:[%s215 + $0xc8] sm:$0xff]
      %v257 = vld [vmem:[%s215 + $0xd0] sm:$0xff]
      %v258 = vld [vmem:[%s215 + $0xd8] sm:$0xff]
      %v259 = vld [vmem:[%s215 + $0xe0] sm:$0xff]
      %v260 = vld [vmem:[%s215 + $0xe8] sm:$0xff]
      %v261 = vld [vmem:[%s215 + $0xf0] sm:$0xff]
      %v262 = vld [vmem:[%s215 + $0xf8] sm:$0xff]
      %v263 = vld [vmem:[%s215 + $0x100] sm:$0xff]
      %v264 = vld [vmem:[%s215 + $0x108] sm:$0xff]
      %v265 = vld [vmem:[%s215 + $0x110] sm:$0xff]
      %v266 = vld [vmem:[%s215 + $0x118] sm:$0xff]
      %v267 = vld [vmem:[%s215 + $0x120] sm:$0xff]
      %v268 = vld [vmem:[%s215 + $0x128] sm:$0xff]
      %v269 = vld [vmem:[%s215 + $0x130] sm:$0xff]
      %v270 = vld [vmem:[%s215 + $0x138] sm:$0xff]
      %v271 = vld [vmem:[%s215 + $0x140] sm:$0xff]
      %v272 = vld [vmem:[%s215 + $0x148] sm:$0xff]
      %v273 = vld [vmem:[%s215 + $0x150] sm:$0xff]
      %v274 = vld [vmem:[%s215 + $0x158] sm:$0xff]
      %v275 = vld [vmem:[%s215 + $0x160] sm:$0xff]
      %v276 = vld [vmem:[%s215 + $0x168] sm:$0xff]
      %v277 = vld [vmem:[%s215 + $0x170] sm:$0xff]
      %v278 = vld [vmem:[%s215 + $0x178] sm:$0xff]
      %v279 = vld [vmem:[%s215 + $0x180] sm:$0xff]
      %v280 = vld [vmem:[%s215 + $0x188] sm:$0xff]
      %v281 = vld [vmem:[%s215 + $0x190] sm:$0xff]
      %v282 = vld [vmem:[%s215 + $0x198] sm:$0xff]
      %v283 = vld [vmem:[%s215 + $0x1a0] sm:$0xff]
      %v284 = vld [vmem:[%s215 + $0x1a8] sm:$0xff]
      %v285 = vld [vmem:[%s215 + $0x1b0] sm:$0xff]
      %v286 = vld [vmem:[%s215 + $0x1b8] sm:$0xff]
      %v287 = vld [vmem:[%s215 + $0x1c0] sm:$0xff]
      %v288 = vld [vmem:[%s215 + $0x1c8] sm:$0xff]
      %v289 = vld [vmem:[%s215 + $0x1d0] sm:$0xff]
      %v290 = vld [vmem:[%s215 + $0x1d8] sm:$0xff]
      %v291 = vld [vmem:[%s215 + $0x1e0] sm:$0xff]
      %v292 = vld [vmem:[%s215 + $0x1e8] sm:$0xff]
      %v293 = vld [vmem:[%s215 + $0x1f0] sm:$0xff]
      %v294 = vld [vmem:[%s215 + $0x1f8] sm:$0xff]
      %v295 = vunpack.c.l.bf16 %v231
      %v296 = vunpack.c.h.bf16 %v231
      %v297 = vunpack.c.l.bf16 %v232
      %v298 = vunpack.c.h.bf16 %v232
      %v299 = vunpack.c.l.bf16 %v233
      %v300 = vunpack.c.h.bf16 %v233
      %v301 = vunpack.c.l.bf16 %v234
      %v302 = vunpack.c.h.bf16 %v234
      %v303 = vunpack.c.l.bf16 %v235
      %v304 = vunpack.c.h.bf16 %v235
      %v305 = vunpack.c.l.bf16 %v236
      %v306 = vunpack.c.h.bf16 %v236
      %v307 = vunpack.c.l.bf16 %v237
      %v308 = vunpack.c.h.bf16 %v237
      %v309 = vunpack.c.l.bf16 %v238
      %v310 = vunpack.c.h.bf16 %v238
      %v311 = vunpack.c.l.bf16 %v239
      %v312 = vunpack.c.h.bf16 %v239
      %v313 = vunpack.c.l.bf16 %v240
      %v314 = vunpack.c.h.bf16 %v240
      %v315 = vunpack.c.l.bf16 %v241
      %v316 = vunpack.c.h.bf16 %v241
      %v317 = vunpack.c.l.bf16 %v242
      %v318 = vunpack.c.h.bf16 %v242
      %v319 = vunpack.c.l.bf16 %v243
      %v320 = vunpack.c.h.bf16 %v243
      %v321 = vunpack.c.l.bf16 %v244
      %v322 = vunpack.c.h.bf16 %v244
      %v323 = vunpack.c.l.bf16 %v245
      %v324 = vunpack.c.h.bf16 %v245
      %v325 = vunpack.c.l.bf16 %v246
      %v326 = vunpack.c.h.bf16 %v246
      %v327 = vunpack.c.l.bf16 %v247
      %v328 = vunpack.c.h.bf16 %v247
      %v329 = vunpack.c.l.bf16 %v248
      %v330 = vunpack.c.h.bf16 %v248
      %v331 = vunpack.c.l.bf16 %v249
      %v332 = vunpack.c.h.bf16 %v249
      %v333 = vunpack.c.l.bf16 %v250
      %v334 = vunpack.c.h.bf16 %v250
      %v335 = vunpack.c.l.bf16 %v251
      %v336 = vunpack.c.h.bf16 %v251
      %v337 = vunpack.c.l.bf16 %v252
      %v338 = vunpack.c.h.bf16 %v252
      %v339 = vunpack.c.l.bf16 %v253
      %v340 = vunpack.c.h.bf16 %v253
      %v341 = vunpack.c.l.bf16 %v254
      %v342 = vunpack.c.h.bf16 %v254
      %v343 = vunpack.c.l.bf16 %v255
      %v344 = vunpack.c.h.bf16 %v255
      %v345 = vunpack.c.l.bf16 %v256
      %v346 = vunpack.c.h.bf16 %v256
      %v347 = vunpack.c.l.bf16 %v257
      %v348 = vunpack.c.h.bf16 %v257
      %v349 = vunpack.c.l.bf16 %v258
      %v350 = vunpack.c.h.bf16 %v258
      %v351 = vunpack.c.l.bf16 %v259
      %v352 = vunpack.c.h.bf16 %v259
      %v353 = vunpack.c.l.bf16 %v260
      %v354 = vunpack.c.h.bf16 %v260
      %v355 = vunpack.c.l.bf16 %v261
      %v356 = vunpack.c.h.bf16 %v261
      %v357 = vunpack.c.l.bf16 %v262
      %v358 = vunpack.c.h.bf16 %v262
      %v359 = vunpack.c.l.bf16 %v263
      %v360 = vunpack.c.h.bf16 %v263
      %v361 = vunpack.c.l.bf16 %v264
      %v362 = vunpack.c.h.bf16 %v264
      %v363 = vunpack.c.l.bf16 %v265
      %v364 = vunpack.c.h.bf16 %v265
      %v365 = vunpack.c.l.bf16 %v266
      %v366 = vunpack.c.h.bf16 %v266
      %v367 = vunpack.c.l.bf16 %v267
      %v368 = vunpack.c.h.bf16 %v267
      %v369 = vunpack.c.l.bf16 %v268
      %v370 = vunpack.c.h.bf16 %v268
      %v371 = vunpack.c.l.bf16 %v269
      %v372 = vunpack.c.h.bf16 %v269
      %v373 = vunpack.c.l.bf16 %v270
      %v374 = vunpack.c.h.bf16 %v270
      %v375 = vunpack.c.l.bf16 %v271
      %v376 = vunpack.c.h.bf16 %v271
      %v377 = vunpack.c.l.bf16 %v272
      %v378 = vunpack.c.h.bf16 %v272
      %v379 = vunpack.c.l.bf16 %v273
      %v380 = vunpack.c.h.bf16 %v273
      %v381 = vunpack.c.l.bf16 %v274
      %v382 = vunpack.c.h.bf16 %v274
      %v383 = vunpack.c.l.bf16 %v275
      %v384 = vunpack.c.h.bf16 %v275
      %v385 = vunpack.c.l.bf16 %v276
      %v386 = vunpack.c.h.bf16 %v276
      %v387 = vunpack.c.l.bf16 %v277
      %v388 = vunpack.c.h.bf16 %v277
      %v389 = vunpack.c.l.bf16 %v278
      %v390 = vunpack.c.h.bf16 %v278
      %v391 = vunpack.c.l.bf16 %v279
      %v392 = vunpack.c.h.bf16 %v279
      %v393 = vunpack.c.l.bf16 %v280
      %v394 = vunpack.c.h.bf16 %v280
      %v395 = vunpack.c.l.bf16 %v281
      %v396 = vunpack.c.h.bf16 %v281
      %v397 = vunpack.c.l.bf16 %v282
      %v398 = vunpack.c.h.bf16 %v282
      %v399 = vunpack.c.l.bf16 %v283
      %v400 = vunpack.c.h.bf16 %v283
      %v401 = vunpack.c.l.bf16 %v284
      %v402 = vunpack.c.h.bf16 %v284
      %v403 = vunpack.c.l.bf16 %v285
      %v404 = vunpack.c.h.bf16 %v285
      %v405 = vunpack.c.l.bf16 %v286
      %v406 = vunpack.c.h.bf16 %v286
      %v407 = vunpack.c.l.bf16 %v287
      %v408 = vunpack.c.h.bf16 %v287
      %v409 = vunpack.c.l.bf16 %v288
      %v410 = vunpack.c.h.bf16 %v288
      %v411 = vunpack.c.l.bf16 %v289
      %v412 = vunpack.c.h.bf16 %v289
      %v413 = vunpack.c.l.bf16 %v290
      %v414 = vunpack.c.h.bf16 %v290
      %v415 = vunpack.c.l.bf16 %v291
      %v416 = vunpack.c.h.bf16 %v291
      %v417 = vunpack.c.l.bf16 %v292
      %v418 = vunpack.c.h.bf16 %v292
      %v419 = vunpack.c.l.bf16 %v293
      %v420 = vunpack.c.h.bf16 %v293
      %v421 = vunpack.c.l.bf16 %v294
      %v422 = vunpack.c.h.bf16 %v294
      %v423 = vld [vmem:[%s222] sm:$0xff]
      %v424 = vld [vmem:[%s222 + $0x8] sm:$0xff]
      %v425 = vld [vmem:[%s222 + $0x10] sm:$0xff]
      %v426 = vld [vmem:[%s222 + $0x18] sm:$0xff]
      %v427 = vld [vmem:[%s222 + $0x20] sm:$0xff]
      %v428 = vld [vmem:[%s222 + $0x28] sm:$0xff]
      %v429 = vld [vmem:[%s222 + $0x30] sm:$0xff]
      %v430 = vld [vmem:[%s222 + $0x38] sm:$0xff]
      %v431 = vld [vmem:[%s222 + $0x40] sm:$0xff]
      %v432 = vld [vmem:[%s222 + $0x48] sm:$0xff]
      %v433 = vld [vmem:[%s222 + $0x50] sm:$0xff]
      %v434 = vld [vmem:[%s222 + $0x58] sm:$0xff]
      %v435 = vld [vmem:[%s222 + $0x60] sm:$0xff]
      %v436 = vld [vmem:[%s222 + $0x68] sm:$0xff]
      %v437 = vld [vmem:[%s222 + $0x70] sm:$0xff]
      %v438 = vld [vmem:[%s222 + $0x78] sm:$0xff]
      %v439 = vld [vmem:[%s222 + $0x80] sm:$0xff]
      %v440 = vld [vmem:[%s222 + $0x88] sm:$0xff]
      %v441 = vld [vmem:[%s222 + $0x90] sm:$0xff]
      %v442 = vld [vmem:[%s222 + $0x98] sm:$0xff]
      %v443 = vld [vmem:[%s222 + $0xa0] sm:$0xff]
      %v444 = vld [vmem:[%s222 + $0xa8] sm:$0xff]
      %v445 = vld [vmem:[%s222 + $0xb0] sm:$0xff]
      %v446 = vld [vmem:[%s222 + $0xb8] sm:$0xff]
      %v447 = vld [vmem:[%s222 + $0xc0] sm:$0xff]
      %v448 = vld [vmem:[%s222 + $0xc8] sm:$0xff]
      %v449 = vld [vmem:[%s222 + $0xd0] sm:$0xff]
      %v450 = vld [vmem:[%s222 + $0xd8] sm:$0xff]
      %v451 = vld [vmem:[%s222 + $0xe0] sm:$0xff]
      %v452 = vld [vmem:[%s222 + $0xe8] sm:$0xff]
      %v453 = vld [vmem:[%s222 + $0xf0] sm:$0xff]
      %v454 = vld [vmem:[%s222 + $0xf8] sm:$0xff]
      %v455 = vld [vmem:[%s222 + $0x100] sm:$0xff]
      %v456 = vld [vmem:[%s222 + $0x108] sm:$0xff]
      %v457 = vld [vmem:[%s222 + $0x110] sm:$0xff]
      %v458 = vld [vmem:[%s222 + $0x118] sm:$0xff]
      %v459 = vld [vmem:[%s222 + $0x120] sm:$0xff]
      %v460 = vld [vmem:[%s222 + $0x128] sm:$0xff]
      %v461 = vld [vmem:[%s222 + $0x130] sm:$0xff]
      %v462 = vld [vmem:[%s222 + $0x138] sm:$0xff]
      %v463 = vld [vmem:[%s222 + $0x140] sm:$0xff]
      %v464 = vld [vmem:[%s222 + $0x148] sm:$0xff]
      %v465 = vld [vmem:[%s222 + $0x150] sm:$0xff]
      %v466 = vld [vmem:[%s222 + $0x158] sm:$0xff]
      %v467 = vld [vmem:[%s222 + $0x160] sm:$0xff]
      %v468 = vld [vmem:[%s222 + $0x168] sm:$0xff]
      %v469 = vld [vmem:[%s222 + $0x170] sm:$0xff]
      %v470 = vld [vmem:[%s222 + $0x178] sm:$0xff]
      %v471 = vld [vmem:[%s222 + $0x180] sm:$0xff]
      %v472 = vld [vmem:[%s222 + $0x188] sm:$0xff]
      %v473 = vld [vmem:[%s222 + $0x190] sm:$0xff]
      %v474 = vld [vmem:[%s222 + $0x198] sm:$0xff]
      %v475 = vld [vmem:[%s222 + $0x1a0] sm:$0xff]
      %v476 = vld [vmem:[%s222 + $0x1a8] sm:$0xff]
      %v477 = vld [vmem:[%s222 + $0x1b0] sm:$0xff]
      %v478 = vld [vmem:[%s222 + $0x1b8] sm:$0xff]
      %v479 = vld [vmem:[%s222 + $0x1c0] sm:$0xff]
      %v480 = vld [vmem:[%s222 + $0x1c8] sm:$0xff]
      %v481 = vld [vmem:[%s222 + $0x1d0] sm:$0xff]
      %v482 = vld [vmem:[%s222 + $0x1d8] sm:$0xff]
      %v483 = vld [vmem:[%s222 + $0x1e0] sm:$0xff]
      %v484 = vld [vmem:[%s222 + $0x1e8] sm:$0xff]
      %v485 = vld [vmem:[%s222 + $0x1f0] sm:$0xff]
      %v486 = vld [vmem:[%s222 + $0x1f8] sm:$0xff]
      %v487 = vunpack.c.l.bf16 %v423
      %v488 = vunpack.c.h.bf16 %v423
      %v489 = vunpack.c.l.bf16 %v424
      %v490 = vunpack.c.h.bf16 %v424
      %v491 = vunpack.c.l.bf16 %v425
      %v492 = vunpack.c.h.bf16 %v425
      %v493 = vunpack.c.l.bf16 %v426
      %v494 = vunpack.c.h.bf16 %v426
      %v495 = vunpack.c.l.bf16 %v427
      %v496 = vunpack.c.h.bf16 %v427
      %v497 = vunpack.c.l.bf16 %v428
      %v498 = vunpack.c.h.bf16 %v428
      %v499 = vunpack.c.l.bf16 %v429
      %v500 = vunpack.c.h.bf16 %v429
      %v501 = vunpack.c.l.bf16 %v430
      %v502 = vunpack.c.h.bf16 %v430
      %v503 = vunpack.c.l.bf16 %v431
      %v504 = vunpack.c.h.bf16 %v431
      %v505 = vunpack.c.l.bf16 %v432
      %v506 = vunpack.c.h.bf16 %v432
      %v507 = vunpack.c.l.bf16 %v433
      %v508 = vunpack.c.h.bf16 %v433
      %v509 = vunpack.c.l.bf16 %v434
      %v510 = vunpack.c.h.bf16 %v434
      %v511 = vunpack.c.l.bf16 %v435
      %v512 = vunpack.c.h.bf16 %v435
      %v513 = vunpack.c.l.bf16 %v436
      %v514 = vunpack.c.h.bf16 %v436
      %v515 = vunpack.c.l.bf16 %v437
      %v516 = vunpack.c.h.bf16 %v437
      %v517 = vunpack.c.l.bf16 %v438
      %v518 = vunpack.c.h.bf16 %v438
      %v519 = vunpack.c.l.bf16 %v439
      %v520 = vunpack.c.h.bf16 %v439
      %v521 = vunpack.c.l.bf16 %v440
      %v522 = vunpack.c.h.bf16 %v440
      %v523 = vunpack.c.l.bf16 %v441
      %v524 = vunpack.c.h.bf16 %v441
      %v525 = vunpack.c.l.bf16 %v442
      %v526 = vunpack.c.h.bf16 %v442
      %v527 = vunpack.c.l.bf16 %v443
      %v528 = vunpack.c.h.bf16 %v443
      %v529 = vunpack.c.l.bf16 %v444
      %v530 = vunpack.c.h.bf16 %v444
      %v531 = vunpack.c.l.bf16 %v445
      %v532 = vunpack.c.h.bf16 %v445
      %v533 = vunpack.c.l.bf16 %v446
      %v534 = vunpack.c.h.bf16 %v446
      %v535 = vunpack.c.l.bf16 %v447
      %v536 = vunpack.c.h.bf16 %v447
      %v537 = vunpack.c.l.bf16 %v448
      %v538 = vunpack.c.h.bf16 %v448
      %v539 = vunpack.c.l.bf16 %v449
      %v540 = vunpack.c.h.bf16 %v449
      %v541 = vunpack.c.l.bf16 %v450
      %v542 = vunpack.c.h.bf16 %v450
      %v543 = vunpack.c.l.bf16 %v451
      %v544 = vunpack.c.h.bf16 %v451
      %v545 = vunpack.c.l.bf16 %v452
      %v546 = vunpack.c.h.bf16 %v452
      %v547 = vunpack.c.l.bf16 %v453
      %v548 = vunpack.c.h.bf16 %v453
      %v549 = vunpack.c.l.bf16 %v454
      %v550 = vunpack.c.h.bf16 %v454
      %v551 = vunpack.c.l.bf16 %v455
      %v552 = vunpack.c.h.bf16 %v455
      %v553 = vunpack.c.l.bf16 %v456
      %v554 = vunpack.c.h.bf16 %v456
      %v555 = vunpack.c.l.bf16 %v457
      %v556 = vunpack.c.h.bf16 %v457
      %v557 = vunpack.c.l.bf16 %v458
      %v558 = vunpack.c.h.bf16 %v458
      %v559 = vunpack.c.l.bf16 %v459
      %v560 = vunpack.c.h.bf16 %v459
      %v561 = vunpack.c.l.bf16 %v460
      %v562 = vunpack.c.h.bf16 %v460
      %v563 = vunpack.c.l.bf16 %v461
      %v564 = vunpack.c.h.bf16 %v461
      %v565 = vunpack.c.l.bf16 %v462
      %v566 = vunpack.c.h.bf16 %v462
      %v567 = vunpack.c.l.bf16 %v463
      %v568 = vunpack.c.h.bf16 %v463
      %v569 = vunpack.c.l.bf16 %v464
      %v570 = vunpack.c.h.bf16 %v464
      %v571 = vunpack.c.l.bf16 %v465
      %v572 = vunpack.c.h.bf16 %v465
      %v573 = vunpack.c.l.bf16 %v466
      %v574 = vunpack.c.h.bf16 %v466
      %v575 = vunpack.c.l.bf16 %v467
      %v576 = vunpack.c.h.bf16 %v467
      %v577 = vunpack.c.l.bf16 %v468
      %v578 = vunpack.c.h.bf16 %v468
      %v579 = vunpack.c.l.bf16 %v469
      %v580 = vunpack.c.h.bf16 %v469
      %v581 = vunpack.c.l.bf16 %v470
      %v582 = vunpack.c.h.bf16 %v470
      %v583 = vunpack.c.l.bf16 %v471
      %v584 = vunpack.c.h.bf16 %v471
      %v585 = vunpack.c.l.bf16 %v472
      %v586 = vunpack.c.h.bf16 %v472
      %v587 = vunpack.c.l.bf16 %v473
      %v588 = vunpack.c.h.bf16 %v473
      %v589 = vunpack.c.l.bf16 %v474
      %v590 = vunpack.c.h.bf16 %v474
      %v591 = vunpack.c.l.bf16 %v475
      %v592 = vunpack.c.h.bf16 %v475
      %v593 = vunpack.c.l.bf16 %v476
      %v594 = vunpack.c.h.bf16 %v476
      %v595 = vunpack.c.l.bf16 %v477
      %v596 = vunpack.c.h.bf16 %v477
      %v597 = vunpack.c.l.bf16 %v478
      %v598 = vunpack.c.h.bf16 %v478
      %v599 = vunpack.c.l.bf16 %v479
      %v600 = vunpack.c.h.bf16 %v479
      %v601 = vunpack.c.l.bf16 %v480
      %v602 = vunpack.c.h.bf16 %v480
      %v603 = vunpack.c.l.bf16 %v481
      %v604 = vunpack.c.h.bf16 %v481
      %v605 = vunpack.c.l.bf16 %v482
      %v606 = vunpack.c.h.bf16 %v482
      %v607 = vunpack.c.l.bf16 %v483
      %v608 = vunpack.c.h.bf16 %v483
      %v609 = vunpack.c.l.bf16 %v484
      %v610 = vunpack.c.h.bf16 %v484
      %v611 = vunpack.c.l.bf16 %v485
      %v612 = vunpack.c.h.bf16 %v485
      %v613 = vunpack.c.l.bf16 %v486
      %v614 = vunpack.c.h.bf16 %v486
      %v615 = vld [vmem:[%s2] sm:$0x3]
      %v617 = vlaneseq
      %v618 = vshrl.u32 %v617, 7
      %v619 = vsub.s32 0, %v618
      %v620 = vrot.slane %v615, %v619
      %v621 = vlaneseq
      %v622 = vshrl.u32 %v621, 7
      %v623 = vsub.s32 1, %v622
      %v624 = vrot.slane %v615, %v623
      %v627 = vmul.f32 %v295, %v620
      %v628 = vmul.f32 %v296, %v624
      %v629 = vmul.f32 %v297, %v620
      %v630 = vmul.f32 %v298, %v624
      %v631 = vmul.f32 %v299, %v620
      %v632 = vmul.f32 %v300, %v624
      %v633 = vmul.f32 %v301, %v620
      %v634 = vmul.f32 %v302, %v624
      %v635 = vmul.f32 %v303, %v620
      %v636 = vmul.f32 %v304, %v624
      %v637 = vmul.f32 %v305, %v620
      %v638 = vmul.f32 %v306, %v624
      %v639 = vmul.f32 %v307, %v620
      %v640 = vmul.f32 %v308, %v624
      %v641 = vmul.f32 %v309, %v620
      %v642 = vmul.f32 %v310, %v624
      %v643 = vmul.f32 %v311, %v620
      %v644 = vmul.f32 %v312, %v624
      %v645 = vmul.f32 %v313, %v620
      %v646 = vmul.f32 %v314, %v624
      %v647 = vmul.f32 %v315, %v620
      %v648 = vmul.f32 %v316, %v624
      %v649 = vmul.f32 %v317, %v620
      %v650 = vmul.f32 %v318, %v624
      %v651 = vmul.f32 %v319, %v620
      %v652 = vmul.f32 %v320, %v624
      %v653 = vmul.f32 %v321, %v620
      %v654 = vmul.f32 %v322, %v624
      %v655 = vmul.f32 %v323, %v620
      %v656 = vmul.f32 %v324, %v624
      %v657 = vmul.f32 %v325, %v620
      %v658 = vmul.f32 %v326, %v624
      %v659 = vmul.f32 %v327, %v620
      %v660 = vmul.f32 %v328, %v624
      %v661 = vmul.f32 %v329, %v620
      %v662 = vmul.f32 %v330, %v624
      %v663 = vmul.f32 %v331, %v620
      %v664 = vmul.f32 %v332, %v624
      %v665 = vmul.f32 %v333, %v620
      %v666 = vmul.f32 %v334, %v624
      %v667 = vmul.f32 %v335, %v620
      %v668 = vmul.f32 %v336, %v624
      %v669 = vmul.f32 %v337, %v620
      %v670 = vmul.f32 %v338, %v624
      %v671 = vmul.f32 %v339, %v620
      %v672 = vmul.f32 %v340, %v624
      %v673 = vmul.f32 %v341, %v620
      %v674 = vmul.f32 %v342, %v624
      %v675 = vmul.f32 %v343, %v620
      %v676 = vmul.f32 %v344, %v624
      %v677 = vmul.f32 %v345, %v620
      %v678 = vmul.f32 %v346, %v624
      %v679 = vmul.f32 %v347, %v620
      %v680 = vmul.f32 %v348, %v624
      %v681 = vmul.f32 %v349, %v620
      %v682 = vmul.f32 %v350, %v624
      %v683 = vmul.f32 %v351, %v620
      %v684 = vmul.f32 %v352, %v624
      %v685 = vmul.f32 %v353, %v620
      %v686 = vmul.f32 %v354, %v624
      %v687 = vmul.f32 %v355, %v620
      %v688 = vmul.f32 %v356, %v624
      %v689 = vmul.f32 %v357, %v620
      %v690 = vmul.f32 %v358, %v624
      %v691 = vmul.f32 %v359, %v620
      %v692 = vmul.f32 %v360, %v624
      %v693 = vmul.f32 %v361, %v620
      %v694 = vmul.f32 %v362, %v624
      %v695 = vmul.f32 %v363, %v620
      %v696 = vmul.f32 %v364, %v624
      %v697 = vmul.f32 %v365, %v620
      %v698 = vmul.f32 %v366, %v624
      %v699 = vmul.f32 %v367, %v620
      %v700 = vmul.f32 %v368, %v624
      %v701 = vmul.f32 %v369, %v620
      %v702 = vmul.f32 %v370, %v624
      %v703 = vmul.f32 %v371, %v620
      %v704 = vmul.f32 %v372, %v624
      %v705 = vmul.f32 %v373, %v620
      %v706 = vmul.f32 %v374, %v624
      %v707 = vmul.f32 %v375, %v620
      %v708 = vmul.f32 %v376, %v624
      %v709 = vmul.f32 %v377, %v620
      %v710 = vmul.f32 %v378, %v624
      %v711 = vmul.f32 %v379, %v620
      %v712 = vmul.f32 %v380, %v624
      %v713 = vmul.f32 %v381, %v620
      %v714 = vmul.f32 %v382, %v624
      %v715 = vmul.f32 %v383, %v620
      %v716 = vmul.f32 %v384, %v624
      %v717 = vmul.f32 %v385, %v620
      %v718 = vmul.f32 %v386, %v624
      %v719 = vmul.f32 %v387, %v620
      %v720 = vmul.f32 %v388, %v624
      %v721 = vmul.f32 %v389, %v620
      %v722 = vmul.f32 %v390, %v624
      %v723 = vmul.f32 %v391, %v620
      %v724 = vmul.f32 %v392, %v624
      %v725 = vmul.f32 %v393, %v620
      %v726 = vmul.f32 %v394, %v624
      %v727 = vmul.f32 %v395, %v620
      %v728 = vmul.f32 %v396, %v624
      %v729 = vmul.f32 %v397, %v620
      %v730 = vmul.f32 %v398, %v624
      %v731 = vmul.f32 %v399, %v620
      %v732 = vmul.f32 %v400, %v624
      %v733 = vmul.f32 %v401, %v620
      %v734 = vmul.f32 %v402, %v624
      %v735 = vmul.f32 %v403, %v620
      %v736 = vmul.f32 %v404, %v624
      %v737 = vmul.f32 %v405, %v620
      %v738 = vmul.f32 %v406, %v624
      %v739 = vmul.f32 %v407, %v620
      %v740 = vmul.f32 %v408, %v624
      %v741 = vmul.f32 %v409, %v620
      %v742 = vmul.f32 %v410, %v624
      %v743 = vmul.f32 %v411, %v620
      %v744 = vmul.f32 %v412, %v624
      %v745 = vmul.f32 %v413, %v620
      %v746 = vmul.f32 %v414, %v624
      %v747 = vmul.f32 %v415, %v620
      %v748 = vmul.f32 %v416, %v624
      %v749 = vmul.f32 %v417, %v620
      %v750 = vmul.f32 %v418, %v624
      %v751 = vmul.f32 %v419, %v620
      %v752 = vmul.f32 %v420, %v624
      %v753 = vmul.f32 %v421, %v620
      %v754 = vmul.f32 %v422, %v624
      %v755 = vld [vmem:[%s3] sm:$0x3]
      %v757 = vlaneseq
      %v758 = vshrl.u32 %v757, 7
      %v759 = vsub.s32 0, %v758
      %v760 = vrot.slane %v755, %v759
      %v761 = vlaneseq
      %v762 = vshrl.u32 %v761, 7
      %v763 = vsub.s32 1, %v762
      %v764 = vrot.slane %v755, %v763
      %v767 = vadd.f32 %v627, %v760
      %v768 = vadd.f32 %v628, %v764
      %v769 = vadd.f32 %v629, %v760
      %v770 = vadd.f32 %v630, %v764
      %v771 = vadd.f32 %v631, %v760
      %v772 = vadd.f32 %v632, %v764
      %v773 = vadd.f32 %v633, %v760
      %v774 = vadd.f32 %v634, %v764
      %v775 = vadd.f32 %v635, %v760
      %v776 = vadd.f32 %v636, %v764
      %v777 = vadd.f32 %v637, %v760
      %v778 = vadd.f32 %v638, %v764
      %v779 = vadd.f32 %v639, %v760
      %v780 = vadd.f32 %v640, %v764
      %v781 = vadd.f32 %v641, %v760
      %v782 = vadd.f32 %v642, %v764
      %v783 = vadd.f32 %v643, %v760
      %v784 = vadd.f32 %v644, %v764
      %v785 = vadd.f32 %v645, %v760
      %v786 = vadd.f32 %v646, %v764
      %v787 = vadd.f32 %v647, %v760
      %v788 = vadd.f32 %v648, %v764
      %v789 = vadd.f32 %v649, %v760
      %v790 = vadd.f32 %v650, %v764
      %v791 = vadd.f32 %v651, %v760
      %v792 = vadd.f32 %v652, %v764
      %v793 = vadd.f32 %v653, %v760
      %v794 = vadd.f32 %v654, %v764
      %v795 = vadd.f32 %v655, %v760
      %v796 = vadd.f32 %v656, %v764
      %v797 = vadd.f32 %v657, %v760
      %v798 = vadd.f32 %v658, %v764
      %v799 = vadd.f32 %v659, %v760
      %v800 = vadd.f32 %v660, %v764
      %v801 = vadd.f32 %v661, %v760
      %v802 = vadd.f32 %v662, %v764
      %v803 = vadd.f32 %v663, %v760
      %v804 = vadd.f32 %v664, %v764
      %v805 = vadd.f32 %v665, %v760
      %v806 = vadd.f32 %v666, %v764
      %v807 = vadd.f32 %v667, %v760
      %v808 = vadd.f32 %v668, %v764
      %v809 = vadd.f32 %v669, %v760
      %v810 = vadd.f32 %v670, %v764
      %v811 = vadd.f32 %v671, %v760
      %v812 = vadd.f32 %v672, %v764
      %v813 = vadd.f32 %v673, %v760
      %v814 = vadd.f32 %v674, %v764
      %v815 = vadd.f32 %v675, %v760
      %v816 = vadd.f32 %v676, %v764
      %v817 = vadd.f32 %v677, %v760
      %v818 = vadd.f32 %v678, %v764
      %v819 = vadd.f32 %v679, %v760
      %v820 = vadd.f32 %v680, %v764
      %v821 = vadd.f32 %v681, %v760
      %v822 = vadd.f32 %v682, %v764
      %v823 = vadd.f32 %v683, %v760
      %v824 = vadd.f32 %v684, %v764
      %v825 = vadd.f32 %v685, %v760
      %v826 = vadd.f32 %v686, %v764
      %v827 = vadd.f32 %v687, %v760
      %v828 = vadd.f32 %v688, %v764
      %v829 = vadd.f32 %v689, %v760
      %v830 = vadd.f32 %v690, %v764
      %v831 = vadd.f32 %v691, %v760
      %v832 = vadd.f32 %v692, %v764
      %v833 = vadd.f32 %v693, %v760
      %v834 = vadd.f32 %v694, %v764
      %v835 = vadd.f32 %v695, %v760
      %v836 = vadd.f32 %v696, %v764
      %v837 = vadd.f32 %v697, %v760
      %v838 = vadd.f32 %v698, %v764
      %v839 = vadd.f32 %v699, %v760
      %v840 = vadd.f32 %v700, %v764
      %v841 = vadd.f32 %v701, %v760
      %v842 = vadd.f32 %v702, %v764
      %v843 = vadd.f32 %v703, %v760
      %v844 = vadd.f32 %v704, %v764
      %v845 = vadd.f32 %v705, %v760
      %v846 = vadd.f32 %v706, %v764
      %v847 = vadd.f32 %v707, %v760
      %v848 = vadd.f32 %v708, %v764
      %v849 = vadd.f32 %v709, %v760
      %v850 = vadd.f32 %v710, %v764
      %v851 = vadd.f32 %v711, %v760
      %v852 = vadd.f32 %v712, %v764
      %v853 = vadd.f32 %v713, %v760
      %v854 = vadd.f32 %v714, %v764
      %v855 = vadd.f32 %v715, %v760
      %v856 = vadd.f32 %v716, %v764
      %v857 = vadd.f32 %v717, %v760
      %v858 = vadd.f32 %v718, %v764
      %v859 = vadd.f32 %v719, %v760
      %v860 = vadd.f32 %v720, %v764
      %v861 = vadd.f32 %v721, %v760
      %v862 = vadd.f32 %v722, %v764
      %v863 = vadd.f32 %v723, %v760
      %v864 = vadd.f32 %v724, %v764
      %v865 = vadd.f32 %v725, %v760
      %v866 = vadd.f32 %v726, %v764
      %v867 = vadd.f32 %v727, %v760
      %v868 = vadd.f32 %v728, %v764
      %v869 = vadd.f32 %v729, %v760
      %v870 = vadd.f32 %v730, %v764
      %v871 = vadd.f32 %v731, %v760
      %v872 = vadd.f32 %v732, %v764
      %v873 = vadd.f32 %v733, %v760
      %v874 = vadd.f32 %v734, %v764
      %v875 = vadd.f32 %v735, %v760
      %v876 = vadd.f32 %v736, %v764
      %v877 = vadd.f32 %v737, %v760
      %v878 = vadd.f32 %v738, %v764
      %v879 = vadd.f32 %v739, %v760
      %v880 = vadd.f32 %v740, %v764
      %v881 = vadd.f32 %v741, %v760
      %v882 = vadd.f32 %v742, %v764
      %v883 = vadd.f32 %v743, %v760
      %v884 = vadd.f32 %v744, %v764
      %v885 = vadd.f32 %v745, %v760
      %v886 = vadd.f32 %v746, %v764
      %v887 = vadd.f32 %v747, %v760
      %v888 = vadd.f32 %v748, %v764
      %v889 = vadd.f32 %v749, %v760
      %v890 = vadd.f32 %v750, %v764
      %v891 = vadd.f32 %v751, %v760
      %v892 = vadd.f32 %v752, %v764
      %v893 = vadd.f32 %v753, %v760
      %v894 = vadd.f32 %v754, %v764
      %v895 = vadd.f32 %v767, %v487
      %v896 = vadd.f32 %v768, %v488
      %v897 = vadd.f32 %v769, %v489
      %v898 = vadd.f32 %v770, %v490
      %v899 = vadd.f32 %v771, %v491
      %v900 = vadd.f32 %v772, %v492
      %v901 = vadd.f32 %v773, %v493
      %v902 = vadd.f32 %v774, %v494
      %v903 = vadd.f32 %v775, %v495
      %v904 = vadd.f32 %v776, %v496
      %v905 = vadd.f32 %v777, %v497
      %v906 = vadd.f32 %v778, %v498
      %v907 = vadd.f32 %v779, %v499
      %v908 = vadd.f32 %v780, %v500
      %v909 = vadd.f32 %v781, %v501
      %v910 = vadd.f32 %v782, %v502
      %v911 = vadd.f32 %v783, %v503
      %v912 = vadd.f32 %v784, %v504
      %v913 = vadd.f32 %v785, %v505
      %v914 = vadd.f32 %v786, %v506
      %v915 = vadd.f32 %v787, %v507
      %v916 = vadd.f32 %v788, %v508
      %v917 = vadd.f32 %v789, %v509
      %v918 = vadd.f32 %v790, %v510
      %v919 = vadd.f32 %v791, %v511
      %v920 = vadd.f32 %v792, %v512
      %v921 = vadd.f32 %v793, %v513
      %v922 = vadd.f32 %v794, %v514
      %v923 = vadd.f32 %v795, %v515
      %v924 = vadd.f32 %v796, %v516
      %v925 = vadd.f32 %v797, %v517
      %v926 = vadd.f32 %v798, %v518
      %v927 = vadd.f32 %v799, %v519
      %v928 = vadd.f32 %v800, %v520
      %v929 = vadd.f32 %v801, %v521
      %v930 = vadd.f32 %v802, %v522
      %v931 = vadd.f32 %v803, %v523
      %v932 = vadd.f32 %v804, %v524
      %v933 = vadd.f32 %v805, %v525
      %v934 = vadd.f32 %v806, %v526
      %v935 = vadd.f32 %v807, %v527
      %v936 = vadd.f32 %v808, %v528
      %v937 = vadd.f32 %v809, %v529
      %v938 = vadd.f32 %v810, %v530
      %v939 = vadd.f32 %v811, %v531
      %v940 = vadd.f32 %v812, %v532
      %v941 = vadd.f32 %v813, %v533
      %v942 = vadd.f32 %v814, %v534
      %v943 = vadd.f32 %v815, %v535
      %v944 = vadd.f32 %v816, %v536
      %v945 = vadd.f32 %v817, %v537
      %v946 = vadd.f32 %v818, %v538
      %v947 = vadd.f32 %v819, %v539
      %v948 = vadd.f32 %v820, %v540
      %v949 = vadd.f32 %v821, %v541
      %v950 = vadd.f32 %v822, %v542
      %v951 = vadd.f32 %v823, %v543
      %v952 = vadd.f32 %v824, %v544
      %v953 = vadd.f32 %v825, %v545
      %v954 = vadd.f32 %v826, %v546
      %v955 = vadd.f32 %v827, %v547
      %v956 = vadd.f32 %v828, %v548
      %v957 = vadd.f32 %v829, %v549
      %v958 = vadd.f32 %v830, %v550
      %v959 = vadd.f32 %v831, %v551
      %v960 = vadd.f32 %v832, %v552
      %v961 = vadd.f32 %v833, %v553
      %v962 = vadd.f32 %v834, %v554
      %v963 = vadd.f32 %v835, %v555
      %v964 = vadd.f32 %v836, %v556
      %v965 = vadd.f32 %v837, %v557
      %v966 = vadd.f32 %v838, %v558
      %v967 = vadd.f32 %v839, %v559
      %v968 = vadd.f32 %v840, %v560
      %v969 = vadd.f32 %v841, %v561
      %v970 = vadd.f32 %v842, %v562
      %v971 = vadd.f32 %v843, %v563
      %v972 = vadd.f32 %v844, %v564
      %v973 = vadd.f32 %v845, %v565
      %v974 = vadd.f32 %v846, %v566
      %v975 = vadd.f32 %v847, %v567
      %v976 = vadd.f32 %v848, %v568
      %v977 = vadd.f32 %v849, %v569
      %v978 = vadd.f32 %v850, %v570
      %v979 = vadd.f32 %v851, %v571
      %v980 = vadd.f32 %v852, %v572
      %v981 = vadd.f32 %v853, %v573
      %v982 = vadd.f32 %v854, %v574
      %v983 = vadd.f32 %v855, %v575
      %v984 = vadd.f32 %v856, %v576
      %v985 = vadd.f32 %v857, %v577
      %v986 = vadd.f32 %v858, %v578
      %v987 = vadd.f32 %v859, %v579
      %v988 = vadd.f32 %v860, %v580
      %v989 = vadd.f32 %v861, %v581
      %v990 = vadd.f32 %v862, %v582
      %v991 = vadd.f32 %v863, %v583
      %v992 = vadd.f32 %v864, %v584
      %v993 = vadd.f32 %v865, %v585
      %v994 = vadd.f32 %v866, %v586
      %v995 = vadd.f32 %v867, %v587
      %v996 = vadd.f32 %v868, %v588
      %v997 = vadd.f32 %v869, %v589
      %v998 = vadd.f32 %v870, %v590
      %v999 = vadd.f32 %v871, %v591
      %v1000 = vadd.f32 %v872, %v592
      %v1001 = vadd.f32 %v873, %v593
      %v1002 = vadd.f32 %v874, %v594
      %v1003 = vadd.f32 %v875, %v595
      %v1004 = vadd.f32 %v876, %v596
      %v1005 = vadd.f32 %v877, %v597
      %v1006 = vadd.f32 %v878, %v598
      %v1007 = vadd.f32 %v879, %v599
      %v1008 = vadd.f32 %v880, %v600
      %v1009 = vadd.f32 %v881, %v601
      %v1010 = vadd.f32 %v882, %v602
      %v1011 = vadd.f32 %v883, %v603
      %v1012 = vadd.f32 %v884, %v604
      %v1013 = vadd.f32 %v885, %v605
      %v1014 = vadd.f32 %v886, %v606
      %v1015 = vadd.f32 %v887, %v607
      %v1016 = vadd.f32 %v888, %v608
      %v1017 = vadd.f32 %v889, %v609
      %v1018 = vadd.f32 %v890, %v610
      %v1019 = vadd.f32 %v891, %v611
      %v1020 = vadd.f32 %v892, %v612
      %v1021 = vadd.f32 %v893, %v613
      %v1022 = vadd.f32 %v894, %v614
      %v1023 = vmax.f32 %v895, 0.0
      %v1024 = vmax.f32 %v896, 0.0
      %v1025 = vmax.f32 %v897, 0.0
      %v1026 = vmax.f32 %v898, 0.0
      %v1027 = vmax.f32 %v899, 0.0
      %v1028 = vmax.f32 %v900, 0.0
      %v1029 = vmax.f32 %v901, 0.0
      %v1030 = vmax.f32 %v902, 0.0
      %v1031 = vmax.f32 %v903, 0.0
      %v1032 = vmax.f32 %v904, 0.0
      %v1033 = vmax.f32 %v905, 0.0
      %v1034 = vmax.f32 %v906, 0.0
      %v1035 = vmax.f32 %v907, 0.0
      %v1036 = vmax.f32 %v908, 0.0
      %v1037 = vmax.f32 %v909, 0.0
      %v1038 = vmax.f32 %v910, 0.0
      %v1039 = vmax.f32 %v911, 0.0
      %v1040 = vmax.f32 %v912, 0.0
      %v1041 = vmax.f32 %v913, 0.0
      %v1042 = vmax.f32 %v914, 0.0
      %v1043 = vmax.f32 %v915, 0.0
      %v1044 = vmax.f32 %v916, 0.0
      %v1045 = vmax.f32 %v917, 0.0
      %v1046 = vmax.f32 %v918, 0.0
      %v1047 = vmax.f32 %v919, 0.0
      %v1048 = vmax.f32 %v920, 0.0
      %v1049 = vmax.f32 %v921, 0.0
      %v1050 = vmax.f32 %v922, 0.0
      %v1051 = vmax.f32 %v923, 0.0
      %v1052 = vmax.f32 %v924, 0.0
      %v1053 = vmax.f32 %v925, 0.0
      %v1054 = vmax.f32 %v926, 0.0
      %v1055 = vmax.f32 %v927, 0.0
      %v1056 = vmax.f32 %v928, 0.0
      %v1057 = vmax.f32 %v929, 0.0
      %v1058 = vmax.f32 %v930, 0.0
      %v1059 = vmax.f32 %v931, 0.0
      %v1060 = vmax.f32 %v932, 0.0
      %v1061 = vmax.f32 %v933, 0.0
      %v1062 = vmax.f32 %v934, 0.0
      %v1063 = vmax.f32 %v935, 0.0
      %v1064 = vmax.f32 %v936, 0.0
      %v1065 = vmax.f32 %v937, 0.0
      %v1066 = vmax.f32 %v938, 0.0
      %v1067 = vmax.f32 %v939, 0.0
      %v1068 = vmax.f32 %v940, 0.0
      %v1069 = vmax.f32 %v941, 0.0
      %v1070 = vmax.f32 %v942, 0.0
      %v1071 = vmax.f32 %v943, 0.0
      %v1072 = vmax.f32 %v944, 0.0
      %v1073 = vmax.f32 %v945, 0.0
      %v1074 = vmax.f32 %v946, 0.0
      %v1075 = vmax.f32 %v947, 0.0
      %v1076 = vmax.f32 %v948, 0.0
      %v1077 = vmax.f32 %v949, 0.0
      %v1078 = vmax.f32 %v950, 0.0
      %v1079 = vmax.f32 %v951, 0.0
      %v1080 = vmax.f32 %v952, 0.0
      %v1081 = vmax.f32 %v953, 0.0
      %v1082 = vmax.f32 %v954, 0.0
      %v1083 = vmax.f32 %v955, 0.0
      %v1084 = vmax.f32 %v956, 0.0
      %v1085 = vmax.f32 %v957, 0.0
      %v1086 = vmax.f32 %v958, 0.0
      %v1087 = vmax.f32 %v959, 0.0
      %v1088 = vmax.f32 %v960, 0.0
      %v1089 = vmax.f32 %v961, 0.0
      %v1090 = vmax.f32 %v962, 0.0
      %v1091 = vmax.f32 %v963, 0.0
      %v1092 = vmax.f32 %v964, 0.0
      %v1093 = vmax.f32 %v965, 0.0
      %v1094 = vmax.f32 %v966, 0.0
      %v1095 = vmax.f32 %v967, 0.0
      %v1096 = vmax.f32 %v968, 0.0
      %v1097 = vmax.f32 %v969, 0.0
      %v1098 = vmax.f32 %v970, 0.0
      %v1099 = vmax.f32 %v971, 0.0
      %v1100 = vmax.f32 %v972, 0.0
      %v1101 = vmax.f32 %v973, 0.0
      %v1102 = vmax.f32 %v974, 0.0
      %v1103 = vmax.f32 %v975, 0.0
      %v1104 = vmax.f32 %v976, 0.0
      %v1105 = vmax.f32 %v977, 0.0
      %v1106 = vmax.f32 %v978, 0.0
      %v1107 = vmax.f32 %v979, 0.0
      %v1108 = vmax.f32 %v980, 0.0
      %v1109 = vmax.f32 %v981, 0.0
      %v1110 = vmax.f32 %v982, 0.0
      %v1111 = vmax.f32 %v983, 0.0
      %v1112 = vmax.f32 %v984, 0.0
      %v1113 = vmax.f32 %v985, 0.0
      %v1114 = vmax.f32 %v986, 0.0
      %v1115 = vmax.f32 %v987, 0.0
      %v1116 = vmax.f32 %v988, 0.0
      %v1117 = vmax.f32 %v989, 0.0
      %v1118 = vmax.f32 %v990, 0.0
      %v1119 = vmax.f32 %v991, 0.0
      %v1120 = vmax.f32 %v992, 0.0
      %v1121 = vmax.f32 %v993, 0.0
      %v1122 = vmax.f32 %v994, 0.0
      %v1123 = vmax.f32 %v995, 0.0
      %v1124 = vmax.f32 %v996, 0.0
      %v1125 = vmax.f32 %v997, 0.0
      %v1126 = vmax.f32 %v998, 0.0
      %v1127 = vmax.f32 %v999, 0.0
      %v1128 = vmax.f32 %v1000, 0.0
      %v1129 = vmax.f32 %v1001, 0.0
      %v1130 = vmax.f32 %v1002, 0.0
      %v1131 = vmax.f32 %v1003, 0.0
      %v1132 = vmax.f32 %v1004, 0.0
      %v1133 = vmax.f32 %v1005, 0.0
      %v1134 = vmax.f32 %v1006, 0.0
      %v1135 = vmax.f32 %v1007, 0.0
      %v1136 = vmax.f32 %v1008, 0.0
      %v1137 = vmax.f32 %v1009, 0.0
      %v1138 = vmax.f32 %v1010, 0.0
      %v1139 = vmax.f32 %v1011, 0.0
      %v1140 = vmax.f32 %v1012, 0.0
      %v1141 = vmax.f32 %v1013, 0.0
      %v1142 = vmax.f32 %v1014, 0.0
      %v1143 = vmax.f32 %v1015, 0.0
      %v1144 = vmax.f32 %v1016, 0.0
      %v1145 = vmax.f32 %v1017, 0.0
      %v1146 = vmax.f32 %v1018, 0.0
      %v1147 = vmax.f32 %v1019, 0.0
      %v1148 = vmax.f32 %v1020, 0.0
      %v1149 = vmax.f32 %v1021, 0.0
      %v1150 = vmax.f32 %v1022, 0.0
      %1151 = vst [vmem:[%s229] sm:$0xff] %v1023
      %1152 = vst [vmem:[%s229 + $0x8] sm:$0xff] %v1024
      %1153 = vst [vmem:[%s229 + $0x10] sm:$0xff] %v1025
      %1154 = vst [vmem:[%s229 + $0x18] sm:$0xff] %v1026
      %1155 = vst [vmem:[%s229 + $0x20] sm:$0xff] %v1027
      %1156 = vst [vmem:[%s229 + $0x28] sm:$0xff] %v1028
      %1157 = vst [vmem:[%s229 + $0x30] sm:$0xff] %v1029
      %1158 = vst [vmem:[%s229 + $0x38] sm:$0xff] %v1030
      %1159 = vst [vmem:[%s229 + $0x40] sm:$0xff] %v1031
      %1160 = vst [vmem:[%s229 + $0x48] sm:$0xff] %v1032
      %1161 = vst [vmem:[%s229 + $0x50] sm:$0xff] %v1033
      %1162 = vst [vmem:[%s229 + $0x58] sm:$0xff] %v1034
      %1163 = vst [vmem:[%s229 + $0x60] sm:$0xff] %v1035
      %1164 = vst [vmem:[%s229 + $0x68] sm:$0xff] %v1036
      %1165 = vst [vmem:[%s229 + $0x70] sm:$0xff] %v1037
      %1166 = vst [vmem:[%s229 + $0x78] sm:$0xff] %v1038
      %1167 = vst [vmem:[%s229 + $0x80] sm:$0xff] %v1039
      %1168 = vst [vmem:[%s229 + $0x88] sm:$0xff] %v1040
      %1169 = vst [vmem:[%s229 + $0x90] sm:$0xff] %v1041
      %1170 = vst [vmem:[%s229 + $0x98] sm:$0xff] %v1042
      %1171 = vst [vmem:[%s229 + $0xa0] sm:$0xff] %v1043
      %1172 = vst [vmem:[%s229 + $0xa8] sm:$0xff] %v1044
      %1173 = vst [vmem:[%s229 + $0xb0] sm:$0xff] %v1045
      %1174 = vst [vmem:[%s229 + $0xb8] sm:$0xff] %v1046
      %1175 = vst [vmem:[%s229 + $0xc0] sm:$0xff] %v1047
      %1176 = vst [vmem:[%s229 + $0xc8] sm:$0xff] %v1048
      %1177 = vst [vmem:[%s229 + $0xd0] sm:$0xff] %v1049
      %1178 = vst [vmem:[%s229 + $0xd8] sm:$0xff] %v1050
      %1179 = vst [vmem:[%s229 + $0xe0] sm:$0xff] %v1051
      %1180 = vst [vmem:[%s229 + $0xe8] sm:$0xff] %v1052
      %1181 = vst [vmem:[%s229 + $0xf0] sm:$0xff] %v1053
      %1182 = vst [vmem:[%s229 + $0xf8] sm:$0xff] %v1054
      %1183 = vst [vmem:[%s229 + $0x100] sm:$0xff] %v1055
      %1184 = vst [vmem:[%s229 + $0x108] sm:$0xff] %v1056
      %1185 = vst [vmem:[%s229 + $0x110] sm:$0xff] %v1057
      %1186 = vst [vmem:[%s229 + $0x118] sm:$0xff] %v1058
      %1187 = vst [vmem:[%s229 + $0x120] sm:$0xff] %v1059
      %1188 = vst [vmem:[%s229 + $0x128] sm:$0xff] %v1060
      %1189 = vst [vmem:[%s229 + $0x130] sm:$0xff] %v1061
      %1190 = vst [vmem:[%s229 + $0x138] sm:$0xff] %v1062
      %1191 = vst [vmem:[%s229 + $0x140] sm:$0xff] %v1063
      %1192 = vst [vmem:[%s229 + $0x148] sm:$0xff] %v1064
      %1193 = vst [vmem:[%s229 + $0x150] sm:$0xff] %v1065
      %1194 = vst [vmem:[%s229 + $0x158] sm:$0xff] %v1066
      %1195 = vst [vmem:[%s229 + $0x160] sm:$0xff] %v1067
      %1196 = vst [vmem:[%s229 + $0x168] sm:$0xff] %v1068
      %1197 = vst [vmem:[%s229 + $0x170] sm:$0xff] %v1069
      %1198 = vst [vmem:[%s229 + $0x178] sm:$0xff] %v1070
      %1199 = vst [vmem:[%s229 + $0x180] sm:$0xff] %v1071
      %1200 = vst [vmem:[%s229 + $0x188] sm:$0xff] %v1072
      %1201 = vst [vmem:[%s229 + $0x190] sm:$0xff] %v1073
      %1202 = vst [vmem:[%s229 + $0x198] sm:$0xff] %v1074
      %1203 = vst [vmem:[%s229 + $0x1a0] sm:$0xff] %v1075
      %1204 = vst [vmem:[%s229 + $0x1a8] sm:$0xff] %v1076
      %1205 = vst [vmem:[%s229 + $0x1b0] sm:$0xff] %v1077
      %1206 = vst [vmem:[%s229 + $0x1b8] sm:$0xff] %v1078
      %1207 = vst [vmem:[%s229 + $0x1c0] sm:$0xff] %v1079
      %1208 = vst [vmem:[%s229 + $0x1c8] sm:$0xff] %v1080
      %1209 = vst [vmem:[%s229 + $0x1d0] sm:$0xff] %v1081
      %1210 = vst [vmem:[%s229 + $0x1d8] sm:$0xff] %v1082
      %1211 = vst [vmem:[%s229 + $0x1e0] sm:$0xff] %v1083
      %1212 = vst [vmem:[%s229 + $0x1e8] sm:$0xff] %v1084
      %1213 = vst [vmem:[%s229 + $0x1f0] sm:$0xff] %v1085
      %1214 = vst [vmem:[%s229 + $0x1f8] sm:$0xff] %v1086
      %1215 = vst [vmem:[%s229 + $0x200] sm:$0xff] %v1087
      %1216 = vst [vmem:[%s229 + $0x208] sm:$0xff] %v1088
      %1217 = vst [vmem:[%s229 + $0x210] sm:$0xff] %v1089
      %1218 = vst [vmem:[%s229 + $0x218] sm:$0xff] %v1090
      %1219 = vst [vmem:[%s229 + $0x220] sm:$0xff] %v1091
      %1220 = vst [vmem:[%s229 + $0x228] sm:$0xff] %v1092
      %1221 = vst [vmem:[%s229 + $0x230] sm:$0xff] %v1093
      %1222 = vst [vmem:[%s229 + $0x238] sm:$0xff] %v1094
      %1223 = vst [vmem:[%s229 + $0x240] sm:$0xff] %v1095
      %1224 = vst [vmem:[%s229 + $0x248] sm:$0xff] %v1096
      %1225 = vst [vmem:[%s229 + $0x250] sm:$0xff] %v1097
      %1226 = vst [vmem:[%s229 + $0x258] sm:$0xff] %v1098
      %1227 = vst [vmem:[%s229 + $0x260] sm:$0xff] %v1099
      %1228 = vst [vmem:[%s229 + $0x268] sm:$0xff] %v1100
      %1229 = vst [vmem:[%s229 + $0x270] sm:$0xff] %v1101
      %1230 = vst [vmem:[%s229 + $0x278] sm:$0xff] %v1102
      %1231 = vst [vmem:[%s229 + $0x280] sm:$0xff] %v1103
      %1232 = vst [vmem:[%s229 + $0x288] sm:$0xff] %v1104
      %1233 = vst [vmem:[%s229 + $0x290] sm:$0xff] %v1105
      %1234 = vst [vmem:[%s229 + $0x298] sm:$0xff] %v1106
      %1235 = vst [vmem:[%s229 + $0x2a0] sm:$0xff] %v1107
      %1236 = vst [vmem:[%s229 + $0x2a8] sm:$0xff] %v1108
      %1237 = vst [vmem:[%s229 + $0x2b0] sm:$0xff] %v1109
      %1238 = vst [vmem:[%s229 + $0x2b8] sm:$0xff] %v1110
      %1239 = vst [vmem:[%s229 + $0x2c0] sm:$0xff] %v1111
      %1240 = vst [vmem:[%s229 + $0x2c8] sm:$0xff] %v1112
      %1241 = vst [vmem:[%s229 + $0x2d0] sm:$0xff] %v1113
      %1242 = vst [vmem:[%s229 + $0x2d8] sm:$0xff] %v1114
      %1243 = vst [vmem:[%s229 + $0x2e0] sm:$0xff] %v1115
      %1244 = vst [vmem:[%s229 + $0x2e8] sm:$0xff] %v1116
      %1245 = vst [vmem:[%s229 + $0x2f0] sm:$0xff] %v1117
      %1246 = vst [vmem:[%s229 + $0x2f8] sm:$0xff] %v1118
      %1247 = vst [vmem:[%s229 + $0x300] sm:$0xff] %v1119
      %1248 = vst [vmem:[%s229 + $0x308] sm:$0xff] %v1120
      %1249 = vst [vmem:[%s229 + $0x310] sm:$0xff] %v1121
      %1250 = vst [vmem:[%s229 + $0x318] sm:$0xff] %v1122
      %1251 = vst [vmem:[%s229 + $0x320] sm:$0xff] %v1123
      %1252 = vst [vmem:[%s229 + $0x328] sm:$0xff] %v1124
      %1253 = vst [vmem:[%s229 + $0x330] sm:$0xff] %v1125
      %1254 = vst [vmem:[%s229 + $0x338] sm:$0xff] %v1126
      %1255 = vst [vmem:[%s229 + $0x340] sm:$0xff] %v1127
      %1256 = vst [vmem:[%s229 + $0x348] sm:$0xff] %v1128
      %1257 = vst [vmem:[%s229 + $0x350] sm:$0xff] %v1129
      %1258 = vst [vmem:[%s229 + $0x358] sm:$0xff] %v1130
      %1259 = vst [vmem:[%s229 + $0x360] sm:$0xff] %v1131
      %1260 = vst [vmem:[%s229 + $0x368] sm:$0xff] %v1132
      %1261 = vst [vmem:[%s229 + $0x370] sm:$0xff] %v1133
      %1262 = vst [vmem:[%s229 + $0x378] sm:$0xff] %v1134
      %1263 = vst [vmem:[%s229 + $0x380] sm:$0xff] %v1135
      %1264 = vst [vmem:[%s229 + $0x388] sm:$0xff] %v1136
      %1265 = vst [vmem:[%s229 + $0x390] sm:$0xff] %v1137
      %1266 = vst [vmem:[%s229 + $0x398] sm:$0xff] %v1138
      %1267 = vst [vmem:[%s229 + $0x3a0] sm:$0xff] %v1139
      %1268 = vst [vmem:[%s229 + $0x3a8] sm:$0xff] %v1140
      %1269 = vst [vmem:[%s229 + $0x3b0] sm:$0xff] %v1141
      %1270 = vst [vmem:[%s229 + $0x3b8] sm:$0xff] %v1142
      %1271 = vst [vmem:[%s229 + $0x3c0] sm:$0xff] %v1143
      %1272 = vst [vmem:[%s229 + $0x3c8] sm:$0xff] %v1144
      %1273 = vst [vmem:[%s229 + $0x3d0] sm:$0xff] %v1145
      %1274 = vst [vmem:[%s229 + $0x3d8] sm:$0xff] %v1146
      %1275 = vst [vmem:[%s229 + $0x3e0] sm:$0xff] %v1147
      %1276 = vst [vmem:[%s229 + $0x3e8] sm:$0xff] %v1148
      %1277 = vst [vmem:[%s229 + $0x3f0] sm:$0xff] %v1149
      %1278 = vst [vmem:[%s229 + $0x3f8] sm:$0xff] %v1150
      %s1279 = smul.u32 64, %s15
      %p1280 = scmp.lt.s32.totalorder %s1279, 127
      %s1281 = scalar_select %p1280, %s1279, 127
      %s1282 = smul.addr %s1281, 2
      %s1283 = smul.addr %s1282, 8
      %s1284 = scalar_lea.vmem %s4, %s1283
      // Predicated region
      $region37: #{up_decoder_forward.7} parent=35 // pred_check
        %p1285 = pneg %p127
      $region38: #{up_decoder_forward.7} parent=35 // pred_check_branch
        %1287 = sbr.rel (%p1285) target = $region40
      $region39: #{up_decoder_forward.7} parent=35 // pred_region
        %s1288 = smul.u32 64, %s15
      $region40: #{up_decoder_forward.7} parent=35 // pred_fallthru
        _
    $region36: #{up_decoder_forward.7} parent=5 // pred_fallthru
      _
    %p1289 = scmp.le.s32.totalorder 2, %s10
    // Predicated region
    $region41: #{up_decoder_forward.7} parent=5 // pred_check
      %p1290 = pneg %p1289
    $region42: #{up_decoder_forward.7} parent=5 // pred_check_branch
      %1292 = sbr.rel (%p1290) target = $region44
    $region43: #{up_decoder_forward.7} parent=5 // pred_region
      %s1293 = ssub.s32 %s10, 2
      // Predicated region
      $region45: #{up_decoder_forward.7} parent=43 // pred_check
        %p1294 = pneg %p133
      $region46: #{up_decoder_forward.7} parent=43 // pred_check_branch
        %1296 = sbr.rel (%p1294) target = $region48
      $region47: #{up_decoder_forward.7} parent=43 // pred_region
        %s1297 = smul.u32 64, %s16
        %p1298 = scmp.lt.s32.totalorder %s1297, 127
        %s1299 = scalar_select %p1298, %s1297, 127
        %s1300 = smul.addr %s1299, 2
        %s1301 = smul.addr %s1300, 8
        %s1302 = scalar_lea.vmem %s4, %s1301
      $region48: #{up_decoder_forward.7} parent=43 // pred_fallthru
        _
    $region44: #{up_decoder_forward.7} parent=5 // pred_fallthru
      _
  $region6: #{up_decoder_forward.7} parent=0 // loop_footer
    %s14 = sadd.s32 1, %s10
  $region7: #{up_decoder_forward.7} parent=0 // loop_footer_branch
    %9 = sbr.rel target = $region3
  $region8: #{up_decoder_forward.7} parent=0 // loop_exit
    _

// kernel: up_decoder_forward.6
$region0: #{up_decoder_forward.6}
  #allocation0 [shape = 'u32[]', space=smem, size = 0x4, offset = 0x4, fixed_abs, tag = 'smem constant byte address 0x4 - core index']
  #allocation1 [shape = 'u32[144,128]{1,0:T(1,128)}', space=vmem, size = 0x12000, scoped, tag = 'internal scratch']
  %s0 = inlined_call_operand.vmem [shape: bf16[512,128], index: 0, kind: input, shape index: {}]
  %s1 = inlined_call_operand.vmem [shape: f32[1,128], index: 1, kind: input, shape index: {}]
  %s2 = inlined_call_operand.vmem [shape: f32[1,128], index: 2, kind: input, shape index: {}]
  %s3 = inlined_call_operand.vmem [shape: bf16[2,128,256], index: 3, kind: input, shape index: {}]
  %s4 = inlined_call_operand.vmem [shape: bf16[32,2,16,256], index: 4, kind: output, shape index: {0}]
  %s5 = inlined_call_operand.vmem [shape: f32[2,1,256], index: 5, kind: output, shape index: {1}]
  %s6 = inlined_call_operand.vmem [shape: f32[2,1,256], index: 6, kind: output, shape index: {2}]
  %7 = xla_tuple %s4, %s5, %s6
  %s8 = sld [smem:[#allocation0]]
  $region65: #{up_decoder_forward.6} parent=0
    _
  %s10 = ssub.s32 1, %s8
  %s11 = scalar_select 0, %s10, %s8
  loop: start=0, step=1, limit=4
  $region2: #{up_decoder_forward.6} parent=0 // loop_pre_header
    _
  $region3: #{up_decoder_forward.6} parent=0 // loop_header
    %s13 = sphi 0, %s17
    %p14 = scmp.ge.s32.totalorder %s13, 4
    %s23 = sphi 0, %s25
    %s26 = sphi 0, %s23
    %s27 = sphi 0, %s26
    %s43 = sphi 0, %s27
    %s47 = sphi 0, %s47
    %s49 = sphi 0, %s47
    %s50 = sphi 0, %s49
    %s64 = sphi 0, %s50
    %s68 = sphi 0, %s68
    %s70 = sphi 0, %s68
    %s71 = sphi 0, %s70
    %s85 = sphi 0, %s71
    %s89 = sphi 0, %s89
    %s91 = sphi 0, %s89
    %s92 = sphi 0, %s91
    %s106 = sphi 0, %s92
    %s112 = sphi 0, %s114
    %s115 = sphi 0, %s112
    %s116 = sphi 0, %s115
    %s132 = sphi 0, %s116
    %s138 = sphi 0, %s140
    %s141 = sphi 0, %s138
    %s142 = sphi 0, %s141
    %s158 = sphi 0, %s142
    %s164 = sphi 0, %s166
    %s167 = sphi 0, %s164
    %s168 = sphi 0, %s167
    %s184 = sphi 0, %s168
  $region4: #{up_decoder_forward.6} parent=0 // loop_header_branch
    %16 = sbr.rel (%p14) target = $region8
  $region5: #{up_decoder_forward.6} parent=0 // loop_body
    %s18 = ssub.s32 %s13, 1
    %s19 = ssub.s32 %s13, 2
    %s20 = sadd.s32 %s13, 1
    %s21 = ssub.s32 %s13, %s20
    %p22 = scmp.eq.s32.totalorder %s21, 0
    %s24 = sadd.s32 %s23, 1
    %s25 = scalar_select %p22, %s23, %s24
    %p28 = pneg %p22
    %p29 = scmp.eq.s32.totalorder %s13, 1
    %p30 = por %p28, %p29
    %p31 = scmp.ne.s32.totalorder %s23, %s26
    %p32 = scmp.eq.s32.totalorder %s13, 0
    %p33 = por %p31, %p32
    %p34 = scmp.ne.s32.totalorder %s23, %s26
    %p35 = scmp.eq.s32.totalorder %s18, 1
    %p36 = por %p34, %p35
    %p37 = scmp.ne.s32.totalorder %s26, %s27
    %p38 = scmp.eq.s32.totalorder %s18, 0
    %p39 = por %p37, %p38
    %p40 = scmp.ne.s32.totalorder %s26, %s27
    %p41 = scmp.eq.s32.totalorder %s19, 1
    %p42 = por %p40, %p41
    %p44 = scmp.ne.s32.totalorder %s27, %s43
    %p45 = scmp.eq.s32.totalorder %s19, 0
    %p46 = por %p44, %p45
    %s48 = sadd.s32 %s47, 1
    %p51 = scmp.eq.s32.totalorder %s13, 1
    %p52 = scmp.ne.s32.totalorder %s47, %s49
    %p53 = scmp.eq.s32.totalorder %s13, 0
    %p54 = por %p52, %p53
    %p55 = scmp.ne.s32.totalorder %s47, %s49
    %p56 = scmp.eq.s32.totalorder %s18, 1
    %p57 = por %p55, %p56
    %p58 = scmp.ne.s32.totalorder %s49, %s50
    %p59 = scmp.eq.s32.totalorder %s18, 0
    %p60 = por %p58, %p59
    %p61 = scmp.ne.s32.totalorder %s49, %s50
    %p62 = scmp.eq.s32.totalorder %s19, 1
    %p63 = por %p61, %p62
    %p65 = scmp.ne.s32.totalorder %s50, %s64
    %p66 = scmp.eq.s32.totalorder %s19, 0
    %p67 = por %p65, %p66
    %s69 = sadd.s32 %s68, 1
    %p72 = scmp.eq.s32.totalorder %s13, 1
    %p73 = scmp.ne.s32.totalorder %s68, %s70
    %p74 = scmp.eq.s32.totalorder %s13, 0
    %p75 = por %p73, %p74
    %p76 = scmp.ne.s32.totalorder %s68, %s70
    %p77 = scmp.eq.s32.totalorder %s18, 1
    %p78 = por %p76, %p77
    %p79 = scmp.ne.s32.totalorder %s70, %s71
    %p80 = scmp.eq.s32.totalorder %s18, 0
    %p81 = por %p79, %p80
    %p82 = scmp.ne.s32.totalorder %s70, %s71
    %p83 = scmp.eq.s32.totalorder %s19, 1
    %p84 = por %p82, %p83
    %p86 = scmp.ne.s32.totalorder %s71, %s85
    %p87 = scmp.eq.s32.totalorder %s19, 0
    %p88 = por %p86, %p87
    %s90 = sadd.s32 %s89, 1
    %p93 = scmp.eq.s32.totalorder %s13, 1
    %p94 = scmp.ne.s32.totalorder %s89, %s91
    %p95 = scmp.eq.s32.totalorder %s13, 0
    %p96 = por %p94, %p95
    %p97 = scmp.ne.s32.totalorder %s89, %s91
    %p98 = scmp.eq.s32.totalorder %s18, 1
    %p99 = por %p97, %p98
    %p100 = scmp.ne.s32.totalorder %s91, %s92
    %p101 = scmp.eq.s32.totalorder %s18, 0
    %p102 = por %p100, %p101
    %p103 = scmp.ne.s32.totalorder %s91, %s92
    %p104 = scmp.eq.s32.totalorder %s19, 1
    %p105 = por %p103, %p104
    %p107 = scmp.ne.s32.totalorder %s92, %s106
    %p108 = scmp.eq.s32.totalorder %s19, 0
    %p109 = por %p107, %p108
    %s110 = ssub.s32 %s13, %s20
    %p111 = scmp.eq.s32.totalorder %s110, 0
    %s113 = sadd.s32 %s112, 1
    %s114 = scalar_select %p111, %s112, %s113
    %p117 = pneg %p111
    %p118 = scmp.eq.s32.totalorder %s13, 1
    %p119 = por %p117, %p118
    %p120 = scmp.ne.s32.totalorder %s112, %s115
    %p121 = scmp.eq.s32.totalorder %s13, 0
    %p122 = por %p120, %p121
    %p123 = scmp.ne.s32.totalorder %s112, %s115
    %p124 = scmp.eq.s32.totalorder %s18, 1
    %p125 = por %p123, %p124
    %p126 = scmp.ne.s32.totalorder %s115, %s116
    %p127 = scmp.eq.s32.totalorder %s18, 0
    %p128 = por %p126, %p127
    %p129 = scmp.ne.s32.totalorder %s115, %s116
    %p130 = scmp.eq.s32.totalorder %s19, 1
    %p131 = por %p129, %p130
    %p133 = scmp.ne.s32.totalorder %s116, %s132
    %p134 = scmp.eq.s32.totalorder %s19, 0
    %p135 = por %p133, %p134
    %s136 = ssub.s32 %s13, %s20
    %p137 = scmp.eq.s32.totalorder %s136, 0
    %s139 = sadd.s32 %s138, 1
    %s140 = scalar_select %p137, %s138, %s139
    %p143 = pneg %p137
    %p144 = scmp.eq.s32.totalorder %s13, 1
    %p145 = por %p143, %p144
    %p146 = scmp.ne.s32.totalorder %s138, %s141
    %p147 = scmp.eq.s32.totalorder %s13, 0
    %p148 = por %p146, %p147
    %p149 = scmp.ne.s32.totalorder %s138, %s141
    %p150 = scmp.eq.s32.totalorder %s18, 1
    %p151 = por %p149, %p150
    %p152 = scmp.ne.s32.totalorder %s141, %s142
    %p153 = scmp.eq.s32.totalorder %s18, 0
    %p154 = por %p152, %p153
    %p155 = scmp.ne.s32.totalorder %s141, %s142
    %p156 = scmp.eq.s32.totalorder %s19, 1
    %p157 = por %p155, %p156
    %p159 = scmp.ne.s32.totalorder %s142, %s158
    %p160 = scmp.eq.s32.totalorder %s19, 0
    %p161 = por %p159, %p160
    %s162 = ssub.s32 %s13, %s20
    %p163 = scmp.eq.s32.totalorder %s162, 0
    %s165 = sadd.s32 %s164, 1
    %s166 = scalar_select %p163, %s164, %s165
    %p169 = pneg %p163
    %p170 = scmp.eq.s32.totalorder %s13, 1
    %p171 = por %p169, %p170
    %p172 = scmp.ne.s32.totalorder %s164, %s167
    %p173 = scmp.eq.s32.totalorder %s13, 0
    %p174 = por %p172, %p173
    %p175 = scmp.ne.s32.totalorder %s164, %s167
    %p176 = scmp.eq.s32.totalorder %s18, 1
    %p177 = por %p175, %p176
    %p178 = scmp.ne.s32.totalorder %s167, %s168
    %p179 = scmp.eq.s32.totalorder %s18, 0
    %p180 = por %p178, %p179
    %p181 = scmp.ne.s32.totalorder %s167, %s168
    %p182 = scmp.eq.s32.totalorder %s19, 1
    %p183 = por %p181, %p182
    %p185 = scmp.ne.s32.totalorder %s168, %s184
    %p186 = scmp.eq.s32.totalorder %s19, 0
    %p187 = por %p185, %p186
    %p188 = scmp.le.s32.totalorder 1, %s13
    %p189 = scmp.lt.s32.totalorder %s13, 3
    %p190 = pnand %p188, %p189
    %p191 = pneg %p190
    // Predicated region
    $region9: #{up_decoder_forward.6} parent=5 // pred_check
      _
    $region10: #{up_decoder_forward.6} parent=5 // pred_check_branch
      %193 = sbr.rel (%p190) target = $region12
    $region11: #{up_decoder_forward.6} parent=5 // pred_region
      %s194 = ssub.s32 %s13, 1
      // Predicated region
      $region13: #{up_decoder_forward.6} parent=11 // pred_check
        %p195 = pneg %p60
      $region14: #{up_decoder_forward.6} parent=11 // pred_check_branch
        %197 = sbr.rel (%p195) target = $region16
      $region15: #{up_decoder_forward.6} parent=11 // pred_region
        _
      $region16: #{up_decoder_forward.6} parent=11 // pred_fallthru
        _
      // Predicated region
      $region17: #{up_decoder_forward.6} parent=11 // pred_check
        %p198 = pneg %p81
      $region18: #{up_decoder_forward.6} parent=11 // pred_check_branch
        %200 = sbr.rel (%p198) target = $region20
      $region19: #{up_decoder_forward.6} parent=11 // pred_region
        _
      $region20: #{up_decoder_forward.6} parent=11 // pred_fallthru
        _
      // Predicated region
      $region21: #{up_decoder_forward.6} parent=11 // pred_check
        %p201 = pneg %p102
      $region22: #{up_decoder_forward.6} parent=11 // pred_check_branch
        %203 = sbr.rel (%p201) target = $region24
      $region23: #{up_decoder_forward.6} parent=11 // pred_region
        _
      $region24: #{up_decoder_forward.6} parent=11 // pred_fallthru
        _
    $region12: #{up_decoder_forward.6} parent=5 // pred_fallthru
      _
    %p204 = scmp.lt.s32.totalorder %s13, 2
    // Predicated region
    $region25: #{up_decoder_forward.6} parent=5 // pred_check
      %p205 = pneg %p204
    $region26: #{up_decoder_forward.6} parent=5 // pred_check_branch
      %207 = sbr.rel (%p205) target = $region28
    $region27: #{up_decoder_forward.6} parent=5 // pred_region
      // Predicated region
      $region29: #{up_decoder_forward.6} parent=27 // pred_check
        %p208 = pneg %p33
      $region30: #{up_decoder_forward.6} parent=27 // pred_check_branch
        %210 = sbr.rel (%p208) target = $region32
      $region31: #{up_decoder_forward.6} parent=27 // pred_region
        %s211 = smul.u32 32, %s13
        %p212 = scmp.lt.s32.totalorder %s211, 63
        %s213 = scalar_select %p212, %s211, 63
        %s214 = smul.addr %s213, 4
        %s215 = scalar_lea.vmem %s0, %s214
        %s216 = smul.u32 32, %s13
      $region32: #{up_decoder_forward.6} parent=27 // pred_fallthru
        _
    $region28: #{up_decoder_forward.6} parent=5 // pred_fallthru
      _
    %p217 = scmp.le.s32.totalorder 1, %s13
    %p218 = scmp.lt.s32.totalorder %s13, 3
    %p219 = pnand %p217, %p218
    %p220 = pneg %p219
    // Predicated region
    $region33: #{up_decoder_forward.6} parent=5 // pred_check
      _
    $region34: #{up_decoder_forward.6} parent=5 // pred_check_branch
      %222 = sbr.rel (%p219) target = $region36
    $region35: #{up_decoder_forward.6} parent=5 // pred_region
      %s223 = ssub.s32 %s13, 1
      %s224 = smul.u32 32, %s18
      %p225 = scmp.lt.s32.totalorder %s224, 63
      %s226 = scalar_select %p225, %s224, 63
      %s227 = smul.addr %s226, 4
      %s228 = scalar_lea.vmem %s0, %s227
      %p229 = pneg %p39
      %p230 = pneg %p36
      %p231 = pneg %p60
      %p232 = pneg %p57
      %p233 = pneg %p81
      %p234 = pneg %p78
      %p235 = pneg %p102
      %p236 = pneg %p99
      %p237 = pneg %p128
      %p238 = pneg %p125
      %s239 = smul.u32 16, %s18
      %p240 = scmp.lt.s32.totalorder %s239, 31
      %s241 = scalar_select %p240, %s239, 31
      %s242 = smul.addr %s241, 8
      %s243 = smul.addr %s242, 4
      %s244 = scalar_lea.vmem %s4, %s243
      %p245 = pneg %p154
      %p246 = pneg %p151
      %p247 = scmp.lt.s32.totalorder %s18, 1
      %s248 = scalar_select %p247, %s18, 1
      %s249 = smul.addr %s248, 2
      %s250 = scalar_lea.vmem %s5, %s249
      %p251 = pneg %p180
      %p252 = pneg %p177
      %p253 = scmp.lt.s32.totalorder %s18, 1
      %s254 = scalar_select %p253, %s18, 1
      %s255 = smul.addr %s254, 2
      %s256 = scalar_lea.vmem %s6, %s255
      %s257 = smul.u32 32, %s18
      %p258 = scmp.lt.s32.totalorder %s257, 63
      %s259 = scalar_select %p258, %s257, 63
      %s260 = smul.addr %s259, 4
      %s261 = scalar_lea.vmem %s0, %s260
      %s262 = smul.u32 32, %s18
      %s263 = smul.u32 16, %s18
      %p264 = scmp.lt.s32.totalorder %s263, 31
      %s265 = scalar_select %p264, %s263, 31
      %s266 = smul.addr %s265, 8
      %s267 = smul.addr %s266, 4
      %s268 = scalar_lea.vmem %s4, %s267
      %s269 = smul.u32 16, %s18
      %p270 = scmp.lt.s32.totalorder %s18, 1
      %s271 = scalar_select %p270, %s18, 1
      %s272 = smul.addr %s271, 2
      %s273 = scalar_lea.vmem %s5, %s272
      %p274 = scmp.lt.s32.totalorder %s18, 1
      %s275 = scalar_select %p274, %s18, 1
      %s276 = smul.addr %s275, 2
      %s277 = scalar_lea.vmem %s6, %s276
      %v279 = vld [vmem:[%s261] sm:$0xf]
      %v280 = vld [vmem:[%s261 + $0x4] sm:$0xf]
      %v281 = vld [vmem:[%s261 + $0x8] sm:$0xf]
      %v282 = vld [vmem:[%s261 + $0xc] sm:$0xf]
      %v283 = vld [vmem:[%s261 + $0x10] sm:$0xf]
      %v284 = vld [vmem:[%s261 + $0x14] sm:$0xf]
      %v285 = vld [vmem:[%s261 + $0x18] sm:$0xf]
      %v286 = vld [vmem:[%s261 + $0x1c] sm:$0xf]
      %v287 = vld [vmem:[%s261 + $0x20] sm:$0xf]
      %v288 = vld [vmem:[%s261 + $0x24] sm:$0xf]
      %v289 = vld [vmem:[%s261 + $0x28] sm:$0xf]
      %v290 = vld [vmem:[%s261 + $0x2c] sm:$0xf]
      %v291 = vld [vmem:[%s261 + $0x30] sm:$0xf]
      %v292 = vld [vmem:[%s261 + $0x34] sm:$0xf]
      %v293 = vld [vmem:[%s261 + $0x38] sm:$0xf]
      %v294 = vld [vmem:[%s261 + $0x3c] sm:$0xf]
      %v295 = vld [vmem:[%s261 + $0x40] sm:$0xf]
      %v296 = vld [vmem:[%s261 + $0x44] sm:$0xf]
      %v297 = vld [vmem:[%s261 + $0x48] sm:$0xf]
      %v298 = vld [vmem:[%s261 + $0x4c] sm:$0xf]
      %v299 = vld [vmem:[%s261 + $0x50] sm:$0xf]
      %v300 = vld [vmem:[%s261 + $0x54] sm:$0xf]
      %v301 = vld [vmem:[%s261 + $0x58] sm:$0xf]
      %v302 = vld [vmem:[%s261 + $0x5c] sm:$0xf]
      %v303 = vld [vmem:[%s261 + $0x60] sm:$0xf]
      %v304 = vld [vmem:[%s261 + $0x64] sm:$0xf]
      %v305 = vld [vmem:[%s261 + $0x68] sm:$0xf]
      %v306 = vld [vmem:[%s261 + $0x6c] sm:$0xf]
      %v307 = vld [vmem:[%s261 + $0x70] sm:$0xf]
      %v308 = vld [vmem:[%s261 + $0x74] sm:$0xf]
      %v309 = vld [vmem:[%s261 + $0x78] sm:$0xf]
      %v310 = vld [vmem:[%s261 + $0x7c] sm:$0xf]
      %v311 = vunpack.c.l.bf16 %v279
      %v312 = vunpack.c.l.bf16 %v280
      %v313 = vunpack.c.l.bf16 %v281
      %v314 = vunpack.c.l.bf16 %v282
      %v315 = vunpack.c.l.bf16 %v283
      %v316 = vunpack.c.l.bf16 %v284
      %v317 = vunpack.c.l.bf16 %v285
      %v318 = vunpack.c.l.bf16 %v286
      %v319 = vunpack.c.l.bf16 %v287
      %v320 = vunpack.c.l.bf16 %v288
      %v321 = vunpack.c.l.bf16 %v289
      %v322 = vunpack.c.l.bf16 %v290
      %v323 = vunpack.c.l.bf16 %v291
      %v324 = vunpack.c.l.bf16 %v292
      %v325 = vunpack.c.l.bf16 %v293
      %v326 = vunpack.c.l.bf16 %v294
      %v327 = vunpack.c.l.bf16 %v295
      %v328 = vunpack.c.l.bf16 %v296
      %v329 = vunpack.c.l.bf16 %v297
      %v330 = vunpack.c.l.bf16 %v298
      %v331 = vunpack.c.l.bf16 %v299
      %v332 = vunpack.c.l.bf16 %v300
      %v333 = vunpack.c.l.bf16 %v301
      %v334 = vunpack.c.l.bf16 %v302
      %v335 = vunpack.c.l.bf16 %v303
      %v336 = vunpack.c.l.bf16 %v304
      %v337 = vunpack.c.l.bf16 %v305
      %v338 = vunpack.c.l.bf16 %v306
      %v339 = vunpack.c.l.bf16 %v307
      %v340 = vunpack.c.l.bf16 %v308
      %v341 = vunpack.c.l.bf16 %v309
      %v342 = vunpack.c.l.bf16 %v310
      %v343 = vld [vmem:[%s1] sm:$0x1]
      %v345 = vlaneseq
      %v346 = vshrl.u32 %v345, 7
      %v347 = vsub.s32 0, %v346
      %v348 = vrot.slane %v343, %v347
      %v350 = vmul.f32 %v311, %v348
      %v351 = vmul.f32 %v312, %v348
      %v352 = vmul.f32 %v313, %v348
      %v353 = vmul.f32 %v314, %v348
      %v354 = vmul.f32 %v315, %v348
      %v355 = vmul.f32 %v316, %v348
      %v356 = vmul.f32 %v317, %v348
      %v357 = vmul.f32 %v318, %v348
      %v358 = vmul.f32 %v319, %v348
      %v359 = vmul.f32 %v320, %v348
      %v360 = vmul.f32 %v321, %v348
      %v361 = vmul.f32 %v322, %v348
      %v362 = vmul.f32 %v323, %v348
      %v363 = vmul.f32 %v324, %v348
      %v364 = vmul.f32 %v325, %v348
      %v365 = vmul.f32 %v326, %v348
      %v366 = vmul.f32 %v327, %v348
      %v367 = vmul.f32 %v328, %v348
      %v368 = vmul.f32 %v329, %v348
      %v369 = vmul.f32 %v330, %v348
      %v370 = vmul.f32 %v331, %v348
      %v371 = vmul.f32 %v332, %v348
      %v372 = vmul.f32 %v333, %v348
      %v373 = vmul.f32 %v334, %v348
      %v374 = vmul.f32 %v335, %v348
      %v375 = vmul.f32 %v336, %v348
      %v376 = vmul.f32 %v337, %v348
      %v377 = vmul.f32 %v338, %v348
      %v378 = vmul.f32 %v339, %v348
      %v379 = vmul.f32 %v340, %v348
      %v380 = vmul.f32 %v341, %v348
      %v381 = vmul.f32 %v342, %v348
      %v382 = vld [vmem:[%s2] sm:$0x1]
      %v384 = vlaneseq
      %v385 = vshrl.u32 %v384, 7
      %v386 = vsub.s32 0, %v385
      %v387 = vrot.slane %v382, %v386
      %v389 = vadd.f32 %v350, %v387
      %v390 = vadd.f32 %v351, %v387
      %v391 = vadd.f32 %v352, %v387
      %v392 = vadd.f32 %v353, %v387
      %v393 = vadd.f32 %v354, %v387
      %v394 = vadd.f32 %v355, %v387
      %v395 = vadd.f32 %v356, %v387
      %v396 = vadd.f32 %v357, %v387
      %v397 = vadd.f32 %v358, %v387
      %v398 = vadd.f32 %v359, %v387
      %v399 = vadd.f32 %v360, %v387
      %v400 = vadd.f32 %v361, %v387
      %v401 = vadd.f32 %v362, %v387
      %v402 = vadd.f32 %v363, %v387
      %v403 = vadd.f32 %v364, %v387
      %v404 = vadd.f32 %v365, %v387
      %v405 = vadd.f32 %v366, %v387
      %v406 = vadd.f32 %v367, %v387
      %v407 = vadd.f32 %v368, %v387
      %v408 = vadd.f32 %v369, %v387
      %v409 = vadd.f32 %v370, %v387
      %v410 = vadd.f32 %v371, %v387
      %v411 = vadd.f32 %v372, %v387
      %v412 = vadd.f32 %v373, %v387
      %v413 = vadd.f32 %v374, %v387
      %v414 = vadd.f32 %v375, %v387
      %v415 = vadd.f32 %v376, %v387
      %v416 = vadd.f32 %v377, %v387
      %v417 = vadd.f32 %v378, %v387
      %v418 = vadd.f32 %v379, %v387
      %v419 = vadd.f32 %v380, %v387
      %v420 = vadd.f32 %v381, %v387
      %v421 = vmax.f32 %v389, 0.0
      %v422 = vmax.f32 %v390, 0.0
      %v423 = vmax.f32 %v391, 0.0
      %v424 = vmax.f32 %v392, 0.0
      %v425 = vmax.f32 %v393, 0.0
      %v426 = vmax.f32 %v394, 0.0
      %v427 = vmax.f32 %v395, 0.0
      %v428 = vmax.f32 %v396, 0.0
      %v429 = vmax.f32 %v397, 0.0
      %v430 = vmax.f32 %v398, 0.0
      %v431 = vmax.f32 %v399, 0.0
      %v432 = vmax.f32 %v400, 0.0
      %v433 = vmax.f32 %v401, 0.0
      %v434 = vmax.f32 %v402, 0.0
      %v435 = vmax.f32 %v403, 0.0
      %v436 = vmax.f32 %v404, 0.0
      %v437 = vmax.f32 %v405, 0.0
      %v438 = vmax.f32 %v406, 0.0
      %v439 = vmax.f32 %v407, 0.0
      %v440 = vmax.f32 %v408, 0.0
      %v441 = vmax.f32 %v409, 0.0
      %v442 = vmax.f32 %v410, 0.0
      %v443 = vmax.f32 %v411, 0.0
      %v444 = vmax.f32 %v412, 0.0
      %v445 = vmax.f32 %v413, 0.0
      %v446 = vmax.f32 %v414, 0.0
      %v447 = vmax.f32 %v415, 0.0
      %v448 = vmax.f32 %v416, 0.0
      %v449 = vmax.f32 %v417, 0.0
      %v450 = vmax.f32 %v418, 0.0
      %v451 = vmax.f32 %v419, 0.0
      %v452 = vmax.f32 %v420, 0.0
      %v453 = vpack.c.bf16 %v422, %v421
      %v454 = vpack.c.bf16 %v424, %v423
      %v455 = vpack.c.bf16 %v426, %v425
      %v456 = vpack.c.bf16 %v428, %v427
      %v457 = vpack.c.bf16 %v430, %v429
      %v458 = vpack.c.bf16 %v432, %v431
      %v459 = vpack.c.bf16 %v434, %v433
      %v460 = vpack.c.bf16 %v436, %v435
      %v461 = vpack.c.bf16 %v438, %v437
      %v462 = vpack.c.bf16 %v440, %v439
      %v463 = vpack.c.bf16 %v442, %v441
      %v464 = vpack.c.bf16 %v444, %v443
      %v465 = vpack.c.bf16 %v446, %v445
      %v466 = vpack.c.bf16 %v448, %v447
      %v467 = vpack.c.bf16 %v450, %v449
      %v468 = vpack.c.bf16 %v452, %v451
      %v469 = vld [vmem:[%s3] sm:$0xff]
      %v470 = vld [vmem:[%s3 + $0x8] sm:$0xff]
      %v471 = vld [vmem:[%s3 + $0x10] sm:$0xff]
      %v472 = vld [vmem:[%s3 + $0x18] sm:$0xff]
      %v473 = vld [vmem:[%s3 + $0x20] sm:$0xff]
      %v474 = vld [vmem:[%s3 + $0x28] sm:$0xff]
      %v475 = vld [vmem:[%s3 + $0x30] sm:$0xff]
      %v476 = vld [vmem:[%s3 + $0x38] sm:$0xff]
      %v477 = vld [vmem:[%s3 + $0x40] sm:$0xff]
      %v478 = vld [vmem:[%s3 + $0x48] sm:$0xff]
      %v479 = vld [vmem:[%s3 + $0x50] sm:$0xff]
      %v480 = vld [vmem:[%s3 + $0x58] sm:$0xff]
      %v481 = vld [vmem:[%s3 + $0x60] sm:$0xff]
      %v482 = vld [vmem:[%s3 + $0x68] sm:$0xff]
      %v483 = vld [vmem:[%s3 + $0x70] sm:$0xff]
      %v484 = vld [vmem:[%s3 + $0x78] sm:$0xff]
      %v501 = vunpack.c.l.b16 %v469
      %v502 = vunpack.c.h.b16 %v469
      %v503 = vunpack.c.l.b16 %v470
      %v504 = vunpack.c.h.b16 %v470
      %v505 = vunpack.c.l.b16 %v471
      %v506 = vunpack.c.h.b16 %v471
      %v507 = vunpack.c.l.b16 %v472
      %v508 = vunpack.c.h.b16 %v472
      %v509 = vunpack.c.l.b16 %v473
      %v510 = vunpack.c.h.b16 %v473
      %v511 = vunpack.c.l.b16 %v474
      %v512 = vunpack.c.h.b16 %v474
      %v513 = vunpack.c.l.b16 %v475
      %v514 = vunpack.c.h.b16 %v475
      %v515 = vunpack.c.l.b16 %v476
      %v516 = vunpack.c.h.b16 %v476
      %v517 = vunpack.c.l.b16 %v477
      %v518 = vunpack.c.h.b16 %v477
      %v519 = vunpack.c.l.b16 %v478
      %v520 = vunpack.c.h.b16 %v478
      %v521 = vunpack.c.l.b16 %v479
      %v522 = vunpack.c.h.b16 %v479
      %v523 = vunpack.c.l.b16 %v480
      %v524 = vunpack.c.h.b16 %v480
      %v525 = vunpack.c.l.b16 %v481
      %v526 = vunpack.c.h.b16 %v481
      %v527 = vunpack.c.l.b16 %v482
      %v528 = vunpack.c.h.b16 %v482
      %v529 = vunpack.c.l.b16 %v483
      %v530 = vunpack.c.h.b16 %v483
      %v531 = vunpack.c.l.b16 %v484
      %v532 = vunpack.c.h.b16 %v484
      %v533 = vpack.c.b16 %v503, %v501
      %v534 = vpack.c.b16 %v504, %v502
      %v535 = vpack.c.b16 %v507, %v505
      %v536 = vpack.c.b16 %v508, %v506
      %v537 = vpack.c.b16 %v511, %v509
      %v538 = vpack.c.b16 %v512, %v510
      %v539 = vpack.c.b16 %v515, %v513
      %v540 = vpack.c.b16 %v516, %v514
      %v541 = vpack.c.b16 %v519, %v517
      %v542 = vpack.c.b16 %v520, %v518
      %v543 = vpack.c.b16 %v523, %v521
      %v544 = vpack.c.b16 %v524, %v522
      %v545 = vpack.c.b16 %v527, %v525
      %v546 = vpack.c.b16 %v528, %v526
      %v547 = vpack.c.b16 %v531, %v529
      %v548 = vpack.c.b16 %v532, %v530
      %565 = vmatprep.subr.bf16.mxu0 %v534
      %566 = vmatpush1.bf16.msra.mxu0 %v533
      %567 = vmatprep.subr.bf16.mxu0 %v536
      %568 = vmatpush1.bf16.msra.mxu0 %v535
      %569 = vmatprep.subr.bf16.mxu0 %v538
      %570 = vmatpush1.bf16.msra.mxu0 %v537
      %571 = vmatprep.subr.bf16.mxu0 %v540
      %572 = vmatpush1.bf16.msra.mxu0 %v539
      %573 = vmatprep.subr.bf16.mxu0 %v542
      %574 = vmatpush1.bf16.msra.mxu0 %v541
      %575 = vmatprep.subr.bf16.mxu0 %v544
      %576 = vmatpush1.bf16.msra.mxu0 %v543
      %577 = vmatprep.subr.bf16.mxu0 %v546
      %578 = vmatpush1.bf16.msra.mxu0 %v545
      %579 = vmatprep.subr.bf16.mxu0 %v548
      %580 = vmatpush1.bf16.msra.mxu0 %v547
      %581 = vmatprep.subr.bf16.mxu0 0
      %582 = vmatpush1.bf16.msra.mxu0 0
      %583 = vmatprep.subr.bf16.mxu0 0
      %584 = vmatpush1.bf16.msra.mxu0 0
      %585 = vmatprep.subr.bf16.mxu0 0
      %586 = vmatpush1.bf16.msra.mxu0 0
      %587 = vmatprep.subr.bf16.mxu0 0
      %588 = vmatpush1.bf16.msra.mxu0 0
      %589 = vmatprep.subr.bf16.mxu0 0
      %590 = vmatpush1.bf16.msra.mxu0 0
      %591 = vmatprep.subr.bf16.mxu0 0
      %592 = vmatpush1.bf16.msra.mxu0 0
      %593 = vmatprep.subr.bf16.mxu0 0
      %594 = vmatpush1.bf16.msra.mxu0 0
      %595 = vmatprep.subr.bf16.mxu0 0
      %596 = vmatpush1.bf16.msra.mxu0 0
      %597 = vmatprep.mubr.bf16.mxu0 0
      %598 = vmatmul.mubr.bf16.gmra.mrb[0].mxu0 %v453
      %v599 = vpop.f32.mrb[0].mxu0
      %v600 = vadd.f32 0.0, %v599
      %v601 = vpop.f32.mrb[0].mxu0
      %v602 = vadd.f32 0.0, %v601
      %v603 = vpop.f32.mrb[0].mxu0
      %v604 = vadd.f32 0.0, %v603
      %v605 = vpop.f32.mrb[0].mxu0
      %v606 = vadd.f32 0.0, %v605
      %607 = vmatprep.mubr.bf16.mxu0 0
      %608 = vmatmul.mubr.bf16.gmra.mrb[0].mxu0 %v454
      %v609 = vpop.f32.mrb[0].mxu0
      %v610 = vadd.f32 0.0, %v609
      %v611 = vpop.f32.mrb[0].mxu0
      %v612 = vadd.f32 0.0, %v611
      %v613 = vpop.f32.mrb[0].mxu0
      %v614 = vadd.f32 0.0, %v613
      %v615 = vpop.f32.mrb[0].mxu0
      %v616 = vadd.f32 0.0, %v615
      %617 = vmatprep.mubr.bf16.mxu0 0
      %618 = vmatmul.mubr.bf16.gmra.mrb[0].mxu0 %v455
      %v619 = vpop.f32.mrb[0].mxu0
      %v620 = vadd.f32 0.0, %v619
      %v621 = vpop.f32.mrb[0].mxu0
      %v622 = vadd.f32 0.0, %v621
      %v623 = vpop.f32.mrb[0].mxu0
      %v624 = vadd.f32 0.0, %v623
      %v625 = vpop.f32.mrb[0].mxu0
      %v626 = vadd.f32 0.0, %v625
      %627 = vmatprep.mubr.bf16.mxu0 0
      %628 = vmatmul.mubr.bf16.gmra.mrb[0].mxu0 %v456
      %v629 = vpop.f32.mrb[0].mxu0
      %v630 = vadd.f32 0.0, %v629
      %v631 = vpop.f32.mrb[0].mxu0
      %v632 = vadd.f32 0.0, %v631
      %v633 = vpop.f32.mrb[0].mxu0
      %v634 = vadd.f32 0.0, %v633
      %v635 = vpop.f32.mrb[0].mxu0
      %v636 = vadd.f32 0.0, %v635
      %637 = vmatprep.mubr.bf16.mxu0 0
      %638 = vmatmul.mubr.bf16.gmra.mrb[0].mxu0 %v457
      %v639 = vpop.f32.mrb[0].mxu0
      %v640 = vadd.f32 0.0, %v639
      %v641 = vpop.f32.mrb[0].mxu0
      %v642 = vadd.f32 0.0, %v641
      %v643 = vpop.f32.mrb[0].mxu0
      %v644 = vadd.f32 0.0, %v643
      %v645 = vpop.f32.mrb[0].mxu0
      %v646 = vadd.f32 0.0, %v645
      %647 = vmatprep.mubr.bf16.mxu0 0
      %648 = vmatmul.mubr.bf16.gmra.mrb[0].mxu0 %v458
      %v649 = vpop.f32.mrb[0].mxu0
      %v650 = vadd.f32 0.0, %v649
      %v651 = vpop.f32.mrb[0].mxu0
      %v652 = vadd.f32 0.0, %v651
      %v653 = vpop.f32.mrb[0].mxu0
      %v654 = vadd.f32 0.0, %v653
      %v655 = vpop.f32.mrb[0].mxu0
      %v656 = vadd.f32 0.0, %v655
      %657 = vmatprep.mubr.bf16.mxu0 0
      %658 = vmatmul.mubr.bf16.gmra.mrb[0].mxu0 %v459
      %v659 = vpop.f32.mrb[0].mxu0
      %v660 = vadd.f32 0.0, %v659
      %v661 = vpop.f32.mrb[0].mxu0
      %v662 = vadd.f32 0.0, %v661
      %v663 = vpop.f32.mrb[0].mxu0
      %v664 = vadd.f32 0.0, %v663
      %v665 = vpop.f32.mrb[0].mxu0
      %v666 = vadd.f32 0.0, %v665
      %667 = vmatprep.mubr.bf16.mxu0 0
      %668 = vmatmul.mubr.bf16.gmra.mrb[0].mxu0 %v460
      %v669 = vpop.f32.mrb[0].mxu0
      %v670 = vadd.f32 0.0, %v669
      %v671 = vpop.f32.mrb[0].mxu0
      %v672 = vadd.f32 0.0, %v671
      %v673 = vpop.f32.mrb[0].mxu0
      %v674 = vadd.f32 0.0, %v673
      %v675 = vpop.f32.mrb[0].mxu0
      %v676 = vadd.f32 0.0, %v675
      %677 = vmatprep.mubr.bf16.mxu0 0
      %678 = vmatmul.mubr.bf16.gmra.mrb[0].mxu0 %v461
      %v679 = vpop.f32.mrb[0].mxu0
      %v680 = vadd.f32 0.0, %v679
      %v681 = vpop.f32.mrb[0].mxu0
      %v682 = vadd.f32 0.0, %v681
      %v683 = vpop.f32.mrb[0].mxu0
      %v684 = vadd.f32 0.0, %v683
      %v685 = vpop.f32.mrb[0].mxu0
      %v686 = vadd.f32 0.0, %v685
      %687 = vmatprep.mubr.bf16.mxu0 0
      %688 = vmatmul.mubr.bf16.gmra.mrb[0].mxu0 %v462
      %v689 = vpop.f32.mrb[0].mxu0
      %v690 = vadd.f32 0.0, %v689
      %v691 = vpop.f32.mrb[0].mxu0
      %v692 = vadd.f32 0.0, %v691
      %v693 = vpop.f32.mrb[0].mxu0
      %v694 = vadd.f32 0.0, %v693
      %v695 = vpop.f32.mrb[0].mxu0
      %v696 = vadd.f32 0.0, %v695
      %697 = vmatprep.mubr.bf16.mxu0 0
      %698 = vmatmul.mubr.bf16.gmra.mrb[0].mxu0 %v463
      %v699 = vpop.f32.mrb[0].mxu0
      %v700 = vadd.f32 0.0, %v699
      %v701 = vpop.f32.mrb[0].mxu0
      %v702 = vadd.f32 0.0, %v701
      %v703 = vpop.f32.mrb[0].mxu0
      %v704 = vadd.f32 0.0, %v703
      %v705 = vpop.f32.mrb[0].mxu0
      %v706 = vadd.f32 0.0, %v705
      %707 = vmatprep.mubr.bf16.mxu0 0
      %708 = vmatmul.mubr.bf16.gmra.mrb[0].mxu0 %v464
      %v709 = vpop.f32.mrb[0].mxu0
      %v710 = vadd.f32 0.0, %v709
      %v711 = vpop.f32.mrb[0].mxu0
      %v712 = vadd.f32 0.0, %v711
      %v713 = vpop.f32.mrb[0].mxu0
      %v714 = vadd.f32 0.0, %v713
      %v715 = vpop.f32.mrb[0].mxu0
      %v716 = vadd.f32 0.0, %v715
      %717 = vmatprep.mubr.bf16.mxu0 0
      %718 = vmatmul.mubr.bf16.gmra.mrb[0].mxu0 %v465
      %v719 = vpop.f32.mrb[0].mxu0
      %v720 = vadd.f32 0.0, %v719
      %v721 = vpop.f32.mrb[0].mxu0
      %v722 = vadd.f32 0.0, %v721
      %v723 = vpop.f32.mrb[0].mxu0
      %v724 = vadd.f32 0.0, %v723
      %v725 = vpop.f32.mrb[0].mxu0
      %v726 = vadd.f32 0.0, %v725
      %727 = vmatprep.mubr.bf16.mxu0 0
      %728 = vmatmul.mubr.bf16.gmra.mrb[0].mxu0 %v466
      %v729 = vpop.f32.mrb[0].mxu0
      %v730 = vadd.f32 0.0, %v729
      %v731 = vpop.f32.mrb[0].mxu0
      %v732 = vadd.f32 0.0, %v731
      %v733 = vpop.f32.mrb[0].mxu0
      %v734 = vadd.f32 0.0, %v733
      %v735 = vpop.f32.mrb[0].mxu0
      %v736 = vadd.f32 0.0, %v735
      %737 = vmatprep.mubr.bf16.mxu0 0
      %738 = vmatmul.mubr.bf16.gmra.mrb[0].mxu0 %v467
      %v739 = vpop.f32.mrb[0].mxu0
      %v740 = vadd.f32 0.0, %v739
      %v741 = vpop.f32.mrb[0].mxu0
      %v742 = vadd.f32 0.0, %v741
      %v743 = vpop.f32.mrb[0].mxu0
      %v744 = vadd.f32 0.0, %v743
      %v745 = vpop.f32.mrb[0].mxu0
      %v746 = vadd.f32 0.0, %v745
      %747 = vmatprep.mubr.bf16.mxu0 0
      %748 = vmatmul.mubr.bf16.gmra.mrb[0].mxu0 %v468
      %v749 = vpop.f32.mrb[0].mxu0
      %v750 = vadd.f32 0.0, %v749
      %v751 = vpop.f32.mrb[0].mxu0
      %v752 = vadd.f32 0.0, %v751
      %v753 = vpop.f32.mrb[0].mxu0
      %v754 = vadd.f32 0.0, %v753
      %v755 = vpop.f32.mrb[0].mxu0
      %v756 = vadd.f32 0.0, %v755
      %757 = vdwg.mxu0
      %v758 = vadd.f32 %v600, %v604
      %v759 = vadd.f32 %v758, %v610
      %v760 = vadd.f32 %v759, %v614
      %v761 = vadd.f32 %v760, %v620
      %v762 = vadd.f32 %v761, %v624
      %v763 = vadd.f32 %v762, %v630
      %v764 = vadd.f32 %v763, %v634
      %v765 = vadd.f32 %v764, %v640
      %v766 = vadd.f32 %v765, %v644
      %v767 = vadd.f32 %v766, %v650
      %v768 = vadd.f32 %v767, %v654
      %v769 = vadd.f32 %v768, %v660
      %v770 = vadd.f32 %v769, %v664
      %v771 = vadd.f32 %v770, %v670
      %v772 = vadd.f32 %v771, %v674
      %v773 = vadd.f32 %v772, %v680
      %v774 = vadd.f32 %v773, %v684
      %v775 = vadd.f32 %v774, %v690
      %v776 = vadd.f32 %v775, %v694
      %v777 = vadd.f32 %v776, %v700
      %v778 = vadd.f32 %v777, %v704
      %v779 = vadd.f32 %v778, %v710
      %v780 = vadd.f32 %v779, %v714
      %v781 = vadd.f32 %v780, %v720
      %v782 = vadd.f32 %v781, %v724
      %v783 = vadd.f32 %v782, %v730
      %v784 = vadd.f32 %v783, %v734
      %v785 = vadd.f32 %v784, %v740
      %v786 = vadd.f32 %v785, %v744
      %v787 = vadd.f32 %v786, %v750
      %v788 = vadd.f32 %v787, %v754
      %v789 = vrot.slane %v788, 4
      %v790 = vadd.f32 %v788, %v789
      %v791 = vrot.slane %v790, 2
      %v792 = vadd.f32 %v790, %v791
      %v793 = vrot.slane %v792, 1
      %v794 = vadd.f32 %v792, %v793
      %v795 = vadd.f32 %v602, %v606
      %v796 = vadd.f32 %v795, %v612
      %v797 = vadd.f32 %v796, %v616
      %v798 = vadd.f32 %v797, %v622
      %v799 = vadd.f32 %v798, %v626
      %v800 = vadd.f32 %v799, %v632
      %v801 = vadd.f32 %v800, %v636
      %v802 = vadd.f32 %v801, %v642
      %v803 = vadd.f32 %v802, %v646
      %v804 = vadd.f32 %v803, %v652
      %v805 = vadd.f32 %v804, %v656
      %v806 = vadd.f32 %v805, %v662
      %v807 = vadd.f32 %v806, %v666
      %v808 = vadd.f32 %v807, %v672
      %v809 = vadd.f32 %v808, %v676
      %v810 = vadd.f32 %v809, %v682
      %v811 = vadd.f32 %v810, %v686
      %v812 = vadd.f32 %v811, %v692
      %v813 = vadd.f32 %v812, %v696
      %v814 = vadd.f32 %v813, %v702
      %v815 = vadd.f32 %v814, %v706
      %v816 = vadd.f32 %v815, %v712
      %v817 = vadd.f32 %v816, %v716
      %v818 = vadd.f32 %v817, %v722
      %v819 = vadd.f32 %v818, %v726
      %v820 = vadd.f32 %v819, %v732
      %v821 = vadd.f32 %v820, %v736
      %v822 = vadd.f32 %v821, %v742
      %v823 = vadd.f32 %v822, %v746
      %v824 = vadd.f32 %v823, %v752
      %v825 = vadd.f32 %v824, %v756
      %v826 = vrot.slane %v825, 4
      %v827 = vadd.f32 %v825, %v826
      %v828 = vrot.slane %v827, 2
      %v829 = vadd.f32 %v827, %v828
      %v830 = vrot.slane %v829, 1
      %v831 = vadd.f32 %v829, %v830
      %v832 = vadd.f32 %v794, 0.0
      %v833 = vadd.f32 %v831, 0.0
      %v834 = vmul.f32 %v600, %v600
      %v835 = vmul.f32 %v602, %v602
      %v836 = vmul.f32 %v604, %v604
      %v837 = vmul.f32 %v606, %v606
      %v838 = vmul.f32 %v610, %v610
      %v839 = vmul.f32 %v612, %v612
      %v840 = vmul.f32 %v614, %v614
      %v841 = vmul.f32 %v616, %v616
      %v842 = vmul.f32 %v620, %v620
      %v843 = vmul.f32 %v622, %v622
      %v844 = vmul.f32 %v624, %v624
      %v845 = vmul.f32 %v626, %v626
      %v846 = vmul.f32 %v630, %v630
      %v847 = vmul.f32 %v632, %v632
      %v848 = vmul.f32 %v634, %v634
      %v849 = vmul.f32 %v636, %v636
      %v850 = vmul.f32 %v640, %v640
      %v851 = vmul.f32 %v642, %v642
      %v852 = vmul.f32 %v644, %v644
      %v853 = vmul.f32 %v646, %v646
      %v854 = vmul.f32 %v650, %v650
      %v855 = vmul.f32 %v652, %v652
      %v856 = vmul.f32 %v654, %v654
      %v857 = vmul.f32 %v656, %v656
      %v858 = vmul.f32 %v660, %v660
      %v859 = vmul.f32 %v662, %v662
      %v860 = vmul.f32 %v664, %v664
      %v861 = vmul.f32 %v666, %v666
      %v862 = vmul.f32 %v670, %v670
      %v863 = vmul.f32 %v672, %v672
      %v864 = vmul.f32 %v674, %v674
      %v865 = vmul.f32 %v676, %v676
      %v866 = vmul.f32 %v680, %v680
      %v867 = vmul.f32 %v682, %v682
      %v868 = vmul.f32 %v684, %v684
      %v869 = vmul.f32 %v686, %v686
      %v870 = vmul.f32 %v690, %v690
      %v871 = vmul.f32 %v692, %v692
      %v872 = vmul.f32 %v694, %v694
      %v873 = vmul.f32 %v696, %v696
      %v874 = vmul.f32 %v700, %v700
      %v875 = vmul.f32 %v702, %v702
      %v876 = vmul.f32 %v704, %v704
      %v877 = vmul.f32 %v706, %v706
      %v878 = vmul.f32 %v710, %v710
      %v879 = vmul.f32 %v712, %v712
      %v880 = vmul.f32 %v714, %v714
      %v881 = vmul.f32 %v716, %v716
      %v882 = vmul.f32 %v720, %v720
      %v883 = vmul.f32 %v722, %v722
      %v884 = vmul.f32 %v724, %v724
      %v885 = vmul.f32 %v726, %v726
      %v886 = vmul.f32 %v730, %v730
      %v887 = vmul.f32 %v732, %v732
      %v888 = vmul.f32 %v734, %v734
      %v889 = vmul.f32 %v736, %v736
      %v890 = vmul.f32 %v740, %v740
      %v891 = vmul.f32 %v742, %v742
      %v892 = vmul.f32 %v744, %v744
      %v893 = vmul.f32 %v746, %v746
      %v894 = vmul.f32 %v750, %v750
      %v895 = vmul.f32 %v752, %v752
      %v896 = vmul.f32 %v754, %v754
      %v897 = vmul.f32 %v756, %v756
      %v898 = vadd.f32 %v834, %v836
      %v899 = vadd.f32 %v898, %v838
      %v900 = vadd.f32 %v899, %v840
      %v901 = vadd.f32 %v900, %v842
      %v902 = vadd.f32 %v901, %v844
      %v903 = vadd.f32 %v902, %v846
      %v904 = vadd.f32 %v903, %v848
      %v905 = vadd.f32 %v904, %v850
      %v906 = vadd.f32 %v905, %v852
      %v907 = vadd.f32 %v906, %v854
      %v908 = vadd.f32 %v907, %v856
      %v909 = vadd.f32 %v908, %v858
      %v910 = vadd.f32 %v909, %v860
      %v911 = vadd.f32 %v910, %v862
      %v912 = vadd.f32 %v911, %v864
      %v913 = vadd.f32 %v912, %v866
      %v914 = vadd.f32 %v913, %v868
      %v915 = vadd.f32 %v914, %v870
      %v916 = vadd.f32 %v915, %v872
      %v917 = vadd.f32 %v916, %v874
      %v918 = vadd.f32 %v917, %v876
      %v919 = vadd.f32 %v918, %v878
      %v920 = vadd.f32 %v919, %v880
      %v921 = vadd.f32 %v920, %v882
      %v922 = vadd.f32 %v921, %v884
      %v923 = vadd.f32 %v922, %v886
      %v924 = vadd.f32 %v923, %v888
      %v925 = vadd.f32 %v924, %v890
      %v926 = vadd.f32 %v925, %v892
      %v927 = vadd.f32 %v926, %v894
      %v928 = vadd.f32 %v927, %v896
      %v929 = vrot.slane %v928, 4
      %v930 = vadd.f32 %v928, %v929
      %v931 = vrot.slane %v930, 2
      %v932 = vadd.f32 %v930, %v931
      %v933 = vrot.slane %v932, 1
      %v934 = vadd.f32 %v932, %v933
      %v935 = vadd.f32 %v835, %v837
      %v936 = vadd.f32 %v935, %v839
      %v937 = vadd.f32 %v936, %v841
      %v938 = vadd.f32 %v937, %v843
      %v939 = vadd.f32 %v938, %v845
      %v940 = vadd.f32 %v939, %v847
      %v941 = vadd.f32 %v940, %v849
      %v942 = vadd.f32 %v941, %v851
      %v943 = vadd.f32 %v942, %v853
      %v944 = vadd.f32 %v943, %v855
      %v945 = vadd.f32 %v944, %v857
      %v946 = vadd.f32 %v945, %v859
      %v947 = vadd.f32 %v946, %v861
      %v948 = vadd.f32 %v947, %v863
      %v949 = vadd.f32 %v948, %v865
      %v950 = vadd.f32 %v949, %v867
      %v951 = vadd.f32 %v950, %v869
      %v952 = vadd.f32 %v951, %v871
      %v953 = vadd.f32 %v952, %v873
      %v954 = vadd.f32 %v953, %v875
      %v955 = vadd.f32 %v954, %v877
      %v956 = vadd.f32 %v955, %v879
      %v957 = vadd.f32 %v956, %v881
      %v958 = vadd.f32 %v957, %v883
      %v959 = vadd.f32 %v958, %v885
      %v960 = vadd.f32 %v959, %v887
      %v961 = vadd.f32 %v960, %v889
      %v962 = vadd.f32 %v961, %v891
      %v963 = vadd.f32 %v962, %v893
      %v964 = vadd.f32 %v963, %v895
      %v965 = vadd.f32 %v964, %v897
      %v966 = vrot.slane %v965, 4
      %v967 = vadd.f32 %v965, %v966
      %v968 = vrot.slane %v967, 2
      %v969 = vadd.f32 %v967, %v968
      %v970 = vrot.slane %v969, 1
      %v971 = vadd.f32 %v969, %v970
      %v972 = vadd.f32 %v934, 0.0
      %v973 = vadd.f32 %v971, 0.0
      %v974 = vpack.c.bf16 %v604, %v600
      %v975 = vpack.c.bf16 %v606, %v602
      %v978 = vunpack.c.l.b16 %v974
      %v979 = vunpack.c.l.b16 %v975
      %v980 = vunpack.c.h.b16 %v974
      %v981 = vunpack.c.h.b16 %v975
      %v982 = vpack.c.b16 %v979, %v978
      %v983 = vpack.c.b16 %v981, %v980
      %986 = vst [vmem:[%s268] sm:$0xff] %v982
      %987 = vst [vmem:[%s268 + $0x8] sm:$0xff] %v983
      %v988 = vpack.c.bf16 %v614, %v610
      %v989 = vpack.c.bf16 %v616, %v612
      %v992 = vunpack.c.l.b16 %v988
      %v993 = vunpack.c.l.b16 %v989
      %v994 = vunpack.c.h.b16 %v988
      %v995 = vunpack.c.h.b16 %v989
      %v996 = vpack.c.b16 %v993, %v992
      %v997 = vpack.c.b16 %v995, %v994
      %s1000 = scalar_lea.vmem %s268, 32
      %1001 = vst [vmem:[%s1000] sm:$0xff] %v996
      %1002 = vst [vmem:[%s1000 + $0x8] sm:$0xff] %v997
      %v1003 = vpack.c.bf16 %v624, %v620
      %v1004 = vpack.c.bf16 %v626, %v622
      %v1007 = vunpack.c.l.b16 %v1003
      %v1008 = vunpack.c.l.b16 %v1004
      %v1009 = vunpack.c.h.b16 %v1003
      %v1010 = vunpack.c.h.b16 %v1004
      %v1011 = vpack.c.b16 %v1008, %v1007
      %v1012 = vpack.c.b16 %v1010, %v1009
      %s1015 = scalar_lea.vmem %s268, 64
      %1016 = vst [vmem:[%s1015] sm:$0xff] %v1011
      %1017 = vst [vmem:[%s1015 + $0x8] sm:$0xff] %v1012
      %v1018 = vpack.c.bf16 %v634, %v630
      %v1019 = vpack.c.bf16 %v636, %v632
      %v1022 = vunpack.c.l.b16 %v1018
      %v1023 = vunpack.c.l.b16 %v1019
      %v1024 = vunpack.c.h.b16 %v1018
      %v1025 = vunpack.c.h.b16 %v1019
      %v1026 = vpack.c.b16 %v1023, %v1022
      %v1027 = vpack.c.b16 %v1025, %v1024
      %s1030 = scalar_lea.vmem %s268, 96
      %1031 = vst [vmem:[%s1030] sm:$0xff] %v1026
      %1032 = vst [vmem:[%s1030 + $0x8] sm:$0xff] %v1027
      %v1033 = vpack.c.bf16 %v644, %v640
      %v1034 = vpack.c.bf16 %v646, %v642
      %v1037 = vunpack.c.l.b16 %v1033
      %v1038 = vunpack.c.l.b16 %v1034
      %v1039 = vunpack.c.h.b16 %v1033
      %v1040 = vunpack.c.h.b16 %v1034
      %v1041 = vpack.c.b16 %v1038, %v1037
      %v1042 = vpack.c.b16 %v1040, %v1039
      %s1045 = scalar_lea.vmem %s268, 128
      %1046 = vst [vmem:[%s1045] sm:$0xff] %v1041
      %1047 = vst [vmem:[%s1045 + $0x8] sm:$0xff] %v1042
      %v1048 = vpack.c.bf16 %v654, %v650
      %v1049 = vpack.c.bf16 %v656, %v652
      %v1052 = vunpack.c.l.b16 %v1048
      %v1053 = vunpack.c.l.b16 %v1049
      %v1054 = vunpack.c.h.b16 %v1048
      %v1055 = vunpack.c.h.b16 %v1049
      %v1056 = vpack.c.b16 %v1053, %v1052
      %v1057 = vpack.c.b16 %v1055, %v1054
      %s1060 = scalar_lea.vmem %s268, 160
      %1061 = vst [vmem:[%s1060] sm:$0xff] %v1056
      %1062 = vst [vmem:[%s1060 + $0x8] sm:$0xff] %v1057
      %v1063 = vpack.c.bf16 %v664, %v660
      %v1064 = vpack.c.bf16 %v666, %v662
      %v1067 = vunpack.c.l.b16 %v1063
      %v1068 = vunpack.c.l.b16 %v1064
      %v1069 = vunpack.c.h.b16 %v1063
      %v1070 = vunpack.c.h.b16 %v1064
      %v1071 = vpack.c.b16 %v1068, %v1067
      %v1072 = vpack.c.b16 %v1070, %v1069
      %s1075 = scalar_lea.vmem %s268, 192
      %1076 = vst [vmem:[%s1075] sm:$0xff] %v1071
      %1077 = vst [vmem:[%s1075 + $0x8] sm:$0xff] %v1072
      %v1078 = vpack.c.bf16 %v674, %v670
      %v1079 = vpack.c.bf16 %v676, %v672
      %v1082 = vunpack.c.l.b16 %v1078
      %v1083 = vunpack.c.l.b16 %v1079
      %v1084 = vunpack.c.h.b16 %v1078
      %v1085 = vunpack.c.h.b16 %v1079
      %v1086 = vpack.c.b16 %v1083, %v1082
      %v1087 = vpack.c.b16 %v1085, %v1084
      %s1090 = scalar_lea.vmem %s268, 224
      %1091 = vst [vmem:[%s1090] sm:$0xff] %v1086
      %1092 = vst [vmem:[%s1090 + $0x8] sm:$0xff] %v1087
      %v1093 = vpack.c.bf16 %v684, %v680
      %v1094 = vpack.c.bf16 %v686, %v682
      %v1097 = vunpack.c.l.b16 %v1093
      %v1098 = vunpack.c.l.b16 %v1094
      %v1099 = vunpack.c.h.b16 %v1093
      %v1100 = vunpack.c.h.b16 %v1094
      %v1101 = vpack.c.b16 %v1098, %v1097
      %v1102 = vpack.c.b16 %v1100, %v1099
      %s1105 = scalar_lea.vmem %s268, 256
      %1106 = vst [vmem:[%s1105] sm:$0xff] %v1101
      %1107 = vst [vmem:[%s1105 + $0x8] sm:$0xff] %v1102
      %v1108 = vpack.c.bf16 %v694, %v690
      %v1109 = vpack.c.bf16 %v696, %v692
      %v1112 = vunpack.c.l.b16 %v1108
      %v1113 = vunpack.c.l.b16 %v1109
      %v1114 = vunpack.c.h.b16 %v1108
      %v1115 = vunpack.c.h.b16 %v1109
      %v1116 = vpack.c.b16 %v1113, %v1112
      %v1117 = vpack.c.b16 %v1115, %v1114
      %s1120 = scalar_lea.vmem %s268, 288
      %1121 = vst [vmem:[%s1120] sm:$0xff] %v1116
      %1122 = vst [vmem:[%s1120 + $0x8] sm:$0xff] %v1117
      %v1123 = vpack.c.bf16 %v704, %v700
      %v1124 = vpack.c.bf16 %v706, %v702
      %v1127 = vunpack.c.l.b16 %v1123
      %v1128 = vunpack.c.l.b16 %v1124
      %v1129 = vunpack.c.h.b16 %v1123
      %v1130 = vunpack.c.h.b16 %v1124
      %v1131 = vpack.c.b16 %v1128, %v1127
      %v1132 = vpack.c.b16 %v1130, %v1129
      %s1135 = scalar_lea.vmem %s268, 320
      %1136 = vst [vmem:[%s1135] sm:$0xff] %v1131
      %1137 = vst [vmem:[%s1135 + $0x8] sm:$0xff] %v1132
      %v1138 = vpack.c.bf16 %v714, %v710
      %v1139 = vpack.c.bf16 %v716, %v712
      %v1142 = vunpack.c.l.b16 %v1138
      %v1143 = vunpack.c.l.b16 %v1139
      %v1144 = vunpack.c.h.b16 %v1138
      %v1145 = vunpack.c.h.b16 %v1139
      %v1146 = vpack.c.b16 %v1143, %v1142
      %v1147 = vpack.c.b16 %v1145, %v1144
      %s1150 = scalar_lea.vmem %s268, 352
      %1151 = vst [vmem:[%s1150] sm:$0xff] %v1146
      %1152 = vst [vmem:[%s1150 + $0x8] sm:$0xff] %v1147
      %v1153 = vpack.c.bf16 %v724, %v720
      %v1154 = vpack.c.bf16 %v726, %v722
      %v1157 = vunpack.c.l.b16 %v1153
      %v1158 = vunpack.c.l.b16 %v1154
      %v1159 = vunpack.c.h.b16 %v1153
      %v1160 = vunpack.c.h.b16 %v1154
      %v1161 = vpack.c.b16 %v1158, %v1157
      %v1162 = vpack.c.b16 %v1160, %v1159
      %s1165 = scalar_lea.vmem %s268, 384
      %1166 = vst [vmem:[%s1165] sm:$0xff] %v1161
      %1167 = vst [vmem:[%s1165 + $0x8] sm:$0xff] %v1162
      %v1168 = vpack.c.bf16 %v734, %v730
      %v1169 = vpack.c.bf16 %v736, %v732
      %v1172 = vunpack.c.l.b16 %v1168
      %v1173 = vunpack.c.l.b16 %v1169
      %v1174 = vunpack.c.h.b16 %v1168
      %v1175 = vunpack.c.h.b16 %v1169
      %v1176 = vpack.c.b16 %v1173, %v1172
      %v1177 = vpack.c.b16 %v1175, %v1174
      %s1180 = scalar_lea.vmem %s268, 416
      %1181 = vst [vmem:[%s1180] sm:$0xff] %v1176
      %1182 = vst [vmem:[%s1180 + $0x8] sm:$0xff] %v1177
      %v1183 = vpack.c.bf16 %v744, %v740
      %v1184 = vpack.c.bf16 %v746, %v742
      %v1187 = vunpack.c.l.b16 %v1183
      %v1188 = vunpack.c.l.b16 %v1184
      %v1189 = vunpack.c.h.b16 %v1183
      %v1190 = vunpack.c.h.b16 %v1184
      %v1191 = vpack.c.b16 %v1188, %v1187
      %v1192 = vpack.c.b16 %v1190, %v1189
      %s1195 = scalar_lea.vmem %s268, 448
      %1196 = vst [vmem:[%s1195] sm:$0xff] %v1191
      %1197 = vst [vmem:[%s1195 + $0x8] sm:$0xff] %v1192
      %v1198 = vpack.c.bf16 %v754, %v750
      %v1199 = vpack.c.bf16 %v756, %v752
      %v1202 = vunpack.c.l.b16 %v1198
      %v1203 = vunpack.c.l.b16 %v1199
      %v1204 = vunpack.c.h.b16 %v1198
      %v1205 = vunpack.c.h.b16 %v1199
      %v1206 = vpack.c.b16 %v1203, %v1202
      %v1207 = vpack.c.b16 %v1205, %v1204
      %s1210 = scalar_lea.vmem %s268, 480
      %1211 = vst [vmem:[%s1210] sm:$0xff] %v1206
      %1212 = vst [vmem:[%s1210 + $0x8] sm:$0xff] %v1207
      %s1213 = scalar_lea.vmem %s3, 128
      %v1214 = vld [vmem:[%s1213] sm:$0xff]
      %v1215 = vld [vmem:[%s1213 + $0x8] sm:$0xff]
      %v1216 = vld [vmem:[%s1213 + $0x10] sm:$0xff]
      %v1217 = vld [vmem:[%s1213 + $0x18] sm:$0xff]
      %v1218 = vld [vmem:[%s1213 + $0x20] sm:$0xff]
      %v1219 = vld [vmem:[%s1213 + $0x28] sm:$0xff]
      %v1220 = vld [vmem:[%s1213 + $0x30] sm:$0xff]
      %v1221 = vld [vmem:[%s1213 + $0x38] sm:$0xff]
      %v1222 = vld [vmem:[%s1213 + $0x40] sm:$0xff]
      %v1223 = vld [vmem:[%s1213 + $0x48] sm:$0xff]
      %v1224 = vld [vmem:[%s1213 + $0x50] sm:$0xff]
      %v1225 = vld [vmem:[%s1213 + $0x58] sm:$0xff]
      %v1226 = vld [vmem:[%s1213 + $0x60] sm:$0xff]
      %v1227 = vld [vmem:[%s1213 + $0x68] sm:$0xff]
      %v1228 = vld [vmem:[%s1213 + $0x70] sm:$0xff]
      %v1229 = vld [vmem:[%s1213 + $0x78] sm:$0xff]
      %v1246 = vunpack.c.l.b16 %v1214
      %v1247 = vunpack.c.h.b16 %v1214
      %v1248 = vunpack.c.l.b16 %v1215
      %v1249 = vunpack.c.h.b16 %v1215
      %v1250 = vunpack.c.l.b16 %v1216
      %v1251 = vunpack.c.h.b16 %v1216
      %v1252 = vunpack.c.l.b16 %v1217
      %v1253 = vunpack.c.h.b16 %v1217
      %v1254 = vunpack.c.l.b16 %v1218
      %v1255 = vunpack.c.h.b16 %v1218
      %v1256 = vunpack.c.l.b16 %v1219
      %v1257 = vunpack.c.h.b16 %v1219
      %v1258 = vunpack.c.l.b16 %v1220
      %v1259 = vunpack.c.h.b16 %v1220
      %v1260 = vunpack.c.l.b16 %v1221
      %v1261 = vunpack.c.h.b16 %v1221
      %v1262 = vunpack.c.l.b16 %v1222
      %v1263 = vunpack.c.h.b16 %v1222
      %v1264 = vunpack.c.l.b16 %v1223
      %v1265 = vunpack.c.h.b16 %v1223
      %v1266 = vunpack.c.l.b16 %v1224
      %v1267 = vunpack.c.h.b16 %v1224
      %v1268 = vunpack.c.l.b16 %v1225
      %v1269 = vunpack.c.h.b16 %v1225
      %v1270 = vunpack.c.l.b16 %v1226
      %v1271 = vunpack.c.h.b16 %v1226
      %v1272 = vunpack.c.l.b16 %v1227
      %v1273 = vunpack.c.h.b16 %v1227
      %v1274 = vunpack.c.l.b16 %v1228
      %v1275 = vunpack.c.h.b16 %v1228
      %v1276 = vunpack.c.l.b16 %v1229
      %v1277 = vunpack.c.h.b16 %v1229
      %v1278 = vpack.c.b16 %v1248, %v1246
      %v1279 = vpack.c.b16 %v1249, %v1247
      %v1280 = vpack.c.b16 %v1252, %v1250
      %v1281 = vpack.c.b16 %v1253, %v1251
      %v1282 = vpack.c.b16 %v1256, %v1254
      %v1283 = vpack.c.b16 %v1257, %v1255
      %v1284 = vpack.c.b16 %v1260, %v1258
      %v1285 = vpack.c.b16 %v1261, %v1259
      %v1286 = vpack.c.b16 %v1264, %v1262
      %v1287 = vpack.c.b16 %v1265, %v1263
      %v1288 = vpack.c.b16 %v1268, %v1266
      %v1289 = vpack.c.b16 %v1269, %v1267
      %v1290 = vpack.c.b16 %v1272, %v1270
      %v1291 = vpack.c.b16 %v1273, %v1271
      %v1292 = vpack.c.b16 %v1276, %v1274
      %v1293 = vpack.c.b16 %v1277, %v1275
      %1310 = vmatprep.subr.bf16.mxu0 %v1279
      %1311 = vmatpush1.bf16.msra.mxu0 %v1278
      %1312 = vmatprep.subr.bf16.mxu0 %v1281
      %1313 = vmatpush1.bf16.msra.mxu0 %v1280
      %1314 = vmatprep.subr.bf16.mxu0 %v1283
      %1315 = vmatpush1.bf16.msra.mxu0 %v1282
      %1316 = vmatprep.subr.bf16.mxu0 %v1285
      %1317 = vmatpush1.bf16.msra.mxu0 %v1284
      %1318 = vmatprep.subr.bf16.mxu0 %v1287
      %1319 = vmatpush1.bf16.msra.mxu0 %v1286
      %1320 = vmatprep.subr.bf16.mxu0 %v1289
      %1321 = vmatpush1.bf16.msra.mxu0 %v1288
      %1322 = vmatprep.subr.bf16.mxu0 %v1291
      %1323 = vmatpush1.bf16.msra.mxu0 %v1290
      %1324 = vmatprep.subr.bf16.mxu0 %v1293
      %1325 = vmatpush1.bf16.msra.mxu0 %v1292
      %1326 = vmatprep.subr.bf16.mxu0 0
      %1327 = vmatpush1.bf16.msra.mxu0 0
      %1328 = vmatprep.subr.bf16.mxu0 0
      %1329 = vmatpush1.bf16.msra.mxu0 0
      %1330 = vmatprep.subr.bf16.mxu0 0
      %1331 = vmatpush1.bf16.msra.mxu0 0
      %1332 = vmatprep.subr.bf16.mxu0 0
      %1333 = vmatpush1.bf16.msra.mxu0 0
      %1334 = vmatprep.subr.bf16.mxu0 0
      %1335 = vmatpush1.bf16.msra.mxu0 0
      %1336 = vmatprep.subr.bf16.mxu0 0
      %1337 = vmatpush1.bf16.msra.mxu0 0
      %1338 = vmatprep.subr.bf16.mxu0 0
      %1339 = vmatpush1.bf16.msra.mxu0 0
      %1340 = vmatprep.subr.bf16.mxu0 0
      %1341 = vmatpush1.bf16.msra.mxu0 0
      %1342 = vmatprep.mubr.bf16.mxu0 0
      %1343 = vmatmul.mubr.bf16.gmra.mrb[0].mxu0 %v453
      %v1344 = vpop.f32.mrb[0].mxu0
      %v1345 = vadd.f32 0.0, %v1344
      %v1346 = vpop.f32.mrb[0].mxu0
      %v1347 = vadd.f32 0.0, %v1346
      %v1348 = vpop.f32.mrb[0].mxu0
      %v1349 = vadd.f32 0.0, %v1348
      %v1350 = vpop.f32.mrb[0].mxu0
      %v1351 = vadd.f32 0.0, %v1350
      %1352 = vmatprep.mubr.bf16.mxu0 0
      %1353 = vmatmul.mubr.bf16.gmra.mrb[0].mxu0 %v454
      %v1354 = vpop.f32.mrb[0].mxu0
      %v1355 = vadd.f32 0.0, %v1354
      %v1356 = vpop.f32.mrb[0].mxu0
      %v1357 = vadd.f32 0.0, %v1356
      %v1358 = vpop.f32.mrb[0].mxu0
      %v1359 = vadd.f32 0.0, %v1358
      %v1360 = vpop.f32.mrb[0].mxu0
      %v1361 = vadd.f32 0.0, %v1360
      %1362 = vmatprep.mubr.bf16.mxu0 0
      %1363 = vmatmul.mubr.bf16.gmra.mrb[0].mxu0 %v455
      %v1364 = vpop.f32.mrb[0].mxu0
      %v1365 = vadd.f32 0.0, %v1364
      %v1366 = vpop.f32.mrb[0].mxu0
      %v1367 = vadd.f32 0.0, %v1366
      %v1368 = vpop.f32.mrb[0].mxu0
      %v1369 = vadd.f32 0.0, %v1368
      %v1370 = vpop.f32.mrb[0].mxu0
      %v1371 = vadd.f32 0.0, %v1370
      %1372 = vmatprep.mubr.bf16.mxu0 0
      %1373 = vmatmul.mubr.bf16.gmra.mrb[0].mxu0 %v456
      %v1374 = vpop.f32.mrb[0].mxu0
      %v1375 = vadd.f32 0.0, %v1374
      %v1376 = vpop.f32.mrb[0].mxu0
      %v1377 = vadd.f32 0.0, %v1376
      %v1378 = vpop.f32.mrb[0].mxu0
      %v1379 = vadd.f32 0.0, %v1378
      %v1380 = vpop.f32.mrb[0].mxu0
      %v1381 = vadd.f32 0.0, %v1380
      %1382 = vmatprep.mubr.bf16.mxu0 0
      %1383 = vmatmul.mubr.bf16.gmra.mrb[0].mxu0 %v457
      %v1384 = vpop.f32.mrb[0].mxu0
      %v1385 = vadd.f32 0.0, %v1384
      %v1386 = vpop.f32.mrb[0].mxu0
      %v1387 = vadd.f32 0.0, %v1386
      %v1388 = vpop.f32.mrb[0].mxu0
      %v1389 = vadd.f32 0.0, %v1388
      %v1390 = vpop.f32.mrb[0].mxu0
      %v1391 = vadd.f32 0.0, %v1390
      %1392 = vmatprep.mubr.bf16.mxu0 0
      %1393 = vmatmul.mubr.bf16.gmra.mrb[0].mxu0 %v458
      %v1394 = vpop.f32.mrb[0].mxu0
      %v1395 = vadd.f32 0.0, %v1394
      %v1396 = vpop.f32.mrb[0].mxu0
      %v1397 = vadd.f32 0.0, %v1396
      %v1398 = vpop.f32.mrb[0].mxu0
      %v1399 = vadd.f32 0.0, %v1398
      %v1400 = vpop.f32.mrb[0].mxu0
      %v1401 = vadd.f32 0.0, %v1400
      %1402 = vmatprep.mubr.bf16.mxu0 0
      %1403 = vmatmul.mubr.bf16.gmra.mrb[0].mxu0 %v459
      %v1404 = vpop.f32.mrb[0].mxu0
      %v1405 = vadd.f32 0.0, %v1404
      %v1406 = vpop.f32.mrb[0].mxu0
      %v1407 = vadd.f32 0.0, %v1406
      %v1408 = vpop.f32.mrb[0].mxu0
      %v1409 = vadd.f32 0.0, %v1408
      %v1410 = vpop.f32.mrb[0].mxu0
      %v1411 = vadd.f32 0.0, %v1410
      %1412 = vmatprep.mubr.bf16.mxu0 0
      %1413 = vmatmul.mubr.bf16.gmra.mrb[0].mxu0 %v460
      %v1414 = vpop.f32.mrb[0].mxu0
      %v1415 = vadd.f32 0.0, %v1414
      %v1416 = vpop.f32.mrb[0].mxu0
      %v1417 = vadd.f32 0.0, %v1416
      %v1418 = vpop.f32.mrb[0].mxu0
      %v1419 = vadd.f32 0.0, %v1418
      %v1420 = vpop.f32.mrb[0].mxu0
      %v1421 = vadd.f32 0.0, %v1420
      %1422 = vmatprep.mubr.bf16.mxu0 0
      %1423 = vmatmul.mubr.bf16.gmra.mrb[0].mxu0 %v461
      %v1424 = vpop.f32.mrb[0].mxu0
      %v1425 = vadd.f32 0.0, %v1424
      %v1426 = vpop.f32.mrb[0].mxu0
      %v1427 = vadd.f32 0.0, %v1426
      %v1428 = vpop.f32.mrb[0].mxu0
      %v1429 = vadd.f32 0.0, %v1428
      %v1430 = vpop.f32.mrb[0].mxu0
      %v1431 = vadd.f32 0.0, %v1430
      %1432 = vmatprep.mubr.bf16.mxu0 0
      %1433 = vmatmul.mubr.bf16.gmra.mrb[0].mxu0 %v462
      %v1434 = vpop.f32.mrb[0].mxu0
      %v1435 = vadd.f32 0.0, %v1434
      %v1436 = vpop.f32.mrb[0].mxu0
      %v1437 = vadd.f32 0.0, %v1436
      %v1438 = vpop.f32.mrb[0].mxu0
      %v1439 = vadd.f32 0.0, %v1438
      %v1440 = vpop.f32.mrb[0].mxu0
      %v1441 = vadd.f32 0.0, %v1440
      %1442 = vmatprep.mubr.bf16.mxu0 0
      %1443 = vmatmul.mubr.bf16.gmra.mrb[0].mxu0 %v463
      %v1444 = vpop.f32.mrb[0].mxu0
      %v1445 = vadd.f32 0.0, %v1444
      %v1446 = vpop.f32.mrb[0].mxu0
      %v1447 = vadd.f32 0.0, %v1446
      %v1448 = vpop.f32.mrb[0].mxu0
      %v1449 = vadd.f32 0.0, %v1448
      %v1450 = vpop.f32.mrb[0].mxu0
      %v1451 = vadd.f32 0.0, %v1450
      %1452 = vmatprep.mubr.bf16.mxu0 0
      %1453 = vmatmul.mubr.bf16.gmra.mrb[0].mxu0 %v464
      %v1454 = vpop.f32.mrb[0].mxu0
      %v1455 = vadd.f32 0.0, %v1454
      %v1456 = vpop.f32.mrb[0].mxu0
      %v1457 = vadd.f32 0.0, %v1456
      %v1458 = vpop.f32.mrb[0].mxu0
      %v1459 = vadd.f32 0.0, %v1458
      %v1460 = vpop.f32.mrb[0].mxu0
      %v1461 = vadd.f32 0.0, %v1460
      %1462 = vmatprep.mubr.bf16.mxu0 0
      %1463 = vmatmul.mubr.bf16.gmra.mrb[0].mxu0 %v465
      %v1464 = vpop.f32.mrb[0].mxu0
      %v1465 = vadd.f32 0.0, %v1464
      %v1466 = vpop.f32.mrb[0].mxu0
      %v1467 = vadd.f32 0.0, %v1466
      %v1468 = vpop.f32.mrb[0].mxu0
      %v1469 = vadd.f32 0.0, %v1468
      %v1470 = vpop.f32.mrb[0].mxu0
      %v1471 = vadd.f32 0.0, %v1470
      %1472 = vmatprep.mubr.bf16.mxu0 0
      %1473 = vmatmul.mubr.bf16.gmra.mrb[0].mxu0 %v466
      %v1474 = vpop.f32.mrb[0].mxu0
      %v1475 = vadd.f32 0.0, %v1474
      %v1476 = vpop.f32.mrb[0].mxu0
      %v1477 = vadd.f32 0.0, %v1476
      %v1478 = vpop.f32.mrb[0].mxu0
      %v1479 = vadd.f32 0.0, %v1478
      %v1480 = vpop.f32.mrb[0].mxu0
      %v1481 = vadd.f32 0.0, %v1480
      %1482 = vmatprep.mubr.bf16.mxu0 0
      %1483 = vmatmul.mubr.bf16.gmra.mrb[0].mxu0 %v467
      %v1484 = vpop.f32.mrb[0].mxu0
      %v1485 = vadd.f32 0.0, %v1484
      %v1486 = vpop.f32.mrb[0].mxu0
      %v1487 = vadd.f32 0.0, %v1486
      %v1488 = vpop.f32.mrb[0].mxu0
      %v1489 = vadd.f32 0.0, %v1488
      %v1490 = vpop.f32.mrb[0].mxu0
      %v1491 = vadd.f32 0.0, %v1490
      %1492 = vmatprep.mubr.bf16.mxu0 0
      %1493 = vmatmul.mubr.bf16.gmra.mrb[0].mxu0 %v468
      %v1494 = vpop.f32.mrb[0].mxu0
      %v1495 = vadd.f32 0.0, %v1494
      %v1496 = vpop.f32.mrb[0].mxu0
      %v1497 = vadd.f32 0.0, %v1496
      %v1498 = vpop.f32.mrb[0].mxu0
      %v1499 = vadd.f32 0.0, %v1498
      %v1500 = vpop.f32.mrb[0].mxu0
      %v1501 = vadd.f32 0.0, %v1500
      %1502 = vdwg.mxu0
      %v1503 = vadd.f32 %v1345, %v1349
      %v1504 = vadd.f32 %v1503, %v1355
      %v1505 = vadd.f32 %v1504, %v1359
      %v1506 = vadd.f32 %v1505, %v1365
      %v1507 = vadd.f32 %v1506, %v1369
      %v1508 = vadd.f32 %v1507, %v1375
      %v1509 = vadd.f32 %v1508, %v1379
      %v1510 = vadd.f32 %v1509, %v1385
      %v1511 = vadd.f32 %v1510, %v1389
      %v1512 = vadd.f32 %v1511, %v1395
      %v1513 = vadd.f32 %v1512, %v1399
      %v1514 = vadd.f32 %v1513, %v1405
      %v1515 = vadd.f32 %v1514, %v1409
      %v1516 = vadd.f32 %v1515, %v1415
      %v1517 = vadd.f32 %v1516, %v1419
      %v1518 = vadd.f32 %v1517, %v1425
      %v1519 = vadd.f32 %v1518, %v1429
      %v1520 = vadd.f32 %v1519, %v1435
      %v1521 = vadd.f32 %v1520, %v1439
      %v1522 = vadd.f32 %v1521, %v1445
      %v1523 = vadd.f32 %v1522, %v1449
      %v1524 = vadd.f32 %v1523, %v1455
      %v1525 = vadd.f32 %v1524, %v1459
      %v1526 = vadd.f32 %v1525, %v1465
      %v1527 = vadd.f32 %v1526, %v1469
      %v1528 = vadd.f32 %v1527, %v1475
      %v1529 = vadd.f32 %v1528, %v1479
      %v1530 = vadd.f32 %v1529, %v1485
      %v1531 = vadd.f32 %v1530, %v1489
      %v1532 = vadd.f32 %v1531, %v1495
      %v1533 = vadd.f32 %v1532, %v1499
      %v1534 = vrot.slane %v1533, 4
      %v1535 = vadd.f32 %v1533, %v1534
      %v1536 = vrot.slane %v1535, 2
      %v1537 = vadd.f32 %v1535, %v1536
      %v1538 = vrot.slane %v1537, 1
      %v1539 = vadd.f32 %v1537, %v1538
      %v1540 = vadd.f32 %v1347, %v1351
      %v1541 = vadd.f32 %v1540, %v1357
      %v1542 = vadd.f32 %v1541, %v1361
      %v1543 = vadd.f32 %v1542, %v1367
      %v1544 = vadd.f32 %v1543, %v1371
      %v1545 = vadd.f32 %v1544, %v1377
      %v1546 = vadd.f32 %v1545, %v1381
      %v1547 = vadd.f32 %v1546, %v1387
      %v1548 = vadd.f32 %v1547, %v1391
      %v1549 = vadd.f32 %v1548, %v1397
      %v1550 = vadd.f32 %v1549, %v1401
      %v1551 = vadd.f32 %v1550, %v1407
      %v1552 = vadd.f32 %v1551, %v1411
      %v1553 = vadd.f32 %v1552, %v1417
      %v1554 = vadd.f32 %v1553, %v1421
      %v1555 = vadd.f32 %v1554, %v1427
      %v1556 = vadd.f32 %v1555, %v1431
      %v1557 = vadd.f32 %v1556, %v1437
      %v1558 = vadd.f32 %v1557, %v1441
      %v1559 = vadd.f32 %v1558, %v1447
      %v1560 = vadd.f32 %v1559, %v1451
      %v1561 = vadd.f32 %v1560, %v1457
      %v1562 = vadd.f32 %v1561, %v1461
      %v1563 = vadd.f32 %v1562, %v1467
      %v1564 = vadd.f32 %v1563, %v1471
      %v1565 = vadd.f32 %v1564, %v1477
      %v1566 = vadd.f32 %v1565, %v1481
      %v1567 = vadd.f32 %v1566, %v1487
      %v1568 = vadd.f32 %v1567, %v1491
      %v1569 = vadd.f32 %v1568, %v1497
      %v1570 = vadd.f32 %v1569, %v1501
      %v1571 = vrot.slane %v1570, 4
      %v1572 = vadd.f32 %v1570, %v1571
      %v1573 = vrot.slane %v1572, 2
      %v1574 = vadd.f32 %v1572, %v1573
      %v1575 = vrot.slane %v1574, 1
      %v1576 = vadd.f32 %v1574, %v1575
      %v1577 = vadd.f32 %v832, %v1539
      %v1578 = vadd.f32 %v833, %v1576
      %v1579 = vmul.f32 %v1345, %v1345
      %v1580 = vmul.f32 %v1347, %v1347
      %v1581 = vmul.f32 %v1349, %v1349
      %v1582 = vmul.f32 %v1351, %v1351
      %v1583 = vmul.f32 %v1355, %v1355
      %v1584 = vmul.f32 %v1357, %v1357
      %v1585 = vmul.f32 %v1359, %v1359
      %v1586 = vmul.f32 %v1361, %v1361
      %v1587 = vmul.f32 %v1365, %v1365
      %v1588 = vmul.f32 %v1367, %v1367
      %v1589 = vmul.f32 %v1369, %v1369
      %v1590 = vmul.f32 %v1371, %v1371
      %v1591 = vmul.f32 %v1375, %v1375
      %v1592 = vmul.f32 %v1377, %v1377
      %v1593 = vmul.f32 %v1379, %v1379
      %v1594 = vmul.f32 %v1381, %v1381
      %v1595 = vmul.f32 %v1385, %v1385
      %v1596 = vmul.f32 %v1387, %v1387
      %v1597 = vmul.f32 %v1389, %v1389
      %v1598 = vmul.f32 %v1391, %v1391
      %v1599 = vmul.f32 %v1395, %v1395
      %v1600 = vmul.f32 %v1397, %v1397
      %v1601 = vmul.f32 %v1399, %v1399
      %v1602 = vmul.f32 %v1401, %v1401
      %v1603 = vmul.f32 %v1405, %v1405
      %v1604 = vmul.f32 %v1407, %v1407
      %v1605 = vmul.f32 %v1409, %v1409
      %v1606 = vmul.f32 %v1411, %v1411
      %v1607 = vmul.f32 %v1415, %v1415
      %v1608 = vmul.f32 %v1417, %v1417
      %v1609 = vmul.f32 %v1419, %v1419
      %v1610 = vmul.f32 %v1421, %v1421
      %v1611 = vmul.f32 %v1425, %v1425
      %v1612 = vmul.f32 %v1427, %v1427
      %v1613 = vmul.f32 %v1429, %v1429
      %v1614 = vmul.f32 %v1431, %v1431
      %v1615 = vmul.f32 %v1435, %v1435
      %v1616 = vmul.f32 %v1437, %v1437
      %v1617 = vmul.f32 %v1439, %v1439
      %v1618 = vmul.f32 %v1441, %v1441
      %v1619 = vmul.f32 %v1445, %v1445
      %v1620 = vmul.f32 %v1447, %v1447
      %v1621 = vmul.f32 %v1449, %v1449
      %v1622 = vmul.f32 %v1451, %v1451
      %v1623 = vmul.f32 %v1455, %v1455
      %v1624 = vmul.f32 %v1457, %v1457
      %v1625 = vmul.f32 %v1459, %v1459
      %v1626 = vmul.f32 %v1461, %v1461
      %v1627 = vmul.f32 %v1465, %v1465
      %v1628 = vmul.f32 %v1467, %v1467
      %v1629 = vmul.f32 %v1469, %v1469
      %v1630 = vmul.f32 %v1471, %v1471
      %v1631 = vmul.f32 %v1475, %v1475
      %v1632 = vmul.f32 %v1477, %v1477
      %v1633 = vmul.f32 %v1479, %v1479
      %v1634 = vmul.f32 %v1481, %v1481
      %v1635 = vmul.f32 %v1485, %v1485
      %v1636 = vmul.f32 %v1487, %v1487
      %v1637 = vmul.f32 %v1489, %v1489
      %v1638 = vmul.f32 %v1491, %v1491
      %v1639 = vmul.f32 %v1495, %v1495
      %v1640 = vmul.f32 %v1497, %v1497
      %v1641 = vmul.f32 %v1499, %v1499
      %v1642 = vmul.f32 %v1501, %v1501
      %v1643 = vadd.f32 %v1579, %v1581
      %v1644 = vadd.f32 %v1643, %v1583
      %v1645 = vadd.f32 %v1644, %v1585
      %v1646 = vadd.f32 %v1645, %v1587
      %v1647 = vadd.f32 %v1646, %v1589
      %v1648 = vadd.f32 %v1647, %v1591
      %v1649 = vadd.f32 %v1648, %v1593
      %v1650 = vadd.f32 %v1649, %v1595
      %v1651 = vadd.f32 %v1650, %v1597
      %v1652 = vadd.f32 %v1651, %v1599
      %v1653 = vadd.f32 %v1652, %v1601
      %v1654 = vadd.f32 %v1653, %v1603
      %v1655 = vadd.f32 %v1654, %v1605
      %v1656 = vadd.f32 %v1655, %v1607
      %v1657 = vadd.f32 %v1656, %v1609
      %v1658 = vadd.f32 %v1657, %v1611
      %v1659 = vadd.f32 %v1658, %v1613
      %v1660 = vadd.f32 %v1659, %v1615
      %v1661 = vadd.f32 %v1660, %v1617
      %v1662 = vadd.f32 %v1661, %v1619
      %v1663 = vadd.f32 %v1662, %v1621
      %v1664 = vadd.f32 %v1663, %v1623
      %v1665 = vadd.f32 %v1664, %v1625
      %v1666 = vadd.f32 %v1665, %v1627
      %v1667 = vadd.f32 %v1666, %v1629
      %v1668 = vadd.f32 %v1667, %v1631
      %v1669 = vadd.f32 %v1668, %v1633
      %v1670 = vadd.f32 %v1669, %v1635
      %v1671 = vadd.f32 %v1670, %v1637
      %v1672 = vadd.f32 %v1671, %v1639
      %v1673 = vadd.f32 %v1672, %v1641
      %v1674 = vrot.slane %v1673, 4
      %v1675 = vadd.f32 %v1673, %v1674
      %v1676 = vrot.slane %v1675, 2
      %v1677 = vadd.f32 %v1675, %v1676
      %v1678 = vrot.slane %v1677, 1
      %v1679 = vadd.f32 %v1677, %v1678
      %v1680 = vadd.f32 %v1580, %v1582
      %v1681 = vadd.f32 %v1680, %v1584
      %v1682 = vadd.f32 %v1681, %v1586
      %v1683 = vadd.f32 %v1682, %v1588
      %v1684 = vadd.f32 %v1683, %v1590
      %v1685 = vadd.f32 %v1684, %v1592
      %v1686 = vadd.f32 %v1685, %v1594
      %v1687 = vadd.f32 %v1686, %v1596
      %v1688 = vadd.f32 %v1687, %v1598
      %v1689 = vadd.f32 %v1688, %v1600
      %v1690 = vadd.f32 %v1689, %v1602
      %v1691 = vadd.f32 %v1690, %v1604
      %v1692 = vadd.f32 %v1691, %v1606
      %v1693 = vadd.f32 %v1692, %v1608
      %v1694 = vadd.f32 %v1693, %v1610
      %v1695 = vadd.f32 %v1694, %v1612
      %v1696 = vadd.f32 %v1695, %v1614
      %v1697 = vadd.f32 %v1696, %v1616
      %v1698 = vadd.f32 %v1697, %v1618
      %v1699 = vadd.f32 %v1698, %v1620
      %v1700 = vadd.f32 %v1699, %v1622
      %v1701 = vadd.f32 %v1700, %v1624
      %v1702 = vadd.f32 %v1701, %v1626
      %v1703 = vadd.f32 %v1702, %v1628
      %v1704 = vadd.f32 %v1703, %v1630
      %v1705 = vadd.f32 %v1704, %v1632
      %v1706 = vadd.f32 %v1705, %v1634
      %v1707 = vadd.f32 %v1706, %v1636
      %v1708 = vadd.f32 %v1707, %v1638
      %v1709 = vadd.f32 %v1708, %v1640
      %v1710 = vadd.f32 %v1709, %v1642
      %v1711 = vrot.slane %v1710, 4
      %v1712 = vadd.f32 %v1710, %v1711
      %v1713 = vrot.slane %v1712, 2
      %v1714 = vadd.f32 %v1712, %v1713
      %v1715 = vrot.slane %v1714, 1
      %v1716 = vadd.f32 %v1714, %v1715
      %v1717 = vadd.f32 %v972, %v1679
      %v1718 = vadd.f32 %v973, %v1716
      %v1719 = vpack.c.bf16 %v1349, %v1345
      %v1720 = vpack.c.bf16 %v1351, %v1347
      %v1723 = vunpack.c.l.b16 %v1719
      %v1724 = vunpack.c.l.b16 %v1720
      %v1725 = vunpack.c.h.b16 %v1719
      %v1726 = vunpack.c.h.b16 %v1720
      %v1727 = vpack.c.b16 %v1724, %v1723
      %v1728 = vpack.c.b16 %v1726, %v1725
      %s1731 = scalar_lea.vmem %s268, 16
      %1732 = vst [vmem:[%s1731] sm:$0xff] %v1727
      %1733 = vst [vmem:[%s1731 + $0x8] sm:$0xff] %v1728
      %v1734 = vpack.c.bf16 %v1359, %v1355
      %v1735 = vpack.c.bf16 %v1361, %v1357
      %v1738 = vunpack.c.l.b16 %v1734
      %v1739 = vunpack.c.l.b16 %v1735
      %v1740 = vunpack.c.h.b16 %v1734
      %v1741 = vunpack.c.h.b16 %v1735
      %v1742 = vpack.c.b16 %v1739, %v1738
      %v1743 = vpack.c.b16 %v1741, %v1740
      %s1746 = scalar_lea.vmem %s268, 48
      %1747 = vst [vmem:[%s1746] sm:$0xff] %v1742
      %1748 = vst [vmem:[%s1746 + $0x8] sm:$0xff] %v1743
      %v1749 = vpack.c.bf16 %v1369, %v1365
      %v1750 = vpack.c.bf16 %v1371, %v1367
      %v1753 = vunpack.c.l.b16 %v1749
      %v1754 = vunpack.c.l.b16 %v1750
      %v1755 = vunpack.c.h.b16 %v1749
      %v1756 = vunpack.c.h.b16 %v1750
      %v1757 = vpack.c.b16 %v1754, %v1753
      %v1758 = vpack.c.b16 %v1756, %v1755
      %s1761 = scalar_lea.vmem %s268, 80
      %1762 = vst [vmem:[%s1761] sm:$0xff] %v1757
      %1763 = vst [vmem:[%s1761 + $0x8] sm:$0xff] %v1758
      %v1764 = vpack.c.bf16 %v1379, %v1375
      %v1765 = vpack.c.bf16 %v1381, %v1377
      %v1768 = vunpack.c.l.b16 %v1764
      %v1769 = vunpack.c.l.b16 %v1765
      %v1770 = vunpack.c.h.b16 %v1764
      %v1771 = vunpack.c.h.b16 %v1765
      %v1772 = vpack.c.b16 %v1769, %v1768
      %v1773 = vpack.c.b16 %v1771, %v1770
      %s1776 = scalar_lea.vmem %s268, 112
      %1777 = vst [vmem:[%s1776] sm:$0xff] %v1772
      %1778 = vst [vmem:[%s1776 + $0x8] sm:$0xff] %v1773
      %v1779 = vpack.c.bf16 %v1389, %v1385
      %v1780 = vpack.c.bf16 %v1391, %v1387
      %v1783 = vunpack.c.l.b16 %v1779
      %v1784 = vunpack.c.l.b16 %v1780
      %v1785 = vunpack.c.h.b16 %v1779
      %v1786 = vunpack.c.h.b16 %v1780
      %v1787 = vpack.c.b16 %v1784, %v1783
      %v1788 = vpack.c.b16 %v1786, %v1785
      %s1791 = scalar_lea.vmem %s268, 144
      %1792 = vst [vmem:[%s1791] sm:$0xff] %v1787
      %1793 = vst [vmem:[%s1791 + $0x8] sm:$0xff] %v1788
      %v1794 = vpack.c.bf16 %v1399, %v1395
      %v1795 = vpack.c.bf16 %v1401, %v1397
      %v1798 = vunpack.c.l.b16 %v1794
      %v1799 = vunpack.c.l.b16 %v1795
      %v1800 = vunpack.c.h.b16 %v1794
      %v1801 = vunpack.c.h.b16 %v1795
      %v1802 = vpack.c.b16 %v1799, %v1798
      %v1803 = vpack.c.b16 %v1801, %v1800
      %s1806 = scalar_lea.vmem %s268, 176
      %1807 = vst [vmem:[%s1806] sm:$0xff] %v1802
      %1808 = vst [vmem:[%s1806 + $0x8] sm:$0xff] %v1803
      %v1809 = vpack.c.bf16 %v1409, %v1405
      %v1810 = vpack.c.bf16 %v1411, %v1407
      %v1813 = vunpack.c.l.b16 %v1809
      %v1814 = vunpack.c.l.b16 %v1810
      %v1815 = vunpack.c.h.b16 %v1809
      %v1816 = vunpack.c.h.b16 %v1810
      %v1817 = vpack.c.b16 %v1814, %v1813
      %v1818 = vpack.c.b16 %v1816, %v1815
      %s1821 = scalar_lea.vmem %s268, 208
      %1822 = vst [vmem:[%s1821] sm:$0xff] %v1817
      %1823 = vst [vmem:[%s1821 + $0x8] sm:$0xff] %v1818
      %v1824 = vpack.c.bf16 %v1419, %v1415
      %v1825 = vpack.c.bf16 %v1421, %v1417
      %v1828 = vunpack.c.l.b16 %v1824
      %v1829 = vunpack.c.l.b16 %v1825
      %v1830 = vunpack.c.h.b16 %v1824
      %v1831 = vunpack.c.h.b16 %v1825
      %v1832 = vpack.c.b16 %v1829, %v1828
      %v1833 = vpack.c.b16 %v1831, %v1830
      %s1836 = scalar_lea.vmem %s268, 240
      %1837 = vst [vmem:[%s1836] sm:$0xff] %v1832
      %1838 = vst [vmem:[%s1836 + $0x8] sm:$0xff] %v1833
      %v1839 = vpack.c.bf16 %v1429, %v1425
      %v1840 = vpack.c.bf16 %v1431, %v1427
      %v1843 = vunpack.c.l.b16 %v1839
      %v1844 = vunpack.c.l.b16 %v1840
      %v1845 = vunpack.c.h.b16 %v1839
      %v1846 = vunpack.c.h.b16 %v1840
      %v1847 = vpack.c.b16 %v1844, %v1843
      %v1848 = vpack.c.b16 %v1846, %v1845
      %s1851 = scalar_lea.vmem %s268, 272
      %1852 = vst [vmem:[%s1851] sm:$0xff] %v1847
      %1853 = vst [vmem:[%s1851 + $0x8] sm:$0xff] %v1848
      %v1854 = vpack.c.bf16 %v1439, %v1435
      %v1855 = vpack.c.bf16 %v1441, %v1437
      %v1858 = vunpack.c.l.b16 %v1854
      %v1859 = vunpack.c.l.b16 %v1855
      %v1860 = vunpack.c.h.b16 %v1854
      %v1861 = vunpack.c.h.b16 %v1855
      %v1862 = vpack.c.b16 %v1859, %v1858
      %v1863 = vpack.c.b16 %v1861, %v1860
      %s1866 = scalar_lea.vmem %s268, 304
      %1867 = vst [vmem:[%s1866] sm:$0xff] %v1862
      %1868 = vst [vmem:[%s1866 + $0x8] sm:$0xff] %v1863
      %v1869 = vpack.c.bf16 %v1449, %v1445
      %v1870 = vpack.c.bf16 %v1451, %v1447
      %v1873 = vunpack.c.l.b16 %v1869
      %v1874 = vunpack.c.l.b16 %v1870
      %v1875 = vunpack.c.h.b16 %v1869
      %v1876 = vunpack.c.h.b16 %v1870
      %v1877 = vpack.c.b16 %v1874, %v1873
      %v1878 = vpack.c.b16 %v1876, %v1875
      %s1881 = scalar_lea.vmem %s268, 336
      %1882 = vst [vmem:[%s1881] sm:$0xff] %v1877
      %1883 = vst [vmem:[%s1881 + $0x8] sm:$0xff] %v1878
      %v1884 = vpack.c.bf16 %v1459, %v1455
      %v1885 = vpack.c.bf16 %v1461, %v1457
      %v1888 = vunpack.c.l.b16 %v1884
      %v1889 = vunpack.c.l.b16 %v1885
      %v1890 = vunpack.c.h.b16 %v1884
      %v1891 = vunpack.c.h.b16 %v1885
      %v1892 = vpack.c.b16 %v1889, %v1888
      %v1893 = vpack.c.b16 %v1891, %v1890
      %s1896 = scalar_lea.vmem %s268, 368
      %1897 = vst [vmem:[%s1896] sm:$0xff] %v1892
      %1898 = vst [vmem:[%s1896 + $0x8] sm:$0xff] %v1893
      %v1899 = vpack.c.bf16 %v1469, %v1465
      %v1900 = vpack.c.bf16 %v1471, %v1467
      %v1903 = vunpack.c.l.b16 %v1899
      %v1904 = vunpack.c.l.b16 %v1900
      %v1905 = vunpack.c.h.b16 %v1899
      %v1906 = vunpack.c.h.b16 %v1900
      %v1907 = vpack.c.b16 %v1904, %v1903
      %v1908 = vpack.c.b16 %v1906, %v1905
      %s1911 = scalar_lea.vmem %s268, 400
      %1912 = vst [vmem:[%s1911] sm:$0xff] %v1907
      %1913 = vst [vmem:[%s1911 + $0x8] sm:$0xff] %v1908
      %v1914 = vpack.c.bf16 %v1479, %v1475
      %v1915 = vpack.c.bf16 %v1481, %v1477
      %v1918 = vunpack.c.l.b16 %v1914
      %v1919 = vunpack.c.l.b16 %v1915
      %v1920 = vunpack.c.h.b16 %v1914
      %v1921 = vunpack.c.h.b16 %v1915
      %v1922 = vpack.c.b16 %v1919, %v1918
      %v1923 = vpack.c.b16 %v1921, %v1920
      %s1926 = scalar_lea.vmem %s268, 432
      %1927 = vst [vmem:[%s1926] sm:$0xff] %v1922
      %1928 = vst [vmem:[%s1926 + $0x8] sm:$0xff] %v1923
      %v1929 = vpack.c.bf16 %v1489, %v1485
      %v1930 = vpack.c.bf16 %v1491, %v1487
      %v1933 = vunpack.c.l.b16 %v1929
      %v1934 = vunpack.c.l.b16 %v1930
      %v1935 = vunpack.c.h.b16 %v1929
      %v1936 = vunpack.c.h.b16 %v1930
      %v1937 = vpack.c.b16 %v1934, %v1933
      %v1938 = vpack.c.b16 %v1936, %v1935
      %s1941 = scalar_lea.vmem %s268, 464
      %1942 = vst [vmem:[%s1941] sm:$0xff] %v1937
      %1943 = vst [vmem:[%s1941 + $0x8] sm:$0xff] %v1938
      %v1944 = vpack.c.bf16 %v1499, %v1495
      %v1945 = vpack.c.bf16 %v1501, %v1497
      %v1948 = vunpack.c.l.b16 %v1944
      %v1949 = vunpack.c.l.b16 %v1945
      %v1950 = vunpack.c.h.b16 %v1944
      %v1951 = vunpack.c.h.b16 %v1945
      %v1952 = vpack.c.b16 %v1949, %v1948
      %v1953 = vpack.c.b16 %v1951, %v1950
      %s1956 = scalar_lea.vmem %s268, 496
      %1957 = vst [vmem:[%s1956] sm:$0xff] %v1952
      %1958 = vst [vmem:[%s1956 + $0x8] sm:$0xff] %v1953
      %v1961 = vcombine.low %v1577, %v1578
      %v1963 = vunpack.c.l.s4 1966171168
      %v1964 = vunpack.c.0.s8 %v1963
      %v1965 = vlaneseq
      %v1966 = vshrl.u32 %v1965, 7
      %v1967 = vsub.s32 %v1964, %v1966
      %v1968 = vrot.slane %v1961, %v1967
      %v1970 = vunpack.c.l.s4 1966171168
      %v1971 = vunpack.c.0.s8 %v1970
      %v1972 = vlaneseq
      %v1973 = vshrl.u32 %v1972, 7
      %v1974 = vsub.s32 %v1971, %v1973
      %v1975 = vrot.slane %v1968, %v1974
      %v1977 = vlaneseq
      %vm1978 = vcmp.ge.s32.totalorder %v1977, 0
      %vm1979 = vcmp.lt.s32.totalorder %v1977, 256
      %vm1980 = vmand %vm1978, %vm1979
      %1981 = vst.msk [vmem:[%s273] sm:$0x3] %vm1980, %v1975
      %v1984 = vcombine.low %v1717, %v1718
      %v1986 = vunpack.c.l.s4 1966171168
      %v1987 = vunpack.c.0.s8 %v1986
      %v1988 = vlaneseq
      %v1989 = vshrl.u32 %v1988, 7
      %v1990 = vsub.s32 %v1987, %v1989
      %v1991 = vrot.slane %v1984, %v1990
      %v1993 = vunpack.c.l.s4 1966171168
      %v1994 = vunpack.c.0.s8 %v1993
      %v1995 = vlaneseq
      %v1996 = vshrl.u32 %v1995, 7
      %v1997 = vsub.s32 %v1994, %v1996
      %v1998 = vrot.slane %v1991, %v1997
      %2000 = vst.msk [vmem:[%s277] sm:$0x3] %vm1980, %v1998
      %s2001 = smul.u32 16, %s18
      %p2002 = scmp.lt.s32.totalorder %s2001, 31
      %s2003 = scalar_select %p2002, %s2001, 31
      %s2004 = smul.addr %s2003, 8
      %s2005 = smul.addr %s2004, 4
      %s2006 = scalar_lea.vmem %s4, %s2005
      %p2007 = scmp.lt.s32.totalorder %s18, 1
      %s2008 = scalar_select %p2007, %s18, 1
      %s2009 = smul.addr %s2008, 2
      %s2010 = scalar_lea.vmem %s5, %s2009
      %p2011 = scmp.lt.s32.totalorder %s18, 1
      %s2012 = scalar_select %p2011, %s18, 1
      %s2013 = smul.addr %s2012, 2
      %s2014 = scalar_lea.vmem %s6, %s2013
      // Predicated region
      $region37: #{up_decoder_forward.6} parent=35 // pred_check
        %p2015 = pneg %p125
      $region38: #{up_decoder_forward.6} parent=35 // pred_check_branch
        %2017 = sbr.rel (%p2015) target = $region40
      $region39: #{up_decoder_forward.6} parent=35 // pred_region
        %s2018 = smul.u32 16, %s18
      $region40: #{up_decoder_forward.6} parent=35 // pred_fallthru
        _
      // Predicated region
      $region41: #{up_decoder_forward.6} parent=35 // pred_check
        %p2019 = pneg %p151
      $region42: #{up_decoder_forward.6} parent=35 // pred_check_branch
        %2021 = sbr.rel (%p2019) target = $region44
      $region43: #{up_decoder_forward.6} parent=35 // pred_region
        _
      $region44: #{up_decoder_forward.6} parent=35 // pred_fallthru
        _
      // Predicated region
      $region45: #{up_decoder_forward.6} parent=35 // pred_check
        %p2022 = pneg %p177
      $region46: #{up_decoder_forward.6} parent=35 // pred_check_branch
        %2024 = sbr.rel (%p2022) target = $region48
      $region47: #{up_decoder_forward.6} parent=35 // pred_region
        _
      $region48: #{up_decoder_forward.6} parent=35 // pred_fallthru
        _
    $region36: #{up_decoder_forward.6} parent=5 // pred_fallthru
      _
    %p2025 = scmp.le.s32.totalorder 2, %s13
    // Predicated region
    $region49: #{up_decoder_forward.6} parent=5 // pred_check
      %p2026 = pneg %p2025
    $region50: #{up_decoder_forward.6} parent=5 // pred_check_branch
      %2028 = sbr.rel (%p2026) target = $region52
    $region51: #{up_decoder_forward.6} parent=5 // pred_region
      %s2029 = ssub.s32 %s13, 2
      // Predicated region
      $region53: #{up_decoder_forward.6} parent=51 // pred_check
        %p2030 = pneg %p131
      $region54: #{up_decoder_forward.6} parent=51 // pred_check_branch
        %2032 = sbr.rel (%p2030) target = $region56
      $region55: #{up_decoder_forward.6} parent=51 // pred_region
        %s2033 = smul.u32 16, %s19
        %p2034 = scmp.lt.s32.totalorder %s2033, 31
        %s2035 = scalar_select %p2034, %s2033, 31
        %s2036 = smul.addr %s2035, 8
        %s2037 = smul.addr %s2036, 4
        %s2038 = scalar_lea.vmem %s4, %s2037
      $region56: #{up_decoder_forward.6} parent=51 // pred_fallthru
        _
      // Predicated region
      $region57: #{up_decoder_forward.6} parent=51 // pred_check
        %p2039 = pneg %p157
      $region58: #{up_decoder_forward.6} parent=51 // pred_check_branch
        %2041 = sbr.rel (%p2039) target = $region60
      $region59: #{up_decoder_forward.6} parent=51 // pred_region
        %p2042 = scmp.lt.s32.totalorder %s19, 1
        %s2043 = scalar_select %p2042, %s19, 1
        %s2044 = smul.addr %s2043, 2
        %s2045 = scalar_lea.vmem %s5, %s2044
      $region60: #{up_decoder_forward.6} parent=51 // pred_fallthru
        _
      // Predicated region
      $region61: #{up_decoder_forward.6} parent=51 // pred_check
        %p2046 = pneg %p183
      $region62: #{up_decoder_forward.6} parent=51 // pred_check_branch
        %2048 = sbr.rel (%p2046) target = $region64
      $region63: #{up_decoder_forward.6} parent=51 // pred_region
        %p2049 = scmp.lt.s32.totalorder %s19, 1
        %s2050 = scalar_select %p2049, %s19, 1
        %s2051 = smul.addr %s2050, 2
        %s2052 = scalar_lea.vmem %s6, %s2051
      $region64: #{up_decoder_forward.6} parent=51 // pred_fallthru
        _
    $region52: #{up_decoder_forward.6} parent=5 // pred_fallthru
      _
  $region6: #{up_decoder_forward.6} parent=0 // loop_footer
    %s17 = sadd.s32 1, %s13
  $region7: #{up_decoder_forward.6} parent=0 // loop_footer_branch
    %12 = sbr.rel target = $region3
  $region8: #{up_decoder_forward.6} parent=0 // loop_exit
    _

</llo_original>
